<compile_context>
chip_gen: v6e
topology: v6e:2x2x1
jax: 0.10.0
libtpu: 0.0.40
codegen_flags: <defaults>
</compile_context>

<pallas_src>
import functools

import jax
import jax.numpy as jnp
from jax.experimental import pallas as pl
from jax.experimental.pallas import tpu as pltpu


# ----------------------------------------------------------------------------
# Static network configuration.
# ----------------------------------------------------------------------------
def _conv_specs(input_dim):
    """(cin, cout, kernel, stride, has_bn_relu) for every conv layer, in order."""
    specs = [
        (1, 16, 5, 2, True),    # conv_1
        (16, 16, 5, 2, True),   # conv_2
        (16, 32, 5, 4, True),   # conv_3
        (32, 32, 3, 2, True),   # conv_4
    ]
    if input_dim in (4096, 8192):
        specs.append((32, 32, 3, 2, True))   # conv_4_2
    if input_dim == 8192:
        specs.append((32, 32, 3, 2, True))   # conv_4_3
    specs += [
        (32, 32, 3, 2, True),   # conv_5
        (32, 16, 3, 1, False),  # conv_6: plain Conv1d, no BN, no ReLU
    ]
    return specs


# ----------------------------------------------------------------------------
# Parameter construction (deterministic, synthetic); eval-mode BN folded in.
# ----------------------------------------------------------------------------
def make_params(input_dim, key):
    eps = 1e-5
    layers = []
    for (cin, cout, k, s, has_bn) in _conv_specs(input_dim):
        key, k1, k2, k3, k4 = jax.random.split(key, 5)
        w = 0.1 * jax.random.normal(k1, (cout, cin, k), jnp.float32)
        b = 0.1 * jax.random.normal(k2, (cout,), jnp.float32)
        if has_bn:
            gamma = 1.0 + 0.1 * jax.random.normal(k3, (cout,), jnp.float32)
            beta = 0.1 * jax.random.normal(k4, (cout,), jnp.float32)
            running_mean = jnp.zeros((cout,), jnp.float32)
            running_var = jnp.ones((cout,), jnp.float32)
            scale = gamma / jnp.sqrt(running_var + eps)
            w = w * scale[:, None, None]
            b = (b - running_mean) * scale + beta
        layers.append(dict(w=w, b=b, cin=cin, cout=cout, k=k, stride=s,
                           pad=k // 2, relu=has_bn))
    return layers


# ----------------------------------------------------------------------------
# Kernel-side inputs: folded weights as (Cout, K*Cin) matrices (bf16 for the
# MXU layers, f32 for the tiny Cin=1 VPU layer), biases as (Cout, 1) f32,
# plus static per-layer dilation offsets for the a-trous evaluation.
# ----------------------------------------------------------------------------
def build_kernel_inputs(input_dim, layers):
    cfgs, flat = [], []
    r = 1
    for lyr in layers:
        cin, cout = lyr["cin"], lyr["cout"]
        K, s, pad = lyr["k"], lyr["stride"], lyr["pad"]
        assert 2 * pad == K - 1, "kernel assumes odd kernels with pad = k // 2"
        assert input_dim % (r * s) == 0
        offsets = [r * (k - pad) for k in range(K)]   # dilated tap offsets
        cfgs.append(dict(cin=cin, cout=cout, k=K, relu=lyr["relu"],
                         offsets=offsets))
        w2 = jnp.transpose(lyr["w"], (0, 2, 1)).reshape(cout, K * cin)
        flat.append(w2.astype(jnp.float32 if cin == 1 else jnp.bfloat16))
        flat.append(lyr["b"].reshape(cout, 1).astype(jnp.float32))
        r *= s
    assert input_dim % (4 * r) == 0
    max_off = max(abs(o) for cfg in cfgs for o in cfg["offsets"])
    maxpad = ((max_off + 127) // 128) * 128   # lane-aligned halo width
    pool_cfg = dict(r=r, window=4, f_out=input_dim // (4 * r))
    return cfgs, pool_cfg, maxpad, flat


# ----------------------------------------------------------------------------
# The fused encoder kernel: `block_b` batch elements per grid step,
# activations in lane-dense (C, L) layout, everything resident on-chip.
# ----------------------------------------------------------------------------
def _encoder_kernel(*refs, cfgs, pool_cfg, maxpad, L0, block_b):
    n_params = 2 * len(cfgs)
    x_ref = refs[0]
    param_refs = refs[1:1 + n_params]
    o_ref = refs[1 + n_params]
    buf = refs[2 + n_params]                     # (32, maxpad + L0 + maxpad) f32

    # Zero the padding halos once per grid step; the interior is rewritten by
    # every layer so the halos stay zero for the whole step.
    rows = buf.shape[0]
    zero_halo = jnp.zeros((rows, maxpad), buf.dtype)
    buf[:, 0:maxpad] = zero_halo
    buf[:, maxpad + L0:maxpad + 2 * maxpad + L0 - maxpad] = zero_halo

    for bi in range(block_b):
        x = x_ref[bi].astype(jnp.float32)        # (1, L0)
        y = None
        pi = 0
        for cfg in cfgs:
            w_ref = param_refs[pi]               # (Cout, K*Cin)
            b_ref = param_refs[pi + 1]           # (Cout, 1) f32
            pi += 2
            cin, cout = cfg["cin"], cfg["cout"]
            offsets = cfg["offsets"]

            # Stage the (full-resolution, dilated) activation into the padded
            # scratch; each tap is then a contiguous static lane slice with
            # zero padding supplied by the halo.
            buf[0:cin, maxpad:maxpad + L0] = x
            taps = [buf[0:cin, maxpad + off:maxpad + off + L0]
                    for off in offsets]

            if cin == 1:
                # Degenerate contraction (K=5): broadcast multiply on the VPU.
                wf = w_ref[...]                  # (Cout, K) f32
                y = jnp.zeros((cout, L0), jnp.float32)
                for k in range(len(offsets)):
                    y = y + wf[:, k:k + 1] * taps[k]
            else:
                # Fold the K taps into the contraction: one bf16 matmul with
                # an 80-96 deep contraction, f32 accumulation on the MXU.
                xk = jnp.concatenate(taps, axis=0).astype(jnp.bfloat16)
                y = jnp.dot(w_ref[...].astype(jnp.bfloat16), xk,
                            preferred_element_type=jnp.float32)

            y = y + b_ref[...]                   # bias, broadcast over lanes
            if cfg["relu"]:
                y = jnp.maximum(y, 0.0)
            x = y                                # (Cout, L0) f32

        # Fused MaxPool1d(4, 4) at the coarse rate r: sliding max of rolled
        # copies (valid lattice points never wrap), then per-column extraction.
        r = pool_cfg["r"]
        m = y
        for j in range(1, pool_cfg["window"]):
            m = jnp.maximum(m, pltpu.roll(y, (-j * r) % L0, axis=1))
        for t in range(pool_cfg["f_out"]):
            col = 4 * r * t
            o_ref[bi, :, t:t + 1] = m[:, col:col + 1].astype(o_ref.dtype)


# ----------------------------------------------------------------------------
# Host wrapper: single pallas_call for the whole encoder.
# ----------------------------------------------------------------------------
def conv_encoder_forward(x_ncl, cfgs, pool_cfg, maxpad, flat_params, block_b=2):
    """x_ncl: (B, 1, input_dim).  Returns (B, 16, input_dim // (4*prod(strides)))."""
    B, cin0, L0 = x_ncl.shape
    assert cin0 == 1 and B % block_b == 0
    cout_f = cfgs[-1]["cout"]
    f_out = pool_cfg["f_out"]

    def _const_spec(arr):
        return pl.BlockSpec(arr.shape, lambda b, _nd=arr.ndim: (0,) * _nd)

    in_specs = [pl.BlockSpec((block_b, 1, L0), lambda b: (b, 0, 0))]
    in_specs += [_const_spec(p) for p in flat_params]

    kernel = functools.partial(_encoder_kernel, cfgs=cfgs, pool_cfg=pool_cfg,
                               maxpad=maxpad, L0=L0, block_b=block_b)

    # Advisory cost + explicit VMEM budget (everything now fits comfortably
    # inside v7x's 64 MiB / v6e's and v5e's default scoped limits).
    flops = 2 * B * sum(c["cout"] * c["cin"] * c["k"] * L0 for c in cfgs)
    param_bytes = sum(int(p.size) * p.dtype.itemsize for p in flat_params)
    bytes_accessed = B * L0 * 4 + B * cout_f * f_out * 4 + param_bytes
    scratch_bytes = 32 * (2 * maxpad + L0) * 4
    act_bytes = 3 * 96 * L0 * 4                      # stacked taps + accum headroom
    io_bytes = 2 * block_b * (L0 + cout_f * f_out) * 4
    est = 4 * (2 * param_bytes + scratch_bytes + act_bytes + io_bytes)
    vmem_limit = int(min(64 * 1024 * 1024, max(32 * 1024 * 1024, est)))

    return pl.pallas_call(
        kernel,
        out_shape=jax.ShapeDtypeStruct((B, cout_f, f_out), jnp.float32),
        grid_spec=pltpu.PrefetchScalarGridSpec(
            num_scalar_prefetch=0,
            grid=(B // block_b,),
            in_specs=in_specs,
            out_specs=pl.BlockSpec((block_b, cout_f, f_out),
                                   lambda b: (b, 0, 0)),
            scratch_shapes=[pltpu.VMEM((32, 2 * maxpad + L0), jnp.float32)],
        ),
        compiler_params=pltpu.CompilerParams(
            dimension_semantics=("parallel",),
            vmem_limit_bytes=vmem_limit),
        cost_estimate=pl.CostEstimate(flops=flops, transcendentals=0,
                                      bytes_accessed=bytes_accessed),
    )(x_ncl, *flat_params)


# ----------------------------------------------------------------------------
# Pure-JAX reference (f32) for a correctness check.
# ----------------------------------------------------------------------------
def _reference_forward(x_ncl, layers):
    x = x_ncl.astype(jnp.float32)                    # (B, C, L)
    for lyr in layers:
        w, b, s, pad = lyr["w"], lyr["b"], lyr["stride"], lyr["pad"]
        _, _, K = w.shape
        B, _, L = x.shape
        L_out = (L + 2 * pad - K) // s + 1
        xp = jnp.pad(x, ((0, 0), (0, 0), (pad, pad)))
        taps = jnp.stack(
            [xp[:, :, k:k + (L_out - 1) * s + 1:s] for k in range(K)], axis=0)
        x = jnp.einsum("oik,kbil->bol", w, taps) + b[None, :, None]
        if lyr["relu"]:
            x = jnp.maximum(x, 0.0)
    B, C, L = x.shape
    Lo = L // 4
    return x[:, :, :Lo * 4].reshape(B, C, Lo, 4).max(axis=-1)


if __name__ == "__main__":
    key = jax.random.PRNGKey(0)
    B, input_dim = 4, 1024   # small config (no conv_4_2 / conv_4_3)
    key, kx, kp = jax.random.split(key, 3)
    x = jax.random.normal(kx, (B, 1, input_dim), jnp.float32)

    layers = make_params(input_dim, kp)
    cfgs, pool_cfg, maxpad, flat_params = build_kernel_inputs(input_dim, layers)

    fwd = jax.jit(lambda xi: conv_encoder_forward(xi, cfgs, pool_cfg, maxpad,
                                                  flat_params, block_b=2))
    out = fwd(x)
    jax.block_until_ready(out)

    assert out.shape == (B, 16, input_dim // 256), out.shape
    assert bool(jnp.all(jnp.isfinite(out)))

    ref = _reference_forward(x, layers)
    max_err = float(jnp.max(jnp.abs(out - ref)))
    max_ref = float(jnp.max(jnp.abs(ref)))
    assert max_err < 5e-2 + 5e-2 * max_ref, (max_err, max_ref)

    print("KERNEL_OK")
</pallas_src>

<mosaic_0001>
module attributes {stable_mosaic.version = 11 : i64} {
  func.func @_encoder_kernel(%arg0: i32, %arg1: memref<2x1x1024xf32, #tpu.memory_space<vmem>>, %arg2: memref<16x5xf32, #tpu.memory_space<vmem>>, %arg3: memref<16x1xf32, #tpu.memory_space<vmem>>, %arg4: memref<16x80xbf16, #tpu.memory_space<vmem>>, %arg5: memref<16x1xf32, #tpu.memory_space<vmem>>, %arg6: memref<32x80xbf16, #tpu.memory_space<vmem>>, %arg7: memref<32x1xf32, #tpu.memory_space<vmem>>, %arg8: memref<32x96xbf16, #tpu.memory_space<vmem>>, %arg9: memref<32x1xf32, #tpu.memory_space<vmem>>, %arg10: memref<32x96xbf16, #tpu.memory_space<vmem>>, %arg11: memref<32x1xf32, #tpu.memory_space<vmem>>, %arg12: memref<16x96xbf16, #tpu.memory_space<vmem>>, %arg13: memref<16x1xf32, #tpu.memory_space<vmem>>, %arg14: memref<2x16x4xf32, #tpu.memory_space<vmem>>, %arg15: memref<32x1280xf32, #tpu.memory_space<vmem>>) attributes {dimension_semantics = [#tpu.dimension_semantics<parallel>], iteration_bounds = array<i64: 2>, scalar_prefetch = 0 : i64, scratch_operands = 1 : i64, tpu.core_type = #tpu.core_type<tc>, window_params = [{transform_indices = @transform_0, window_bounds = array<i64: 2, 1, 1024>}, {pipeline_mode = #tpu.pipeline_mode<synchronous>, transform_indices = @transform_1, window_bounds = array<i64: 16, 5>}, {pipeline_mode = #tpu.pipeline_mode<synchronous>, transform_indices = @transform_2, window_bounds = array<i64: 16, 1>}, {pipeline_mode = #tpu.pipeline_mode<synchronous>, transform_indices = @transform_3, window_bounds = array<i64: 16, 80>}, {pipeline_mode = #tpu.pipeline_mode<synchronous>, transform_indices = @transform_4, window_bounds = array<i64: 16, 1>}, {pipeline_mode = #tpu.pipeline_mode<synchronous>, transform_indices = @transform_5, window_bounds = array<i64: 32, 80>}, {pipeline_mode = #tpu.pipeline_mode<synchronous>, transform_indices = @transform_6, window_bounds = array<i64: 32, 1>}, {pipeline_mode = #tpu.pipeline_mode<synchronous>, transform_indices = @transform_7, window_bounds = array<i64: 32, 96>}, {pipeline_mode = #tpu.pipeline_mode<synchronous>, transform_indices = @transform_8, window_bounds = array<i64: 32, 1>}, {pipeline_mode = #tpu.pipeline_mode<synchronous>, transform_indices = @transform_9, window_bounds = array<i64: 32, 96>}, {pipeline_mode = #tpu.pipeline_mode<synchronous>, transform_indices = @transform_10, window_bounds = array<i64: 32, 1>}, {pipeline_mode = #tpu.pipeline_mode<synchronous>, transform_indices = @transform_11, window_bounds = array<i64: 16, 96>}, {pipeline_mode = #tpu.pipeline_mode<synchronous>, transform_indices = @transform_12, window_bounds = array<i64: 16, 1>}, {transform_indices = @transform_13, window_bounds = array<i64: 2, 16, 4>}]} {
    %cst = arith.constant 0.000000e+00 : f32
    %0 = vector.broadcast %cst : f32 to vector<32x128xf32>
    %c0 = arith.constant 0 : index
    %c0_0 = arith.constant 0 : index
    %1 = vector.load %arg15[%c0, %c0_0] : memref<32x1280xf32, #tpu.memory_space<vmem>>, vector<32x128xf32>
    tpu.vector_store %arg15[%c0, %c0_0], %0 {strides = array<i32>} : memref<32x1280xf32, #tpu.memory_space<vmem>>, vector<32x128xf32>,
    %c0_1 = arith.constant 0 : index
    %c1152 = arith.constant 1152 : index
    %2 = vector.load %arg15[%c0_1, %c1152] : memref<32x1280xf32, #tpu.memory_space<vmem>>, vector<32x128xf32>
    tpu.vector_store %arg15[%c0_1, %c1152], %0 {strides = array<i32>} : memref<32x1280xf32, #tpu.memory_space<vmem>>, vector<32x128xf32>,
    %c0_2 = arith.constant 0 : index
    %c0_3 = arith.constant 0 : index
    %c0_4 = arith.constant 0 : index
    %3 = vector.load %arg1[%c0_2, %c0_3, %c0_4] : memref<2x1x1024xf32, #tpu.memory_space<vmem>>, vector<1x1x1024xf32>
    %4 = vector.shape_cast %3 : vector<1x1x1024xf32> to vector<1x1024xf32>
    %c0_5 = arith.constant 0 : index
    %c128 = arith.constant 128 : index
    %5 = vector.load %arg15[%c0_5, %c128] : memref<32x1280xf32, #tpu.memory_space<vmem>>, vector<1x1024xf32>
    tpu.vector_store %arg15[%c0_5, %c128], %4 {strides = array<i32>} : memref<32x1280xf32, #tpu.memory_space<vmem>>, vector<1x1024xf32>,
    %c0_6 = arith.constant 0 : index
    %c126 = arith.constant 126 : index
    %6 = vector.load %arg15[%c0_6, %c126] : memref<32x1280xf32, #tpu.memory_space<vmem>>, vector<1x1024xf32>
    %c0_7 = arith.constant 0 : index
    %c127 = arith.constant 127 : index
    %7 = vector.load %arg15[%c0_7, %c127] : memref<32x1280xf32, #tpu.memory_space<vmem>>, vector<1x1024xf32>
    %c0_8 = arith.constant 0 : index
    %c128_9 = arith.constant 128 : index
    %8 = vector.load %arg15[%c0_8, %c128_9] : memref<32x1280xf32, #tpu.memory_space<vmem>>, vector<1x1024xf32>
    %c0_10 = arith.constant 0 : index
    %c129 = arith.constant 129 : index
    %9 = vector.load %arg15[%c0_10, %c129] : memref<32x1280xf32, #tpu.memory_space<vmem>>, vector<1x1024xf32>
    %c0_11 = arith.constant 0 : index
    %c130 = arith.constant 130 : index
    %10 = vector.load %arg15[%c0_11, %c130] : memref<32x1280xf32, #tpu.memory_space<vmem>>, vector<1x1024xf32>
    %c0_12 = arith.constant 0 : index
    %c0_13 = arith.constant 0 : index
    %11 = vector.load %arg2[%c0_12, %c0_13] : memref<16x5xf32, #tpu.memory_space<vmem>>, vector<16x5xf32>
    %cst_14 = arith.constant 0.000000e+00 : f32
    %12 = vector.broadcast %cst_14 : f32 to vector<16x1024xf32>
    %13 = vector.extract_strided_slice %11 {offsets = [0, 0], sizes = [16, 1], strides = [1, 1]} : vector<16x5xf32> to vector<16x1xf32>
    %14 = vector.broadcast %13 : vector<16x1xf32> to vector<16x1024xf32>
    %15 = vector.broadcast %6 : vector<1x1024xf32> to vector<16x1024xf32>
    %16 = arith.mulf %14, %15 : vector<16x1024xf32>
    %17 = arith.addf %12, %16 : vector<16x1024xf32>
    %18 = vector.extract_strided_slice %11 {offsets = [0, 1], sizes = [16, 1], strides = [1, 1]} : vector<16x5xf32> to vector<16x1xf32>
    %19 = vector.broadcast %18 : vector<16x1xf32> to vector<16x1024xf32>
    %20 = vector.broadcast %7 : vector<1x1024xf32> to vector<16x1024xf32>
    %21 = arith.mulf %19, %20 : vector<16x1024xf32>
    %22 = arith.addf %17, %21 : vector<16x1024xf32>
    %23 = vector.extract_strided_slice %11 {offsets = [0, 2], sizes = [16, 1], strides = [1, 1]} : vector<16x5xf32> to vector<16x1xf32>
    %24 = vector.broadcast %23 : vector<16x1xf32> to vector<16x1024xf32>
    %25 = vector.broadcast %8 : vector<1x1024xf32> to vector<16x1024xf32>
    %26 = arith.mulf %24, %25 : vector<16x1024xf32>
    %27 = arith.addf %22, %26 : vector<16x1024xf32>
    %28 = vector.extract_strided_slice %11 {offsets = [0, 3], sizes = [16, 1], strides = [1, 1]} : vector<16x5xf32> to vector<16x1xf32>
    %29 = vector.broadcast %28 : vector<16x1xf32> to vector<16x1024xf32>
    %30 = vector.broadcast %9 : vector<1x1024xf32> to vector<16x1024xf32>
    %31 = arith.mulf %29, %30 : vector<16x1024xf32>
    %32 = arith.addf %27, %31 : vector<16x1024xf32>
    %33 = vector.extract_strided_slice %11 {offsets = [0, 4], sizes = [16, 1], strides = [1, 1]} : vector<16x5xf32> to vector<16x1xf32>
    %34 = vector.broadcast %33 : vector<16x1xf32> to vector<16x1024xf32>
    %35 = vector.broadcast %10 : vector<1x1024xf32> to vector<16x1024xf32>
    %36 = arith.mulf %34, %35 : vector<16x1024xf32>
    %37 = arith.addf %32, %36 : vector<16x1024xf32>
    %c0_15 = arith.constant 0 : index
    %c0_16 = arith.constant 0 : index
    %38 = vector.load %arg3[%c0_15, %c0_16] : memref<16x1xf32, #tpu.memory_space<vmem>>, vector<16x1xf32>
    %39 = vector.broadcast %38 : vector<16x1xf32> to vector<16x1024xf32>
    %40 = arith.addf %37, %39 : vector<16x1024xf32>
    %cst_17 = arith.constant 0.000000e+00 : f32
    %41 = vector.broadcast %cst_17 : f32 to vector<16x1024xf32>
    %42 = arith.maximumf %40, %41 : vector<16x1024xf32>
    %c0_18 = arith.constant 0 : index
    %c128_19 = arith.constant 128 : index
    %43 = vector.load %arg15[%c0_18, %c128_19] : memref<32x1280xf32, #tpu.memory_space<vmem>>, vector<16x1024xf32>
    tpu.vector_store %arg15[%c0_18, %c128_19], %42 {strides = array<i32>} : memref<32x1280xf32, #tpu.memory_space<vmem>>, vector<16x1024xf32>,
    %c0_20 = arith.constant 0 : index
    %c124 = arith.constant 124 : index
    %44 = vector.load %arg15[%c0_20, %c124] : memref<32x1280xf32, #tpu.memory_space<vmem>>, vector<16x1024xf32>
    %c0_21 = arith.constant 0 : index
    %c126_22 = arith.constant 126 : index
    %45 = vector.load %arg15[%c0_21, %c126_22] : memref<32x1280xf32, #tpu.memory_space<vmem>>, vector<16x1024xf32>
    %c0_23 = arith.constant 0 : index
    %c128_24 = arith.constant 128 : index
    %46 = vector.load %arg15[%c0_23, %c128_24] : memref<32x1280xf32, #tpu.memory_space<vmem>>, vector<16x1024xf32>
    %c0_25 = arith.constant 0 : index
    %c130_26 = arith.constant 130 : index
    %47 = vector.load %arg15[%c0_25, %c130_26] : memref<32x1280xf32, #tpu.memory_space<vmem>>, vector<16x1024xf32>
    %c0_27 = arith.constant 0 : index
    %c132 = arith.constant 132 : index
    %48 = vector.load %arg15[%c0_27, %c132] : memref<32x1280xf32, #tpu.memory_space<vmem>>, vector<16x1024xf32>
    %49 = tpu.concatenate %44, %45, %46, %47, %48 in 0 : vector<16x1024xf32>, vector<16x1024xf32>, vector<16x1024xf32>, vector<16x1024xf32>, vector<16x1024xf32> -> vector<80x1024xf32>
    %50 = arith.truncf %49 : vector<80x1024xf32> to vector<80x1024xbf16>
    %c0_28 = arith.constant 0 : index
    %c0_29 = arith.constant 0 : index
    %51 = vector.load %arg4[%c0_28, %c0_29] : memref<16x80xbf16, #tpu.memory_space<vmem>>, vector<16x80xbf16>
    %cst_30 = arith.constant dense<0.000000e+00> : vector<16x1024xf32>
    %52 = tpu.matmul %51, %50, %cst_30 {dimension_numbers = #tpu.dot_dimension_numbers<[1], [0], [0], [1], [0, 0, 1, 1], [], []>} : vector<16x80xbf16>, vector<80x1024xbf16>, vector<16x1024xf32> -> vector<16x1024xf32>
    %c0_31 = arith.constant 0 : index
    %c0_32 = arith.constant 0 : index
    %53 = vector.load %arg5[%c0_31, %c0_32] : memref<16x1xf32, #tpu.memory_space<vmem>>, vector<16x1xf32>
    %54 = vector.broadcast %53 : vector<16x1xf32> to vector<16x1024xf32>
    %55 = arith.addf %52, %54 : vector<16x1024xf32>
    %cst_33 = arith.constant 0.000000e+00 : f32
    %56 = vector.broadcast %cst_33 : f32 to vector<16x1024xf32>
    %57 = arith.maximumf %55, %56 : vector<16x1024xf32>
    %c0_34 = arith.constant 0 : index
    %c128_35 = arith.constant 128 : index
    %58 = vector.load %arg15[%c0_34, %c128_35] : memref<32x1280xf32, #tpu.memory_space<vmem>>, vector<16x1024xf32>
    tpu.vector_store %arg15[%c0_34, %c128_35], %57 {strides = array<i32>} : memref<32x1280xf32, #tpu.memory_space<vmem>>, vector<16x1024xf32>,
    %c0_36 = arith.constant 0 : index
    %c120 = arith.constant 120 : index
    %59 = vector.load %arg15[%c0_36, %c120] : memref<32x1280xf32, #tpu.memory_space<vmem>>, vector<16x1024xf32>
    %c0_37 = arith.constant 0 : index
    %c124_38 = arith.constant 124 : index
    %60 = vector.load %arg15[%c0_37, %c124_38] : memref<32x1280xf32, #tpu.memory_space<vmem>>, vector<16x1024xf32>
    %c0_39 = arith.constant 0 : index
    %c128_40 = arith.constant 128 : index
    %61 = vector.load %arg15[%c0_39, %c128_40] : memref<32x1280xf32, #tpu.memory_space<vmem>>, vector<16x1024xf32>
    %c0_41 = arith.constant 0 : index
    %c132_42 = arith.constant 132 : index
    %62 = vector.load %arg15[%c0_41, %c132_42] : memref<32x1280xf32, #tpu.memory_space<vmem>>, vector<16x1024xf32>
    %c0_43 = arith.constant 0 : index
    %c136 = arith.constant 136 : index
    %63 = vector.load %arg15[%c0_43, %c136] : memref<32x1280xf32, #tpu.memory_space<vmem>>, vector<16x1024xf32>
    %64 = tpu.concatenate %59, %60, %61, %62, %63 in 0 : vector<16x1024xf32>, vector<16x1024xf32>, vector<16x1024xf32>, vector<16x1024xf32>, vector<16x1024xf32> -> vector<80x1024xf32>
    %65 = arith.truncf %64 : vector<80x1024xf32> to vector<80x1024xbf16>
    %c0_44 = arith.constant 0 : index
    %c0_45 = arith.constant 0 : index
    %66 = vector.load %arg6[%c0_44, %c0_45] : memref<32x80xbf16, #tpu.memory_space<vmem>>, vector<32x80xbf16>
    %cst_46 = arith.constant dense<0.000000e+00> : vector<32x1024xf32>
    %67 = tpu.matmul %66, %65, %cst_46 {dimension_numbers = #tpu.dot_dimension_numbers<[1], [0], [0], [1], [0, 0, 1, 1], [], []>} : vector<32x80xbf16>, vector<80x1024xbf16>, vector<32x1024xf32> -> vector<32x1024xf32>
    %c0_47 = arith.constant 0 : index
    %c0_48 = arith.constant 0 : index
    %68 = vector.load %arg7[%c0_47, %c0_48] : memref<32x1xf32, #tpu.memory_space<vmem>>, vector<32x1xf32>
    %69 = vector.broadcast %68 : vector<32x1xf32> to vector<32x1024xf32>
    %70 = arith.addf %67, %69 : vector<32x1024xf32>
    %cst_49 = arith.constant 0.000000e+00 : f32
    %71 = vector.broadcast %cst_49 : f32 to vector<32x1024xf32>
    %72 = arith.maximumf %70, %71 : vector<32x1024xf32>
    %c0_50 = arith.constant 0 : index
    %c128_51 = arith.constant 128 : index
    %73 = vector.load %arg15[%c0_50, %c128_51] : memref<32x1280xf32, #tpu.memory_space<vmem>>, vector<32x1024xf32>
    tpu.vector_store %arg15[%c0_50, %c128_51], %72 {strides = array<i32>} : memref<32x1280xf32, #tpu.memory_space<vmem>>, vector<32x1024xf32>,
    %c0_52 = arith.constant 0 : index
    %c112 = arith.constant 112 : index
    %74 = vector.load %arg15[%c0_52, %c112] : memref<32x1280xf32, #tpu.memory_space<vmem>>, vector<32x1024xf32>
    %c0_53 = arith.constant 0 : index
    %c128_54 = arith.constant 128 : index
    %75 = vector.load %arg15[%c0_53, %c128_54] : memref<32x1280xf32, #tpu.memory_space<vmem>>, vector<32x1024xf32>
    %c0_55 = arith.constant 0 : index
    %c144 = arith.constant 144 : index
    %76 = vector.load %arg15[%c0_55, %c144] : memref<32x1280xf32, #tpu.memory_space<vmem>>, vector<32x1024xf32>
    %77 = tpu.concatenate %74, %75, %76 in 0 : vector<32x1024xf32>, vector<32x1024xf32>, vector<32x1024xf32> -> vector<96x1024xf32>
    %78 = arith.truncf %77 : vector<96x1024xf32> to vector<96x1024xbf16>
    %c0_56 = arith.constant 0 : index
    %c0_57 = arith.constant 0 : index
    %79 = vector.load %arg8[%c0_56, %c0_57] : memref<32x96xbf16, #tpu.memory_space<vmem>>, vector<32x96xbf16>
    %cst_58 = arith.constant dense<0.000000e+00> : vector<32x1024xf32>
    %80 = tpu.matmul %79, %78, %cst_58 {dimension_numbers = #tpu.dot_dimension_numbers<[1], [0], [0], [1], [0, 0, 1, 1], [], []>} : vector<32x96xbf16>, vector<96x1024xbf16>, vector<32x1024xf32> -> vector<32x1024xf32>
    %c0_59 = arith.constant 0 : index
    %c0_60 = arith.constant 0 : index
    %81 = vector.load %arg9[%c0_59, %c0_60] : memref<32x1xf32, #tpu.memory_space<vmem>>, vector<32x1xf32>
    %82 = vector.broadcast %81 : vector<32x1xf32> to vector<32x1024xf32>
    %83 = arith.addf %80, %82 : vector<32x1024xf32>
    %cst_61 = arith.constant 0.000000e+00 : f32
    %84 = vector.broadcast %cst_61 : f32 to vector<32x1024xf32>
    %85 = arith.maximumf %83, %84 : vector<32x1024xf32>
    %c0_62 = arith.constant 0 : index
    %c128_63 = arith.constant 128 : index
    %86 = vector.load %arg15[%c0_62, %c128_63] : memref<32x1280xf32, #tpu.memory_space<vmem>>, vector<32x1024xf32>
    tpu.vector_store %arg15[%c0_62, %c128_63], %85 {strides = array<i32>} : memref<32x1280xf32, #tpu.memory_space<vmem>>, vector<32x1024xf32>,
    %c0_64 = arith.constant 0 : index
    %c96 = arith.constant 96 : index
    %87 = vector.load %arg15[%c0_64, %c96] : memref<32x1280xf32, #tpu.memory_space<vmem>>, vector<32x1024xf32>
    %c0_65 = arith.constant 0 : index
    %c128_66 = arith.constant 128 : index
    %88 = vector.load %arg15[%c0_65, %c128_66] : memref<32x1280xf32, #tpu.memory_space<vmem>>, vector<32x1024xf32>
    %c0_67 = arith.constant 0 : index
    %c160 = arith.constant 160 : index
    %89 = vector.load %arg15[%c0_67, %c160] : memref<32x1280xf32, #tpu.memory_space<vmem>>, vector<32x1024xf32>
    %90 = tpu.concatenate %87, %88, %89 in 0 : vector<32x1024xf32>, vector<32x1024xf32>, vector<32x1024xf32> -> vector<96x1024xf32>
    %91 = arith.truncf %90 : vector<96x1024xf32> to vector<96x1024xbf16>
    %c0_68 = arith.constant 0 : index
    %c0_69 = arith.constant 0 : index
    %92 = vector.load %arg10[%c0_68, %c0_69] : memref<32x96xbf16, #tpu.memory_space<vmem>>, vector<32x96xbf16>
    %cst_70 = arith.constant dense<0.000000e+00> : vector<32x1024xf32>
    %93 = tpu.matmul %92, %91, %cst_70 {dimension_numbers = #tpu.dot_dimension_numbers<[1], [0], [0], [1], [0, 0, 1, 1], [], []>} : vector<32x96xbf16>, vector<96x1024xbf16>, vector<32x1024xf32> -> vector<32x1024xf32>
    %c0_71 = arith.constant 0 : index
    %c0_72 = arith.constant 0 : index
    %94 = vector.load %arg11[%c0_71, %c0_72] : memref<32x1xf32, #tpu.memory_space<vmem>>, vector<32x1xf32>
    %95 = vector.broadcast %94 : vector<32x1xf32> to vector<32x1024xf32>
    %96 = arith.addf %93, %95 : vector<32x1024xf32>
    %cst_73 = arith.constant 0.000000e+00 : f32
    %97 = vector.broadcast %cst_73 : f32 to vector<32x1024xf32>
    %98 = arith.maximumf %96, %97 : vector<32x1024xf32>
    %c0_74 = arith.constant 0 : index
    %c128_75 = arith.constant 128 : index
    %99 = vector.load %arg15[%c0_74, %c128_75] : memref<32x1280xf32, #tpu.memory_space<vmem>>, vector<32x1024xf32>
    tpu.vector_store %arg15[%c0_74, %c128_75], %98 {strides = array<i32>} : memref<32x1280xf32, #tpu.memory_space<vmem>>, vector<32x1024xf32>,
    %c0_76 = arith.constant 0 : index
    %c64 = arith.constant 64 : index
    %100 = vector.load %arg15[%c0_76, %c64] : memref<32x1280xf32, #tpu.memory_space<vmem>>, vector<32x1024xf32>
    %c0_77 = arith.constant 0 : index
    %c128_78 = arith.constant 128 : index
    %101 = vector.load %arg15[%c0_77, %c128_78] : memref<32x1280xf32, #tpu.memory_space<vmem>>, vector<32x1024xf32>
    %c0_79 = arith.constant 0 : index
    %c192 = arith.constant 192 : index
    %102 = vector.load %arg15[%c0_79, %c192] : memref<32x1280xf32, #tpu.memory_space<vmem>>, vector<32x1024xf32>
    %103 = tpu.concatenate %100, %101, %102 in 0 : vector<32x1024xf32>, vector<32x1024xf32>, vector<32x1024xf32> -> vector<96x1024xf32>
    %104 = arith.truncf %103 : vector<96x1024xf32> to vector<96x1024xbf16>
    %c0_80 = arith.constant 0 : index
    %c0_81 = arith.constant 0 : index
    %105 = vector.load %arg12[%c0_80, %c0_81] : memref<16x96xbf16, #tpu.memory_space<vmem>>, vector<16x96xbf16>
    %cst_82 = arith.constant dense<0.000000e+00> : vector<16x1024xf32>
    %106 = tpu.matmul %105, %104, %cst_82 {dimension_numbers = #tpu.dot_dimension_numbers<[1], [0], [0], [1], [0, 0, 1, 1], [], []>} : vector<16x96xbf16>, vector<96x1024xbf16>, vector<16x1024xf32> -> vector<16x1024xf32>
    %c0_83 = arith.constant 0 : index
    %c0_84 = arith.constant 0 : index
    %107 = vector.load %arg13[%c0_83, %c0_84] : memref<16x1xf32, #tpu.memory_space<vmem>>, vector<16x1xf32>
    %108 = vector.broadcast %107 : vector<16x1xf32> to vector<16x1024xf32>
    %109 = arith.addf %106, %108 : vector<16x1024xf32>
    %c960_i32 = arith.constant 960 : i32
    %110 = tpu.dynamic_rotate %109 by %c960_i32 dim 1 : vector<16x1024xf32>, i32 -> vector<16x1024xf32>
    %111 = arith.maximumf %109, %110 : vector<16x1024xf32>
    %c896_i32 = arith.constant 896 : i32
    %112 = tpu.dynamic_rotate %109 by %c896_i32 dim 1 : vector<16x1024xf32>, i32 -> vector<16x1024xf32>
    %113 = arith.maximumf %111, %112 : vector<16x1024xf32>
    %c832_i32 = arith.constant 832 : i32
    %114 = tpu.dynamic_rotate %109 by %c832_i32 dim 1 : vector<16x1024xf32>, i32 -> vector<16x1024xf32>
    %115 = arith.maximumf %113, %114 : vector<16x1024xf32>
    %116 = vector.extract_strided_slice %115 {offsets = [0, 0], sizes = [16, 1], strides = [1, 1]} : vector<16x1024xf32> to vector<16x1xf32>
    %c0_85 = arith.constant 0 : index
    %c0_86 = arith.constant 0 : index
    %c0_87 = arith.constant 0 : index
    %117 = vector.load %arg14[%c0_85, %c0_86, %c0_87] : memref<2x16x4xf32, #tpu.memory_space<vmem>>, vector<1x16x1xf32>
    %118 = vector.shape_cast %117 : vector<1x16x1xf32> to vector<16x1xf32>
    %119 = vector.shape_cast %116 : vector<16x1xf32> to vector<1x16x1xf32>
    tpu.vector_store %arg14[%c0_85, %c0_86, %c0_87], %119 {strides = array<i32>} : memref<2x16x4xf32, #tpu.memory_space<vmem>>, vector<1x16x1xf32>,
    %120 = vector.extract_strided_slice %115 {offsets = [0, 256], sizes = [16, 1], strides = [1, 1]} : vector<16x1024xf32> to vector<16x1xf32>
    %c0_88 = arith.constant 0 : index
    %c0_89 = arith.constant 0 : index
    %c1 = arith.constant 1 : index
    %121 = vector.load %arg14[%c0_88, %c0_89, %c1] : memref<2x16x4xf32, #tpu.memory_space<vmem>>, vector<1x16x1xf32>
    %122 = vector.shape_cast %121 : vector<1x16x1xf32> to vector<16x1xf32>
    %123 = vector.shape_cast %120 : vector<16x1xf32> to vector<1x16x1xf32>
    tpu.vector_store %arg14[%c0_88, %c0_89, %c1], %123 {strides = array<i32>} : memref<2x16x4xf32, #tpu.memory_space<vmem>>, vector<1x16x1xf32>,
    %124 = vector.extract_strided_slice %115 {offsets = [0, 512], sizes = [16, 1], strides = [1, 1]} : vector<16x1024xf32> to vector<16x1xf32>
    %c0_90 = arith.constant 0 : index
    %c0_91 = arith.constant 0 : index
    %c2 = arith.constant 2 : index
    %125 = vector.load %arg14[%c0_90, %c0_91, %c2] : memref<2x16x4xf32, #tpu.memory_space<vmem>>, vector<1x16x1xf32>
    %126 = vector.shape_cast %125 : vector<1x16x1xf32> to vector<16x1xf32>
    %127 = vector.shape_cast %124 : vector<16x1xf32> to vector<1x16x1xf32>
    tpu.vector_store %arg14[%c0_90, %c0_91, %c2], %127 {strides = array<i32>} : memref<2x16x4xf32, #tpu.memory_space<vmem>>, vector<1x16x1xf32>,
    %128 = vector.extract_strided_slice %115 {offsets = [0, 768], sizes = [16, 1], strides = [1, 1]} : vector<16x1024xf32> to vector<16x1xf32>
    %c0_92 = arith.constant 0 : index
    %c0_93 = arith.constant 0 : index
    %c3 = arith.constant 3 : index
    %129 = vector.load %arg14[%c0_92, %c0_93, %c3] : memref<2x16x4xf32, #tpu.memory_space<vmem>>, vector<1x16x1xf32>
    %130 = vector.shape_cast %129 : vector<1x16x1xf32> to vector<16x1xf32>
    %131 = vector.shape_cast %128 : vector<16x1xf32> to vector<1x16x1xf32>
    tpu.vector_store %arg14[%c0_92, %c0_93, %c3], %131 {strides = array<i32>} : memref<2x16x4xf32, #tpu.memory_space<vmem>>, vector<1x16x1xf32>,
    %c1_94 = arith.constant 1 : index
    %c0_95 = arith.constant 0 : index
    %c0_96 = arith.constant 0 : index
    %132 = vector.load %arg1[%c1_94, %c0_95, %c0_96] : memref<2x1x1024xf32, #tpu.memory_space<vmem>>, vector<1x1x1024xf32>
    %133 = vector.shape_cast %132 : vector<1x1x1024xf32> to vector<1x1024xf32>
    %c0_97 = arith.constant 0 : index
    %c128_98 = arith.constant 128 : index
    %134 = vector.load %arg15[%c0_97, %c128_98] : memref<32x1280xf32, #tpu.memory_space<vmem>>, vector<1x1024xf32>
    tpu.vector_store %arg15[%c0_97, %c128_98], %133 {strides = array<i32>} : memref<32x1280xf32, #tpu.memory_space<vmem>>, vector<1x1024xf32>,
    %c0_99 = arith.constant 0 : index
    %c126_100 = arith.constant 126 : index
    %135 = vector.load %arg15[%c0_99, %c126_100] : memref<32x1280xf32, #tpu.memory_space<vmem>>, vector<1x1024xf32>
    %c0_101 = arith.constant 0 : index
    %c127_102 = arith.constant 127 : index
    %136 = vector.load %arg15[%c0_101, %c127_102] : memref<32x1280xf32, #tpu.memory_space<vmem>>, vector<1x1024xf32>
    %c0_103 = arith.constant 0 : index
    %c128_104 = arith.constant 128 : index
    %137 = vector.load %arg15[%c0_103, %c128_104] : memref<32x1280xf32, #tpu.memory_space<vmem>>, vector<1x1024xf32>
    %c0_105 = arith.constant 0 : index
    %c129_106 = arith.constant 129 : index
    %138 = vector.load %arg15[%c0_105, %c129_106] : memref<32x1280xf32, #tpu.memory_space<vmem>>, vector<1x1024xf32>
    %c0_107 = arith.constant 0 : index
    %c130_108 = arith.constant 130 : index
    %139 = vector.load %arg15[%c0_107, %c130_108] : memref<32x1280xf32, #tpu.memory_space<vmem>>, vector<1x1024xf32>
    %c0_109 = arith.constant 0 : index
    %c0_110 = arith.constant 0 : index
    %140 = vector.load %arg2[%c0_109, %c0_110] : memref<16x5xf32, #tpu.memory_space<vmem>>, vector<16x5xf32>
    %cst_111 = arith.constant 0.000000e+00 : f32
    %141 = vector.broadcast %cst_111 : f32 to vector<16x1024xf32>
    %142 = vector.extract_strided_slice %140 {offsets = [0, 0], sizes = [16, 1], strides = [1, 1]} : vector<16x5xf32> to vector<16x1xf32>
    %143 = vector.broadcast %142 : vector<16x1xf32> to vector<16x1024xf32>
    %144 = vector.broadcast %135 : vector<1x1024xf32> to vector<16x1024xf32>
    %145 = arith.mulf %143, %144 : vector<16x1024xf32>
    %146 = arith.addf %141, %145 : vector<16x1024xf32>
    %147 = vector.extract_strided_slice %140 {offsets = [0, 1], sizes = [16, 1], strides = [1, 1]} : vector<16x5xf32> to vector<16x1xf32>
    %148 = vector.broadcast %147 : vector<16x1xf32> to vector<16x1024xf32>
    %149 = vector.broadcast %136 : vector<1x1024xf32> to vector<16x1024xf32>
    %150 = arith.mulf %148, %149 : vector<16x1024xf32>
    %151 = arith.addf %146, %150 : vector<16x1024xf32>
    %152 = vector.extract_strided_slice %140 {offsets = [0, 2], sizes = [16, 1], strides = [1, 1]} : vector<16x5xf32> to vector<16x1xf32>
    %153 = vector.broadcast %152 : vector<16x1xf32> to vector<16x1024xf32>
    %154 = vector.broadcast %137 : vector<1x1024xf32> to vector<16x1024xf32>
    %155 = arith.mulf %153, %154 : vector<16x1024xf32>
    %156 = arith.addf %151, %155 : vector<16x1024xf32>
    %157 = vector.extract_strided_slice %140 {offsets = [0, 3], sizes = [16, 1], strides = [1, 1]} : vector<16x5xf32> to vector<16x1xf32>
    %158 = vector.broadcast %157 : vector<16x1xf32> to vector<16x1024xf32>
    %159 = vector.broadcast %138 : vector<1x1024xf32> to vector<16x1024xf32>
    %160 = arith.mulf %158, %159 : vector<16x1024xf32>
    %161 = arith.addf %156, %160 : vector<16x1024xf32>
    %162 = vector.extract_strided_slice %140 {offsets = [0, 4], sizes = [16, 1], strides = [1, 1]} : vector<16x5xf32> to vector<16x1xf32>
    %163 = vector.broadcast %162 : vector<16x1xf32> to vector<16x1024xf32>
    %164 = vector.broadcast %139 : vector<1x1024xf32> to vector<16x1024xf32>
    %165 = arith.mulf %163, %164 : vector<16x1024xf32>
    %166 = arith.addf %161, %165 : vector<16x1024xf32>
    %c0_112 = arith.constant 0 : index
    %c0_113 = arith.constant 0 : index
    %167 = vector.load %arg3[%c0_112, %c0_113] : memref<16x1xf32, #tpu.memory_space<vmem>>, vector<16x1xf32>
    %168 = vector.broadcast %167 : vector<16x1xf32> to vector<16x1024xf32>
    %169 = arith.addf %166, %168 : vector<16x1024xf32>
    %cst_114 = arith.constant 0.000000e+00 : f32
    %170 = vector.broadcast %cst_114 : f32 to vector<16x1024xf32>
    %171 = arith.maximumf %169, %170 : vector<16x1024xf32>
    %c0_115 = arith.constant 0 : index
    %c128_116 = arith.constant 128 : index
    %172 = vector.load %arg15[%c0_115, %c128_116] : memref<32x1280xf32, #tpu.memory_space<vmem>>, vector<16x1024xf32>
    tpu.vector_store %arg15[%c0_115, %c128_116], %171 {strides = array<i32>} : memref<32x1280xf32, #tpu.memory_space<vmem>>, vector<16x1024xf32>,
    %c0_117 = arith.constant 0 : index
    %c124_118 = arith.constant 124 : index
    %173 = vector.load %arg15[%c0_117, %c124_118] : memref<32x1280xf32, #tpu.memory_space<vmem>>, vector<16x1024xf32>
    %c0_119 = arith.constant 0 : index
    %c126_120 = arith.constant 126 : index
    %174 = vector.load %arg15[%c0_119, %c126_120] : memref<32x1280xf32, #tpu.memory_space<vmem>>, vector<16x1024xf32>
    %c0_121 = arith.constant 0 : index
    %c128_122 = arith.constant 128 : index
    %175 = vector.load %arg15[%c0_121, %c128_122] : memref<32x1280xf32, #tpu.memory_space<vmem>>, vector<16x1024xf32>
    %c0_123 = arith.constant 0 : index
    %c130_124 = arith.constant 130 : index
    %176 = vector.load %arg15[%c0_123, %c130_124] : memref<32x1280xf32, #tpu.memory_space<vmem>>, vector<16x1024xf32>
    %c0_125 = arith.constant 0 : index
    %c132_126 = arith.constant 132 : index
    %177 = vector.load %arg15[%c0_125, %c132_126] : memref<32x1280xf32, #tpu.memory_space<vmem>>, vector<16x1024xf32>
    %178 = tpu.concatenate %173, %174, %175, %176, %177 in 0 : vector<16x1024xf32>, vector<16x1024xf32>, vector<16x1024xf32>, vector<16x1024xf32>, vector<16x1024xf32> -> vector<80x1024xf32>
    %179 = arith.truncf %178 : vector<80x1024xf32> to vector<80x1024xbf16>
    %c0_127 = arith.constant 0 : index
    %c0_128 = arith.constant 0 : index
    %180 = vector.load %arg4[%c0_127, %c0_128] : memref<16x80xbf16, #tpu.memory_space<vmem>>, vector<16x80xbf16>
    %cst_129 = arith.constant dense<0.000000e+00> : vector<16x1024xf32>
    %181 = tpu.matmul %180, %179, %cst_129 {dimension_numbers = #tpu.dot_dimension_numbers<[1], [0], [0], [1], [0, 0, 1, 1], [], []>} : vector<16x80xbf16>, vector<80x1024xbf16>, vector<16x1024xf32> -> vector<16x1024xf32>
    %c0_130 = arith.constant 0 : index
    %c0_131 = arith.constant 0 : index
    %182 = vector.load %arg5[%c0_130, %c0_131] : memref<16x1xf32, #tpu.memory_space<vmem>>, vector<16x1xf32>
    %183 = vector.broadcast %182 : vector<16x1xf32> to vector<16x1024xf32>
    %184 = arith.addf %181, %183 : vector<16x1024xf32>
    %cst_132 = arith.constant 0.000000e+00 : f32
    %185 = vector.broadcast %cst_132 : f32 to vector<16x1024xf32>
    %186 = arith.maximumf %184, %185 : vector<16x1024xf32>
    %c0_133 = arith.constant 0 : index
    %c128_134 = arith.constant 128 : index
    %187 = vector.load %arg15[%c0_133, %c128_134] : memref<32x1280xf32, #tpu.memory_space<vmem>>, vector<16x1024xf32>
    tpu.vector_store %arg15[%c0_133, %c128_134], %186 {strides = array<i32>} : memref<32x1280xf32, #tpu.memory_space<vmem>>, vector<16x1024xf32>,
    %c0_135 = arith.constant 0 : index
    %c120_136 = arith.constant 120 : index
    %188 = vector.load %arg15[%c0_135, %c120_136] : memref<32x1280xf32, #tpu.memory_space<vmem>>, vector<16x1024xf32>
    %c0_137 = arith.constant 0 : index
    %c124_138 = arith.constant 124 : index
    %189 = vector.load %arg15[%c0_137, %c124_138] : memref<32x1280xf32, #tpu.memory_space<vmem>>, vector<16x1024xf32>
    %c0_139 = arith.constant 0 : index
    %c128_140 = arith.constant 128 : index
    %190 = vector.load %arg15[%c0_139, %c128_140] : memref<32x1280xf32, #tpu.memory_space<vmem>>, vector<16x1024xf32>
    %c0_141 = arith.constant 0 : index
    %c132_142 = arith.constant 132 : index
    %191 = vector.load %arg15[%c0_141, %c132_142] : memref<32x1280xf32, #tpu.memory_space<vmem>>, vector<16x1024xf32>
    %c0_143 = arith.constant 0 : index
    %c136_144 = arith.constant 136 : index
    %192 = vector.load %arg15[%c0_143, %c136_144] : memref<32x1280xf32, #tpu.memory_space<vmem>>, vector<16x1024xf32>
    %193 = tpu.concatenate %188, %189, %190, %191, %192 in 0 : vector<16x1024xf32>, vector<16x1024xf32>, vector<16x1024xf32>, vector<16x1024xf32>, vector<16x1024xf32> -> vector<80x1024xf32>
    %194 = arith.truncf %193 : vector<80x1024xf32> to vector<80x1024xbf16>
    %c0_145 = arith.constant 0 : index
    %c0_146 = arith.constant 0 : index
    %195 = vector.load %arg6[%c0_145, %c0_146] : memref<32x80xbf16, #tpu.memory_space<vmem>>, vector<32x80xbf16>
    %cst_147 = arith.constant dense<0.000000e+00> : vector<32x1024xf32>
    %196 = tpu.matmul %195, %194, %cst_147 {dimension_numbers = #tpu.dot_dimension_numbers<[1], [0], [0], [1], [0, 0, 1, 1], [], []>} : vector<32x80xbf16>, vector<80x1024xbf16>, vector<32x1024xf32> -> vector<32x1024xf32>
    %c0_148 = arith.constant 0 : index
    %c0_149 = arith.constant 0 : index
    %197 = vector.load %arg7[%c0_148, %c0_149] : memref<32x1xf32, #tpu.memory_space<vmem>>, vector<32x1xf32>
    %198 = vector.broadcast %197 : vector<32x1xf32> to vector<32x1024xf32>
    %199 = arith.addf %196, %198 : vector<32x1024xf32>
    %cst_150 = arith.constant 0.000000e+00 : f32
    %200 = vector.broadcast %cst_150 : f32 to vector<32x1024xf32>
    %201 = arith.maximumf %199, %200 : vector<32x1024xf32>
    %c0_151 = arith.constant 0 : index
    %c128_152 = arith.constant 128 : index
    %202 = vector.load %arg15[%c0_151, %c128_152] : memref<32x1280xf32, #tpu.memory_space<vmem>>, vector<32x1024xf32>
    tpu.vector_store %arg15[%c0_151, %c128_152], %201 {strides = array<i32>} : memref<32x1280xf32, #tpu.memory_space<vmem>>, vector<32x1024xf32>,
    %c0_153 = arith.constant 0 : index
    %c112_154 = arith.constant 112 : index
    %203 = vector.load %arg15[%c0_153, %c112_154] : memref<32x1280xf32, #tpu.memory_space<vmem>>, vector<32x1024xf32>
    %c0_155 = arith.constant 0 : index
    %c128_156 = arith.constant 128 : index
    %204 = vector.load %arg15[%c0_155, %c128_156] : memref<32x1280xf32, #tpu.memory_space<vmem>>, vector<32x1024xf32>
    %c0_157 = arith.constant 0 : index
    %c144_158 = arith.constant 144 : index
    %205 = vector.load %arg15[%c0_157, %c144_158] : memref<32x1280xf32, #tpu.memory_space<vmem>>, vector<32x1024xf32>
    %206 = tpu.concatenate %203, %204, %205 in 0 : vector<32x1024xf32>, vector<32x1024xf32>, vector<32x1024xf32> -> vector<96x1024xf32>
    %207 = arith.truncf %206 : vector<96x1024xf32> to vector<96x1024xbf16>
    %c0_159 = arith.constant 0 : index
    %c0_160 = arith.constant 0 : index
    %208 = vector.load %arg8[%c0_159, %c0_160] : memref<32x96xbf16, #tpu.memory_space<vmem>>, vector<32x96xbf16>
    %cst_161 = arith.constant dense<0.000000e+00> : vector<32x1024xf32>
    %209 = tpu.matmul %208, %207, %cst_161 {dimension_numbers = #tpu.dot_dimension_numbers<[1], [0], [0], [1], [0, 0, 1, 1], [], []>} : vector<32x96xbf16>, vector<96x1024xbf16>, vector<32x1024xf32> -> vector<32x1024xf32>
    %c0_162 = arith.constant 0 : index
    %c0_163 = arith.constant 0 : index
    %210 = vector.load %arg9[%c0_162, %c0_163] : memref<32x1xf32, #tpu.memory_space<vmem>>, vector<32x1xf32>
    %211 = vector.broadcast %210 : vector<32x1xf32> to vector<32x1024xf32>
    %212 = arith.addf %209, %211 : vector<32x1024xf32>
    %cst_164 = arith.constant 0.000000e+00 : f32
    %213 = vector.broadcast %cst_164 : f32 to vector<32x1024xf32>
    %214 = arith.maximumf %212, %213 : vector<32x1024xf32>
    %c0_165 = arith.constant 0 : index
    %c128_166 = arith.constant 128 : index
    %215 = vector.load %arg15[%c0_165, %c128_166] : memref<32x1280xf32, #tpu.memory_space<vmem>>, vector<32x1024xf32>
    tpu.vector_store %arg15[%c0_165, %c128_166], %214 {strides = array<i32>} : memref<32x1280xf32, #tpu.memory_space<vmem>>, vector<32x1024xf32>,
    %c0_167 = arith.constant 0 : index
    %c96_168 = arith.constant 96 : index
    %216 = vector.load %arg15[%c0_167, %c96_168] : memref<32x1280xf32, #tpu.memory_space<vmem>>, vector<32x1024xf32>
    %c0_169 = arith.constant 0 : index
    %c128_170 = arith.constant 128 : index
    %217 = vector.load %arg15[%c0_169, %c128_170] : memref<32x1280xf32, #tpu.memory_space<vmem>>, vector<32x1024xf32>
    %c0_171 = arith.constant 0 : index
    %c160_172 = arith.constant 160 : index
    %218 = vector.load %arg15[%c0_171, %c160_172] : memref<32x1280xf32, #tpu.memory_space<vmem>>, vector<32x1024xf32>
    %219 = tpu.concatenate %216, %217, %218 in 0 : vector<32x1024xf32>, vector<32x1024xf32>, vector<32x1024xf32> -> vector<96x1024xf32>
    %220 = arith.truncf %219 : vector<96x1024xf32> to vector<96x1024xbf16>
    %c0_173 = arith.constant 0 : index
    %c0_174 = arith.constant 0 : index
    %221 = vector.load %arg10[%c0_173, %c0_174] : memref<32x96xbf16, #tpu.memory_space<vmem>>, vector<32x96xbf16>
    %cst_175 = arith.constant dense<0.000000e+00> : vector<32x1024xf32>
    %222 = tpu.matmul %221, %220, %cst_175 {dimension_numbers = #tpu.dot_dimension_numbers<[1], [0], [0], [1], [0, 0, 1, 1], [], []>} : vector<32x96xbf16>, vector<96x1024xbf16>, vector<32x1024xf32> -> vector<32x1024xf32>
    %c0_176 = arith.constant 0 : index
    %c0_177 = arith.constant 0 : index
    %223 = vector.load %arg11[%c0_176, %c0_177] : memref<32x1xf32, #tpu.memory_space<vmem>>, vector<32x1xf32>
    %224 = vector.broadcast %223 : vector<32x1xf32> to vector<32x1024xf32>
    %225 = arith.addf %222, %224 : vector<32x1024xf32>
    %cst_178 = arith.constant 0.000000e+00 : f32
    %226 = vector.broadcast %cst_178 : f32 to vector<32x1024xf32>
    %227 = arith.maximumf %225, %226 : vector<32x1024xf32>
    %c0_179 = arith.constant 0 : index
    %c128_180 = arith.constant 128 : index
    %228 = vector.load %arg15[%c0_179, %c128_180] : memref<32x1280xf32, #tpu.memory_space<vmem>>, vector<32x1024xf32>
    tpu.vector_store %arg15[%c0_179, %c128_180], %227 {strides = array<i32>} : memref<32x1280xf32, #tpu.memory_space<vmem>>, vector<32x1024xf32>,
    %c0_181 = arith.constant 0 : index
    %c64_182 = arith.constant 64 : index
    %229 = vector.load %arg15[%c0_181, %c64_182] : memref<32x1280xf32, #tpu.memory_space<vmem>>, vector<32x1024xf32>
    %c0_183 = arith.constant 0 : index
    %c128_184 = arith.constant 128 : index
    %230 = vector.load %arg15[%c0_183, %c128_184] : memref<32x1280xf32, #tpu.memory_space<vmem>>, vector<32x1024xf32>
    %c0_185 = arith.constant 0 : index
    %c192_186 = arith.constant 192 : index
    %231 = vector.load %arg15[%c0_185, %c192_186] : memref<32x1280xf32, #tpu.memory_space<vmem>>, vector<32x1024xf32>
    %232 = tpu.concatenate %229, %230, %231 in 0 : vector<32x1024xf32>, vector<32x1024xf32>, vector<32x1024xf32> -> vector<96x1024xf32>
    %233 = arith.truncf %232 : vector<96x1024xf32> to vector<96x1024xbf16>
    %c0_187 = arith.constant 0 : index
    %c0_188 = arith.constant 0 : index
    %234 = vector.load %arg12[%c0_187, %c0_188] : memref<16x96xbf16, #tpu.memory_space<vmem>>, vector<16x96xbf16>
    %cst_189 = arith.constant dense<0.000000e+00> : vector<16x1024xf32>
    %235 = tpu.matmul %234, %233, %cst_189 {dimension_numbers = #tpu.dot_dimension_numbers<[1], [0], [0], [1], [0, 0, 1, 1], [], []>} : vector<16x96xbf16>, vector<96x1024xbf16>, vector<16x1024xf32> -> vector<16x1024xf32>
    %c0_190 = arith.constant 0 : index
    %c0_191 = arith.constant 0 : index
    %236 = vector.load %arg13[%c0_190, %c0_191] : memref<16x1xf32, #tpu.memory_space<vmem>>, vector<16x1xf32>
    %237 = vector.broadcast %236 : vector<16x1xf32> to vector<16x1024xf32>
    %238 = arith.addf %235, %237 : vector<16x1024xf32>
    %c960_i32_192 = arith.constant 960 : i32
    %239 = tpu.dynamic_rotate %238 by %c960_i32_192 dim 1 : vector<16x1024xf32>, i32 -> vector<16x1024xf32>
    %240 = arith.maximumf %238, %239 : vector<16x1024xf32>
    %c896_i32_193 = arith.constant 896 : i32
    %241 = tpu.dynamic_rotate %238 by %c896_i32_193 dim 1 : vector<16x1024xf32>, i32 -> vector<16x1024xf32>
    %242 = arith.maximumf %240, %241 : vector<16x1024xf32>
    %c832_i32_194 = arith.constant 832 : i32
    %243 = tpu.dynamic_rotate %238 by %c832_i32_194 dim 1 : vector<16x1024xf32>, i32 -> vector<16x1024xf32>
    %244 = arith.maximumf %242, %243 : vector<16x1024xf32>
    %245 = vector.extract_strided_slice %244 {offsets = [0, 0], sizes = [16, 1], strides = [1, 1]} : vector<16x1024xf32> to vector<16x1xf32>
    %c1_195 = arith.constant 1 : index
    %c0_196 = arith.constant 0 : index
    %c0_197 = arith.constant 0 : index
    %246 = vector.load %arg14[%c1_195, %c0_196, %c0_197] : memref<2x16x4xf32, #tpu.memory_space<vmem>>, vector<1x16x1xf32>
    %247 = vector.shape_cast %246 : vector<1x16x1xf32> to vector<16x1xf32>
    %248 = vector.shape_cast %245 : vector<16x1xf32> to vector<1x16x1xf32>
    tpu.vector_store %arg14[%c1_195, %c0_196, %c0_197], %248 {strides = array<i32>} : memref<2x16x4xf32, #tpu.memory_space<vmem>>, vector<1x16x1xf32>,
    %249 = vector.extract_strided_slice %244 {offsets = [0, 256], sizes = [16, 1], strides = [1, 1]} : vector<16x1024xf32> to vector<16x1xf32>
    %c1_198 = arith.constant 1 : index
    %c0_199 = arith.constant 0 : index
    %c1_200 = arith.constant 1 : index
    %250 = vector.load %arg14[%c1_198, %c0_199, %c1_200] : memref<2x16x4xf32, #tpu.memory_space<vmem>>, vector<1x16x1xf32>
    %251 = vector.shape_cast %250 : vector<1x16x1xf32> to vector<16x1xf32>
    %252 = vector.shape_cast %249 : vector<16x1xf32> to vector<1x16x1xf32>
    tpu.vector_store %arg14[%c1_198, %c0_199, %c1_200], %252 {strides = array<i32>} : memref<2x16x4xf32, #tpu.memory_space<vmem>>, vector<1x16x1xf32>,
    %253 = vector.extract_strided_slice %244 {offsets = [0, 512], sizes = [16, 1], strides = [1, 1]} : vector<16x1024xf32> to vector<16x1xf32>
    %c1_201 = arith.constant 1 : index
    %c0_202 = arith.constant 0 : index
    %c2_203 = arith.constant 2 : index
    %254 = vector.load %arg14[%c1_201, %c0_202, %c2_203] : memref<2x16x4xf32, #tpu.memory_space<vmem>>, vector<1x16x1xf32>
    %255 = vector.shape_cast %254 : vector<1x16x1xf32> to vector<16x1xf32>
    %256 = vector.shape_cast %253 : vector<16x1xf32> to vector<1x16x1xf32>
    tpu.vector_store %arg14[%c1_201, %c0_202, %c2_203], %256 {strides = array<i32>} : memref<2x16x4xf32, #tpu.memory_space<vmem>>, vector<1x16x1xf32>,
    %257 = vector.extract_strided_slice %244 {offsets = [0, 768], sizes = [16, 1], strides = [1, 1]} : vector<16x1024xf32> to vector<16x1xf32>
    %c1_204 = arith.constant 1 : index
    %c0_205 = arith.constant 0 : index
    %c3_206 = arith.constant 3 : index
    %258 = vector.load %arg14[%c1_204, %c0_205, %c3_206] : memref<2x16x4xf32, #tpu.memory_space<vmem>>, vector<1x16x1xf32>
    %259 = vector.shape_cast %258 : vector<1x16x1xf32> to vector<16x1xf32>
    %260 = vector.shape_cast %257 : vector<16x1xf32> to vector<1x16x1xf32>
    tpu.vector_store %arg14[%c1_204, %c0_205, %c3_206], %260 {strides = array<i32>} : memref<2x16x4xf32, #tpu.memory_space<vmem>>, vector<1x16x1xf32>,
    return
  }
  func.func @transform_0(%arg0: i32) -> (i32, i32, i32) {
    %c0_i32 = arith.constant 0 : i32
    %c0_i32_0 = arith.constant 0 : i32
    %c0_i32_1 = arith.constant 0 : i32
    return %arg0, %c0_i32, %c0_i32_0 : i32, i32, i32
  }
  func.func @transform_1(%arg0: i32) -> (i32, i32) {
    %c0_i32 = arith.constant 0 : i32
    %c0_i32_0 = arith.constant 0 : i32
    %c0_i32_1 = arith.constant 0 : i32
    return %c0_i32, %c0_i32_0 : i32, i32
  }
  func.func @transform_2(%arg0: i32) -> (i32, i32) {
    %c0_i32 = arith.constant 0 : i32
    %c0_i32_0 = arith.constant 0 : i32
    %c0_i32_1 = arith.constant 0 : i32
    return %c0_i32, %c0_i32_0 : i32, i32
  }
  func.func @transform_3(%arg0: i32) -> (i32, i32) {
    %c0_i32 = arith.constant 0 : i32
    %c0_i32_0 = arith.constant 0 : i32
    %c0_i32_1 = arith.constant 0 : i32
    return %c0_i32, %c0_i32_0 : i32, i32
  }
  func.func @transform_4(%arg0: i32) -> (i32, i32) {
    %c0_i32 = arith.constant 0 : i32
    %c0_i32_0 = arith.constant 0 : i32
    %c0_i32_1 = arith.constant 0 : i32
    return %c0_i32, %c0_i32_0 : i32, i32
  }
  func.func @transform_5(%arg0: i32) -> (i32, i32) {
    %c0_i32 = arith.constant 0 : i32
    %c0_i32_0 = arith.constant 0 : i32
    %c0_i32_1 = arith.constant 0 : i32
    return %c0_i32, %c0_i32_0 : i32, i32
  }
  func.func @transform_6(%arg0: i32) -> (i32, i32) {
    %c0_i32 = arith.constant 0 : i32
    %c0_i32_0 = arith.constant 0 : i32
    %c0_i32_1 = arith.constant 0 : i32
    return %c0_i32, %c0_i32_0 : i32, i32
  }
  func.func @transform_7(%arg0: i32) -> (i32, i32) {
    %c0_i32 = arith.constant 0 : i32
    %c0_i32_0 = arith.constant 0 : i32
    %c0_i32_1 = arith.constant 0 : i32
    return %c0_i32, %c0_i32_0 : i32, i32
  }
  func.func @transform_8(%arg0: i32) -> (i32, i32) {
    %c0_i32 = arith.constant 0 : i32
    %c0_i32_0 = arith.constant 0 : i32
    %c0_i32_1 = arith.constant 0 : i32
    return %c0_i32, %c0_i32_0 : i32, i32
  }
  func.func @transform_9(%arg0: i32) -> (i32, i32) {
    %c0_i32 = arith.constant 0 : i32
    %c0_i32_0 = arith.constant 0 : i32
    %c0_i32_1 = arith.constant 0 : i32
    return %c0_i32, %c0_i32_0 : i32, i32
  }
  func.func @transform_10(%arg0: i32) -> (i32, i32) {
    %c0_i32 = arith.constant 0 : i32
    %c0_i32_0 = arith.constant 0 : i32
    %c0_i32_1 = arith.constant 0 : i32
    return %c0_i32, %c0_i32_0 : i32, i32
  }
  func.func @transform_11(%arg0: i32) -> (i32, i32) {
    %c0_i32 = arith.constant 0 : i32
    %c0_i32_0 = arith.constant 0 : i32
    %c0_i32_1 = arith.constant 0 : i32
    return %c0_i32, %c0_i32_0 : i32, i32
  }
  func.func @transform_12(%arg0: i32) -> (i32, i32) {
    %c0_i32 = arith.constant 0 : i32
    %c0_i32_0 = arith.constant 0 : i32
    %c0_i32_1 = arith.constant 0 : i32
    return %c0_i32, %c0_i32_0 : i32, i32
  }
  func.func @transform_13(%arg0: i32) -> (i32, i32, i32) {
    %c0_i32 = arith.constant 0 : i32
    %c0_i32_0 = arith.constant 0 : i32
    %c0_i32_1 = arith.constant 0 : i32
    return %arg0, %c0_i32, %c0_i32_0 : i32, i32, i32
  }
}

</mosaic_0001>

<llo_original>
// kernel: _lambda_.1
$region0: #{_lambda_.1}
  #allocation0 [shape = 'u32[]', space=smem, size = 0x4, offset = 0x4, fixed_abs, tag = 'smem constant byte address 0x4 - core index']
  #allocation1 [shape = 'u32[144,128]{1,0:T(1,128)}', space=vmem, size = 0x12000, scoped, tag = 'internal scratch']
  #allocation2 [shape = 'f32[32,1280]{1,0:T(8,128)}', space=vmem, size = 0x28000, scoped, tag = 'scratch operand']
  %s0 = inlined_call_operand.hbm [shape: f32[4,1,1024], index: 0, kind: input, shape index: {}]
  %s1 = inlined_call_operand.hbm [shape: f32[16,5], index: 1, kind: input, shape index: {}]
  %s2 = inlined_call_operand.hbm [shape: f32[16,1], index: 2, kind: input, shape index: {}]
  %s3 = inlined_call_operand.hbm [shape: bf16[16,80], index: 3, kind: input, shape index: {}]
  %s4 = inlined_call_operand.hbm [shape: f32[16,1], index: 4, kind: input, shape index: {}]
  %s5 = inlined_call_operand.hbm [shape: bf16[32,80], index: 5, kind: input, shape index: {}]
  %s6 = inlined_call_operand.hbm [shape: f32[32,1], index: 6, kind: input, shape index: {}]
  %s7 = inlined_call_operand.hbm [shape: bf16[32,96], index: 7, kind: input, shape index: {}]
  %s8 = inlined_call_operand.hbm [shape: f32[32,1], index: 8, kind: input, shape index: {}]
  %s9 = inlined_call_operand.hbm [shape: bf16[32,96], index: 9, kind: input, shape index: {}]
  %s10 = inlined_call_operand.hbm [shape: f32[32,1], index: 10, kind: input, shape index: {}]
  %s11 = inlined_call_operand.hbm [shape: bf16[16,96], index: 11, kind: input, shape index: {}]
  %s12 = inlined_call_operand.vmem [shape: f32[16,1], index: 12, kind: input, shape index: {}]
  %s13 = inlined_call_operand.vmem [shape: f32[4,16,4], index: 13, kind: output, shape index: {}]
  %s14 = sld [smem:[#allocation0]]
  $region133: #{_lambda_.1} parent=0
    _
  %s16 = ssub.s32 1, %s14
  %s17 = scalar_select 0, %s16, %s14
  $region1: #{_lambda_.1} parent=0
    #allocation3 [shape = 'u8[16384]{0}', space=vmem, size = 0x4000, scoped, tag = 'input window, operand 0']
    #allocation4 [shape = 's32[2]{0}', space=sflag, size = 0x8, scoped, tag = 'scoped memory for _lambda_.1']
    #allocation5 [shape = 'u8[8192]{0}', space=vmem, size = 0x2000, scoped, tag = 'input window, operand 1, single buffered']
    #allocation6 [shape = 's32[1]{0}', space=sflag, size = 0x4, scoped, tag = 'scoped memory for _lambda_.1']
    #allocation7 [shape = 'u8[8192]{0}', space=vmem, size = 0x2000, scoped, tag = 'input window, operand 2, single buffered']
    #allocation8 [shape = 'u8[4096]{0}', space=vmem, size = 0x1000, scoped, tag = 'input window, operand 3, single buffered']
    #allocation9 [shape = 's32[1]{0}', space=sflag, size = 0x4, scoped, tag = 'scoped memory for _lambda_.1']
    #allocation10 [shape = 'u8[8192]{0}', space=vmem, size = 0x2000, scoped, tag = 'input window, operand 4, single buffered']
    #allocation11 [shape = 'u8[8192]{0}', space=vmem, size = 0x2000, scoped, tag = 'input window, operand 5, single buffered']
    #allocation12 [shape = 's32[1]{0}', space=sflag, size = 0x4, scoped, tag = 'scoped memory for _lambda_.1']
    #allocation13 [shape = 'u8[16384]{0}', space=vmem, size = 0x4000, scoped, tag = 'input window, operand 6, single buffered']
    #allocation14 [shape = 'u8[8192]{0}', space=vmem, size = 0x2000, scoped, tag = 'input window, operand 7, single buffered']
    #allocation15 [shape = 's32[1]{0}', space=sflag, size = 0x4, scoped, tag = 'scoped memory for _lambda_.1']
    #allocation16 [shape = 'u8[16384]{0}', space=vmem, size = 0x4000, scoped, tag = 'input window, operand 8, single buffered']
    #allocation17 [shape = 'u8[8192]{0}', space=vmem, size = 0x2000, scoped, tag = 'input window, operand 9, single buffered']
    #allocation18 [shape = 's32[1]{0}', space=sflag, size = 0x4, scoped, tag = 'scoped memory for _lambda_.1']
    #allocation19 [shape = 'u8[16384]{0}', space=vmem, size = 0x4000, scoped, tag = 'input window, operand 10, single buffered']
    #allocation20 [shape = 'u8[4096]{0}', space=vmem, size = 0x1000, scoped, tag = 'input window, operand 11, single buffered']
    #allocation21 [shape = 's32[1]{0}', space=sflag, size = 0x4, scoped, tag = 'scoped memory for _lambda_.1']
    %18 = vsyncpa [#allocation4], 0
    %s19 = scalar_lea.sflag [#allocation4], 1
    %20 = vsyncpa %s19, 0
    %21 = vsyncpa [#allocation6], 0
    %22 = vsyncpa [#allocation9], 0
    %23 = vsyncpa [#allocation12], 0
    %24 = vsyncpa [#allocation15], 0
    %25 = vsyncpa [#allocation18], 0
    %26 = vsyncpa [#allocation21], 0
    loop: start=0, step=1, limit=4
    $region2: #{_lambda_.1} parent=1 // loop_pre_header
      _
    $region3: #{_lambda_.1} parent=1 // loop_header
      %s28 = sphi 0, %s32
      %p29 = scmp.ge.s32.totalorder %s28, 4
      %s38 = sphi 0, %s40
      %s41 = sphi 0, %s38
      %s42 = sphi 0, %s41
      %s58 = sphi 0, %s42
      %s62 = sphi 0, %s62
      %s64 = sphi 0, %s62
      %s65 = sphi 0, %s64
      %s79 = sphi 0, %s65
      %s83 = sphi 0, %s83
      %s85 = sphi 0, %s83
      %s86 = sphi 0, %s85
      %s100 = sphi 0, %s86
      %s104 = sphi 0, %s104
      %s106 = sphi 0, %s104
      %s107 = sphi 0, %s106
      %s121 = sphi 0, %s107
      %s125 = sphi 0, %s125
      %s127 = sphi 0, %s125
      %s128 = sphi 0, %s127
      %s142 = sphi 0, %s128
      %s146 = sphi 0, %s146
      %s148 = sphi 0, %s146
      %s149 = sphi 0, %s148
      %s163 = sphi 0, %s149
      %s167 = sphi 0, %s167
      %s169 = sphi 0, %s167
      %s170 = sphi 0, %s169
      %s184 = sphi 0, %s170
      %s188 = sphi 0, %s188
      %s190 = sphi 0, %s188
      %s191 = sphi 0, %s190
      %s205 = sphi 0, %s191
      %s209 = sphi 0, %s209
      %s211 = sphi 0, %s209
      %s212 = sphi 0, %s211
      %s226 = sphi 0, %s212
      %s230 = sphi 0, %s230
      %s232 = sphi 0, %s230
      %s233 = sphi 0, %s232
      %s247 = sphi 0, %s233
      %s251 = sphi 0, %s251
      %s253 = sphi 0, %s251
      %s254 = sphi 0, %s253
      %s268 = sphi 0, %s254
      %s272 = sphi 0, %s272
      %s274 = sphi 0, %s272
      %s275 = sphi 0, %s274
      %s289 = sphi 0, %s275
      %s293 = sphi 0, %s293
      %s295 = sphi 0, %s293
      %s296 = sphi 0, %s295
      %s310 = sphi 0, %s296
      %s316 = sphi 0, %s318
      %s319 = sphi 0, %s316
      %s320 = sphi 0, %s319
      %s336 = sphi 0, %s320
    $region4: #{_lambda_.1} parent=1 // loop_header_branch
      %31 = sbr.rel (%p29) target = $region8
    $region5: #{_lambda_.1} parent=1 // loop_body
      %s33 = ssub.s32 %s28, 1
      %s34 = ssub.s32 %s28, 2
      %s35 = sadd.s32 %s28, 1
      %s36 = ssub.s32 %s28, %s35
      %p37 = scmp.eq.s32.totalorder %s36, 0
      %s39 = sadd.s32 %s38, 1
      %s40 = scalar_select %p37, %s38, %s39
      %p43 = pneg %p37
      %p44 = scmp.eq.s32.totalorder %s28, 1
      %p45 = por %p43, %p44
      %p46 = scmp.ne.s32.totalorder %s38, %s41
      %p47 = scmp.eq.s32.totalorder %s28, 0
      %p48 = por %p46, %p47
      %p49 = scmp.ne.s32.totalorder %s38, %s41
      %p50 = scmp.eq.s32.totalorder %s33, 1
      %p51 = por %p49, %p50
      %p52 = scmp.ne.s32.totalorder %s41, %s42
      %p53 = scmp.eq.s32.totalorder %s33, 0
      %p54 = por %p52, %p53
      %p55 = scmp.ne.s32.totalorder %s41, %s42
      %p56 = scmp.eq.s32.totalorder %s34, 1
      %p57 = por %p55, %p56
      %p59 = scmp.ne.s32.totalorder %s42, %s58
      %p60 = scmp.eq.s32.totalorder %s34, 0
      %p61 = por %p59, %p60
      %s63 = sadd.s32 %s62, 1
      %p66 = scmp.eq.s32.totalorder %s28, 1
      %p67 = scmp.ne.s32.totalorder %s62, %s64
      %p68 = scmp.eq.s32.totalorder %s28, 0
      %p69 = por %p67, %p68
      %p70 = scmp.ne.s32.totalorder %s62, %s64
      %p71 = scmp.eq.s32.totalorder %s33, 1
      %p72 = por %p70, %p71
      %p73 = scmp.ne.s32.totalorder %s64, %s65
      %p74 = scmp.eq.s32.totalorder %s33, 0
      %p75 = por %p73, %p74
      %p76 = scmp.ne.s32.totalorder %s64, %s65
      %p77 = scmp.eq.s32.totalorder %s34, 1
      %p78 = por %p76, %p77
      %p80 = scmp.ne.s32.totalorder %s65, %s79
      %p81 = scmp.eq.s32.totalorder %s34, 0
      %p82 = por %p80, %p81
      %s84 = sadd.s32 %s83, 1
      %p87 = scmp.eq.s32.totalorder %s28, 1
      %p88 = scmp.ne.s32.totalorder %s83, %s85
      %p89 = scmp.eq.s32.totalorder %s28, 0
      %p90 = por %p88, %p89
      %p91 = scmp.ne.s32.totalorder %s83, %s85
      %p92 = scmp.eq.s32.totalorder %s33, 1
      %p93 = por %p91, %p92
      %p94 = scmp.ne.s32.totalorder %s85, %s86
      %p95 = scmp.eq.s32.totalorder %s33, 0
      %p96 = por %p94, %p95
      %p97 = scmp.ne.s32.totalorder %s85, %s86
      %p98 = scmp.eq.s32.totalorder %s34, 1
      %p99 = por %p97, %p98
      %p101 = scmp.ne.s32.totalorder %s86, %s100
      %p102 = scmp.eq.s32.totalorder %s34, 0
      %p103 = por %p101, %p102
      %s105 = sadd.s32 %s104, 1
      %p108 = scmp.eq.s32.totalorder %s28, 1
      %p109 = scmp.ne.s32.totalorder %s104, %s106
      %p110 = scmp.eq.s32.totalorder %s28, 0
      %p111 = por %p109, %p110
      %p112 = scmp.ne.s32.totalorder %s104, %s106
      %p113 = scmp.eq.s32.totalorder %s33, 1
      %p114 = por %p112, %p113
      %p115 = scmp.ne.s32.totalorder %s106, %s107
      %p116 = scmp.eq.s32.totalorder %s33, 0
      %p117 = por %p115, %p116
      %p118 = scmp.ne.s32.totalorder %s106, %s107
      %p119 = scmp.eq.s32.totalorder %s34, 1
      %p120 = por %p118, %p119
      %p122 = scmp.ne.s32.totalorder %s107, %s121
      %p123 = scmp.eq.s32.totalorder %s34, 0
      %p124 = por %p122, %p123
      %s126 = sadd.s32 %s125, 1
      %p129 = scmp.eq.s32.totalorder %s28, 1
      %p130 = scmp.ne.s32.totalorder %s125, %s127
      %p131 = scmp.eq.s32.totalorder %s28, 0
      %p132 = por %p130, %p131
      %p133 = scmp.ne.s32.totalorder %s125, %s127
      %p134 = scmp.eq.s32.totalorder %s33, 1
      %p135 = por %p133, %p134
      %p136 = scmp.ne.s32.totalorder %s127, %s128
      %p137 = scmp.eq.s32.totalorder %s33, 0
      %p138 = por %p136, %p137
      %p139 = scmp.ne.s32.totalorder %s127, %s128
      %p140 = scmp.eq.s32.totalorder %s34, 1
      %p141 = por %p139, %p140
      %p143 = scmp.ne.s32.totalorder %s128, %s142
      %p144 = scmp.eq.s32.totalorder %s34, 0
      %p145 = por %p143, %p144
      %s147 = sadd.s32 %s146, 1
      %p150 = scmp.eq.s32.totalorder %s28, 1
      %p151 = scmp.ne.s32.totalorder %s146, %s148
      %p152 = scmp.eq.s32.totalorder %s28, 0
      %p153 = por %p151, %p152
      %p154 = scmp.ne.s32.totalorder %s146, %s148
      %p155 = scmp.eq.s32.totalorder %s33, 1
      %p156 = por %p154, %p155
      %p157 = scmp.ne.s32.totalorder %s148, %s149
      %p158 = scmp.eq.s32.totalorder %s33, 0
      %p159 = por %p157, %p158
      %p160 = scmp.ne.s32.totalorder %s148, %s149
      %p161 = scmp.eq.s32.totalorder %s34, 1
      %p162 = por %p160, %p161
      %p164 = scmp.ne.s32.totalorder %s149, %s163
      %p165 = scmp.eq.s32.totalorder %s34, 0
      %p166 = por %p164, %p165
      %s168 = sadd.s32 %s167, 1
      %p171 = scmp.eq.s32.totalorder %s28, 1
      %p172 = scmp.ne.s32.totalorder %s167, %s169
      %p173 = scmp.eq.s32.totalorder %s28, 0
      %p174 = por %p172, %p173
      %p175 = scmp.ne.s32.totalorder %s167, %s169
      %p176 = scmp.eq.s32.totalorder %s33, 1
      %p177 = por %p175, %p176
      %p178 = scmp.ne.s32.totalorder %s169, %s170
      %p179 = scmp.eq.s32.totalorder %s33, 0
      %p180 = por %p178, %p179
      %p181 = scmp.ne.s32.totalorder %s169, %s170
      %p182 = scmp.eq.s32.totalorder %s34, 1
      %p183 = por %p181, %p182
      %p185 = scmp.ne.s32.totalorder %s170, %s184
      %p186 = scmp.eq.s32.totalorder %s34, 0
      %p187 = por %p185, %p186
      %s189 = sadd.s32 %s188, 1
      %p192 = scmp.eq.s32.totalorder %s28, 1
      %p193 = scmp.ne.s32.totalorder %s188, %s190
      %p194 = scmp.eq.s32.totalorder %s28, 0
      %p195 = por %p193, %p194
      %p196 = scmp.ne.s32.totalorder %s188, %s190
      %p197 = scmp.eq.s32.totalorder %s33, 1
      %p198 = por %p196, %p197
      %p199 = scmp.ne.s32.totalorder %s190, %s191
      %p200 = scmp.eq.s32.totalorder %s33, 0
      %p201 = por %p199, %p200
      %p202 = scmp.ne.s32.totalorder %s190, %s191
      %p203 = scmp.eq.s32.totalorder %s34, 1
      %p204 = por %p202, %p203
      %p206 = scmp.ne.s32.totalorder %s191, %s205
      %p207 = scmp.eq.s32.totalorder %s34, 0
      %p208 = por %p206, %p207
      %s210 = sadd.s32 %s209, 1
      %p213 = scmp.eq.s32.totalorder %s28, 1
      %p214 = scmp.ne.s32.totalorder %s209, %s211
      %p215 = scmp.eq.s32.totalorder %s28, 0
      %p216 = por %p214, %p215
      %p217 = scmp.ne.s32.totalorder %s209, %s211
      %p218 = scmp.eq.s32.totalorder %s33, 1
      %p219 = por %p217, %p218
      %p220 = scmp.ne.s32.totalorder %s211, %s212
      %p221 = scmp.eq.s32.totalorder %s33, 0
      %p222 = por %p220, %p221
      %p223 = scmp.ne.s32.totalorder %s211, %s212
      %p224 = scmp.eq.s32.totalorder %s34, 1
      %p225 = por %p223, %p224
      %p227 = scmp.ne.s32.totalorder %s212, %s226
      %p228 = scmp.eq.s32.totalorder %s34, 0
      %p229 = por %p227, %p228
      %s231 = sadd.s32 %s230, 1
      %p234 = scmp.eq.s32.totalorder %s28, 1
      %p235 = scmp.ne.s32.totalorder %s230, %s232
      %p236 = scmp.eq.s32.totalorder %s28, 0
      %p237 = por %p235, %p236
      %p238 = scmp.ne.s32.totalorder %s230, %s232
      %p239 = scmp.eq.s32.totalorder %s33, 1
      %p240 = por %p238, %p239
      %p241 = scmp.ne.s32.totalorder %s232, %s233
      %p242 = scmp.eq.s32.totalorder %s33, 0
      %p243 = por %p241, %p242
      %p244 = scmp.ne.s32.totalorder %s232, %s233
      %p245 = scmp.eq.s32.totalorder %s34, 1
      %p246 = por %p244, %p245
      %p248 = scmp.ne.s32.totalorder %s233, %s247
      %p249 = scmp.eq.s32.totalorder %s34, 0
      %p250 = por %p248, %p249
      %s252 = sadd.s32 %s251, 1
      %p255 = scmp.eq.s32.totalorder %s28, 1
      %p256 = scmp.ne.s32.totalorder %s251, %s253
      %p257 = scmp.eq.s32.totalorder %s28, 0
      %p258 = por %p256, %p257
      %p259 = scmp.ne.s32.totalorder %s251, %s253
      %p260 = scmp.eq.s32.totalorder %s33, 1
      %p261 = por %p259, %p260
      %p262 = scmp.ne.s32.totalorder %s253, %s254
      %p263 = scmp.eq.s32.totalorder %s33, 0
      %p264 = por %p262, %p263
      %p265 = scmp.ne.s32.totalorder %s253, %s254
      %p266 = scmp.eq.s32.totalorder %s34, 1
      %p267 = por %p265, %p266
      %p269 = scmp.ne.s32.totalorder %s254, %s268
      %p270 = scmp.eq.s32.totalorder %s34, 0
      %p271 = por %p269, %p270
      %s273 = sadd.s32 %s272, 1
      %p276 = scmp.eq.s32.totalorder %s28, 1
      %p277 = scmp.ne.s32.totalorder %s272, %s274
      %p278 = scmp.eq.s32.totalorder %s28, 0
      %p279 = por %p277, %p278
      %p280 = scmp.ne.s32.totalorder %s272, %s274
      %p281 = scmp.eq.s32.totalorder %s33, 1
      %p282 = por %p280, %p281
      %p283 = scmp.ne.s32.totalorder %s274, %s275
      %p284 = scmp.eq.s32.totalorder %s33, 0
      %p285 = por %p283, %p284
      %p286 = scmp.ne.s32.totalorder %s274, %s275
      %p287 = scmp.eq.s32.totalorder %s34, 1
      %p288 = por %p286, %p287
      %p290 = scmp.ne.s32.totalorder %s275, %s289
      %p291 = scmp.eq.s32.totalorder %s34, 0
      %p292 = por %p290, %p291
      %s294 = sadd.s32 %s293, 1
      %p297 = scmp.eq.s32.totalorder %s28, 1
      %p298 = scmp.ne.s32.totalorder %s293, %s295
      %p299 = scmp.eq.s32.totalorder %s28, 0
      %p300 = por %p298, %p299
      %p301 = scmp.ne.s32.totalorder %s293, %s295
      %p302 = scmp.eq.s32.totalorder %s33, 1
      %p303 = por %p301, %p302
      %p304 = scmp.ne.s32.totalorder %s295, %s296
      %p305 = scmp.eq.s32.totalorder %s33, 0
      %p306 = por %p304, %p305
      %p307 = scmp.ne.s32.totalorder %s295, %s296
      %p308 = scmp.eq.s32.totalorder %s34, 1
      %p309 = por %p307, %p308
      %p311 = scmp.ne.s32.totalorder %s296, %s310
      %p312 = scmp.eq.s32.totalorder %s34, 0
      %p313 = por %p311, %p312
      %s314 = ssub.s32 %s28, %s35
      %p315 = scmp.eq.s32.totalorder %s314, 0
      %s317 = sadd.s32 %s316, 1
      %s318 = scalar_select %p315, %s316, %s317
      %p321 = pneg %p315
      %p322 = scmp.eq.s32.totalorder %s28, 1
      %p323 = por %p321, %p322
      %p324 = scmp.ne.s32.totalorder %s316, %s319
      %p325 = scmp.eq.s32.totalorder %s28, 0
      %p326 = por %p324, %p325
      %p327 = scmp.ne.s32.totalorder %s316, %s319
      %p328 = scmp.eq.s32.totalorder %s33, 1
      %p329 = por %p327, %p328
      %p330 = scmp.ne.s32.totalorder %s319, %s320
      %p331 = scmp.eq.s32.totalorder %s33, 0
      %p332 = por %p330, %p331
      %p333 = scmp.ne.s32.totalorder %s319, %s320
      %p334 = scmp.eq.s32.totalorder %s34, 1
      %p335 = por %p333, %p334
      %p337 = scmp.ne.s32.totalorder %s320, %s336
      %p338 = scmp.eq.s32.totalorder %s34, 0
      %p339 = por %p337, %p338
      %p340 = scmp.le.s32.totalorder 1, %s28
      %p341 = scmp.lt.s32.totalorder %s28, 3
      %p342 = pnand %p340, %p341
      %p343 = pneg %p342
      // Predicated region
      $region9: #{_lambda_.1} parent=5 // pred_check
        _
      $region10: #{_lambda_.1} parent=5 // pred_check_branch
        %345 = sbr.rel (%p342) target = $region12
      $region11: #{_lambda_.1} parent=5 // pred_region
        %s346 = ssub.s32 %s28, 1
        // Predicated region
        $region13: #{_lambda_.1} parent=11 // pred_check
          %p347 = pneg %p75
        $region14: #{_lambda_.1} parent=11 // pred_check_branch
          %349 = sbr.rel (%p347) target = $region16
        $region15: #{_lambda_.1} parent=11 // pred_region
          %s351 = ssub.s32 256, 256
          %352 = vsyncadd [#allocation6], %s351
          %s353 = sshll.u32 [#allocation5], 4
          %s354 = int_to_ptr.vmem [resolvable:$true] %s353
          %359 = dma.hbm_to_vmem [thread:$0]  %s1, 256, %s354, [#allocation6], 128, 128, 8
        $region16: #{_lambda_.1} parent=11 // pred_fallthru
          _
        // Predicated region
        $region17: #{_lambda_.1} parent=11 // pred_check
          %p360 = pneg %p96
        $region18: #{_lambda_.1} parent=11 // pred_check_branch
          %362 = sbr.rel (%p360) target = $region20
        $region19: #{_lambda_.1} parent=11 // pred_region
          %s364 = ssub.s32 256, 256
          %365 = vsyncadd [#allocation6], %s364
          %s366 = sshll.u32 [#allocation7], 4
          %s367 = int_to_ptr.vmem [resolvable:$true] %s366
          %372 = dma.hbm_to_vmem [thread:$0]  %s2, 256, %s367, [#allocation6], 128, 128, 8
        $region20: #{_lambda_.1} parent=11 // pred_fallthru
          _
        // Predicated region
        $region21: #{_lambda_.1} parent=11 // pred_check
          %p373 = pneg %p117
        $region22: #{_lambda_.1} parent=11 // pred_check_branch
          %375 = sbr.rel (%p373) target = $region24
        $region23: #{_lambda_.1} parent=11 // pred_region
          %s377 = ssub.s32 128, 128
          %378 = vsyncadd [#allocation9], %s377
          %s379 = sshll.u32 [#allocation8], 4
          %s380 = int_to_ptr.vmem [resolvable:$true] %s379
          %385 = dma.hbm_to_vmem [thread:$0]  %s3, 128, %s380, [#allocation9], 64, 64, 4
        $region24: #{_lambda_.1} parent=11 // pred_fallthru
          _
        // Predicated region
        $region25: #{_lambda_.1} parent=11 // pred_check
          %p386 = pneg %p138
        $region26: #{_lambda_.1} parent=11 // pred_check_branch
          %388 = sbr.rel (%p386) target = $region28
        $region27: #{_lambda_.1} parent=11 // pred_region
          %s390 = ssub.s32 256, 256
          %391 = vsyncadd [#allocation9], %s390
          %s392 = sshll.u32 [#allocation10], 4
          %s393 = int_to_ptr.vmem [resolvable:$true] %s392
          %398 = dma.hbm_to_vmem [thread:$0]  %s4, 256, %s393, [#allocation9], 128, 128, 8
        $region28: #{_lambda_.1} parent=11 // pred_fallthru
          _
        // Predicated region
        $region29: #{_lambda_.1} parent=11 // pred_check
          %p399 = pneg %p159
        $region30: #{_lambda_.1} parent=11 // pred_check_branch
          %401 = sbr.rel (%p399) target = $region32
        $region31: #{_lambda_.1} parent=11 // pred_region
          %s403 = ssub.s32 256, 256
          %404 = vsyncadd [#allocation12], %s403
          %s405 = sshll.u32 [#allocation11], 4
          %s406 = int_to_ptr.vmem [resolvable:$true] %s405
          %411 = dma.hbm_to_vmem [thread:$0]  %s5, 256, %s406, [#allocation12], 64, 64, 4
        $region32: #{_lambda_.1} parent=11 // pred_fallthru
          _
        // Predicated region
        $region33: #{_lambda_.1} parent=11 // pred_check
          %p412 = pneg %p180
        $region34: #{_lambda_.1} parent=11 // pred_check_branch
          %414 = sbr.rel (%p412) target = $region36
        $region35: #{_lambda_.1} parent=11 // pred_region
          %s416 = ssub.s32 512, 512
          %417 = vsyncadd [#allocation12], %s416
          %s418 = sshll.u32 [#allocation13], 4
          %s419 = int_to_ptr.vmem [resolvable:$true] %s418
          %424 = dma.hbm_to_vmem [thread:$0]  %s6, 512, %s419, [#allocation12], 128, 128, 8
        $region36: #{_lambda_.1} parent=11 // pred_fallthru
          _
        // Predicated region
        $region37: #{_lambda_.1} parent=11 // pred_check
          %p425 = pneg %p201
        $region38: #{_lambda_.1} parent=11 // pred_check_branch
          %427 = sbr.rel (%p425) target = $region40
        $region39: #{_lambda_.1} parent=11 // pred_region
          %s429 = ssub.s32 256, 256
          %430 = vsyncadd [#allocation15], %s429
          %s431 = sshll.u32 [#allocation14], 4
          %s432 = int_to_ptr.vmem [resolvable:$true] %s431
          %437 = dma.hbm_to_vmem [thread:$0]  %s7, 256, %s432, [#allocation15], 64, 64, 4
        $region40: #{_lambda_.1} parent=11 // pred_fallthru
          _
        // Predicated region
        $region41: #{_lambda_.1} parent=11 // pred_check
          %p438 = pneg %p222
        $region42: #{_lambda_.1} parent=11 // pred_check_branch
          %440 = sbr.rel (%p438) target = $region44
        $region43: #{_lambda_.1} parent=11 // pred_region
          %s442 = ssub.s32 512, 512
          %443 = vsyncadd [#allocation15], %s442
          %s444 = sshll.u32 [#allocation16], 4
          %s445 = int_to_ptr.vmem [resolvable:$true] %s444
          %450 = dma.hbm_to_vmem [thread:$0]  %s8, 512, %s445, [#allocation15], 128, 128, 8
        $region44: #{_lambda_.1} parent=11 // pred_fallthru
          _
        // Predicated region
        $region45: #{_lambda_.1} parent=11 // pred_check
          %p451 = pneg %p243
        $region46: #{_lambda_.1} parent=11 // pred_check_branch
          %453 = sbr.rel (%p451) target = $region48
        $region47: #{_lambda_.1} parent=11 // pred_region
          %s455 = ssub.s32 256, 256
          %456 = vsyncadd [#allocation18], %s455
          %s457 = sshll.u32 [#allocation17], 4
          %s458 = int_to_ptr.vmem [resolvable:$true] %s457
          %463 = dma.hbm_to_vmem [thread:$0]  %s9, 256, %s458, [#allocation18], 64, 64, 4
        $region48: #{_lambda_.1} parent=11 // pred_fallthru
          _
        // Predicated region
        $region49: #{_lambda_.1} parent=11 // pred_check
          %p464 = pneg %p264
        $region50: #{_lambda_.1} parent=11 // pred_check_branch
          %466 = sbr.rel (%p464) target = $region52
        $region51: #{_lambda_.1} parent=11 // pred_region
          %s468 = ssub.s32 512, 512
          %469 = vsyncadd [#allocation18], %s468
          %s470 = sshll.u32 [#allocation19], 4
          %s471 = int_to_ptr.vmem [resolvable:$true] %s470
          %476 = dma.hbm_to_vmem [thread:$0]  %s10, 512, %s471, [#allocation18], 128, 128, 8
        $region52: #{_lambda_.1} parent=11 // pred_fallthru
          _
        // Predicated region
        $region53: #{_lambda_.1} parent=11 // pred_check
          %p477 = pneg %p285
        $region54: #{_lambda_.1} parent=11 // pred_check_branch
          %479 = sbr.rel (%p477) target = $region56
        $region55: #{_lambda_.1} parent=11 // pred_region
          %s481 = ssub.s32 128, 128
          %482 = vsyncadd [#allocation21], %s481
          %s483 = sshll.u32 [#allocation20], 4
          %s484 = int_to_ptr.vmem [resolvable:$true] %s483
          %489 = dma.hbm_to_vmem [thread:$0]  %s11, 128, %s484, [#allocation21], 64, 64, 4
        $region56: #{_lambda_.1} parent=11 // pred_fallthru
          _
        // Predicated region
        $region57: #{_lambda_.1} parent=11 // pred_check
          %p490 = pneg %p306
        $region58: #{_lambda_.1} parent=11 // pred_check_branch
          %492 = sbr.rel (%p490) target = $region60
        $region59: #{_lambda_.1} parent=11 // pred_region
          _
        $region60: #{_lambda_.1} parent=11 // pred_fallthru
          _
      $region12: #{_lambda_.1} parent=5 // pred_fallthru
        _
      %p493 = scmp.lt.s32.totalorder %s28, 2
      // Predicated region
      $region61: #{_lambda_.1} parent=5 // pred_check
        %p494 = pneg %p493
      $region62: #{_lambda_.1} parent=5 // pred_check_branch
        %496 = sbr.rel (%p494) target = $region64
      $region63: #{_lambda_.1} parent=5 // pred_region
        // Predicated region
        $region65: #{_lambda_.1} parent=63 // pred_check
          %p497 = pneg %p48
        $region66: #{_lambda_.1} parent=63 // pred_check_branch
          %499 = sbr.rel (%p497) target = $region68
        $region67: #{_lambda_.1} parent=63 // pred_region
          %s500 = sand.u32 %s38, 1
          %s501 = scalar_lea.sflag [#allocation4], %s500
          %s502 = sand.u32 %s38, 1
          %s503 = smul.addr %s502, 16
          %s504 = scalar_lea.vmem [#allocation3], %s503
          %s505 = smul.u32 2, %s28
          %s507 = ssub.s32 256, 256
          %508 = vsyncadd %s501, %s507
          %s509 = smul.addr %s505, 8
          %s510 = smul.addr %s509, 16
          %s511 = scalar_lea.hbm %s0, %s510
          %s512 = sshll.u32 %s504, 4
          %s513 = int_to_ptr.vmem [resolvable:$true] %s512
          %518 = dma.hbm_to_vmem [thread:$0]  %s511, 256, %s513, %s501, 128, 128, 8
        $region68: #{_lambda_.1} parent=63 // pred_fallthru
          _
      $region64: #{_lambda_.1} parent=5 // pred_fallthru
        _
      %p519 = scmp.le.s32.totalorder 1, %s28
      %p520 = scmp.lt.s32.totalorder %s28, 3
      %p521 = pnand %p519, %p520
      %p522 = pneg %p521
      // Predicated region
      $region69: #{_lambda_.1} parent=5 // pred_check
        _
      $region70: #{_lambda_.1} parent=5 // pred_check_branch
        %524 = sbr.rel (%p521) target = $region72
      $region71: #{_lambda_.1} parent=5 // pred_region
        %s525 = ssub.s32 %s28, 1
        %s526 = sand.u32 %s41, 1
        %s527 = scalar_lea.sflag [#allocation4], %s526
        %s528 = sand.u32 %s41, 1
        %s529 = smul.addr %s528, 16
        %s530 = scalar_lea.vmem [#allocation3], %s529
        // Predicated region
        $region73: #{_lambda_.1} parent=71 // pred_check
          %p531 = pneg %p54
        $region74: #{_lambda_.1} parent=71 // pred_check_branch
          %533 = sbr.rel (%p531) target = $region76
        $region75: #{_lambda_.1} parent=71 // pred_region
          %534 = dma.done %s527, 256
        $region76: #{_lambda_.1} parent=71 // pred_fallthru
          _
        // Predicated region
        $region77: #{_lambda_.1} parent=71 // pred_check
          %p535 = pneg %p75
        $region78: #{_lambda_.1} parent=71 // pred_check_branch
          %537 = sbr.rel (%p535) target = $region80
        $region79: #{_lambda_.1} parent=71 // pred_region
          %538 = dma.done [#allocation6], 256
        $region80: #{_lambda_.1} parent=71 // pred_fallthru
          _
        // Predicated region
        $region81: #{_lambda_.1} parent=71 // pred_check
          %p539 = pneg %p96
        $region82: #{_lambda_.1} parent=71 // pred_check_branch
          %541 = sbr.rel (%p539) target = $region84
        $region83: #{_lambda_.1} parent=71 // pred_region
          %542 = dma.done [#allocation6], 256
        $region84: #{_lambda_.1} parent=71 // pred_fallthru
          _
        // Predicated region
        $region85: #{_lambda_.1} parent=71 // pred_check
          %p543 = pneg %p117
        $region86: #{_lambda_.1} parent=71 // pred_check_branch
          %545 = sbr.rel (%p543) target = $region88
        $region87: #{_lambda_.1} parent=71 // pred_region
          %546 = dma.done [#allocation9], 128
        $region88: #{_lambda_.1} parent=71 // pred_fallthru
          _
        // Predicated region
        $region89: #{_lambda_.1} parent=71 // pred_check
          %p547 = pneg %p138
        $region90: #{_lambda_.1} parent=71 // pred_check_branch
          %549 = sbr.rel (%p547) target = $region92
        $region91: #{_lambda_.1} parent=71 // pred_region
          %550 = dma.done [#allocation9], 256
        $region92: #{_lambda_.1} parent=71 // pred_fallthru
          _
        // Predicated region
        $region93: #{_lambda_.1} parent=71 // pred_check
          %p551 = pneg %p159
        $region94: #{_lambda_.1} parent=71 // pred_check_branch
          %553 = sbr.rel (%p551) target = $region96
        $region95: #{_lambda_.1} parent=71 // pred_region
          %554 = dma.done [#allocation12], 256
        $region96: #{_lambda_.1} parent=71 // pred_fallthru
          _
        // Predicated region
        $region97: #{_lambda_.1} parent=71 // pred_check
          %p555 = pneg %p180
        $region98: #{_lambda_.1} parent=71 // pred_check_branch
          %557 = sbr.rel (%p555) target = $region100
        $region99: #{_lambda_.1} parent=71 // pred_region
          %558 = dma.done [#allocation12], 512
        $region100: #{_lambda_.1} parent=71 // pred_fallthru
          _
        // Predicated region
        $region101: #{_lambda_.1} parent=71 // pred_check
          %p559 = pneg %p201
        $region102: #{_lambda_.1} parent=71 // pred_check_branch
          %561 = sbr.rel (%p559) target = $region104
        $region103: #{_lambda_.1} parent=71 // pred_region
          %562 = dma.done [#allocation15], 256
        $region104: #{_lambda_.1} parent=71 // pred_fallthru
          _
        // Predicated region
        $region105: #{_lambda_.1} parent=71 // pred_check
          %p563 = pneg %p222
        $region106: #{_lambda_.1} parent=71 // pred_check_branch
          %565 = sbr.rel (%p563) target = $region108
        $region107: #{_lambda_.1} parent=71 // pred_region
          %566 = dma.done [#allocation15], 512
        $region108: #{_lambda_.1} parent=71 // pred_fallthru
          _
        // Predicated region
        $region109: #{_lambda_.1} parent=71 // pred_check
          %p567 = pneg %p243
        $region110: #{_lambda_.1} parent=71 // pred_check_branch
          %569 = sbr.rel (%p567) target = $region112
        $region111: #{_lambda_.1} parent=71 // pred_region
          %570 = dma.done [#allocation18], 256
        $region112: #{_lambda_.1} parent=71 // pred_fallthru
          _
        // Predicated region
        $region113: #{_lambda_.1} parent=71 // pred_check
          %p571 = pneg %p264
        $region114: #{_lambda_.1} parent=71 // pred_check_branch
          %573 = sbr.rel (%p571) target = $region116
        $region115: #{_lambda_.1} parent=71 // pred_region
          %574 = dma.done [#allocation18], 512
        $region116: #{_lambda_.1} parent=71 // pred_fallthru
          _
        // Predicated region
        $region117: #{_lambda_.1} parent=71 // pred_check
          %p575 = pneg %p285
        $region118: #{_lambda_.1} parent=71 // pred_check_branch
          %577 = sbr.rel (%p575) target = $region120
        $region119: #{_lambda_.1} parent=71 // pred_region
          %578 = dma.done [#allocation21], 128
        $region120: #{_lambda_.1} parent=71 // pred_fallthru
          _
        %s579 = sand.u32 %s41, 1
        %s580 = scalar_lea.sflag [#allocation4], %s579
        %s581 = sand.u32 %s41, 1
        %s582 = smul.addr %s581, 16
        %s583 = scalar_lea.vmem [#allocation3], %s582
        %p584 = pneg %p54
        %p585 = pneg %p51
        %p586 = pneg %p75
        %p587 = pneg %p72
        %p588 = pneg %p96
        %p589 = pneg %p93
        %p590 = pneg %p117
        %p591 = pneg %p114
        %p592 = pneg %p138
        %p593 = pneg %p135
        %p594 = pneg %p159
        %p595 = pneg %p156
        %p596 = pneg %p180
        %p597 = pneg %p177
        %p598 = pneg %p201
        %p599 = pneg %p198
        %p600 = pneg %p222
        %p601 = pneg %p219
        %p602 = pneg %p243
        %p603 = pneg %p240
        %p604 = pneg %p264
        %p605 = pneg %p261
        %p606 = pneg %p285
        %p607 = pneg %p282
        %p608 = pneg %p306
        %p609 = pneg %p303
        %p610 = pneg %p332
        %p611 = pneg %p329
        %s612 = smul.u32 2, %s33
        %p613 = scmp.lt.s32.totalorder %s612, 3
        %s614 = scalar_select %p613, %s612, 3
        %s615 = smul.addr %s614, 2
        %s616 = smul.addr %s615, 8
        %s617 = scalar_lea.vmem %s13, %s616
        %s618 = smul.u32 2, %s33
        %s619 = smul.u32 2, %s33
        %p620 = scmp.lt.s32.totalorder %s619, 3
        %s621 = scalar_select %p620, %s619, 3
        %s622 = smul.addr %s621, 2
        %s623 = smul.addr %s622, 8
        %s624 = scalar_lea.vmem %s13, %s623
        %s625 = smul.u32 2, %s33
        %627 = vst [vmem:[#allocation2] sm:$0xff] 0.0
        %628 = vst [vmem:[#allocation2 + $0x50] sm:$0xff] 0.0
        %629 = vst [vmem:[#allocation2 + $0xa0] sm:$0xff] 0.0
        %630 = vst [vmem:[#allocation2 + $0xf0] sm:$0xff] 0.0
        %631 = vst [vmem:[#allocation2 + $0x48] sm:$0xff] 0.0
        %632 = vst [vmem:[#allocation2 + $0x98] sm:$0xff] 0.0
        %633 = vst [vmem:[#allocation2 + $0xe8] sm:$0xff] 0.0
        %634 = vst [vmem:[#allocation2 + $0x138] sm:$0xff] 0.0
        %v635 = vld [vmem:[%s530] sm:$0xff]
        %s636 = scalar_lea.vmem [#allocation2], 8
        %637 = vst [vmem:[%s636] ss:$8 sm:$0xf] %v635
        %638 = vst [vmem:[%s636] ss:$8 sm:$0xf0] %v635
        %v639 = vld [vmem:[#allocation2] ss:$8 sm:$0xf]
        %v640 = vld [vmem:[#allocation2] ss:$8 sm:$0xf0]
        %v641 = vor.u32 %v639, %v640
        %s642 = scalar_lea.vmem [#allocation2], 64
        %v643 = vld [vmem:[%s642] ss:$8 sm:$0x1]
        %v644 = vld [vmem:[%s636] ss:$8 sm:$0xf]
        %v645 = vld [vmem:[%s636] ss:$8 sm:$0xf0]
        %v646 = vor.u32 %v644, %v645
        %s647 = scalar_lea.vmem [#allocation2], 72
        %v648 = vld [vmem:[%s647] ss:$8 sm:$0x1]
        %v649 = vld [vmem:[#allocation5] sm:$0xff]
        %v650 = vld [vmem:[#allocation5 + $0x8] sm:$0xff]
        %652 = vset.pattern.permute.xlu0 0
        %653 = vperm.xlu0 %652, %v649
        %v654 = vpop.permute.xlu0 %653
        %657 = vset.pattern.permute.xlu0 0
        %658 = vperm.xlu0 %657, %v650
        %v659 = vpop.permute.xlu0 %658
        %v663 = vlaneseq
        %v664 = vshrl.u32 %v663, 7
        %v665 = vsub.s32 0, %v664
        %v666 = vrot.slane %v641, %v665
        %v667 = vlaneseq
        %v668 = vshrl.u32 %v667, 7
        %v669 = vsub.s32 1, %v668
        %v670 = vrot.slane %v641, %v669
        %v671 = vlaneseq
        %v672 = vshrl.u32 %v671, 7
        %v673 = vsub.s32 2, %v672
        %v674 = vrot.slane %v641, %v673
        %v675 = vlaneseq
        %v676 = vshrl.u32 %v675, 7
        %v677 = vsub.s32 3, %v676
        %v678 = vrot.slane %v641, %v677
        %v679 = vlaneseq
        %v680 = vshrl.u32 %v679, 7
        %v681 = vsub.s32 4, %v680
        %v682 = vrot.slane %v641, %v681
        %v683 = vlaneseq
        %v684 = vshrl.u32 %v683, 7
        %v685 = vsub.s32 5, %v684
        %v686 = vrot.slane %v641, %v685
        %v687 = vlaneseq
        %v688 = vshrl.u32 %v687, 7
        %v689 = vsub.s32 6, %v688
        %v690 = vrot.slane %v641, %v689
        %v691 = vlaneseq
        %v692 = vshrl.u32 %v691, 7
        %v693 = vsub.s32 7, %v692
        %v694 = vrot.slane %v641, %v693
        %v695 = vlaneseq
        %v696 = vshrl.u32 %v695, 7
        %v697 = vsub.s32 0, %v696
        %v698 = vrot.slane %v643, %v697
        %v708 = vmul.f32 %v654, %v666
        %v709 = vmul.f32 %v654, %v670
        %v710 = vmul.f32 %v654, %v674
        %v711 = vmul.f32 %v654, %v678
        %v712 = vmul.f32 %v654, %v682
        %v713 = vmul.f32 %v654, %v686
        %v714 = vmul.f32 %v654, %v690
        %v715 = vmul.f32 %v654, %v694
        %v716 = vmul.f32 %v654, %v698
        %v717 = vmul.f32 %v659, %v666
        %v718 = vmul.f32 %v659, %v670
        %v719 = vmul.f32 %v659, %v674
        %v720 = vmul.f32 %v659, %v678
        %v721 = vmul.f32 %v659, %v682
        %v722 = vmul.f32 %v659, %v686
        %v723 = vmul.f32 %v659, %v690
        %v724 = vmul.f32 %v659, %v694
        %v725 = vmul.f32 %v659, %v698
        %v726 = vadd.f32 %v708, 0.0
        %v727 = vadd.f32 %v709, 0.0
        %v728 = vadd.f32 %v710, 0.0
        %v729 = vadd.f32 %v711, 0.0
        %v730 = vadd.f32 %v712, 0.0
        %v731 = vadd.f32 %v713, 0.0
        %v732 = vadd.f32 %v714, 0.0
        %v733 = vadd.f32 %v715, 0.0
        %v734 = vadd.f32 %v716, 0.0
        %v735 = vadd.f32 %v717, 0.0
        %v736 = vadd.f32 %v718, 0.0
        %v737 = vadd.f32 %v719, 0.0
        %v738 = vadd.f32 %v720, 0.0
        %v739 = vadd.f32 %v721, 0.0
        %v740 = vadd.f32 %v722, 0.0
        %v741 = vadd.f32 %v723, 0.0
        %v742 = vadd.f32 %v724, 0.0
        %v743 = vadd.f32 %v725, 0.0
        %744 = vset.pattern.permute.xlu0 1
        %745 = vperm.xlu0 %744, %v649
        %v746 = vpop.permute.xlu0 %745
        %748 = vset.pattern.permute.xlu0 1
        %749 = vperm.xlu0 %748, %v650
        %v750 = vpop.permute.xlu0 %749
        %v752 = vmul.f32 %v746, %v666
        %v753 = vmul.f32 %v746, %v670
        %v754 = vmul.f32 %v746, %v674
        %v755 = vmul.f32 %v746, %v678
        %v756 = vmul.f32 %v746, %v682
        %v757 = vmul.f32 %v746, %v686
        %v758 = vmul.f32 %v746, %v690
        %v759 = vmul.f32 %v746, %v694
        %v760 = vmul.f32 %v746, %v698
        %v761 = vmul.f32 %v750, %v666
        %v762 = vmul.f32 %v750, %v670
        %v763 = vmul.f32 %v750, %v674
        %v764 = vmul.f32 %v750, %v678
        %v765 = vmul.f32 %v750, %v682
        %v766 = vmul.f32 %v750, %v686
        %v767 = vmul.f32 %v750, %v690
        %v768 = vmul.f32 %v750, %v694
        %v769 = vmul.f32 %v750, %v698
        %788 = vrot.lane.b32.xlu0 %v752, 127
        %v789 = vpop.permute.xlu0 %788
        %790 = vrot.lane.b32.xlu0 %v753, 127
        %v791 = vpop.permute.xlu0 %790
        %792 = vrot.lane.b32.xlu0 %v754, 127
        %v793 = vpop.permute.xlu0 %792
        %794 = vrot.lane.b32.xlu0 %v755, 127
        %v795 = vpop.permute.xlu0 %794
        %796 = vrot.lane.b32.xlu0 %v756, 127
        %v797 = vpop.permute.xlu0 %796
        %798 = vrot.lane.b32.xlu0 %v757, 127
        %v799 = vpop.permute.xlu0 %798
        %800 = vrot.lane.b32.xlu0 %v758, 127
        %v801 = vpop.permute.xlu0 %800
        %802 = vrot.lane.b32.xlu0 %v759, 127
        %v803 = vpop.permute.xlu0 %802
        %804 = vrot.lane.b32.xlu0 %v760, 127
        %v805 = vpop.permute.xlu0 %804
        %806 = vrot.lane.b32.xlu0 %v761, 127
        %v807 = vpop.permute.xlu0 %806
        %808 = vrot.lane.b32.xlu0 %v762, 127
        %v809 = vpop.permute.xlu0 %808
        %810 = vrot.lane.b32.xlu0 %v763, 127
        %v811 = vpop.permute.xlu0 %810
        %812 = vrot.lane.b32.xlu0 %v764, 127
        %v813 = vpop.permute.xlu0 %812
        %814 = vrot.lane.b32.xlu0 %v765, 127
        %v815 = vpop.permute.xlu0 %814
        %816 = vrot.lane.b32.xlu0 %v766, 127
        %v817 = vpop.permute.xlu0 %816
        %818 = vrot.lane.b32.xlu0 %v767, 127
        %v819 = vpop.permute.xlu0 %818
        %820 = vrot.lane.b32.xlu0 %v768, 127
        %v821 = vpop.permute.xlu0 %820
        %822 = vrot.lane.b32.xlu0 %v769, 127
        %v823 = vpop.permute.xlu0 %822
        %vm824 = vcmask 1039360
        %v825 = vsel %vm824, %v789, %v791
        %v826 = vsel %vm824, %v791, %v793
        %v827 = vsel %vm824, %v793, %v795
        %v828 = vsel %vm824, %v795, %v797
        %v829 = vsel %vm824, %v797, %v799
        %v830 = vsel %vm824, %v799, %v801
        %v831 = vsel %vm824, %v801, %v803
        %v832 = vsel %vm824, %v803, %v805
        %v833 = vsel %vm824, %v807, %v809
        %v834 = vsel %vm824, %v809, %v811
        %v835 = vsel %vm824, %v811, %v813
        %v836 = vsel %vm824, %v813, %v815
        %v837 = vsel %vm824, %v815, %v817
        %v838 = vsel %vm824, %v817, %v819
        %v839 = vsel %vm824, %v819, %v821
        %v840 = vsel %vm824, %v821, %v823
        %v859 = vadd.f32 %v726, %v825
        %v860 = vadd.f32 %v727, %v826
        %v861 = vadd.f32 %v728, %v827
        %v862 = vadd.f32 %v729, %v828
        %v863 = vadd.f32 %v730, %v829
        %v864 = vadd.f32 %v731, %v830
        %v865 = vadd.f32 %v732, %v831
        %v866 = vadd.f32 %v733, %v832
        %v867 = vadd.f32 %v734, %v805
        %v868 = vadd.f32 %v735, %v833
        %v869 = vadd.f32 %v736, %v834
        %v870 = vadd.f32 %v737, %v835
        %v871 = vadd.f32 %v738, %v836
        %v872 = vadd.f32 %v739, %v837
        %v873 = vadd.f32 %v740, %v838
        %v874 = vadd.f32 %v741, %v839
        %v875 = vadd.f32 %v742, %v840
        %v876 = vadd.f32 %v743, %v823
        %877 = vset.pattern.permute.xlu0 2
        %878 = vperm.xlu0 %877, %v649
        %v879 = vpop.permute.xlu0 %878
        %881 = vset.pattern.permute.xlu0 2
        %882 = vperm.xlu0 %881, %v650
        %v883 = vpop.permute.xlu0 %882
        %v886 = vlaneseq
        %v887 = vshrl.u32 %v886, 7
        %v888 = vsub.s32 0, %v887
        %v889 = vrot.slane %v646, %v888
        %v890 = vlaneseq
        %v891 = vshrl.u32 %v890, 7
        %v892 = vsub.s32 1, %v891
        %v893 = vrot.slane %v646, %v892
        %v894 = vlaneseq
        %v895 = vshrl.u32 %v894, 7
        %v896 = vsub.s32 2, %v895
        %v897 = vrot.slane %v646, %v896
        %v898 = vlaneseq
        %v899 = vshrl.u32 %v898, 7
        %v900 = vsub.s32 3, %v899
        %v901 = vrot.slane %v646, %v900
        %v902 = vlaneseq
        %v903 = vshrl.u32 %v902, 7
        %v904 = vsub.s32 4, %v903
        %v905 = vrot.slane %v646, %v904
        %v906 = vlaneseq
        %v907 = vshrl.u32 %v906, 7
        %v908 = vsub.s32 5, %v907
        %v909 = vrot.slane %v646, %v908
        %v910 = vlaneseq
        %v911 = vshrl.u32 %v910, 7
        %v912 = vsub.s32 6, %v911
        %v913 = vrot.slane %v646, %v912
        %v914 = vlaneseq
        %v915 = vshrl.u32 %v914, 7
        %v916 = vsub.s32 7, %v915
        %v917 = vrot.slane %v646, %v916
        %v926 = vmul.f32 %v879, %v889
        %v927 = vmul.f32 %v879, %v893
        %v928 = vmul.f32 %v879, %v897
        %v929 = vmul.f32 %v879, %v901
        %v930 = vmul.f32 %v879, %v905
        %v931 = vmul.f32 %v879, %v909
        %v932 = vmul.f32 %v879, %v913
        %v933 = vmul.f32 %v879, %v917
        %v934 = vmul.f32 %v883, %v889
        %v935 = vmul.f32 %v883, %v893
        %v936 = vmul.f32 %v883, %v897
        %v937 = vmul.f32 %v883, %v901
        %v938 = vmul.f32 %v883, %v905
        %v939 = vmul.f32 %v883, %v909
        %v940 = vmul.f32 %v883, %v913
        %v941 = vmul.f32 %v883, %v917
        %958 = vrot.lane.b32.xlu0 %v926, 126
        %v959 = vpop.permute.xlu0 %958
        %960 = vrot.lane.b32.xlu0 %v927, 126
        %v961 = vpop.permute.xlu0 %960
        %962 = vrot.lane.b32.xlu0 %v928, 126
        %v963 = vpop.permute.xlu0 %962
        %964 = vrot.lane.b32.xlu0 %v929, 126
        %v965 = vpop.permute.xlu0 %964
        %966 = vrot.lane.b32.xlu0 %v930, 126
        %v967 = vpop.permute.xlu0 %966
        %968 = vrot.lane.b32.xlu0 %v931, 126
        %v969 = vpop.permute.xlu0 %968
        %970 = vrot.lane.b32.xlu0 %v932, 126
        %v971 = vpop.permute.xlu0 %970
        %972 = vrot.lane.b32.xlu0 %v933, 126
        %v973 = vpop.permute.xlu0 %972
        %974 = vrot.lane.b32.xlu0 %v934, 126
        %v975 = vpop.permute.xlu0 %974
        %976 = vrot.lane.b32.xlu0 %v935, 126
        %v977 = vpop.permute.xlu0 %976
        %978 = vrot.lane.b32.xlu0 %v936, 126
        %v979 = vpop.permute.xlu0 %978
        %980 = vrot.lane.b32.xlu0 %v937, 126
        %v981 = vpop.permute.xlu0 %980
        %982 = vrot.lane.b32.xlu0 %v938, 126
        %v983 = vpop.permute.xlu0 %982
        %984 = vrot.lane.b32.xlu0 %v939, 126
        %v985 = vpop.permute.xlu0 %984
        %986 = vrot.lane.b32.xlu0 %v940, 126
        %v987 = vpop.permute.xlu0 %986
        %988 = vrot.lane.b32.xlu0 %v941, 126
        %v989 = vpop.permute.xlu0 %988
        %vm990 = vcmask 1031168
        %v991 = vsel %vm990, %v959, %v961
        %v992 = vsel %vm990, %v961, %v963
        %v993 = vsel %vm990, %v963, %v965
        %v994 = vsel %vm990, %v965, %v967
        %v995 = vsel %vm990, %v967, %v969
        %v996 = vsel %vm990, %v969, %v971
        %v997 = vsel %vm990, %v971, %v973
        %v998 = vsel %vm990, %v975, %v977
        %v999 = vsel %vm990, %v977, %v979
        %v1000 = vsel %vm990, %v979, %v981
        %v1001 = vsel %vm990, %v981, %v983
        %v1002 = vsel %vm990, %v983, %v985
        %v1003 = vsel %vm990, %v985, %v987
        %v1004 = vsel %vm990, %v987, %v989
        %v1023 = vadd.f32 %v859, %v959
        %v1024 = vadd.f32 %v860, %v991
        %v1025 = vadd.f32 %v861, %v992
        %v1026 = vadd.f32 %v862, %v993
        %v1027 = vadd.f32 %v863, %v994
        %v1028 = vadd.f32 %v864, %v995
        %v1029 = vadd.f32 %v865, %v996
        %v1030 = vadd.f32 %v866, %v997
        %v1031 = vadd.f32 %v867, %v973
        %v1032 = vadd.f32 %v868, %v975
        %v1033 = vadd.f32 %v869, %v998
        %v1034 = vadd.f32 %v870, %v999
        %v1035 = vadd.f32 %v871, %v1000
        %v1036 = vadd.f32 %v872, %v1001
        %v1037 = vadd.f32 %v873, %v1002
        %v1038 = vadd.f32 %v874, %v1003
        %v1039 = vadd.f32 %v875, %v1004
        %v1040 = vadd.f32 %v876, %v989
        %1041 = vset.pattern.permute.xlu0 3
        %1042 = vperm.xlu0 %1041, %v649
        %v1043 = vpop.permute.xlu0 %1042
        %1045 = vset.pattern.permute.xlu0 3
        %1046 = vperm.xlu0 %1045, %v650
        %v1047 = vpop.permute.xlu0 %1046
        %v1050 = vlaneseq
        %v1051 = vshrl.u32 %v1050, 7
        %v1052 = vsub.s32 0, %v1051
        %v1053 = vrot.slane %v648, %v1052
        %v1055 = vmul.f32 %v1043, %v889
        %v1056 = vmul.f32 %v1043, %v893
        %v1057 = vmul.f32 %v1043, %v897
        %v1058 = vmul.f32 %v1043, %v901
        %v1059 = vmul.f32 %v1043, %v905
        %v1060 = vmul.f32 %v1043, %v909
        %v1061 = vmul.f32 %v1043, %v913
        %v1062 = vmul.f32 %v1043, %v917
        %v1063 = vmul.f32 %v1043, %v1053
        %v1064 = vmul.f32 %v1047, %v889
        %v1065 = vmul.f32 %v1047, %v893
        %v1066 = vmul.f32 %v1047, %v897
        %v1067 = vmul.f32 %v1047, %v901
        %v1068 = vmul.f32 %v1047, %v905
        %v1069 = vmul.f32 %v1047, %v909
        %v1070 = vmul.f32 %v1047, %v913
        %v1071 = vmul.f32 %v1047, %v917
        %v1072 = vmul.f32 %v1047, %v1053
        %1091 = vrot.lane.b32.xlu0 %v1055, 125
        %v1092 = vpop.permute.xlu0 %1091
        %1093 = vrot.lane.b32.xlu0 %v1056, 125
        %v1094 = vpop.permute.xlu0 %1093
        %1095 = vrot.lane.b32.xlu0 %v1057, 125
        %v1096 = vpop.permute.xlu0 %1095
        %1097 = vrot.lane.b32.xlu0 %v1058, 125
        %v1098 = vpop.permute.xlu0 %1097
        %1099 = vrot.lane.b32.xlu0 %v1059, 125
        %v1100 = vpop.permute.xlu0 %1099
        %1101 = vrot.lane.b32.xlu0 %v1060, 125
        %v1102 = vpop.permute.xlu0 %1101
        %1103 = vrot.lane.b32.xlu0 %v1061, 125
        %v1104 = vpop.permute.xlu0 %1103
        %1105 = vrot.lane.b32.xlu0 %v1062, 125
        %v1106 = vpop.permute.xlu0 %1105
        %1107 = vrot.lane.b32.xlu0 %v1063, 125
        %v1108 = vpop.permute.xlu0 %1107
        %1109 = vrot.lane.b32.xlu0 %v1064, 125
        %v1110 = vpop.permute.xlu0 %1109
        %1111 = vrot.lane.b32.xlu0 %v1065, 125
        %v1112 = vpop.permute.xlu0 %1111
        %1113 = vrot.lane.b32.xlu0 %v1066, 125
        %v1114 = vpop.permute.xlu0 %1113
        %1115 = vrot.lane.b32.xlu0 %v1067, 125
        %v1116 = vpop.permute.xlu0 %1115
        %1117 = vrot.lane.b32.xlu0 %v1068, 125
        %v1118 = vpop.permute.xlu0 %1117
        %1119 = vrot.lane.b32.xlu0 %v1069, 125
        %v1120 = vpop.permute.xlu0 %1119
        %1121 = vrot.lane.b32.xlu0 %v1070, 125
        %v1122 = vpop.permute.xlu0 %1121
        %1123 = vrot.lane.b32.xlu0 %v1071, 125
        %v1124 = vpop.permute.xlu0 %1123
        %1125 = vrot.lane.b32.xlu0 %v1072, 125
        %v1126 = vpop.permute.xlu0 %1125
        %vm1127 = vcmask 1022976
        %v1128 = vsel %vm1127, %v1092, %v1094
        %v1129 = vsel %vm1127, %v1094, %v1096
        %v1130 = vsel %vm1127, %v1096, %v1098
        %v1131 = vsel %vm1127, %v1098, %v1100
        %v1132 = vsel %vm1127, %v1100, %v1102
        %v1133 = vsel %vm1127, %v1102, %v1104
        %v1134 = vsel %vm1127, %v1104, %v1106
        %v1135 = vsel %vm1127, %v1106, %v1108
        %v1136 = vsel %vm1127, %v1110, %v1112
        %v1137 = vsel %vm1127, %v1112, %v1114
        %v1138 = vsel %vm1127, %v1114, %v1116
        %v1139 = vsel %vm1127, %v1116, %v1118
        %v1140 = vsel %vm1127, %v1118, %v1120
        %v1141 = vsel %vm1127, %v1120, %v1122
        %v1142 = vsel %vm1127, %v1122, %v1124
        %v1143 = vsel %vm1127, %v1124, %v1126
        %v1162 = vadd.f32 %v1023, %v1092
        %v1163 = vadd.f32 %v1024, %v1128
        %v1164 = vadd.f32 %v1025, %v1129
        %v1165 = vadd.f32 %v1026, %v1130
        %v1166 = vadd.f32 %v1027, %v1131
        %v1167 = vadd.f32 %v1028, %v1132
        %v1168 = vadd.f32 %v1029, %v1133
        %v1169 = vadd.f32 %v1030, %v1134
        %v1170 = vadd.f32 %v1031, %v1135
        %v1171 = vadd.f32 %v1032, %v1110
        %v1172 = vadd.f32 %v1033, %v1136
        %v1173 = vadd.f32 %v1034, %v1137
        %v1174 = vadd.f32 %v1035, %v1138
        %v1175 = vadd.f32 %v1036, %v1139
        %v1176 = vadd.f32 %v1037, %v1140
        %v1177 = vadd.f32 %v1038, %v1141
        %v1178 = vadd.f32 %v1039, %v1142
        %v1179 = vadd.f32 %v1040, %v1143
        %1180 = vset.pattern.permute.xlu0 4
        %1181 = vperm.xlu0 %1180, %v649
        %v1182 = vpop.permute.xlu0 %1181
        %1184 = vset.pattern.permute.xlu0 4
        %1185 = vperm.xlu0 %1184, %v650
        %v1186 = vpop.permute.xlu0 %1185
        %v1188 = vmul.f32 %v1182, %v889
        %v1189 = vmul.f32 %v1182, %v893
        %v1190 = vmul.f32 %v1182, %v897
        %v1191 = vmul.f32 %v1182, %v901
        %v1192 = vmul.f32 %v1182, %v905
        %v1193 = vmul.f32 %v1182, %v909
        %v1194 = vmul.f32 %v1182, %v913
        %v1195 = vmul.f32 %v1182, %v917
        %v1196 = vmul.f32 %v1182, %v1053
        %v1197 = vmul.f32 %v1186, %v889
        %v1198 = vmul.f32 %v1186, %v893
        %v1199 = vmul.f32 %v1186, %v897
        %v1200 = vmul.f32 %v1186, %v901
        %v1201 = vmul.f32 %v1186, %v905
        %v1202 = vmul.f32 %v1186, %v909
        %v1203 = vmul.f32 %v1186, %v913
        %v1204 = vmul.f32 %v1186, %v917
        %v1205 = vmul.f32 %v1186, %v1053
        %1224 = vrot.lane.b32.xlu0 %v1188, 124
        %v1225 = vpop.permute.xlu0 %1224
        %1226 = vrot.lane.b32.xlu0 %v1189, 124
        %v1227 = vpop.permute.xlu0 %1226
        %1228 = vrot.lane.b32.xlu0 %v1190, 124
        %v1229 = vpop.permute.xlu0 %1228
        %1230 = vrot.lane.b32.xlu0 %v1191, 124
        %v1231 = vpop.permute.xlu0 %1230
        %1232 = vrot.lane.b32.xlu0 %v1192, 124
        %v1233 = vpop.permute.xlu0 %1232
        %1234 = vrot.lane.b32.xlu0 %v1193, 124
        %v1235 = vpop.permute.xlu0 %1234
        %1236 = vrot.lane.b32.xlu0 %v1194, 124
        %v1237 = vpop.permute.xlu0 %1236
        %1238 = vrot.lane.b32.xlu0 %v1195, 124
        %v1239 = vpop.permute.xlu0 %1238
        %1240 = vrot.lane.b32.xlu0 %v1196, 124
        %v1241 = vpop.permute.xlu0 %1240
        %1242 = vrot.lane.b32.xlu0 %v1197, 124
        %v1243 = vpop.permute.xlu0 %1242
        %1244 = vrot.lane.b32.xlu0 %v1198, 124
        %v1245 = vpop.permute.xlu0 %1244
        %1246 = vrot.lane.b32.xlu0 %v1199, 124
        %v1247 = vpop.permute.xlu0 %1246
        %1248 = vrot.lane.b32.xlu0 %v1200, 124
        %v1249 = vpop.permute.xlu0 %1248
        %1250 = vrot.lane.b32.xlu0 %v1201, 124
        %v1251 = vpop.permute.xlu0 %1250
        %1252 = vrot.lane.b32.xlu0 %v1202, 124
        %v1253 = vpop.permute.xlu0 %1252
        %1254 = vrot.lane.b32.xlu0 %v1203, 124
        %v1255 = vpop.permute.xlu0 %1254
        %1256 = vrot.lane.b32.xlu0 %v1204, 124
        %v1257 = vpop.permute.xlu0 %1256
        %1258 = vrot.lane.b32.xlu0 %v1205, 124
        %v1259 = vpop.permute.xlu0 %1258
        %vm1260 = vcmask 1014784
        %v1261 = vsel %vm1260, %v1225, %v1227
        %v1262 = vsel %vm1260, %v1227, %v1229
        %v1263 = vsel %vm1260, %v1229, %v1231
        %v1264 = vsel %vm1260, %v1231, %v1233
        %v1265 = vsel %vm1260, %v1233, %v1235
        %v1266 = vsel %vm1260, %v1235, %v1237
        %v1267 = vsel %vm1260, %v1237, %v1239
        %v1268 = vsel %vm1260, %v1239, %v1241
        %v1269 = vsel %vm1260, %v1243, %v1245
        %v1270 = vsel %vm1260, %v1245, %v1247
        %v1271 = vsel %vm1260, %v1247, %v1249
        %v1272 = vsel %vm1260, %v1249, %v1251
        %v1273 = vsel %vm1260, %v1251, %v1253
        %v1274 = vsel %vm1260, %v1253, %v1255
        %v1275 = vsel %vm1260, %v1255, %v1257
        %v1276 = vsel %vm1260, %v1257, %v1259
        %v1295 = vadd.f32 %v1162, %v1225
        %v1296 = vadd.f32 %v1163, %v1261
        %v1297 = vadd.f32 %v1164, %v1262
        %v1298 = vadd.f32 %v1165, %v1263
        %v1299 = vadd.f32 %v1166, %v1264
        %v1300 = vadd.f32 %v1167, %v1265
        %v1301 = vadd.f32 %v1168, %v1266
        %v1302 = vadd.f32 %v1169, %v1267
        %v1303 = vadd.f32 %v1170, %v1268
        %v1304 = vadd.f32 %v1171, %v1243
        %v1305 = vadd.f32 %v1172, %v1269
        %v1306 = vadd.f32 %v1173, %v1270
        %v1307 = vadd.f32 %v1174, %v1271
        %v1308 = vadd.f32 %v1175, %v1272
        %v1309 = vadd.f32 %v1176, %v1273
        %v1310 = vadd.f32 %v1177, %v1274
        %v1311 = vadd.f32 %v1178, %v1275
        %v1312 = vadd.f32 %v1179, %v1276
        %v1313 = vld [vmem:[#allocation7] sm:$0xff]
        %v1314 = vld [vmem:[#allocation7 + $0x8] sm:$0xff]
        %1316 = vset.pattern.permute.xlu0 0
        %1317 = vperm.xlu0 %1316, %v1313
        %v1318 = vpop.permute.xlu0 %1317
        %1321 = vset.pattern.permute.xlu0 0
        %1322 = vperm.xlu0 %1321, %v1314
        %v1323 = vpop.permute.xlu0 %1322
        %v1325 = vadd.f32 %v1295, %v1318
        %v1326 = vadd.f32 %v1296, %v1318
        %v1327 = vadd.f32 %v1297, %v1318
        %v1328 = vadd.f32 %v1298, %v1318
        %v1329 = vadd.f32 %v1299, %v1318
        %v1330 = vadd.f32 %v1300, %v1318
        %v1331 = vadd.f32 %v1301, %v1318
        %v1332 = vadd.f32 %v1302, %v1318
        %v1333 = vadd.f32 %v1303, %v1318
        %v1334 = vadd.f32 %v1304, %v1323
        %v1335 = vadd.f32 %v1305, %v1323
        %v1336 = vadd.f32 %v1306, %v1323
        %v1337 = vadd.f32 %v1307, %v1323
        %v1338 = vadd.f32 %v1308, %v1323
        %v1339 = vadd.f32 %v1309, %v1323
        %v1340 = vadd.f32 %v1310, %v1323
        %v1341 = vadd.f32 %v1311, %v1323
        %v1342 = vadd.f32 %v1312, %v1323
        %v1343 = vmax.f32 %v1325, 0.0
        %v1344 = vmax.f32 %v1326, 0.0
        %v1345 = vmax.f32 %v1327, 0.0
        %v1346 = vmax.f32 %v1328, 0.0
        %v1347 = vmax.f32 %v1329, 0.0
        %v1348 = vmax.f32 %v1330, 0.0
        %v1349 = vmax.f32 %v1331, 0.0
        %v1350 = vmax.f32 %v1332, 0.0
        %v1351 = vmax.f32 %v1333, 0.0
        %v1352 = vmax.f32 %v1334, 0.0
        %v1353 = vmax.f32 %v1335, 0.0
        %v1354 = vmax.f32 %v1336, 0.0
        %v1355 = vmax.f32 %v1337, 0.0
        %v1356 = vmax.f32 %v1338, 0.0
        %v1357 = vmax.f32 %v1339, 0.0
        %v1358 = vmax.f32 %v1340, 0.0
        %v1359 = vmax.f32 %v1341, 0.0
        %v1360 = vmax.f32 %v1342, 0.0
        %1379 = vrot.lane.b32.xlu0 %v1343, 2
        %v1380 = vpop.permute.xlu0 %1379
        %1381 = vrot.lane.b32.xlu0 %v1344, 2
        %v1382 = vpop.permute.xlu0 %1381
        %1383 = vrot.lane.b32.xlu0 %v1345, 2
        %v1384 = vpop.permute.xlu0 %1383
        %1385 = vrot.lane.b32.xlu0 %v1346, 2
        %v1386 = vpop.permute.xlu0 %1385
        %1387 = vrot.lane.b32.xlu0 %v1347, 2
        %v1388 = vpop.permute.xlu0 %1387
        %1389 = vrot.lane.b32.xlu0 %v1348, 2
        %v1390 = vpop.permute.xlu0 %1389
        %1391 = vrot.lane.b32.xlu0 %v1349, 2
        %v1392 = vpop.permute.xlu0 %1391
        %1393 = vrot.lane.b32.xlu0 %v1350, 2
        %v1394 = vpop.permute.xlu0 %1393
        %1395 = vrot.lane.b32.xlu0 %v1351, 2
        %v1396 = vpop.permute.xlu0 %1395
        %1397 = vrot.lane.b32.xlu0 %v1352, 2
        %v1398 = vpop.permute.xlu0 %1397
        %1399 = vrot.lane.b32.xlu0 %v1353, 2
        %v1400 = vpop.permute.xlu0 %1399
        %1401 = vrot.lane.b32.xlu0 %v1354, 2
        %v1402 = vpop.permute.xlu0 %1401
        %1403 = vrot.lane.b32.xlu0 %v1355, 2
        %v1404 = vpop.permute.xlu0 %1403
        %1405 = vrot.lane.b32.xlu0 %v1356, 2
        %v1406 = vpop.permute.xlu0 %1405
        %1407 = vrot.lane.b32.xlu0 %v1357, 2
        %v1408 = vpop.permute.xlu0 %1407
        %1409 = vrot.lane.b32.xlu0 %v1358, 2
        %v1410 = vpop.permute.xlu0 %1409
        %1411 = vrot.lane.b32.xlu0 %v1359, 2
        %v1412 = vpop.permute.xlu0 %1411
        %1413 = vrot.lane.b32.xlu0 %v1360, 2
        %v1414 = vpop.permute.xlu0 %1413
        %vm1415 = vcmask 15360
        %v1416 = vsel %vm1415, %v1380, %v1382
        %v1417 = vsel %vm1415, %v1382, %v1384
        %v1418 = vsel %vm1415, %v1384, %v1386
        %v1419 = vsel %vm1415, %v1386, %v1388
        %v1420 = vsel %vm1415, %v1388, %v1390
        %v1421 = vsel %vm1415, %v1390, %v1392
        %v1422 = vsel %vm1415, %v1392, %v1394
        %v1423 = vsel %vm1415, %v1394, %v1396
        %v1424 = vsel %vm1415, %v1398, %v1400
        %v1425 = vsel %vm1415, %v1400, %v1402
        %v1426 = vsel %vm1415, %v1402, %v1404
        %v1427 = vsel %vm1415, %v1404, %v1406
        %v1428 = vsel %vm1415, %v1406, %v1408
        %v1429 = vsel %vm1415, %v1408, %v1410
        %v1430 = vsel %vm1415, %v1410, %v1412
        %v1431 = vsel %vm1415, %v1412, %v1414
        %1448 = vst [vmem:[#allocation2 + $0x8] sm:$0xff] %v1416
        %1449 = vst [vmem:[#allocation2 + $0x10] sm:$0xff] %v1417
        %1450 = vst [vmem:[#allocation2 + $0x18] sm:$0xff] %v1418
        %1451 = vst [vmem:[#allocation2 + $0x20] sm:$0xff] %v1419
        %1452 = vst [vmem:[#allocation2 + $0x28] sm:$0xff] %v1420
        %1453 = vst [vmem:[#allocation2 + $0x30] sm:$0xff] %v1421
        %1454 = vst [vmem:[#allocation2 + $0x38] sm:$0xff] %v1422
        %1455 = vst [vmem:[#allocation2 + $0x40] sm:$0xff] %v1423
        %1456 = vst [vmem:[#allocation2 + $0x58] sm:$0xff] %v1424
        %1457 = vst [vmem:[#allocation2 + $0x60] sm:$0xff] %v1425
        %1458 = vst [vmem:[#allocation2 + $0x68] sm:$0xff] %v1426
        %1459 = vst [vmem:[#allocation2 + $0x70] sm:$0xff] %v1427
        %1460 = vst [vmem:[#allocation2 + $0x78] sm:$0xff] %v1428
        %1461 = vst [vmem:[#allocation2 + $0x80] sm:$0xff] %v1429
        %1462 = vst [vmem:[#allocation2 + $0x88] sm:$0xff] %v1430
        %1463 = vst [vmem:[#allocation2 + $0x90] sm:$0xff] %v1431
        %v1464 = vld [vmem:[#allocation2] sm:$0xff]
        %v1465 = vld [vmem:[#allocation2 + $0x8] sm:$0xff]
        %v1466 = vld [vmem:[#allocation2 + $0x10] sm:$0xff]
        %v1467 = vld [vmem:[#allocation2 + $0x18] sm:$0xff]
        %v1468 = vld [vmem:[#allocation2 + $0x20] sm:$0xff]
        %v1469 = vld [vmem:[#allocation2 + $0x28] sm:$0xff]
        %v1470 = vld [vmem:[#allocation2 + $0x30] sm:$0xff]
        %v1471 = vld [vmem:[#allocation2 + $0x38] sm:$0xff]
        %v1472 = vld [vmem:[#allocation2 + $0x40] sm:$0xff]
        %v1473 = vld [vmem:[#allocation2 + $0x50] sm:$0xff]
        %v1474 = vld [vmem:[#allocation2 + $0x58] sm:$0xff]
        %v1475 = vld [vmem:[#allocation2 + $0x60] sm:$0xff]
        %v1476 = vld [vmem:[#allocation2 + $0x68] sm:$0xff]
        %v1477 = vld [vmem:[#allocation2 + $0x70] sm:$0xff]
        %v1478 = vld [vmem:[#allocation2 + $0x78] sm:$0xff]
        %v1479 = vld [vmem:[#allocation2 + $0x80] sm:$0xff]
        %v1480 = vld [vmem:[#allocation2 + $0x88] sm:$0xff]
        %v1481 = vld [vmem:[#allocation2 + $0x90] sm:$0xff]
        %v1482 = vld [vmem:[#allocation2 + $0x48] sm:$0xff]
        %v1483 = vld [vmem:[#allocation2 + $0x98] sm:$0xff]
        %1502 = vrot.lane.b32.xlu0 %v1464, 126
        %v1503 = vpop.permute.xlu0 %1502
        %1504 = vrot.lane.b32.xlu0 %v1465, 126
        %v1505 = vpop.permute.xlu0 %1504
        %1506 = vrot.lane.b32.xlu0 %v1466, 126
        %v1507 = vpop.permute.xlu0 %1506
        %1508 = vrot.lane.b32.xlu0 %v1467, 126
        %v1509 = vpop.permute.xlu0 %1508
        %1510 = vrot.lane.b32.xlu0 %v1468, 126
        %v1511 = vpop.permute.xlu0 %1510
        %1512 = vrot.lane.b32.xlu0 %v1469, 126
        %v1513 = vpop.permute.xlu0 %1512
        %1514 = vrot.lane.b32.xlu0 %v1470, 126
        %v1515 = vpop.permute.xlu0 %1514
        %1516 = vrot.lane.b32.xlu0 %v1471, 126
        %v1517 = vpop.permute.xlu0 %1516
        %1518 = vrot.lane.b32.xlu0 %v1472, 126
        %v1519 = vpop.permute.xlu0 %1518
        %1520 = vrot.lane.b32.xlu0 %v1473, 126
        %v1521 = vpop.permute.xlu0 %1520
        %1522 = vrot.lane.b32.xlu0 %v1474, 126
        %v1523 = vpop.permute.xlu0 %1522
        %1524 = vrot.lane.b32.xlu0 %v1475, 126
        %v1525 = vpop.permute.xlu0 %1524
        %1526 = vrot.lane.b32.xlu0 %v1476, 126
        %v1527 = vpop.permute.xlu0 %1526
        %1528 = vrot.lane.b32.xlu0 %v1477, 126
        %v1529 = vpop.permute.xlu0 %1528
        %1530 = vrot.lane.b32.xlu0 %v1478, 126
        %v1531 = vpop.permute.xlu0 %1530
        %1532 = vrot.lane.b32.xlu0 %v1479, 126
        %v1533 = vpop.permute.xlu0 %1532
        %1534 = vrot.lane.b32.xlu0 %v1480, 126
        %v1535 = vpop.permute.xlu0 %1534
        %1536 = vrot.lane.b32.xlu0 %v1481, 126
        %v1537 = vpop.permute.xlu0 %1536
        %v1538 = vsel %vm990, %v1503, %v1505
        %v1539 = vsel %vm990, %v1505, %v1507
        %v1540 = vsel %vm990, %v1507, %v1509
        %v1541 = vsel %vm990, %v1509, %v1511
        %v1542 = vsel %vm990, %v1511, %v1513
        %v1543 = vsel %vm990, %v1513, %v1515
        %v1544 = vsel %vm990, %v1515, %v1517
        %v1545 = vsel %vm990, %v1517, %v1519
        %v1546 = vsel %vm990, %v1521, %v1523
        %v1547 = vsel %vm990, %v1523, %v1525
        %v1548 = vsel %vm990, %v1525, %v1527
        %v1549 = vsel %vm990, %v1527, %v1529
        %v1550 = vsel %vm990, %v1529, %v1531
        %v1551 = vsel %vm990, %v1531, %v1533
        %v1552 = vsel %vm990, %v1533, %v1535
        %v1553 = vsel %vm990, %v1535, %v1537
        %1572 = vrot.lane.b32.xlu0 %v1465, 124
        %v1573 = vpop.permute.xlu0 %1572
        %1574 = vrot.lane.b32.xlu0 %v1466, 124
        %v1575 = vpop.permute.xlu0 %1574
        %1576 = vrot.lane.b32.xlu0 %v1467, 124
        %v1577 = vpop.permute.xlu0 %1576
        %1578 = vrot.lane.b32.xlu0 %v1468, 124
        %v1579 = vpop.permute.xlu0 %1578
        %1580 = vrot.lane.b32.xlu0 %v1469, 124
        %v1581 = vpop.permute.xlu0 %1580
        %1582 = vrot.lane.b32.xlu0 %v1470, 124
        %v1583 = vpop.permute.xlu0 %1582
        %1584 = vrot.lane.b32.xlu0 %v1471, 124
        %v1585 = vpop.permute.xlu0 %1584
        %1586 = vrot.lane.b32.xlu0 %v1472, 124
        %v1587 = vpop.permute.xlu0 %1586
        %1588 = vrot.lane.b32.xlu0 %v1474, 124
        %v1589 = vpop.permute.xlu0 %1588
        %1590 = vrot.lane.b32.xlu0 %v1475, 124
        %v1591 = vpop.permute.xlu0 %1590
        %1592 = vrot.lane.b32.xlu0 %v1476, 124
        %v1593 = vpop.permute.xlu0 %1592
        %1594 = vrot.lane.b32.xlu0 %v1477, 124
        %v1595 = vpop.permute.xlu0 %1594
        %1596 = vrot.lane.b32.xlu0 %v1478, 124
        %v1597 = vpop.permute.xlu0 %1596
        %1598 = vrot.lane.b32.xlu0 %v1479, 124
        %v1599 = vpop.permute.xlu0 %1598
        %1600 = vrot.lane.b32.xlu0 %v1480, 124
        %v1601 = vpop.permute.xlu0 %1600
        %1602 = vrot.lane.b32.xlu0 %v1481, 124
        %v1603 = vpop.permute.xlu0 %1602
        %v1604 = vsel %vm1260, %v1573, %v1575
        %v1605 = vsel %vm1260, %v1575, %v1577
        %v1606 = vsel %vm1260, %v1577, %v1579
        %v1607 = vsel %vm1260, %v1579, %v1581
        %v1608 = vsel %vm1260, %v1581, %v1583
        %v1609 = vsel %vm1260, %v1583, %v1585
        %v1610 = vsel %vm1260, %v1585, %v1587
        %v1611 = vsel %vm1260, %v1589, %v1591
        %v1612 = vsel %vm1260, %v1591, %v1593
        %v1613 = vsel %vm1260, %v1593, %v1595
        %v1614 = vsel %vm1260, %v1595, %v1597
        %v1615 = vsel %vm1260, %v1597, %v1599
        %v1616 = vsel %vm1260, %v1599, %v1601
        %v1617 = vsel %vm1260, %v1601, %v1603
        %1638 = vrot.lane.b32.xlu0 %v1465, 122
        %v1639 = vpop.permute.xlu0 %1638
        %1640 = vrot.lane.b32.xlu0 %v1466, 122
        %v1641 = vpop.permute.xlu0 %1640
        %1642 = vrot.lane.b32.xlu0 %v1467, 122
        %v1643 = vpop.permute.xlu0 %1642
        %1644 = vrot.lane.b32.xlu0 %v1468, 122
        %v1645 = vpop.permute.xlu0 %1644
        %1646 = vrot.lane.b32.xlu0 %v1469, 122
        %v1647 = vpop.permute.xlu0 %1646
        %1648 = vrot.lane.b32.xlu0 %v1470, 122
        %v1649 = vpop.permute.xlu0 %1648
        %1650 = vrot.lane.b32.xlu0 %v1471, 122
        %v1651 = vpop.permute.xlu0 %1650
        %1652 = vrot.lane.b32.xlu0 %v1472, 122
        %v1653 = vpop.permute.xlu0 %1652
        %1654 = vrot.lane.b32.xlu0 %v1482, 122
        %v1655 = vpop.permute.xlu0 %1654
        %1656 = vrot.lane.b32.xlu0 %v1474, 122
        %v1657 = vpop.permute.xlu0 %1656
        %1658 = vrot.lane.b32.xlu0 %v1475, 122
        %v1659 = vpop.permute.xlu0 %1658
        %1660 = vrot.lane.b32.xlu0 %v1476, 122
        %v1661 = vpop.permute.xlu0 %1660
        %1662 = vrot.lane.b32.xlu0 %v1477, 122
        %v1663 = vpop.permute.xlu0 %1662
        %1664 = vrot.lane.b32.xlu0 %v1478, 122
        %v1665 = vpop.permute.xlu0 %1664
        %1666 = vrot.lane.b32.xlu0 %v1479, 122
        %v1667 = vpop.permute.xlu0 %1666
        %1668 = vrot.lane.b32.xlu0 %v1480, 122
        %v1669 = vpop.permute.xlu0 %1668
        %1670 = vrot.lane.b32.xlu0 %v1481, 122
        %v1671 = vpop.permute.xlu0 %1670
        %1672 = vrot.lane.b32.xlu0 %v1483, 122
        %v1673 = vpop.permute.xlu0 %1672
        %vm1674 = vcmask 998400
        %v1675 = vsel %vm1674, %v1639, %v1641
        %v1676 = vsel %vm1674, %v1641, %v1643
        %v1677 = vsel %vm1674, %v1643, %v1645
        %v1678 = vsel %vm1674, %v1645, %v1647
        %v1679 = vsel %vm1674, %v1647, %v1649
        %v1680 = vsel %vm1674, %v1649, %v1651
        %v1681 = vsel %vm1674, %v1651, %v1653
        %v1682 = vsel %vm1674, %v1653, %v1655
        %v1683 = vsel %vm1674, %v1657, %v1659
        %v1684 = vsel %vm1674, %v1659, %v1661
        %v1685 = vsel %vm1674, %v1661, %v1663
        %v1686 = vsel %vm1674, %v1663, %v1665
        %v1687 = vsel %vm1674, %v1665, %v1667
        %v1688 = vsel %vm1674, %v1667, %v1669
        %v1689 = vsel %vm1674, %v1669, %v1671
        %v1690 = vsel %vm1674, %v1671, %v1673
        %1709 = vrot.lane.b32.xlu0 %v1465, 120
        %v1710 = vpop.permute.xlu0 %1709
        %1711 = vrot.lane.b32.xlu0 %v1466, 120
        %v1712 = vpop.permute.xlu0 %1711
        %1713 = vrot.lane.b32.xlu0 %v1467, 120
        %v1714 = vpop.permute.xlu0 %1713
        %1715 = vrot.lane.b32.xlu0 %v1468, 120
        %v1716 = vpop.permute.xlu0 %1715
        %1717 = vrot.lane.b32.xlu0 %v1469, 120
        %v1718 = vpop.permute.xlu0 %1717
        %1719 = vrot.lane.b32.xlu0 %v1470, 120
        %v1720 = vpop.permute.xlu0 %1719
        %1721 = vrot.lane.b32.xlu0 %v1471, 120
        %v1722 = vpop.permute.xlu0 %1721
        %1723 = vrot.lane.b32.xlu0 %v1472, 120
        %v1724 = vpop.permute.xlu0 %1723
        %1725 = vrot.lane.b32.xlu0 %v1482, 120
        %v1726 = vpop.permute.xlu0 %1725
        %1727 = vrot.lane.b32.xlu0 %v1474, 120
        %v1728 = vpop.permute.xlu0 %1727
        %1729 = vrot.lane.b32.xlu0 %v1475, 120
        %v1730 = vpop.permute.xlu0 %1729
        %1731 = vrot.lane.b32.xlu0 %v1476, 120
        %v1732 = vpop.permute.xlu0 %1731
        %1733 = vrot.lane.b32.xlu0 %v1477, 120
        %v1734 = vpop.permute.xlu0 %1733
        %1735 = vrot.lane.b32.xlu0 %v1478, 120
        %v1736 = vpop.permute.xlu0 %1735
        %1737 = vrot.lane.b32.xlu0 %v1479, 120
        %v1738 = vpop.permute.xlu0 %1737
        %1739 = vrot.lane.b32.xlu0 %v1480, 120
        %v1740 = vpop.permute.xlu0 %1739
        %1741 = vrot.lane.b32.xlu0 %v1481, 120
        %v1742 = vpop.permute.xlu0 %1741
        %1743 = vrot.lane.b32.xlu0 %v1483, 120
        %v1744 = vpop.permute.xlu0 %1743
        %vm1745 = vcmask 982016
        %v1746 = vsel %vm1745, %v1710, %v1712
        %v1747 = vsel %vm1745, %v1712, %v1714
        %v1748 = vsel %vm1745, %v1714, %v1716
        %v1749 = vsel %vm1745, %v1716, %v1718
        %v1750 = vsel %vm1745, %v1718, %v1720
        %v1751 = vsel %vm1745, %v1720, %v1722
        %v1752 = vsel %vm1745, %v1722, %v1724
        %v1753 = vsel %vm1745, %v1724, %v1726
        %v1754 = vsel %vm1745, %v1728, %v1730
        %v1755 = vsel %vm1745, %v1730, %v1732
        %v1756 = vsel %vm1745, %v1732, %v1734
        %v1757 = vsel %vm1745, %v1734, %v1736
        %v1758 = vsel %vm1745, %v1736, %v1738
        %v1759 = vsel %vm1745, %v1738, %v1740
        %v1760 = vsel %vm1745, %v1740, %v1742
        %v1761 = vsel %vm1745, %v1742, %v1744
        %v1780 = vpack.c.bf16 %v1473, %v1464
        %v1781 = vpack.c.bf16 %v1474, %v1465
        %v1782 = vpack.c.bf16 %v1475, %v1466
        %v1783 = vpack.c.bf16 %v1476, %v1467
        %v1784 = vpack.c.bf16 %v1477, %v1468
        %v1785 = vpack.c.bf16 %v1478, %v1469
        %v1786 = vpack.c.bf16 %v1479, %v1470
        %v1787 = vpack.c.bf16 %v1480, %v1471
        %v1788 = vpack.c.bf16 %v1481, %v1472
        %v1789 = vpack.c.bf16 %v1546, %v1538
        %v1790 = vpack.c.bf16 %v1547, %v1539
        %v1791 = vpack.c.bf16 %v1548, %v1540
        %v1792 = vpack.c.bf16 %v1549, %v1541
        %v1793 = vpack.c.bf16 %v1550, %v1542
        %v1794 = vpack.c.bf16 %v1551, %v1543
        %v1795 = vpack.c.bf16 %v1552, %v1544
        %v1796 = vpack.c.bf16 %v1553, %v1545
        %v1797 = vpack.c.bf16 %v1537, %v1519
        %v1798 = vpack.c.bf16 %v1589, %v1573
        %v1799 = vpack.c.bf16 %v1611, %v1604
        %v1800 = vpack.c.bf16 %v1612, %v1605
        %v1801 = vpack.c.bf16 %v1613, %v1606
        %v1802 = vpack.c.bf16 %v1614, %v1607
        %v1803 = vpack.c.bf16 %v1615, %v1608
        %v1804 = vpack.c.bf16 %v1616, %v1609
        %v1805 = vpack.c.bf16 %v1617, %v1610
        %v1806 = vpack.c.bf16 %v1603, %v1587
        %v1807 = vpack.c.bf16 %v1657, %v1639
        %v1808 = vpack.c.bf16 %v1683, %v1675
        %v1809 = vpack.c.bf16 %v1684, %v1676
        %v1810 = vpack.c.bf16 %v1685, %v1677
        %v1811 = vpack.c.bf16 %v1686, %v1678
        %v1812 = vpack.c.bf16 %v1687, %v1679
        %v1813 = vpack.c.bf16 %v1688, %v1680
        %v1814 = vpack.c.bf16 %v1689, %v1681
        %v1815 = vpack.c.bf16 %v1690, %v1682
        %v1816 = vpack.c.bf16 %v1728, %v1710
        %v1817 = vpack.c.bf16 %v1754, %v1746
        %v1818 = vpack.c.bf16 %v1755, %v1747
        %v1819 = vpack.c.bf16 %v1756, %v1748
        %v1820 = vpack.c.bf16 %v1757, %v1749
        %v1821 = vpack.c.bf16 %v1758, %v1750
        %v1822 = vpack.c.bf16 %v1759, %v1751
        %v1823 = vpack.c.bf16 %v1760, %v1752
        %v1824 = vpack.c.bf16 %v1761, %v1753
        %v1825 = vld [vmem:[#allocation8] sm:$0xf]
        %v1826 = vld [vmem:[#allocation8 + $0x4] sm:$0xf]
        %v1827 = vld [vmem:[#allocation10] sm:$0xff]
        %v1828 = vld [vmem:[#allocation10 + $0x8] sm:$0xff]
        %1830 = vset.pattern.permute.xlu0 0
        %1831 = vperm.xlu0 %1830, %v1827
        %v1832 = vpop.permute.xlu0 %1831
        %1835 = vset.pattern.permute.xlu0 0
        %1836 = vperm.xlu0 %1835, %v1828
        %v1837 = vpop.permute.xlu0 %1836
        %v1841 = vunpack.c.l.b16 %v1825
        %v1842 = vunpack.c.l.b16 %v1826
        %v1843 = vpack.c.b16 %v1842, %v1841
        %1889 = vrot.lane.b32.xlu0 %v1780, 4
        %v1890 = vpop.permute.xlu0 %1889
        %1891 = vrot.lane.b32.xlu0 %v1781, 4
        %v1892 = vpop.permute.xlu0 %1891
        %1893 = vrot.lane.b32.xlu0 %v1782, 4
        %v1894 = vpop.permute.xlu0 %1893
        %1895 = vrot.lane.b32.xlu0 %v1783, 4
        %v1896 = vpop.permute.xlu0 %1895
        %1897 = vrot.lane.b32.xlu0 %v1784, 4
        %v1898 = vpop.permute.xlu0 %1897
        %1899 = vrot.lane.b32.xlu0 %v1785, 4
        %v1900 = vpop.permute.xlu0 %1899
        %1901 = vrot.lane.b32.xlu0 %v1786, 4
        %v1902 = vpop.permute.xlu0 %1901
        %1903 = vrot.lane.b32.xlu0 %v1787, 4
        %v1904 = vpop.permute.xlu0 %1903
        %1905 = vrot.lane.b32.xlu0 %v1788, 4
        %v1906 = vpop.permute.xlu0 %1905
        %1907 = vrot.lane.b32.xlu0 %v1789, 4
        %v1908 = vpop.permute.xlu0 %1907
        %1909 = vrot.lane.b32.xlu0 %v1790, 4
        %v1910 = vpop.permute.xlu0 %1909
        %1911 = vrot.lane.b32.xlu0 %v1791, 4
        %v1912 = vpop.permute.xlu0 %1911
        %1913 = vrot.lane.b32.xlu0 %v1792, 4
        %v1914 = vpop.permute.xlu0 %1913
        %1915 = vrot.lane.b32.xlu0 %v1793, 4
        %v1916 = vpop.permute.xlu0 %1915
        %1917 = vrot.lane.b32.xlu0 %v1794, 4
        %v1918 = vpop.permute.xlu0 %1917
        %1919 = vrot.lane.b32.xlu0 %v1795, 4
        %v1920 = vpop.permute.xlu0 %1919
        %1921 = vrot.lane.b32.xlu0 %v1796, 4
        %v1922 = vpop.permute.xlu0 %1921
        %1923 = vrot.lane.b32.xlu0 %v1797, 4
        %v1924 = vpop.permute.xlu0 %1923
        %1925 = vrot.lane.b32.xlu0 %v1798, 4
        %v1926 = vpop.permute.xlu0 %1925
        %1927 = vrot.lane.b32.xlu0 %v1799, 4
        %v1928 = vpop.permute.xlu0 %1927
        %1929 = vrot.lane.b32.xlu0 %v1800, 4
        %v1930 = vpop.permute.xlu0 %1929
        %1931 = vrot.lane.b32.xlu0 %v1801, 4
        %v1932 = vpop.permute.xlu0 %1931
        %1933 = vrot.lane.b32.xlu0 %v1802, 4
        %v1934 = vpop.permute.xlu0 %1933
        %1935 = vrot.lane.b32.xlu0 %v1803, 4
        %v1936 = vpop.permute.xlu0 %1935
        %1937 = vrot.lane.b32.xlu0 %v1804, 4
        %v1938 = vpop.permute.xlu0 %1937
        %1939 = vrot.lane.b32.xlu0 %v1805, 4
        %v1940 = vpop.permute.xlu0 %1939
        %1941 = vrot.lane.b32.xlu0 %v1806, 4
        %v1942 = vpop.permute.xlu0 %1941
        %1943 = vrot.lane.b32.xlu0 %v1807, 4
        %v1944 = vpop.permute.xlu0 %1943
        %1945 = vrot.lane.b32.xlu0 %v1808, 4
        %v1946 = vpop.permute.xlu0 %1945
        %1947 = vrot.lane.b32.xlu0 %v1809, 4
        %v1948 = vpop.permute.xlu0 %1947
        %1949 = vrot.lane.b32.xlu0 %v1810, 4
        %v1950 = vpop.permute.xlu0 %1949
        %1951 = vrot.lane.b32.xlu0 %v1811, 4
        %v1952 = vpop.permute.xlu0 %1951
        %1953 = vrot.lane.b32.xlu0 %v1812, 4
        %v1954 = vpop.permute.xlu0 %1953
        %1955 = vrot.lane.b32.xlu0 %v1813, 4
        %v1956 = vpop.permute.xlu0 %1955
        %1957 = vrot.lane.b32.xlu0 %v1814, 4
        %v1958 = vpop.permute.xlu0 %1957
        %1959 = vrot.lane.b32.xlu0 %v1815, 4
        %v1960 = vpop.permute.xlu0 %1959
        %1961 = vrot.lane.b32.xlu0 %v1816, 4
        %v1962 = vpop.permute.xlu0 %1961
        %1963 = vrot.lane.b32.xlu0 %v1817, 4
        %v1964 = vpop.permute.xlu0 %1963
        %1965 = vrot.lane.b32.xlu0 %v1818, 4
        %v1966 = vpop.permute.xlu0 %1965
        %1967 = vrot.lane.b32.xlu0 %v1819, 4
        %v1968 = vpop.permute.xlu0 %1967
        %1969 = vrot.lane.b32.xlu0 %v1820, 4
        %v1970 = vpop.permute.xlu0 %1969
        %1971 = vrot.lane.b32.xlu0 %v1821, 4
        %v1972 = vpop.permute.xlu0 %1971
        %1973 = vrot.lane.b32.xlu0 %v1822, 4
        %v1974 = vpop.permute.xlu0 %1973
        %1975 = vrot.lane.b32.xlu0 %v1823, 4
        %v1976 = vpop.permute.xlu0 %1975
        %1977 = vrot.lane.b32.xlu0 %v1824, 4
        %v1978 = vpop.permute.xlu0 %1977
        %vm1979 = vcmask 31744
        %v1980 = vsel %vm1979, %v1890, %v1892
        %v1981 = vsel %vm1979, %v1892, %v1894
        %v1982 = vsel %vm1979, %v1894, %v1896
        %v1983 = vsel %vm1979, %v1896, %v1898
        %v1984 = vsel %vm1979, %v1898, %v1900
        %v1985 = vsel %vm1979, %v1900, %v1902
        %v1986 = vsel %vm1979, %v1902, %v1904
        %v1987 = vsel %vm1979, %v1904, %v1906
        %v1988 = vsel %vm1979, %v1908, %v1910
        %v1989 = vsel %vm1979, %v1910, %v1912
        %v1990 = vsel %vm1979, %v1912, %v1914
        %v1991 = vsel %vm1979, %v1914, %v1916
        %v1992 = vsel %vm1979, %v1916, %v1918
        %v1993 = vsel %vm1979, %v1918, %v1920
        %v1994 = vsel %vm1979, %v1920, %v1922
        %v1995 = vsel %vm1979, %v1922, %v1924
        %v1996 = vsel %vm1979, %v1926, %v1928
        %v1997 = vsel %vm1979, %v1928, %v1930
        %v1998 = vsel %vm1979, %v1930, %v1932
        %v1999 = vsel %vm1979, %v1932, %v1934
        %v2000 = vsel %vm1979, %v1934, %v1936
        %v2001 = vsel %vm1979, %v1936, %v1938
        %v2002 = vsel %vm1979, %v1938, %v1940
        %v2003 = vsel %vm1979, %v1940, %v1942
        %v2004 = vsel %vm1979, %v1944, %v1946
        %v2005 = vsel %vm1979, %v1946, %v1948
        %v2006 = vsel %vm1979, %v1948, %v1950
        %v2007 = vsel %vm1979, %v1950, %v1952
        %v2008 = vsel %vm1979, %v1952, %v1954
        %v2009 = vsel %vm1979, %v1954, %v1956
        %v2010 = vsel %vm1979, %v1956, %v1958
        %v2011 = vsel %vm1979, %v1958, %v1960
        %v2012 = vsel %vm1979, %v1962, %v1964
        %v2013 = vsel %vm1979, %v1964, %v1966
        %v2014 = vsel %vm1979, %v1966, %v1968
        %v2015 = vsel %vm1979, %v1968, %v1970
        %v2016 = vsel %vm1979, %v1970, %v1972
        %v2017 = vsel %vm1979, %v1972, %v1974
        %v2018 = vsel %vm1979, %v1974, %v1976
        %v2019 = vsel %vm1979, %v1976, %v1978
        %vm2060 = vcmask 654336
        %v2062 = vsel %vm2060, %v1843, 0
        %2064 = vmatprep.subr.bf16.mxu0 0
        %2065 = vmatpush1.bf16.msra.mxu0 0
        %2066 = vmatprep.subr.bf16.mxu0 0
        %2067 = vmatpush1.bf16.msra.mxu0 0
        %2068 = vmatprep.subr.bf16.mxu0 0
        %2069 = vmatpush1.bf16.msra.mxu0 0
        %2070 = vmatprep.subr.bf16.mxu0 %v2013
        %2071 = vmatpush1.bf16.msra.mxu0 %v2012
        %2072 = vmatprep.subr.bf16.mxu0 %v2005
        %2073 = vmatpush1.bf16.msra.mxu0 %v2004
        %2074 = vmatprep.subr.bf16.mxu0 %v1997
        %2075 = vmatpush1.bf16.msra.mxu0 %v1996
        %2076 = vmatprep.subr.bf16.mxu0 %v1989
        %2077 = vmatpush1.bf16.msra.mxu0 %v1988
        %2078 = vmatprep.subr.bf16.mxu0 %v1981
        %2079 = vmatpush1.bf16.msra.mxu0 %v1980
        %2080 = vmatprep.subr.bf16.mxu0 0
        %2081 = vmatpush2.bf16.msra.mxu0 0
        %2082 = vmatprep.subr.bf16.mxu0 0
        %2083 = vmatpush2.bf16.msra.mxu0 0
        %2084 = vmatprep.subr.bf16.mxu0 0
        %2085 = vmatpush2.bf16.msra.mxu0 0
        %2086 = vmatprep.subr.bf16.mxu0 0
        %2087 = vmatpush2.bf16.msra.mxu0 0
        %2088 = vmatprep.subr.bf16.mxu0 0
        %2089 = vmatpush2.bf16.msra.mxu0 0
        %2090 = vmatprep.subr.bf16.mxu0 0
        %2091 = vmatpush2.bf16.msra.mxu0 0
        %2092 = vmatprep.subr.bf16.mxu0 0
        %2093 = vmatpush2.bf16.msra.mxu0 0
        %2094 = vmatprep.subr.bf16.mxu0 0
        %2095 = vmatpush2.bf16.msra.mxu0 0
        %2096 = vmatprep.mubr.bf16.mxu0 0
        %2097 = vmatmul.mubr.bf16.gmra.mxu0 %v2062
        %v2098 = vpop.f32.mrf.mxu0
        %v2099 = vadd.f32 %v1832, %v2098
        %v2100 = vpop.f32.mrf.mxu0
        %v2101 = vadd.f32 %v1832, %v2100
        %v2102 = vpop.f32.mrf.mxu0
        %v2103 = vadd.f32 %v1837, %v2102
        %v2104 = vpop.f32.mrf.mxu0
        %v2105 = vadd.f32 %v1837, %v2104
        %2106 = vdwg.mxu0
        %2107 = vmatprep.subr.bf16.mxu0 0
        %2108 = vmatpush1.bf16.msra.mxu0 0
        %2109 = vmatprep.subr.bf16.mxu0 0
        %2110 = vmatpush1.bf16.msra.mxu0 0
        %2111 = vmatprep.subr.bf16.mxu0 0
        %2112 = vmatpush1.bf16.msra.mxu0 0
        %2113 = vmatprep.subr.bf16.mxu0 %v2015
        %2114 = vmatpush1.bf16.msra.mxu0 %v2014
        %2115 = vmatprep.subr.bf16.mxu0 %v2007
        %2116 = vmatpush1.bf16.msra.mxu0 %v2006
        %2117 = vmatprep.subr.bf16.mxu0 %v1999
        %2118 = vmatpush1.bf16.msra.mxu0 %v1998
        %2119 = vmatprep.subr.bf16.mxu0 %v1991
        %2120 = vmatpush1.bf16.msra.mxu0 %v1990
        %2121 = vmatprep.subr.bf16.mxu0 %v1983
        %2122 = vmatpush1.bf16.msra.mxu0 %v1982
        %2123 = vmatprep.subr.bf16.mxu0 0
        %2124 = vmatpush2.bf16.msra.mxu0 0
        %2125 = vmatprep.subr.bf16.mxu0 0
        %2126 = vmatpush2.bf16.msra.mxu0 0
        %2127 = vmatprep.subr.bf16.mxu0 0
        %2128 = vmatpush2.bf16.msra.mxu0 0
        %2129 = vmatprep.subr.bf16.mxu0 0
        %2130 = vmatpush2.bf16.msra.mxu0 0
        %2131 = vmatprep.subr.bf16.mxu0 0
        %2132 = vmatpush2.bf16.msra.mxu0 0
        %2133 = vmatprep.subr.bf16.mxu0 0
        %2134 = vmatpush2.bf16.msra.mxu0 0
        %2135 = vmatprep.subr.bf16.mxu0 0
        %2136 = vmatpush2.bf16.msra.mxu0 0
        %2137 = vmatprep.subr.bf16.mxu0 0
        %2138 = vmatpush2.bf16.msra.mxu0 0
        %2139 = vmatprep.mubr.bf16.mxu0 0
        %2140 = vmatmul.mubr.bf16.gmra.mxu0 %v2062
        %v2141 = vpop.f32.mrf.mxu0
        %v2142 = vadd.f32 %v1832, %v2141
        %v2143 = vpop.f32.mrf.mxu0
        %v2144 = vadd.f32 %v1832, %v2143
        %v2145 = vpop.f32.mrf.mxu0
        %v2146 = vadd.f32 %v1837, %v2145
        %v2147 = vpop.f32.mrf.mxu0
        %v2148 = vadd.f32 %v1837, %v2147
        %2149 = vdwg.mxu0
        %2150 = vmatprep.subr.bf16.mxu0 0
        %2151 = vmatpush1.bf16.msra.mxu0 0
        %2152 = vmatprep.subr.bf16.mxu0 0
        %2153 = vmatpush1.bf16.msra.mxu0 0
        %2154 = vmatprep.subr.bf16.mxu0 0
        %2155 = vmatpush1.bf16.msra.mxu0 0
        %2156 = vmatprep.subr.bf16.mxu0 %v2017
        %2157 = vmatpush1.bf16.msra.mxu0 %v2016
        %2158 = vmatprep.subr.bf16.mxu0 %v2009
        %2159 = vmatpush1.bf16.msra.mxu0 %v2008
        %2160 = vmatprep.subr.bf16.mxu0 %v2001
        %2161 = vmatpush1.bf16.msra.mxu0 %v2000
        %2162 = vmatprep.subr.bf16.mxu0 %v1993
        %2163 = vmatpush1.bf16.msra.mxu0 %v1992
        %2164 = vmatprep.subr.bf16.mxu0 %v1985
        %2165 = vmatpush1.bf16.msra.mxu0 %v1984
        %2166 = vmatprep.subr.bf16.mxu0 0
        %2167 = vmatpush2.bf16.msra.mxu0 0
        %2168 = vmatprep.subr.bf16.mxu0 0
        %2169 = vmatpush2.bf16.msra.mxu0 0
        %2170 = vmatprep.subr.bf16.mxu0 0
        %2171 = vmatpush2.bf16.msra.mxu0 0
        %2172 = vmatprep.subr.bf16.mxu0 0
        %2173 = vmatpush2.bf16.msra.mxu0 0
        %2174 = vmatprep.subr.bf16.mxu0 0
        %2175 = vmatpush2.bf16.msra.mxu0 0
        %2176 = vmatprep.subr.bf16.mxu0 0
        %2177 = vmatpush2.bf16.msra.mxu0 0
        %2178 = vmatprep.subr.bf16.mxu0 0
        %2179 = vmatpush2.bf16.msra.mxu0 0
        %2180 = vmatprep.subr.bf16.mxu0 0
        %2181 = vmatpush2.bf16.msra.mxu0 0
        %2182 = vmatprep.mubr.bf16.mxu0 0
        %2183 = vmatmul.mubr.bf16.gmra.mxu0 %v2062
        %v2184 = vpop.f32.mrf.mxu0
        %v2185 = vadd.f32 %v1832, %v2184
        %v2186 = vpop.f32.mrf.mxu0
        %v2187 = vadd.f32 %v1832, %v2186
        %v2188 = vpop.f32.mrf.mxu0
        %v2189 = vadd.f32 %v1837, %v2188
        %v2190 = vpop.f32.mrf.mxu0
        %v2191 = vadd.f32 %v1837, %v2190
        %2192 = vdwg.mxu0
        %2193 = vmatprep.subr.bf16.mxu0 0
        %2194 = vmatpush1.bf16.msra.mxu0 0
        %2195 = vmatprep.subr.bf16.mxu0 0
        %2196 = vmatpush1.bf16.msra.mxu0 0
        %2197 = vmatprep.subr.bf16.mxu0 0
        %2198 = vmatpush1.bf16.msra.mxu0 0
        %2199 = vmatprep.subr.bf16.mxu0 %v2019
        %2200 = vmatpush1.bf16.msra.mxu0 %v2018
        %2201 = vmatprep.subr.bf16.mxu0 %v2011
        %2202 = vmatpush1.bf16.msra.mxu0 %v2010
        %2203 = vmatprep.subr.bf16.mxu0 %v2003
        %2204 = vmatpush1.bf16.msra.mxu0 %v2002
        %2205 = vmatprep.subr.bf16.mxu0 %v1995
        %2206 = vmatpush1.bf16.msra.mxu0 %v1994
        %2207 = vmatprep.subr.bf16.mxu0 %v1987
        %2208 = vmatpush1.bf16.msra.mxu0 %v1986
        %2209 = vmatprep.subr.bf16.mxu0 0
        %2210 = vmatpush2.bf16.msra.mxu0 0
        %2211 = vmatprep.subr.bf16.mxu0 0
        %2212 = vmatpush2.bf16.msra.mxu0 0
        %2213 = vmatprep.subr.bf16.mxu0 0
        %2214 = vmatpush2.bf16.msra.mxu0 0
        %2215 = vmatprep.subr.bf16.mxu0 0
        %2216 = vmatpush2.bf16.msra.mxu0 0
        %2217 = vmatprep.subr.bf16.mxu0 0
        %2218 = vmatpush2.bf16.msra.mxu0 0
        %2219 = vmatprep.subr.bf16.mxu0 0
        %2220 = vmatpush2.bf16.msra.mxu0 0
        %2221 = vmatprep.subr.bf16.mxu0 0
        %2222 = vmatpush2.bf16.msra.mxu0 0
        %2223 = vmatprep.subr.bf16.mxu0 0
        %2224 = vmatpush2.bf16.msra.mxu0 0
        %2225 = vmatprep.mubr.bf16.mxu0 0
        %2226 = vmatmul.mubr.bf16.gmra.mxu0 %v2062
        %v2227 = vpop.f32.mrf.mxu0
        %v2228 = vadd.f32 %v1832, %v2227
        %v2229 = vpop.f32.mrf.mxu0
        %v2230 = vadd.f32 %v1832, %v2229
        %v2231 = vpop.f32.mrf.mxu0
        %v2232 = vadd.f32 %v1837, %v2231
        %v2233 = vpop.f32.mrf.mxu0
        %v2234 = vadd.f32 %v1837, %v2233
        %2235 = vdwg.mxu0
        %v2236 = vmax.f32 %v2099, 0.0
        %v2237 = vmax.f32 %v2101, 0.0
        %v2238 = vmax.f32 %v2142, 0.0
        %v2239 = vmax.f32 %v2144, 0.0
        %v2240 = vmax.f32 %v2185, 0.0
        %v2241 = vmax.f32 %v2187, 0.0
        %v2242 = vmax.f32 %v2228, 0.0
        %v2243 = vmax.f32 %v2230, 0.0
        %v2244 = vmax.f32 %v2103, 0.0
        %v2245 = vmax.f32 %v2105, 0.0
        %v2246 = vmax.f32 %v2146, 0.0
        %v2247 = vmax.f32 %v2148, 0.0
        %v2248 = vmax.f32 %v2189, 0.0
        %v2249 = vmax.f32 %v2191, 0.0
        %v2250 = vmax.f32 %v2232, 0.0
        %v2251 = vmax.f32 %v2234, 0.0
        %2252 = vst [vmem:[#allocation2 + $0x8] sm:$0xff] %v2236
        %2253 = vst [vmem:[#allocation2 + $0x10] sm:$0xff] %v2237
        %2254 = vst [vmem:[#allocation2 + $0x18] sm:$0xff] %v2238
        %2255 = vst [vmem:[#allocation2 + $0x20] sm:$0xff] %v2239
        %2256 = vst [vmem:[#allocation2 + $0x28] sm:$0xff] %v2240
        %2257 = vst [vmem:[#allocation2 + $0x30] sm:$0xff] %v2241
        %2258 = vst [vmem:[#allocation2 + $0x38] sm:$0xff] %v2242
        %2259 = vst [vmem:[#allocation2 + $0x40] sm:$0xff] %v2243
        %2260 = vst [vmem:[#allocation2 + $0x58] sm:$0xff] %v2244
        %2261 = vst [vmem:[#allocation2 + $0x60] sm:$0xff] %v2245
        %2262 = vst [vmem:[#allocation2 + $0x68] sm:$0xff] %v2246
        %2263 = vst [vmem:[#allocation2 + $0x70] sm:$0xff] %v2247
        %2264 = vst [vmem:[#allocation2 + $0x78] sm:$0xff] %v2248
        %2265 = vst [vmem:[#allocation2 + $0x80] sm:$0xff] %v2249
        %2266 = vst [vmem:[#allocation2 + $0x88] sm:$0xff] %v2250
        %2267 = vst [vmem:[#allocation2 + $0x90] sm:$0xff] %v2251
        %v2268 = vld [vmem:[#allocation2] sm:$0xff]
        %v2269 = vld [vmem:[#allocation2 + $0x8] sm:$0xff]
        %v2270 = vld [vmem:[#allocation2 + $0x10] sm:$0xff]
        %v2271 = vld [vmem:[#allocation2 + $0x18] sm:$0xff]
        %v2272 = vld [vmem:[#allocation2 + $0x20] sm:$0xff]
        %v2273 = vld [vmem:[#allocation2 + $0x28] sm:$0xff]
        %v2274 = vld [vmem:[#allocation2 + $0x30] sm:$0xff]
        %v2275 = vld [vmem:[#allocation2 + $0x38] sm:$0xff]
        %v2276 = vld [vmem:[#allocation2 + $0x40] sm:$0xff]
        %v2277 = vld [vmem:[#allocation2 + $0x50] sm:$0xff]
        %v2278 = vld [vmem:[#allocation2 + $0x58] sm:$0xff]
        %v2279 = vld [vmem:[#allocation2 + $0x60] sm:$0xff]
        %v2280 = vld [vmem:[#allocation2 + $0x68] sm:$0xff]
        %v2281 = vld [vmem:[#allocation2 + $0x70] sm:$0xff]
        %v2282 = vld [vmem:[#allocation2 + $0x78] sm:$0xff]
        %v2283 = vld [vmem:[#allocation2 + $0x80] sm:$0xff]
        %v2284 = vld [vmem:[#allocation2 + $0x88] sm:$0xff]
        %v2285 = vld [vmem:[#allocation2 + $0x90] sm:$0xff]
        %v2286 = vld [vmem:[#allocation2 + $0x48] sm:$0xff]
        %v2287 = vld [vmem:[#allocation2 + $0x98] sm:$0xff]
        %2306 = vrot.lane.b32.xlu0 %v2268, 124
        %v2307 = vpop.permute.xlu0 %2306
        %2308 = vrot.lane.b32.xlu0 %v2269, 124
        %v2309 = vpop.permute.xlu0 %2308
        %2310 = vrot.lane.b32.xlu0 %v2270, 124
        %v2311 = vpop.permute.xlu0 %2310
        %2312 = vrot.lane.b32.xlu0 %v2271, 124
        %v2313 = vpop.permute.xlu0 %2312
        %2314 = vrot.lane.b32.xlu0 %v2272, 124
        %v2315 = vpop.permute.xlu0 %2314
        %2316 = vrot.lane.b32.xlu0 %v2273, 124
        %v2317 = vpop.permute.xlu0 %2316
        %2318 = vrot.lane.b32.xlu0 %v2274, 124
        %v2319 = vpop.permute.xlu0 %2318
        %2320 = vrot.lane.b32.xlu0 %v2275, 124
        %v2321 = vpop.permute.xlu0 %2320
        %2322 = vrot.lane.b32.xlu0 %v2276, 124
        %v2323 = vpop.permute.xlu0 %2322
        %2324 = vrot.lane.b32.xlu0 %v2277, 124
        %v2325 = vpop.permute.xlu0 %2324
        %2326 = vrot.lane.b32.xlu0 %v2278, 124
        %v2327 = vpop.permute.xlu0 %2326
        %2328 = vrot.lane.b32.xlu0 %v2279, 124
        %v2329 = vpop.permute.xlu0 %2328
        %2330 = vrot.lane.b32.xlu0 %v2280, 124
        %v2331 = vpop.permute.xlu0 %2330
        %2332 = vrot.lane.b32.xlu0 %v2281, 124
        %v2333 = vpop.permute.xlu0 %2332
        %2334 = vrot.lane.b32.xlu0 %v2282, 124
        %v2335 = vpop.permute.xlu0 %2334
        %2336 = vrot.lane.b32.xlu0 %v2283, 124
        %v2337 = vpop.permute.xlu0 %2336
        %2338 = vrot.lane.b32.xlu0 %v2284, 124
        %v2339 = vpop.permute.xlu0 %2338
        %2340 = vrot.lane.b32.xlu0 %v2285, 124
        %v2341 = vpop.permute.xlu0 %2340
        %v2342 = vsel %vm1260, %v2307, %v2309
        %v2343 = vsel %vm1260, %v2309, %v2311
        %v2344 = vsel %vm1260, %v2311, %v2313
        %v2345 = vsel %vm1260, %v2313, %v2315
        %v2346 = vsel %vm1260, %v2315, %v2317
        %v2347 = vsel %vm1260, %v2317, %v2319
        %v2348 = vsel %vm1260, %v2319, %v2321
        %v2349 = vsel %vm1260, %v2321, %v2323
        %v2350 = vsel %vm1260, %v2325, %v2327
        %v2351 = vsel %vm1260, %v2327, %v2329
        %v2352 = vsel %vm1260, %v2329, %v2331
        %v2353 = vsel %vm1260, %v2331, %v2333
        %v2354 = vsel %vm1260, %v2333, %v2335
        %v2355 = vsel %vm1260, %v2335, %v2337
        %v2356 = vsel %vm1260, %v2337, %v2339
        %v2357 = vsel %vm1260, %v2339, %v2341
        %2376 = vrot.lane.b32.xlu0 %v2269, 120
        %v2377 = vpop.permute.xlu0 %2376
        %2378 = vrot.lane.b32.xlu0 %v2270, 120
        %v2379 = vpop.permute.xlu0 %2378
        %2380 = vrot.lane.b32.xlu0 %v2271, 120
        %v2381 = vpop.permute.xlu0 %2380
        %2382 = vrot.lane.b32.xlu0 %v2272, 120
        %v2383 = vpop.permute.xlu0 %2382
        %2384 = vrot.lane.b32.xlu0 %v2273, 120
        %v2385 = vpop.permute.xlu0 %2384
        %2386 = vrot.lane.b32.xlu0 %v2274, 120
        %v2387 = vpop.permute.xlu0 %2386
        %2388 = vrot.lane.b32.xlu0 %v2275, 120
        %v2389 = vpop.permute.xlu0 %2388
        %2390 = vrot.lane.b32.xlu0 %v2276, 120
        %v2391 = vpop.permute.xlu0 %2390
        %2392 = vrot.lane.b32.xlu0 %v2278, 120
        %v2393 = vpop.permute.xlu0 %2392
        %2394 = vrot.lane.b32.xlu0 %v2279, 120
        %v2395 = vpop.permute.xlu0 %2394
        %2396 = vrot.lane.b32.xlu0 %v2280, 120
        %v2397 = vpop.permute.xlu0 %2396
        %2398 = vrot.lane.b32.xlu0 %v2281, 120
        %v2399 = vpop.permute.xlu0 %2398
        %2400 = vrot.lane.b32.xlu0 %v2282, 120
        %v2401 = vpop.permute.xlu0 %2400
        %2402 = vrot.lane.b32.xlu0 %v2283, 120
        %v2403 = vpop.permute.xlu0 %2402
        %2404 = vrot.lane.b32.xlu0 %v2284, 120
        %v2405 = vpop.permute.xlu0 %2404
        %2406 = vrot.lane.b32.xlu0 %v2285, 120
        %v2407 = vpop.permute.xlu0 %2406
        %v2408 = vsel %vm1745, %v2377, %v2379
        %v2409 = vsel %vm1745, %v2379, %v2381
        %v2410 = vsel %vm1745, %v2381, %v2383
        %v2411 = vsel %vm1745, %v2383, %v2385
        %v2412 = vsel %vm1745, %v2385, %v2387
        %v2413 = vsel %vm1745, %v2387, %v2389
        %v2414 = vsel %vm1745, %v2389, %v2391
        %v2415 = vsel %vm1745, %v2393, %v2395
        %v2416 = vsel %vm1745, %v2395, %v2397
        %v2417 = vsel %vm1745, %v2397, %v2399
        %v2418 = vsel %vm1745, %v2399, %v2401
        %v2419 = vsel %vm1745, %v2401, %v2403
        %v2420 = vsel %vm1745, %v2403, %v2405
        %v2421 = vsel %vm1745, %v2405, %v2407
        %2442 = vrot.lane.b32.xlu0 %v2269, 116
        %v2443 = vpop.permute.xlu0 %2442
        %2444 = vrot.lane.b32.xlu0 %v2270, 116
        %v2445 = vpop.permute.xlu0 %2444
        %2446 = vrot.lane.b32.xlu0 %v2271, 116
        %v2447 = vpop.permute.xlu0 %2446
        %2448 = vrot.lane.b32.xlu0 %v2272, 116
        %v2449 = vpop.permute.xlu0 %2448
        %2450 = vrot.lane.b32.xlu0 %v2273, 116
        %v2451 = vpop.permute.xlu0 %2450
        %2452 = vrot.lane.b32.xlu0 %v2274, 116
        %v2453 = vpop.permute.xlu0 %2452
        %2454 = vrot.lane.b32.xlu0 %v2275, 116
        %v2455 = vpop.permute.xlu0 %2454
        %2456 = vrot.lane.b32.xlu0 %v2276, 116
        %v2457 = vpop.permute.xlu0 %2456
        %2458 = vrot.lane.b32.xlu0 %v2286, 116
        %v2459 = vpop.permute.xlu0 %2458
        %2460 = vrot.lane.b32.xlu0 %v2278, 116
        %v2461 = vpop.permute.xlu0 %2460
        %2462 = vrot.lane.b32.xlu0 %v2279, 116
        %v2463 = vpop.permute.xlu0 %2462
        %2464 = vrot.lane.b32.xlu0 %v2280, 116
        %v2465 = vpop.permute.xlu0 %2464
        %2466 = vrot.lane.b32.xlu0 %v2281, 116
        %v2467 = vpop.permute.xlu0 %2466
        %2468 = vrot.lane.b32.xlu0 %v2282, 116
        %v2469 = vpop.permute.xlu0 %2468
        %2470 = vrot.lane.b32.xlu0 %v2283, 116
        %v2471 = vpop.permute.xlu0 %2470
        %2472 = vrot.lane.b32.xlu0 %v2284, 116
        %v2473 = vpop.permute.xlu0 %2472
        %2474 = vrot.lane.b32.xlu0 %v2285, 116
        %v2475 = vpop.permute.xlu0 %2474
        %2476 = vrot.lane.b32.xlu0 %v2287, 116
        %v2477 = vpop.permute.xlu0 %2476
        %vm2478 = vcmask 949248
        %v2479 = vsel %vm2478, %v2443, %v2445
        %v2480 = vsel %vm2478, %v2445, %v2447
        %v2481 = vsel %vm2478, %v2447, %v2449
        %v2482 = vsel %vm2478, %v2449, %v2451
        %v2483 = vsel %vm2478, %v2451, %v2453
        %v2484 = vsel %vm2478, %v2453, %v2455
        %v2485 = vsel %vm2478, %v2455, %v2457
        %v2486 = vsel %vm2478, %v2457, %v2459
        %v2487 = vsel %vm2478, %v2461, %v2463
        %v2488 = vsel %vm2478, %v2463, %v2465
        %v2489 = vsel %vm2478, %v2465, %v2467
        %v2490 = vsel %vm2478, %v2467, %v2469
        %v2491 = vsel %vm2478, %v2469, %v2471
        %v2492 = vsel %vm2478, %v2471, %v2473
        %v2493 = vsel %vm2478, %v2473, %v2475
        %v2494 = vsel %vm2478, %v2475, %v2477
        %2513 = vrot.lane.b32.xlu0 %v2269, 112
        %v2514 = vpop.permute.xlu0 %2513
        %2515 = vrot.lane.b32.xlu0 %v2270, 112
        %v2516 = vpop.permute.xlu0 %2515
        %2517 = vrot.lane.b32.xlu0 %v2271, 112
        %v2518 = vpop.permute.xlu0 %2517
        %2519 = vrot.lane.b32.xlu0 %v2272, 112
        %v2520 = vpop.permute.xlu0 %2519
        %2521 = vrot.lane.b32.xlu0 %v2273, 112
        %v2522 = vpop.permute.xlu0 %2521
        %2523 = vrot.lane.b32.xlu0 %v2274, 112
        %v2524 = vpop.permute.xlu0 %2523
        %2525 = vrot.lane.b32.xlu0 %v2275, 112
        %v2526 = vpop.permute.xlu0 %2525
        %2527 = vrot.lane.b32.xlu0 %v2276, 112
        %v2528 = vpop.permute.xlu0 %2527
        %2529 = vrot.lane.b32.xlu0 %v2286, 112
        %v2530 = vpop.permute.xlu0 %2529
        %2531 = vrot.lane.b32.xlu0 %v2278, 112
        %v2532 = vpop.permute.xlu0 %2531
        %2533 = vrot.lane.b32.xlu0 %v2279, 112
        %v2534 = vpop.permute.xlu0 %2533
        %2535 = vrot.lane.b32.xlu0 %v2280, 112
        %v2536 = vpop.permute.xlu0 %2535
        %2537 = vrot.lane.b32.xlu0 %v2281, 112
        %v2538 = vpop.permute.xlu0 %2537
        %2539 = vrot.lane.b32.xlu0 %v2282, 112
        %v2540 = vpop.permute.xlu0 %2539
        %2541 = vrot.lane.b32.xlu0 %v2283, 112
        %v2542 = vpop.permute.xlu0 %2541
        %2543 = vrot.lane.b32.xlu0 %v2284, 112
        %v2544 = vpop.permute.xlu0 %2543
        %2545 = vrot.lane.b32.xlu0 %v2285, 112
        %v2546 = vpop.permute.xlu0 %2545
        %2547 = vrot.lane.b32.xlu0 %v2287, 112
        %v2548 = vpop.permute.xlu0 %2547
        %vm2549 = vcmask 916480
        %v2550 = vsel %vm2549, %v2514, %v2516
        %v2551 = vsel %vm2549, %v2516, %v2518
        %v2552 = vsel %vm2549, %v2518, %v2520
        %v2553 = vsel %vm2549, %v2520, %v2522
        %v2554 = vsel %vm2549, %v2522, %v2524
        %v2555 = vsel %vm2549, %v2524, %v2526
        %v2556 = vsel %vm2549, %v2526, %v2528
        %v2557 = vsel %vm2549, %v2528, %v2530
        %v2558 = vsel %vm2549, %v2532, %v2534
        %v2559 = vsel %vm2549, %v2534, %v2536
        %v2560 = vsel %vm2549, %v2536, %v2538
        %v2561 = vsel %vm2549, %v2538, %v2540
        %v2562 = vsel %vm2549, %v2540, %v2542
        %v2563 = vsel %vm2549, %v2542, %v2544
        %v2564 = vsel %vm2549, %v2544, %v2546
        %v2565 = vsel %vm2549, %v2546, %v2548
        %v2584 = vpack.c.bf16 %v2277, %v2268
        %v2585 = vpack.c.bf16 %v2278, %v2269
        %v2586 = vpack.c.bf16 %v2279, %v2270
        %v2587 = vpack.c.bf16 %v2280, %v2271
        %v2588 = vpack.c.bf16 %v2281, %v2272
        %v2589 = vpack.c.bf16 %v2282, %v2273
        %v2590 = vpack.c.bf16 %v2283, %v2274
        %v2591 = vpack.c.bf16 %v2284, %v2275
        %v2592 = vpack.c.bf16 %v2285, %v2276
        %v2593 = vpack.c.bf16 %v2350, %v2342
        %v2594 = vpack.c.bf16 %v2351, %v2343
        %v2595 = vpack.c.bf16 %v2352, %v2344
        %v2596 = vpack.c.bf16 %v2353, %v2345
        %v2597 = vpack.c.bf16 %v2354, %v2346
        %v2598 = vpack.c.bf16 %v2355, %v2347
        %v2599 = vpack.c.bf16 %v2356, %v2348
        %v2600 = vpack.c.bf16 %v2357, %v2349
        %v2601 = vpack.c.bf16 %v2341, %v2323
        %v2602 = vpack.c.bf16 %v2393, %v2377
        %v2603 = vpack.c.bf16 %v2415, %v2408
        %v2604 = vpack.c.bf16 %v2416, %v2409
        %v2605 = vpack.c.bf16 %v2417, %v2410
        %v2606 = vpack.c.bf16 %v2418, %v2411
        %v2607 = vpack.c.bf16 %v2419, %v2412
        %v2608 = vpack.c.bf16 %v2420, %v2413
        %v2609 = vpack.c.bf16 %v2421, %v2414
        %v2610 = vpack.c.bf16 %v2407, %v2391
        %v2611 = vpack.c.bf16 %v2461, %v2443
        %v2612 = vpack.c.bf16 %v2487, %v2479
        %v2613 = vpack.c.bf16 %v2488, %v2480
        %v2614 = vpack.c.bf16 %v2489, %v2481
        %v2615 = vpack.c.bf16 %v2490, %v2482
        %v2616 = vpack.c.bf16 %v2491, %v2483
        %v2617 = vpack.c.bf16 %v2492, %v2484
        %v2618 = vpack.c.bf16 %v2493, %v2485
        %v2619 = vpack.c.bf16 %v2494, %v2486
        %v2620 = vpack.c.bf16 %v2532, %v2514
        %v2621 = vpack.c.bf16 %v2558, %v2550
        %v2622 = vpack.c.bf16 %v2559, %v2551
        %v2623 = vpack.c.bf16 %v2560, %v2552
        %v2624 = vpack.c.bf16 %v2561, %v2553
        %v2625 = vpack.c.bf16 %v2562, %v2554
        %v2626 = vpack.c.bf16 %v2563, %v2555
        %v2627 = vpack.c.bf16 %v2564, %v2556
        %v2628 = vpack.c.bf16 %v2565, %v2557
        %v2629 = vld [vmem:[#allocation11] sm:$0xf]
        %v2630 = vld [vmem:[#allocation11 + $0x4] sm:$0xf]
        %v2631 = vld [vmem:[#allocation11 + $0x8] sm:$0xf]
        %v2632 = vld [vmem:[#allocation11 + $0xc] sm:$0xf]
        %v2633 = vld [vmem:[#allocation13] sm:$0xff]
        %v2634 = vld [vmem:[#allocation13 + $0x8] sm:$0xff]
        %v2635 = vld [vmem:[#allocation13 + $0x10] sm:$0xff]
        %v2636 = vld [vmem:[#allocation13 + $0x18] sm:$0xff]
        %2638 = vset.pattern.permute.xlu0 0
        %2639 = vperm.xlu0 %2638, %v2633
        %v2640 = vpop.permute.xlu0 %2639
        %2643 = vset.pattern.permute.xlu0 0
        %2644 = vperm.xlu0 %2643, %v2634
        %v2645 = vpop.permute.xlu0 %2644
        %2648 = vset.pattern.permute.xlu0 0
        %2649 = vperm.xlu0 %2648, %v2635
        %v2650 = vpop.permute.xlu0 %2649
        %2653 = vset.pattern.permute.xlu0 0
        %2654 = vperm.xlu0 %2653, %v2636
        %v2655 = vpop.permute.xlu0 %2654
        %v2661 = vunpack.c.l.b16 %v2629
        %v2662 = vunpack.c.l.b16 %v2630
        %v2663 = vunpack.c.l.b16 %v2631
        %v2664 = vunpack.c.l.b16 %v2632
        %v2665 = vpack.c.b16 %v2662, %v2661
        %v2666 = vpack.c.b16 %v2664, %v2663
        %2712 = vrot.lane.b32.xlu0 %v2584, 8
        %v2713 = vpop.permute.xlu0 %2712
        %2714 = vrot.lane.b32.xlu0 %v2585, 8
        %v2715 = vpop.permute.xlu0 %2714
        %2716 = vrot.lane.b32.xlu0 %v2586, 8
        %v2717 = vpop.permute.xlu0 %2716
        %2718 = vrot.lane.b32.xlu0 %v2587, 8
        %v2719 = vpop.permute.xlu0 %2718
        %2720 = vrot.lane.b32.xlu0 %v2588, 8
        %v2721 = vpop.permute.xlu0 %2720
        %2722 = vrot.lane.b32.xlu0 %v2589, 8
        %v2723 = vpop.permute.xlu0 %2722
        %2724 = vrot.lane.b32.xlu0 %v2590, 8
        %v2725 = vpop.permute.xlu0 %2724
        %2726 = vrot.lane.b32.xlu0 %v2591, 8
        %v2727 = vpop.permute.xlu0 %2726
        %2728 = vrot.lane.b32.xlu0 %v2592, 8
        %v2729 = vpop.permute.xlu0 %2728
        %2730 = vrot.lane.b32.xlu0 %v2593, 8
        %v2731 = vpop.permute.xlu0 %2730
        %2732 = vrot.lane.b32.xlu0 %v2594, 8
        %v2733 = vpop.permute.xlu0 %2732
        %2734 = vrot.lane.b32.xlu0 %v2595, 8
        %v2735 = vpop.permute.xlu0 %2734
        %2736 = vrot.lane.b32.xlu0 %v2596, 8
        %v2737 = vpop.permute.xlu0 %2736
        %2738 = vrot.lane.b32.xlu0 %v2597, 8
        %v2739 = vpop.permute.xlu0 %2738
        %2740 = vrot.lane.b32.xlu0 %v2598, 8
        %v2741 = vpop.permute.xlu0 %2740
        %2742 = vrot.lane.b32.xlu0 %v2599, 8
        %v2743 = vpop.permute.xlu0 %2742
        %2744 = vrot.lane.b32.xlu0 %v2600, 8
        %v2745 = vpop.permute.xlu0 %2744
        %2746 = vrot.lane.b32.xlu0 %v2601, 8
        %v2747 = vpop.permute.xlu0 %2746
        %2748 = vrot.lane.b32.xlu0 %v2602, 8
        %v2749 = vpop.permute.xlu0 %2748
        %2750 = vrot.lane.b32.xlu0 %v2603, 8
        %v2751 = vpop.permute.xlu0 %2750
        %2752 = vrot.lane.b32.xlu0 %v2604, 8
        %v2753 = vpop.permute.xlu0 %2752
        %2754 = vrot.lane.b32.xlu0 %v2605, 8
        %v2755 = vpop.permute.xlu0 %2754
        %2756 = vrot.lane.b32.xlu0 %v2606, 8
        %v2757 = vpop.permute.xlu0 %2756
        %2758 = vrot.lane.b32.xlu0 %v2607, 8
        %v2759 = vpop.permute.xlu0 %2758
        %2760 = vrot.lane.b32.xlu0 %v2608, 8
        %v2761 = vpop.permute.xlu0 %2760
        %2762 = vrot.lane.b32.xlu0 %v2609, 8
        %v2763 = vpop.permute.xlu0 %2762
        %2764 = vrot.lane.b32.xlu0 %v2610, 8
        %v2765 = vpop.permute.xlu0 %2764
        %2766 = vrot.lane.b32.xlu0 %v2611, 8
        %v2767 = vpop.permute.xlu0 %2766
        %2768 = vrot.lane.b32.xlu0 %v2612, 8
        %v2769 = vpop.permute.xlu0 %2768
        %2770 = vrot.lane.b32.xlu0 %v2613, 8
        %v2771 = vpop.permute.xlu0 %2770
        %2772 = vrot.lane.b32.xlu0 %v2614, 8
        %v2773 = vpop.permute.xlu0 %2772
        %2774 = vrot.lane.b32.xlu0 %v2615, 8
        %v2775 = vpop.permute.xlu0 %2774
        %2776 = vrot.lane.b32.xlu0 %v2616, 8
        %v2777 = vpop.permute.xlu0 %2776
        %2778 = vrot.lane.b32.xlu0 %v2617, 8
        %v2779 = vpop.permute.xlu0 %2778
        %2780 = vrot.lane.b32.xlu0 %v2618, 8
        %v2781 = vpop.permute.xlu0 %2780
        %2782 = vrot.lane.b32.xlu0 %v2619, 8
        %v2783 = vpop.permute.xlu0 %2782
        %2784 = vrot.lane.b32.xlu0 %v2620, 8
        %v2785 = vpop.permute.xlu0 %2784
        %2786 = vrot.lane.b32.xlu0 %v2621, 8
        %v2787 = vpop.permute.xlu0 %2786
        %2788 = vrot.lane.b32.xlu0 %v2622, 8
        %v2789 = vpop.permute.xlu0 %2788
        %2790 = vrot.lane.b32.xlu0 %v2623, 8
        %v2791 = vpop.permute.xlu0 %2790
        %2792 = vrot.lane.b32.xlu0 %v2624, 8
        %v2793 = vpop.permute.xlu0 %2792
        %2794 = vrot.lane.b32.xlu0 %v2625, 8
        %v2795 = vpop.permute.xlu0 %2794
        %2796 = vrot.lane.b32.xlu0 %v2626, 8
        %v2797 = vpop.permute.xlu0 %2796
        %2798 = vrot.lane.b32.xlu0 %v2627, 8
        %v2799 = vpop.permute.xlu0 %2798
        %2800 = vrot.lane.b32.xlu0 %v2628, 8
        %v2801 = vpop.permute.xlu0 %2800
        %vm2802 = vcmask 64512
        %v2803 = vsel %vm2802, %v2713, %v2715
        %v2804 = vsel %vm2802, %v2715, %v2717
        %v2805 = vsel %vm2802, %v2717, %v2719
        %v2806 = vsel %vm2802, %v2719, %v2721
        %v2807 = vsel %vm2802, %v2721, %v2723
        %v2808 = vsel %vm2802, %v2723, %v2725
        %v2809 = vsel %vm2802, %v2725, %v2727
        %v2810 = vsel %vm2802, %v2727, %v2729
        %v2811 = vsel %vm2802, %v2731, %v2733
        %v2812 = vsel %vm2802, %v2733, %v2735
        %v2813 = vsel %vm2802, %v2735, %v2737
        %v2814 = vsel %vm2802, %v2737, %v2739
        %v2815 = vsel %vm2802, %v2739, %v2741
        %v2816 = vsel %vm2802, %v2741, %v2743
        %v2817 = vsel %vm2802, %v2743, %v2745
        %v2818 = vsel %vm2802, %v2745, %v2747
        %v2819 = vsel %vm2802, %v2749, %v2751
        %v2820 = vsel %vm2802, %v2751, %v2753
        %v2821 = vsel %vm2802, %v2753, %v2755
        %v2822 = vsel %vm2802, %v2755, %v2757
        %v2823 = vsel %vm2802, %v2757, %v2759
        %v2824 = vsel %vm2802, %v2759, %v2761
        %v2825 = vsel %vm2802, %v2761, %v2763
        %v2826 = vsel %vm2802, %v2763, %v2765
        %v2827 = vsel %vm2802, %v2767, %v2769
        %v2828 = vsel %vm2802, %v2769, %v2771
        %v2829 = vsel %vm2802, %v2771, %v2773
        %v2830 = vsel %vm2802, %v2773, %v2775
        %v2831 = vsel %vm2802, %v2775, %v2777
        %v2832 = vsel %vm2802, %v2777, %v2779
        %v2833 = vsel %vm2802, %v2779, %v2781
        %v2834 = vsel %vm2802, %v2781, %v2783
        %v2835 = vsel %vm2802, %v2785, %v2787
        %v2836 = vsel %vm2802, %v2787, %v2789
        %v2837 = vsel %vm2802, %v2789, %v2791
        %v2838 = vsel %vm2802, %v2791, %v2793
        %v2839 = vsel %vm2802, %v2793, %v2795
        %v2840 = vsel %vm2802, %v2795, %v2797
        %v2841 = vsel %vm2802, %v2797, %v2799
        %v2842 = vsel %vm2802, %v2799, %v2801
        %v2884 = vsel %vm2060, %v2665, 0
        %v2887 = vsel %vm2060, %v2666, 0
        %2889 = vmatprep.subr.bf16.mxu0 0
        %2890 = vmatpush1.bf16.msra.mxu0 0
        %2891 = vmatprep.subr.bf16.mxu0 0
        %2892 = vmatpush1.bf16.msra.mxu0 0
        %2893 = vmatprep.subr.bf16.mxu0 0
        %2894 = vmatpush1.bf16.msra.mxu0 0
        %2895 = vmatprep.subr.bf16.mxu0 %v2836
        %2896 = vmatpush1.bf16.msra.mxu0 %v2835
        %2897 = vmatprep.subr.bf16.mxu0 %v2828
        %2898 = vmatpush1.bf16.msra.mxu0 %v2827
        %2899 = vmatprep.subr.bf16.mxu0 %v2820
        %2900 = vmatpush1.bf16.msra.mxu0 %v2819
        %2901 = vmatprep.subr.bf16.mxu0 %v2812
        %2902 = vmatpush1.bf16.msra.mxu0 %v2811
        %2903 = vmatprep.subr.bf16.mxu0 %v2804
        %2904 = vmatpush1.bf16.msra.mxu0 %v2803
        %2905 = vmatprep.subr.bf16.mxu0 0
        %2906 = vmatpush2.bf16.msra.mxu0 0
        %2907 = vmatprep.subr.bf16.mxu0 0
        %2908 = vmatpush2.bf16.msra.mxu0 0
        %2909 = vmatprep.subr.bf16.mxu0 0
        %2910 = vmatpush2.bf16.msra.mxu0 0
        %2911 = vmatprep.subr.bf16.mxu0 0
        %2912 = vmatpush2.bf16.msra.mxu0 0
        %2913 = vmatprep.subr.bf16.mxu0 0
        %2914 = vmatpush2.bf16.msra.mxu0 0
        %2915 = vmatprep.subr.bf16.mxu0 0
        %2916 = vmatpush2.bf16.msra.mxu0 0
        %2917 = vmatprep.subr.bf16.mxu0 0
        %2918 = vmatpush2.bf16.msra.mxu0 0
        %2919 = vmatprep.subr.bf16.mxu0 0
        %2920 = vmatpush2.bf16.msra.mxu0 0
        %2921 = vmatprep.mubr.bf16.mxu0 0
        %2922 = vmatmul.mubr.bf16.gmra.mxu0 %v2884
        %v2923 = vpop.f32.mrf.mxu0
        %v2924 = vadd.f32 %v2640, %v2923
        %v2925 = vpop.f32.mrf.mxu0
        %v2926 = vadd.f32 %v2640, %v2925
        %v2927 = vpop.f32.mrf.mxu0
        %v2928 = vadd.f32 %v2645, %v2927
        %v2929 = vpop.f32.mrf.mxu0
        %v2930 = vadd.f32 %v2645, %v2929
        %2931 = vmatprep.mubr.bf16.mxu0 0
        %2932 = vmatmul.mubr.bf16.gmra.mxu0 %v2887
        %v2933 = vpop.f32.mrf.mxu0
        %v2934 = vadd.f32 %v2650, %v2933
        %v2935 = vpop.f32.mrf.mxu0
        %v2936 = vadd.f32 %v2650, %v2935
        %v2937 = vpop.f32.mrf.mxu0
        %v2938 = vadd.f32 %v2655, %v2937
        %v2939 = vpop.f32.mrf.mxu0
        %v2940 = vadd.f32 %v2655, %v2939
        %2941 = vdwg.mxu0
        %2942 = vmatprep.subr.bf16.mxu0 0
        %2943 = vmatpush1.bf16.msra.mxu0 0
        %2944 = vmatprep.subr.bf16.mxu0 0
        %2945 = vmatpush1.bf16.msra.mxu0 0
        %2946 = vmatprep.subr.bf16.mxu0 0
        %2947 = vmatpush1.bf16.msra.mxu0 0
        %2948 = vmatprep.subr.bf16.mxu0 %v2838
        %2949 = vmatpush1.bf16.msra.mxu0 %v2837
        %2950 = vmatprep.subr.bf16.mxu0 %v2830
        %2951 = vmatpush1.bf16.msra.mxu0 %v2829
        %2952 = vmatprep.subr.bf16.mxu0 %v2822
        %2953 = vmatpush1.bf16.msra.mxu0 %v2821
        %2954 = vmatprep.subr.bf16.mxu0 %v2814
        %2955 = vmatpush1.bf16.msra.mxu0 %v2813
        %2956 = vmatprep.subr.bf16.mxu0 %v2806
        %2957 = vmatpush1.bf16.msra.mxu0 %v2805
        %2958 = vmatprep.subr.bf16.mxu0 0
        %2959 = vmatpush2.bf16.msra.mxu0 0
        %2960 = vmatprep.subr.bf16.mxu0 0
        %2961 = vmatpush2.bf16.msra.mxu0 0
        %2962 = vmatprep.subr.bf16.mxu0 0
        %2963 = vmatpush2.bf16.msra.mxu0 0
        %2964 = vmatprep.subr.bf16.mxu0 0
        %2965 = vmatpush2.bf16.msra.mxu0 0
        %2966 = vmatprep.subr.bf16.mxu0 0
        %2967 = vmatpush2.bf16.msra.mxu0 0
        %2968 = vmatprep.subr.bf16.mxu0 0
        %2969 = vmatpush2.bf16.msra.mxu0 0
        %2970 = vmatprep.subr.bf16.mxu0 0
        %2971 = vmatpush2.bf16.msra.mxu0 0
        %2972 = vmatprep.subr.bf16.mxu0 0
        %2973 = vmatpush2.bf16.msra.mxu0 0
        %2974 = vmatprep.mubr.bf16.mxu0 0
        %2975 = vmatmul.mubr.bf16.gmra.mxu0 %v2884
        %v2976 = vpop.f32.mrf.mxu0
        %v2977 = vadd.f32 %v2640, %v2976
        %v2978 = vpop.f32.mrf.mxu0
        %v2979 = vadd.f32 %v2640, %v2978
        %v2980 = vpop.f32.mrf.mxu0
        %v2981 = vadd.f32 %v2645, %v2980
        %v2982 = vpop.f32.mrf.mxu0
        %v2983 = vadd.f32 %v2645, %v2982
        %2984 = vmatprep.mubr.bf16.mxu0 0
        %2985 = vmatmul.mubr.bf16.gmra.mxu0 %v2887
        %v2986 = vpop.f32.mrf.mxu0
        %v2987 = vadd.f32 %v2650, %v2986
        %v2988 = vpop.f32.mrf.mxu0
        %v2989 = vadd.f32 %v2650, %v2988
        %v2990 = vpop.f32.mrf.mxu0
        %v2991 = vadd.f32 %v2655, %v2990
        %v2992 = vpop.f32.mrf.mxu0
        %v2993 = vadd.f32 %v2655, %v2992
        %2994 = vdwg.mxu0
        %2995 = vmatprep.subr.bf16.mxu0 0
        %2996 = vmatpush1.bf16.msra.mxu0 0
        %2997 = vmatprep.subr.bf16.mxu0 0
        %2998 = vmatpush1.bf16.msra.mxu0 0
        %2999 = vmatprep.subr.bf16.mxu0 0
        %3000 = vmatpush1.bf16.msra.mxu0 0
        %3001 = vmatprep.subr.bf16.mxu0 %v2840
        %3002 = vmatpush1.bf16.msra.mxu0 %v2839
        %3003 = vmatprep.subr.bf16.mxu0 %v2832
        %3004 = vmatpush1.bf16.msra.mxu0 %v2831
        %3005 = vmatprep.subr.bf16.mxu0 %v2824
        %3006 = vmatpush1.bf16.msra.mxu0 %v2823
        %3007 = vmatprep.subr.bf16.mxu0 %v2816
        %3008 = vmatpush1.bf16.msra.mxu0 %v2815
        %3009 = vmatprep.subr.bf16.mxu0 %v2808
        %3010 = vmatpush1.bf16.msra.mxu0 %v2807
        %3011 = vmatprep.subr.bf16.mxu0 0
        %3012 = vmatpush2.bf16.msra.mxu0 0
        %3013 = vmatprep.subr.bf16.mxu0 0
        %3014 = vmatpush2.bf16.msra.mxu0 0
        %3015 = vmatprep.subr.bf16.mxu0 0
        %3016 = vmatpush2.bf16.msra.mxu0 0
        %3017 = vmatprep.subr.bf16.mxu0 0
        %3018 = vmatpush2.bf16.msra.mxu0 0
        %3019 = vmatprep.subr.bf16.mxu0 0
        %3020 = vmatpush2.bf16.msra.mxu0 0
        %3021 = vmatprep.subr.bf16.mxu0 0
        %3022 = vmatpush2.bf16.msra.mxu0 0
        %3023 = vmatprep.subr.bf16.mxu0 0
        %3024 = vmatpush2.bf16.msra.mxu0 0
        %3025 = vmatprep.subr.bf16.mxu0 0
        %3026 = vmatpush2.bf16.msra.mxu0 0
        %3027 = vmatprep.mubr.bf16.mxu0 0
        %3028 = vmatmul.mubr.bf16.gmra.mxu0 %v2884
        %v3029 = vpop.f32.mrf.mxu0
        %v3030 = vadd.f32 %v2640, %v3029
        %v3031 = vpop.f32.mrf.mxu0
        %v3032 = vadd.f32 %v2640, %v3031
        %v3033 = vpop.f32.mrf.mxu0
        %v3034 = vadd.f32 %v2645, %v3033
        %v3035 = vpop.f32.mrf.mxu0
        %v3036 = vadd.f32 %v2645, %v3035
        %3037 = vmatprep.mubr.bf16.mxu0 0
        %3038 = vmatmul.mubr.bf16.gmra.mxu0 %v2887
        %v3039 = vpop.f32.mrf.mxu0
        %v3040 = vadd.f32 %v2650, %v3039
        %v3041 = vpop.f32.mrf.mxu0
        %v3042 = vadd.f32 %v2650, %v3041
        %v3043 = vpop.f32.mrf.mxu0
        %v3044 = vadd.f32 %v2655, %v3043
        %v3045 = vpop.f32.mrf.mxu0
        %v3046 = vadd.f32 %v2655, %v3045
        %3047 = vdwg.mxu0
        %3048 = vmatprep.subr.bf16.mxu0 0
        %3049 = vmatpush1.bf16.msra.mxu0 0
        %3050 = vmatprep.subr.bf16.mxu0 0
        %3051 = vmatpush1.bf16.msra.mxu0 0
        %3052 = vmatprep.subr.bf16.mxu0 0
        %3053 = vmatpush1.bf16.msra.mxu0 0
        %3054 = vmatprep.subr.bf16.mxu0 %v2842
        %3055 = vmatpush1.bf16.msra.mxu0 %v2841
        %3056 = vmatprep.subr.bf16.mxu0 %v2834
        %3057 = vmatpush1.bf16.msra.mxu0 %v2833
        %3058 = vmatprep.subr.bf16.mxu0 %v2826
        %3059 = vmatpush1.bf16.msra.mxu0 %v2825
        %3060 = vmatprep.subr.bf16.mxu0 %v2818
        %3061 = vmatpush1.bf16.msra.mxu0 %v2817
        %3062 = vmatprep.subr.bf16.mxu0 %v2810
        %3063 = vmatpush1.bf16.msra.mxu0 %v2809
        %3064 = vmatprep.subr.bf16.mxu0 0
        %3065 = vmatpush2.bf16.msra.mxu0 0
        %3066 = vmatprep.subr.bf16.mxu0 0
        %3067 = vmatpush2.bf16.msra.mxu0 0
        %3068 = vmatprep.subr.bf16.mxu0 0
        %3069 = vmatpush2.bf16.msra.mxu0 0
        %3070 = vmatprep.subr.bf16.mxu0 0
        %3071 = vmatpush2.bf16.msra.mxu0 0
        %3072 = vmatprep.subr.bf16.mxu0 0
        %3073 = vmatpush2.bf16.msra.mxu0 0
        %3074 = vmatprep.subr.bf16.mxu0 0
        %3075 = vmatpush2.bf16.msra.mxu0 0
        %3076 = vmatprep.subr.bf16.mxu0 0
        %3077 = vmatpush2.bf16.msra.mxu0 0
        %3078 = vmatprep.subr.bf16.mxu0 0
        %3079 = vmatpush2.bf16.msra.mxu0 0
        %3080 = vmatprep.mubr.bf16.mxu0 0
        %3081 = vmatmul.mubr.bf16.gmra.mxu0 %v2884
        %v3082 = vpop.f32.mrf.mxu0
        %v3083 = vadd.f32 %v2640, %v3082
        %v3084 = vpop.f32.mrf.mxu0
        %v3085 = vadd.f32 %v2640, %v3084
        %v3086 = vpop.f32.mrf.mxu0
        %v3087 = vadd.f32 %v2645, %v3086
        %v3088 = vpop.f32.mrf.mxu0
        %v3089 = vadd.f32 %v2645, %v3088
        %3090 = vmatprep.mubr.bf16.mxu0 0
        %3091 = vmatmul.mubr.bf16.gmra.mxu0 %v2887
        %v3092 = vpop.f32.mrf.mxu0
        %v3093 = vadd.f32 %v2650, %v3092
        %v3094 = vpop.f32.mrf.mxu0
        %v3095 = vadd.f32 %v2650, %v3094
        %v3096 = vpop.f32.mrf.mxu0
        %v3097 = vadd.f32 %v2655, %v3096
        %v3098 = vpop.f32.mrf.mxu0
        %v3099 = vadd.f32 %v2655, %v3098
        %3100 = vdwg.mxu0
        %v3101 = vmax.f32 %v2924, 0.0
        %v3102 = vmax.f32 %v2926, 0.0
        %v3103 = vmax.f32 %v2977, 0.0
        %v3104 = vmax.f32 %v2979, 0.0
        %v3105 = vmax.f32 %v3030, 0.0
        %v3106 = vmax.f32 %v3032, 0.0
        %v3107 = vmax.f32 %v3083, 0.0
        %v3108 = vmax.f32 %v3085, 0.0
        %v3109 = vmax.f32 %v2928, 0.0
        %v3110 = vmax.f32 %v2930, 0.0
        %v3111 = vmax.f32 %v2981, 0.0
        %v3112 = vmax.f32 %v2983, 0.0
        %v3113 = vmax.f32 %v3034, 0.0
        %v3114 = vmax.f32 %v3036, 0.0
        %v3115 = vmax.f32 %v3087, 0.0
        %v3116 = vmax.f32 %v3089, 0.0
        %v3117 = vmax.f32 %v2934, 0.0
        %v3118 = vmax.f32 %v2936, 0.0
        %v3119 = vmax.f32 %v2987, 0.0
        %v3120 = vmax.f32 %v2989, 0.0
        %v3121 = vmax.f32 %v3040, 0.0
        %v3122 = vmax.f32 %v3042, 0.0
        %v3123 = vmax.f32 %v3093, 0.0
        %v3124 = vmax.f32 %v3095, 0.0
        %v3125 = vmax.f32 %v2938, 0.0
        %v3126 = vmax.f32 %v2940, 0.0
        %v3127 = vmax.f32 %v2991, 0.0
        %v3128 = vmax.f32 %v2993, 0.0
        %v3129 = vmax.f32 %v3044, 0.0
        %v3130 = vmax.f32 %v3046, 0.0
        %v3131 = vmax.f32 %v3097, 0.0
        %v3132 = vmax.f32 %v3099, 0.0
        %3133 = vst [vmem:[#allocation2 + $0x8] sm:$0xff] %v3101
        %3134 = vst [vmem:[#allocation2 + $0x10] sm:$0xff] %v3102
        %3135 = vst [vmem:[#allocation2 + $0x18] sm:$0xff] %v3103
        %3136 = vst [vmem:[#allocation2 + $0x20] sm:$0xff] %v3104
        %3137 = vst [vmem:[#allocation2 + $0x28] sm:$0xff] %v3105
        %3138 = vst [vmem:[#allocation2 + $0x30] sm:$0xff] %v3106
        %3139 = vst [vmem:[#allocation2 + $0x38] sm:$0xff] %v3107
        %3140 = vst [vmem:[#allocation2 + $0x40] sm:$0xff] %v3108
        %3141 = vst [vmem:[#allocation2 + $0x58] sm:$0xff] %v3109
        %3142 = vst [vmem:[#allocation2 + $0x60] sm:$0xff] %v3110
        %3143 = vst [vmem:[#allocation2 + $0x68] sm:$0xff] %v3111
        %3144 = vst [vmem:[#allocation2 + $0x70] sm:$0xff] %v3112
        %3145 = vst [vmem:[#allocation2 + $0x78] sm:$0xff] %v3113
        %3146 = vst [vmem:[#allocation2 + $0x80] sm:$0xff] %v3114
        %3147 = vst [vmem:[#allocation2 + $0x88] sm:$0xff] %v3115
        %3148 = vst [vmem:[#allocation2 + $0x90] sm:$0xff] %v3116
        %3149 = vst [vmem:[#allocation2 + $0xa8] sm:$0xff] %v3117
        %3150 = vst [vmem:[#allocation2 + $0xb0] sm:$0xff] %v3118
        %3151 = vst [vmem:[#allocation2 + $0xb8] sm:$0xff] %v3119
        %3152 = vst [vmem:[#allocation2 + $0xc0] sm:$0xff] %v3120
        %3153 = vst [vmem:[#allocation2 + $0xc8] sm:$0xff] %v3121
        %3154 = vst [vmem:[#allocation2 + $0xd0] sm:$0xff] %v3122
        %3155 = vst [vmem:[#allocation2 + $0xd8] sm:$0xff] %v3123
        %3156 = vst [vmem:[#allocation2 + $0xe0] sm:$0xff] %v3124
        %3157 = vst [vmem:[#allocation2 + $0xf8] sm:$0xff] %v3125
        %3158 = vst [vmem:[#allocation2 + $0x100] sm:$0xff] %v3126
        %3159 = vst [vmem:[#allocation2 + $0x108] sm:$0xff] %v3127
        %3160 = vst [vmem:[#allocation2 + $0x110] sm:$0xff] %v3128
        %3161 = vst [vmem:[#allocation2 + $0x118] sm:$0xff] %v3129
        %3162 = vst [vmem:[#allocation2 + $0x120] sm:$0xff] %v3130
        %3163 = vst [vmem:[#allocation2 + $0x128] sm:$0xff] %v3131
        %3164 = vst [vmem:[#allocation2 + $0x130] sm:$0xff] %v3132
        %v3165 = vld [vmem:[#allocation2] sm:$0xff]
        %v3166 = vld [vmem:[#allocation2 + $0x8] sm:$0xff]
        %v3167 = vld [vmem:[#allocation2 + $0x10] sm:$0xff]
        %v3168 = vld [vmem:[#allocation2 + $0x18] sm:$0xff]
        %v3169 = vld [vmem:[#allocation2 + $0x20] sm:$0xff]
        %v3170 = vld [vmem:[#allocation2 + $0x28] sm:$0xff]
        %v3171 = vld [vmem:[#allocation2 + $0x30] sm:$0xff]
        %v3172 = vld [vmem:[#allocation2 + $0x38] sm:$0xff]
        %v3173 = vld [vmem:[#allocation2 + $0x40] sm:$0xff]
        %v3174 = vld [vmem:[#allocation2 + $0x50] sm:$0xff]
        %v3175 = vld [vmem:[#allocation2 + $0x58] sm:$0xff]
        %v3176 = vld [vmem:[#allocation2 + $0x60] sm:$0xff]
        %v3177 = vld [vmem:[#allocation2 + $0x68] sm:$0xff]
        %v3178 = vld [vmem:[#allocation2 + $0x70] sm:$0xff]
        %v3179 = vld [vmem:[#allocation2 + $0x78] sm:$0xff]
        %v3180 = vld [vmem:[#allocation2 + $0x80] sm:$0xff]
        %v3181 = vld [vmem:[#allocation2 + $0x88] sm:$0xff]
        %v3182 = vld [vmem:[#allocation2 + $0x90] sm:$0xff]
        %v3183 = vld [vmem:[#allocation2 + $0xa0] sm:$0xff]
        %v3184 = vld [vmem:[#allocation2 + $0xa8] sm:$0xff]
        %v3185 = vld [vmem:[#allocation2 + $0xb0] sm:$0xff]
        %v3186 = vld [vmem:[#allocation2 + $0xb8] sm:$0xff]
        %v3187 = vld [vmem:[#allocation2 + $0xc0] sm:$0xff]
        %v3188 = vld [vmem:[#allocation2 + $0xc8] sm:$0xff]
        %v3189 = vld [vmem:[#allocation2 + $0xd0] sm:$0xff]
        %v3190 = vld [vmem:[#allocation2 + $0xd8] sm:$0xff]
        %v3191 = vld [vmem:[#allocation2 + $0xe0] sm:$0xff]
        %v3192 = vld [vmem:[#allocation2 + $0xf0] sm:$0xff]
        %v3193 = vld [vmem:[#allocation2 + $0xf8] sm:$0xff]
        %v3194 = vld [vmem:[#allocation2 + $0x100] sm:$0xff]
        %v3195 = vld [vmem:[#allocation2 + $0x108] sm:$0xff]
        %v3196 = vld [vmem:[#allocation2 + $0x110] sm:$0xff]
        %v3197 = vld [vmem:[#allocation2 + $0x118] sm:$0xff]
        %v3198 = vld [vmem:[#allocation2 + $0x120] sm:$0xff]
        %v3199 = vld [vmem:[#allocation2 + $0x128] sm:$0xff]
        %v3200 = vld [vmem:[#allocation2 + $0x130] sm:$0xff]
        %v3201 = vld [vmem:[#allocation2 + $0x8] sm:$0xff]
        %v3202 = vld [vmem:[#allocation2 + $0x10] sm:$0xff]
        %v3203 = vld [vmem:[#allocation2 + $0x18] sm:$0xff]
        %v3204 = vld [vmem:[#allocation2 + $0x20] sm:$0xff]
        %v3205 = vld [vmem:[#allocation2 + $0x28] sm:$0xff]
        %v3206 = vld [vmem:[#allocation2 + $0x30] sm:$0xff]
        %v3207 = vld [vmem:[#allocation2 + $0x38] sm:$0xff]
        %v3208 = vld [vmem:[#allocation2 + $0x40] sm:$0xff]
        %v3209 = vld [vmem:[#allocation2 + $0x48] sm:$0xff]
        %v3210 = vld [vmem:[#allocation2 + $0x58] sm:$0xff]
        %v3211 = vld [vmem:[#allocation2 + $0x60] sm:$0xff]
        %v3212 = vld [vmem:[#allocation2 + $0x68] sm:$0xff]
        %v3213 = vld [vmem:[#allocation2 + $0x70] sm:$0xff]
        %v3214 = vld [vmem:[#allocation2 + $0x78] sm:$0xff]
        %v3215 = vld [vmem:[#allocation2 + $0x80] sm:$0xff]
        %v3216 = vld [vmem:[#allocation2 + $0x88] sm:$0xff]
        %v3217 = vld [vmem:[#allocation2 + $0x90] sm:$0xff]
        %v3218 = vld [vmem:[#allocation2 + $0x98] sm:$0xff]
        %v3219 = vld [vmem:[#allocation2 + $0xa8] sm:$0xff]
        %v3220 = vld [vmem:[#allocation2 + $0xb0] sm:$0xff]
        %v3221 = vld [vmem:[#allocation2 + $0xb8] sm:$0xff]
        %v3222 = vld [vmem:[#allocation2 + $0xc0] sm:$0xff]
        %v3223 = vld [vmem:[#allocation2 + $0xc8] sm:$0xff]
        %v3224 = vld [vmem:[#allocation2 + $0xd0] sm:$0xff]
        %v3225 = vld [vmem:[#allocation2 + $0xd8] sm:$0xff]
        %v3226 = vld [vmem:[#allocation2 + $0xe0] sm:$0xff]
        %v3227 = vld [vmem:[#allocation2 + $0xe8] sm:$0xff]
        %v3228 = vld [vmem:[#allocation2 + $0xf8] sm:$0xff]
        %v3229 = vld [vmem:[#allocation2 + $0x100] sm:$0xff]
        %v3230 = vld [vmem:[#allocation2 + $0x108] sm:$0xff]
        %v3231 = vld [vmem:[#allocation2 + $0x110] sm:$0xff]
        %v3232 = vld [vmem:[#allocation2 + $0x118] sm:$0xff]
        %v3233 = vld [vmem:[#allocation2 + $0x120] sm:$0xff]
        %v3234 = vld [vmem:[#allocation2 + $0x128] sm:$0xff]
        %v3235 = vld [vmem:[#allocation2 + $0x130] sm:$0xff]
        %v3236 = vld [vmem:[#allocation2 + $0x138] sm:$0xff]
        %3269 = vrot.lane.b32.xlu0 %v3166, 112
        %v3270 = vpop.permute.xlu0 %3269
        %3271 = vrot.lane.b32.xlu0 %v3167, 112
        %v3272 = vpop.permute.xlu0 %3271
        %3273 = vrot.lane.b32.xlu0 %v3168, 112
        %v3274 = vpop.permute.xlu0 %3273
        %3275 = vrot.lane.b32.xlu0 %v3169, 112
        %v3276 = vpop.permute.xlu0 %3275
        %3277 = vrot.lane.b32.xlu0 %v3170, 112
        %v3278 = vpop.permute.xlu0 %3277
        %3279 = vrot.lane.b32.xlu0 %v3171, 112
        %v3280 = vpop.permute.xlu0 %3279
        %3281 = vrot.lane.b32.xlu0 %v3172, 112
        %v3282 = vpop.permute.xlu0 %3281
        %3283 = vrot.lane.b32.xlu0 %v3173, 112
        %v3284 = vpop.permute.xlu0 %3283
        %3285 = vrot.lane.b32.xlu0 %v3175, 112
        %v3286 = vpop.permute.xlu0 %3285
        %3287 = vrot.lane.b32.xlu0 %v3176, 112
        %v3288 = vpop.permute.xlu0 %3287
        %3289 = vrot.lane.b32.xlu0 %v3177, 112
        %v3290 = vpop.permute.xlu0 %3289
        %3291 = vrot.lane.b32.xlu0 %v3178, 112
        %v3292 = vpop.permute.xlu0 %3291
        %3293 = vrot.lane.b32.xlu0 %v3179, 112
        %v3294 = vpop.permute.xlu0 %3293
        %3295 = vrot.lane.b32.xlu0 %v3180, 112
        %v3296 = vpop.permute.xlu0 %3295
        %3297 = vrot.lane.b32.xlu0 %v3181, 112
        %v3298 = vpop.permute.xlu0 %3297
        %3299 = vrot.lane.b32.xlu0 %v3182, 112
        %v3300 = vpop.permute.xlu0 %3299
        %3301 = vrot.lane.b32.xlu0 %v3184, 112
        %v3302 = vpop.permute.xlu0 %3301
        %3303 = vrot.lane.b32.xlu0 %v3185, 112
        %v3304 = vpop.permute.xlu0 %3303
        %3305 = vrot.lane.b32.xlu0 %v3186, 112
        %v3306 = vpop.permute.xlu0 %3305
        %3307 = vrot.lane.b32.xlu0 %v3187, 112
        %v3308 = vpop.permute.xlu0 %3307
        %3309 = vrot.lane.b32.xlu0 %v3188, 112
        %v3310 = vpop.permute.xlu0 %3309
        %3311 = vrot.lane.b32.xlu0 %v3189, 112
        %v3312 = vpop.permute.xlu0 %3311
        %3313 = vrot.lane.b32.xlu0 %v3190, 112
        %v3314 = vpop.permute.xlu0 %3313
        %3315 = vrot.lane.b32.xlu0 %v3191, 112
        %v3316 = vpop.permute.xlu0 %3315
        %3317 = vrot.lane.b32.xlu0 %v3193, 112
        %v3318 = vpop.permute.xlu0 %3317
        %3319 = vrot.lane.b32.xlu0 %v3194, 112
        %v3320 = vpop.permute.xlu0 %3319
        %3321 = vrot.lane.b32.xlu0 %v3195, 112
        %v3322 = vpop.permute.xlu0 %3321
        %3323 = vrot.lane.b32.xlu0 %v3196, 112
        %v3324 = vpop.permute.xlu0 %3323
        %3325 = vrot.lane.b32.xlu0 %v3197, 112
        %v3326 = vpop.permute.xlu0 %3325
        %3327 = vrot.lane.b32.xlu0 %v3198, 112
        %v3328 = vpop.permute.xlu0 %3327
        %3329 = vrot.lane.b32.xlu0 %v3199, 112
        %v3330 = vpop.permute.xlu0 %3329
        %3331 = vrot.lane.b32.xlu0 %v3200, 112
        %v3332 = vpop.permute.xlu0 %3331
        %v3333 = vsel %vm2549, %v3270, %v3272
        %v3334 = vsel %vm2549, %v3272, %v3274
        %v3335 = vsel %vm2549, %v3274, %v3276
        %v3336 = vsel %vm2549, %v3276, %v3278
        %v3337 = vsel %vm2549, %v3278, %v3280
        %v3338 = vsel %vm2549, %v3280, %v3282
        %v3339 = vsel %vm2549, %v3282, %v3284
        %v3340 = vsel %vm2549, %v3286, %v3288
        %v3341 = vsel %vm2549, %v3288, %v3290
        %v3342 = vsel %vm2549, %v3290, %v3292
        %v3343 = vsel %vm2549, %v3292, %v3294
        %v3344 = vsel %vm2549, %v3294, %v3296
        %v3345 = vsel %vm2549, %v3296, %v3298
        %v3346 = vsel %vm2549, %v3298, %v3300
        %v3347 = vsel %vm2549, %v3302, %v3304
        %v3348 = vsel %vm2549, %v3304, %v3306
        %v3349 = vsel %vm2549, %v3306, %v3308
        %v3350 = vsel %vm2549, %v3308, %v3310
        %v3351 = vsel %vm2549, %v3310, %v3312
        %v3352 = vsel %vm2549, %v3312, %v3314
        %v3353 = vsel %vm2549, %v3314, %v3316
        %v3354 = vsel %vm2549, %v3318, %v3320
        %v3355 = vsel %vm2549, %v3320, %v3322
        %v3356 = vsel %vm2549, %v3322, %v3324
        %v3357 = vsel %vm2549, %v3324, %v3326
        %v3358 = vsel %vm2549, %v3326, %v3328
        %v3359 = vsel %vm2549, %v3328, %v3330
        %v3360 = vsel %vm2549, %v3330, %v3332
        %3433 = vrot.lane.b32.xlu0 %v3201, 96
        %v3434 = vpop.permute.xlu0 %3433
        %3435 = vrot.lane.b32.xlu0 %v3202, 96
        %v3436 = vpop.permute.xlu0 %3435
        %3437 = vrot.lane.b32.xlu0 %v3203, 96
        %v3438 = vpop.permute.xlu0 %3437
        %3439 = vrot.lane.b32.xlu0 %v3204, 96
        %v3440 = vpop.permute.xlu0 %3439
        %3441 = vrot.lane.b32.xlu0 %v3205, 96
        %v3442 = vpop.permute.xlu0 %3441
        %3443 = vrot.lane.b32.xlu0 %v3206, 96
        %v3444 = vpop.permute.xlu0 %3443
        %3445 = vrot.lane.b32.xlu0 %v3207, 96
        %v3446 = vpop.permute.xlu0 %3445
        %3447 = vrot.lane.b32.xlu0 %v3208, 96
        %v3448 = vpop.permute.xlu0 %3447
        %3449 = vrot.lane.b32.xlu0 %v3209, 96
        %v3450 = vpop.permute.xlu0 %3449
        %3451 = vrot.lane.b32.xlu0 %v3210, 96
        %v3452 = vpop.permute.xlu0 %3451
        %3453 = vrot.lane.b32.xlu0 %v3211, 96
        %v3454 = vpop.permute.xlu0 %3453
        %3455 = vrot.lane.b32.xlu0 %v3212, 96
        %v3456 = vpop.permute.xlu0 %3455
        %3457 = vrot.lane.b32.xlu0 %v3213, 96
        %v3458 = vpop.permute.xlu0 %3457
        %3459 = vrot.lane.b32.xlu0 %v3214, 96
        %v3460 = vpop.permute.xlu0 %3459
        %3461 = vrot.lane.b32.xlu0 %v3215, 96
        %v3462 = vpop.permute.xlu0 %3461
        %3463 = vrot.lane.b32.xlu0 %v3216, 96
        %v3464 = vpop.permute.xlu0 %3463
        %3465 = vrot.lane.b32.xlu0 %v3217, 96
        %v3466 = vpop.permute.xlu0 %3465
        %3467 = vrot.lane.b32.xlu0 %v3218, 96
        %v3468 = vpop.permute.xlu0 %3467
        %3469 = vrot.lane.b32.xlu0 %v3219, 96
        %v3470 = vpop.permute.xlu0 %3469
        %3471 = vrot.lane.b32.xlu0 %v3220, 96
        %v3472 = vpop.permute.xlu0 %3471
        %3473 = vrot.lane.b32.xlu0 %v3221, 96
        %v3474 = vpop.permute.xlu0 %3473
        %3475 = vrot.lane.b32.xlu0 %v3222, 96
        %v3476 = vpop.permute.xlu0 %3475
        %3477 = vrot.lane.b32.xlu0 %v3223, 96
        %v3478 = vpop.permute.xlu0 %3477
        %3479 = vrot.lane.b32.xlu0 %v3224, 96
        %v3480 = vpop.permute.xlu0 %3479
        %3481 = vrot.lane.b32.xlu0 %v3225, 96
        %v3482 = vpop.permute.xlu0 %3481
        %3483 = vrot.lane.b32.xlu0 %v3226, 96
        %v3484 = vpop.permute.xlu0 %3483
        %3485 = vrot.lane.b32.xlu0 %v3227, 96
        %v3486 = vpop.permute.xlu0 %3485
        %3487 = vrot.lane.b32.xlu0 %v3228, 96
        %v3488 = vpop.permute.xlu0 %3487
        %3489 = vrot.lane.b32.xlu0 %v3229, 96
        %v3490 = vpop.permute.xlu0 %3489
        %3491 = vrot.lane.b32.xlu0 %v3230, 96
        %v3492 = vpop.permute.xlu0 %3491
        %3493 = vrot.lane.b32.xlu0 %v3231, 96
        %v3494 = vpop.permute.xlu0 %3493
        %3495 = vrot.lane.b32.xlu0 %v3232, 96
        %v3496 = vpop.permute.xlu0 %3495
        %3497 = vrot.lane.b32.xlu0 %v3233, 96
        %v3498 = vpop.permute.xlu0 %3497
        %3499 = vrot.lane.b32.xlu0 %v3234, 96
        %v3500 = vpop.permute.xlu0 %3499
        %3501 = vrot.lane.b32.xlu0 %v3235, 96
        %v3502 = vpop.permute.xlu0 %3501
        %3503 = vrot.lane.b32.xlu0 %v3236, 96
        %v3504 = vpop.permute.xlu0 %3503
        %vm3505 = vcmask 785408
        %v3506 = vsel %vm3505, %v3434, %v3436
        %v3507 = vsel %vm3505, %v3436, %v3438
        %v3508 = vsel %vm3505, %v3438, %v3440
        %v3509 = vsel %vm3505, %v3440, %v3442
        %v3510 = vsel %vm3505, %v3442, %v3444
        %v3511 = vsel %vm3505, %v3444, %v3446
        %v3512 = vsel %vm3505, %v3446, %v3448
        %v3513 = vsel %vm3505, %v3448, %v3450
        %v3514 = vsel %vm3505, %v3452, %v3454
        %v3515 = vsel %vm3505, %v3454, %v3456
        %v3516 = vsel %vm3505, %v3456, %v3458
        %v3517 = vsel %vm3505, %v3458, %v3460
        %v3518 = vsel %vm3505, %v3460, %v3462
        %v3519 = vsel %vm3505, %v3462, %v3464
        %v3520 = vsel %vm3505, %v3464, %v3466
        %v3521 = vsel %vm3505, %v3466, %v3468
        %v3522 = vsel %vm3505, %v3470, %v3472
        %v3523 = vsel %vm3505, %v3472, %v3474
        %v3524 = vsel %vm3505, %v3474, %v3476
        %v3525 = vsel %vm3505, %v3476, %v3478
        %v3526 = vsel %vm3505, %v3478, %v3480
        %v3527 = vsel %vm3505, %v3480, %v3482
        %v3528 = vsel %vm3505, %v3482, %v3484
        %v3529 = vsel %vm3505, %v3484, %v3486
        %v3530 = vsel %vm3505, %v3488, %v3490
        %v3531 = vsel %vm3505, %v3490, %v3492
        %v3532 = vsel %vm3505, %v3492, %v3494
        %v3533 = vsel %vm3505, %v3494, %v3496
        %v3534 = vsel %vm3505, %v3496, %v3498
        %v3535 = vsel %vm3505, %v3498, %v3500
        %v3536 = vsel %vm3505, %v3500, %v3502
        %v3537 = vsel %vm3505, %v3502, %v3504
        %v3574 = vpack.c.bf16 %v3174, %v3165
        %v3575 = vpack.c.bf16 %v3175, %v3166
        %v3576 = vpack.c.bf16 %v3176, %v3167
        %v3577 = vpack.c.bf16 %v3177, %v3168
        %v3578 = vpack.c.bf16 %v3178, %v3169
        %v3579 = vpack.c.bf16 %v3179, %v3170
        %v3580 = vpack.c.bf16 %v3180, %v3171
        %v3581 = vpack.c.bf16 %v3181, %v3172
        %v3582 = vpack.c.bf16 %v3182, %v3173
        %v3583 = vpack.c.bf16 %v3192, %v3183
        %v3584 = vpack.c.bf16 %v3193, %v3184
        %v3585 = vpack.c.bf16 %v3194, %v3185
        %v3586 = vpack.c.bf16 %v3195, %v3186
        %v3587 = vpack.c.bf16 %v3196, %v3187
        %v3588 = vpack.c.bf16 %v3197, %v3188
        %v3589 = vpack.c.bf16 %v3198, %v3189
        %v3590 = vpack.c.bf16 %v3199, %v3190
        %v3591 = vpack.c.bf16 %v3200, %v3191
        %v3592 = vpack.c.bf16 %v3286, %v3270
        %v3593 = vpack.c.bf16 %v3340, %v3333
        %v3594 = vpack.c.bf16 %v3341, %v3334
        %v3595 = vpack.c.bf16 %v3342, %v3335
        %v3596 = vpack.c.bf16 %v3343, %v3336
        %v3597 = vpack.c.bf16 %v3344, %v3337
        %v3598 = vpack.c.bf16 %v3345, %v3338
        %v3599 = vpack.c.bf16 %v3346, %v3339
        %v3600 = vpack.c.bf16 %v3300, %v3284
        %v3601 = vpack.c.bf16 %v3318, %v3302
        %v3602 = vpack.c.bf16 %v3354, %v3347
        %v3603 = vpack.c.bf16 %v3355, %v3348
        %v3604 = vpack.c.bf16 %v3356, %v3349
        %v3605 = vpack.c.bf16 %v3357, %v3350
        %v3606 = vpack.c.bf16 %v3358, %v3351
        %v3607 = vpack.c.bf16 %v3359, %v3352
        %v3608 = vpack.c.bf16 %v3360, %v3353
        %v3609 = vpack.c.bf16 %v3332, %v3316
        %v3610 = vpack.c.bf16 %v3452, %v3434
        %v3611 = vpack.c.bf16 %v3514, %v3506
        %v3612 = vpack.c.bf16 %v3515, %v3507
        %v3613 = vpack.c.bf16 %v3516, %v3508
        %v3614 = vpack.c.bf16 %v3517, %v3509
        %v3615 = vpack.c.bf16 %v3518, %v3510
        %v3616 = vpack.c.bf16 %v3519, %v3511
        %v3617 = vpack.c.bf16 %v3520, %v3512
        %v3618 = vpack.c.bf16 %v3521, %v3513
        %v3619 = vpack.c.bf16 %v3488, %v3470
        %v3620 = vpack.c.bf16 %v3530, %v3522
        %v3621 = vpack.c.bf16 %v3531, %v3523
        %v3622 = vpack.c.bf16 %v3532, %v3524
        %v3623 = vpack.c.bf16 %v3533, %v3525
        %v3624 = vpack.c.bf16 %v3534, %v3526
        %v3625 = vpack.c.bf16 %v3535, %v3527
        %v3626 = vpack.c.bf16 %v3536, %v3528
        %v3627 = vpack.c.bf16 %v3537, %v3529
        %v3628 = vld [vmem:[#allocation14] sm:$0xf]
        %v3629 = vld [vmem:[#allocation14 + $0x4] sm:$0xf]
        %v3630 = vld [vmem:[#allocation14 + $0x8] sm:$0xf]
        %v3631 = vld [vmem:[#allocation14 + $0xc] sm:$0xf]
        %v3632 = vld [vmem:[#allocation16] sm:$0xff]
        %v3633 = vld [vmem:[#allocation16 + $0x8] sm:$0xff]
        %v3634 = vld [vmem:[#allocation16 + $0x10] sm:$0xff]
        %v3635 = vld [vmem:[#allocation16 + $0x18] sm:$0xff]
        %3637 = vset.pattern.permute.xlu0 0
        %3638 = vperm.xlu0 %3637, %v3632
        %v3639 = vpop.permute.xlu0 %3638
        %3642 = vset.pattern.permute.xlu0 0
        %3643 = vperm.xlu0 %3642, %v3633
        %v3644 = vpop.permute.xlu0 %3643
        %3647 = vset.pattern.permute.xlu0 0
        %3648 = vperm.xlu0 %3647, %v3634
        %v3649 = vpop.permute.xlu0 %3648
        %3652 = vset.pattern.permute.xlu0 0
        %3653 = vperm.xlu0 %3652, %v3635
        %v3654 = vpop.permute.xlu0 %3653
        %v3660 = vunpack.c.l.b16 %v3628
        %v3661 = vunpack.c.l.b16 %v3629
        %v3662 = vunpack.c.l.b16 %v3630
        %v3663 = vunpack.c.l.b16 %v3631
        %v3664 = vpack.c.b16 %v3661, %v3660
        %v3665 = vpack.c.b16 %v3663, %v3662
        %3720 = vrot.lane.b32.xlu0 %v3574, 16
        %v3721 = vpop.permute.xlu0 %3720
        %3722 = vrot.lane.b32.xlu0 %v3575, 16
        %v3723 = vpop.permute.xlu0 %3722
        %3724 = vrot.lane.b32.xlu0 %v3576, 16
        %v3725 = vpop.permute.xlu0 %3724
        %3726 = vrot.lane.b32.xlu0 %v3577, 16
        %v3727 = vpop.permute.xlu0 %3726
        %3728 = vrot.lane.b32.xlu0 %v3578, 16
        %v3729 = vpop.permute.xlu0 %3728
        %3730 = vrot.lane.b32.xlu0 %v3579, 16
        %v3731 = vpop.permute.xlu0 %3730
        %3732 = vrot.lane.b32.xlu0 %v3580, 16
        %v3733 = vpop.permute.xlu0 %3732
        %3734 = vrot.lane.b32.xlu0 %v3581, 16
        %v3735 = vpop.permute.xlu0 %3734
        %3736 = vrot.lane.b32.xlu0 %v3582, 16
        %v3737 = vpop.permute.xlu0 %3736
        %3738 = vrot.lane.b32.xlu0 %v3583, 16
        %v3739 = vpop.permute.xlu0 %3738
        %3740 = vrot.lane.b32.xlu0 %v3584, 16
        %v3741 = vpop.permute.xlu0 %3740
        %3742 = vrot.lane.b32.xlu0 %v3585, 16
        %v3743 = vpop.permute.xlu0 %3742
        %3744 = vrot.lane.b32.xlu0 %v3586, 16
        %v3745 = vpop.permute.xlu0 %3744
        %3746 = vrot.lane.b32.xlu0 %v3587, 16
        %v3747 = vpop.permute.xlu0 %3746
        %3748 = vrot.lane.b32.xlu0 %v3588, 16
        %v3749 = vpop.permute.xlu0 %3748
        %3750 = vrot.lane.b32.xlu0 %v3589, 16
        %v3751 = vpop.permute.xlu0 %3750
        %3752 = vrot.lane.b32.xlu0 %v3590, 16
        %v3753 = vpop.permute.xlu0 %3752
        %3754 = vrot.lane.b32.xlu0 %v3591, 16
        %v3755 = vpop.permute.xlu0 %3754
        %3756 = vrot.lane.b32.xlu0 %v3592, 16
        %v3757 = vpop.permute.xlu0 %3756
        %3758 = vrot.lane.b32.xlu0 %v3593, 16
        %v3759 = vpop.permute.xlu0 %3758
        %3760 = vrot.lane.b32.xlu0 %v3594, 16
        %v3761 = vpop.permute.xlu0 %3760
        %3762 = vrot.lane.b32.xlu0 %v3595, 16
        %v3763 = vpop.permute.xlu0 %3762
        %3764 = vrot.lane.b32.xlu0 %v3596, 16
        %v3765 = vpop.permute.xlu0 %3764
        %3766 = vrot.lane.b32.xlu0 %v3597, 16
        %v3767 = vpop.permute.xlu0 %3766
        %3768 = vrot.lane.b32.xlu0 %v3598, 16
        %v3769 = vpop.permute.xlu0 %3768
        %3770 = vrot.lane.b32.xlu0 %v3599, 16
        %v3771 = vpop.permute.xlu0 %3770
        %3772 = vrot.lane.b32.xlu0 %v3600, 16
        %v3773 = vpop.permute.xlu0 %3772
        %3774 = vrot.lane.b32.xlu0 %v3601, 16
        %v3775 = vpop.permute.xlu0 %3774
        %3776 = vrot.lane.b32.xlu0 %v3602, 16
        %v3777 = vpop.permute.xlu0 %3776
        %3778 = vrot.lane.b32.xlu0 %v3603, 16
        %v3779 = vpop.permute.xlu0 %3778
        %3780 = vrot.lane.b32.xlu0 %v3604, 16
        %v3781 = vpop.permute.xlu0 %3780
        %3782 = vrot.lane.b32.xlu0 %v3605, 16
        %v3783 = vpop.permute.xlu0 %3782
        %3784 = vrot.lane.b32.xlu0 %v3606, 16
        %v3785 = vpop.permute.xlu0 %3784
        %3786 = vrot.lane.b32.xlu0 %v3607, 16
        %v3787 = vpop.permute.xlu0 %3786
        %3788 = vrot.lane.b32.xlu0 %v3608, 16
        %v3789 = vpop.permute.xlu0 %3788
        %3790 = vrot.lane.b32.xlu0 %v3609, 16
        %v3791 = vpop.permute.xlu0 %3790
        %3792 = vrot.lane.b32.xlu0 %v3610, 16
        %v3793 = vpop.permute.xlu0 %3792
        %3794 = vrot.lane.b32.xlu0 %v3611, 16
        %v3795 = vpop.permute.xlu0 %3794
        %3796 = vrot.lane.b32.xlu0 %v3612, 16
        %v3797 = vpop.permute.xlu0 %3796
        %3798 = vrot.lane.b32.xlu0 %v3613, 16
        %v3799 = vpop.permute.xlu0 %3798
        %3800 = vrot.lane.b32.xlu0 %v3614, 16
        %v3801 = vpop.permute.xlu0 %3800
        %3802 = vrot.lane.b32.xlu0 %v3615, 16
        %v3803 = vpop.permute.xlu0 %3802
        %3804 = vrot.lane.b32.xlu0 %v3616, 16
        %v3805 = vpop.permute.xlu0 %3804
        %3806 = vrot.lane.b32.xlu0 %v3617, 16
        %v3807 = vpop.permute.xlu0 %3806
        %3808 = vrot.lane.b32.xlu0 %v3618, 16
        %v3809 = vpop.permute.xlu0 %3808
        %3810 = vrot.lane.b32.xlu0 %v3619, 16
        %v3811 = vpop.permute.xlu0 %3810
        %3812 = vrot.lane.b32.xlu0 %v3620, 16
        %v3813 = vpop.permute.xlu0 %3812
        %3814 = vrot.lane.b32.xlu0 %v3621, 16
        %v3815 = vpop.permute.xlu0 %3814
        %3816 = vrot.lane.b32.xlu0 %v3622, 16
        %v3817 = vpop.permute.xlu0 %3816
        %3818 = vrot.lane.b32.xlu0 %v3623, 16
        %v3819 = vpop.permute.xlu0 %3818
        %3820 = vrot.lane.b32.xlu0 %v3624, 16
        %v3821 = vpop.permute.xlu0 %3820
        %3822 = vrot.lane.b32.xlu0 %v3625, 16
        %v3823 = vpop.permute.xlu0 %3822
        %3824 = vrot.lane.b32.xlu0 %v3626, 16
        %v3825 = vpop.permute.xlu0 %3824
        %3826 = vrot.lane.b32.xlu0 %v3627, 16
        %v3827 = vpop.permute.xlu0 %3826
        %vm3828 = vcmask 130048
        %v3829 = vsel %vm3828, %v3721, %v3723
        %v3830 = vsel %vm3828, %v3723, %v3725
        %v3831 = vsel %vm3828, %v3725, %v3727
        %v3832 = vsel %vm3828, %v3727, %v3729
        %v3833 = vsel %vm3828, %v3729, %v3731
        %v3834 = vsel %vm3828, %v3731, %v3733
        %v3835 = vsel %vm3828, %v3733, %v3735
        %v3836 = vsel %vm3828, %v3735, %v3737
        %v3837 = vsel %vm3828, %v3739, %v3741
        %v3838 = vsel %vm3828, %v3741, %v3743
        %v3839 = vsel %vm3828, %v3743, %v3745
        %v3840 = vsel %vm3828, %v3745, %v3747
        %v3841 = vsel %vm3828, %v3747, %v3749
        %v3842 = vsel %vm3828, %v3749, %v3751
        %v3843 = vsel %vm3828, %v3751, %v3753
        %v3844 = vsel %vm3828, %v3753, %v3755
        %v3845 = vsel %vm3828, %v3757, %v3759
        %v3846 = vsel %vm3828, %v3759, %v3761
        %v3847 = vsel %vm3828, %v3761, %v3763
        %v3848 = vsel %vm3828, %v3763, %v3765
        %v3849 = vsel %vm3828, %v3765, %v3767
        %v3850 = vsel %vm3828, %v3767, %v3769
        %v3851 = vsel %vm3828, %v3769, %v3771
        %v3852 = vsel %vm3828, %v3771, %v3773
        %v3853 = vsel %vm3828, %v3775, %v3777
        %v3854 = vsel %vm3828, %v3777, %v3779
        %v3855 = vsel %vm3828, %v3779, %v3781
        %v3856 = vsel %vm3828, %v3781, %v3783
        %v3857 = vsel %vm3828, %v3783, %v3785
        %v3858 = vsel %vm3828, %v3785, %v3787
        %v3859 = vsel %vm3828, %v3787, %v3789
        %v3860 = vsel %vm3828, %v3789, %v3791
        %v3861 = vsel %vm3828, %v3793, %v3795
        %v3862 = vsel %vm3828, %v3795, %v3797
        %v3863 = vsel %vm3828, %v3797, %v3799
        %v3864 = vsel %vm3828, %v3799, %v3801
        %v3865 = vsel %vm3828, %v3801, %v3803
        %v3866 = vsel %vm3828, %v3803, %v3805
        %v3867 = vsel %vm3828, %v3805, %v3807
        %v3868 = vsel %vm3828, %v3807, %v3809
        %v3869 = vsel %vm3828, %v3811, %v3813
        %v3870 = vsel %vm3828, %v3813, %v3815
        %v3871 = vsel %vm3828, %v3815, %v3817
        %v3872 = vsel %vm3828, %v3817, %v3819
        %v3873 = vsel %vm3828, %v3819, %v3821
        %v3874 = vsel %vm3828, %v3821, %v3823
        %v3875 = vsel %vm3828, %v3823, %v3825
        %v3876 = vsel %vm3828, %v3825, %v3827
        %v3926 = vsel %vm3505, %v3664, 0
        %v3929 = vsel %vm3505, %v3665, 0
        %3931 = vmatprep.subr.bf16.mxu0 0
        %3932 = vmatpush1.bf16.msra.mxu0 0
        %3933 = vmatprep.subr.bf16.mxu0 0
        %3934 = vmatpush1.bf16.msra.mxu0 0
        %3935 = vmatprep.subr.bf16.mxu0 %v3870
        %3936 = vmatpush1.bf16.msra.mxu0 %v3869
        %3937 = vmatprep.subr.bf16.mxu0 %v3862
        %3938 = vmatpush1.bf16.msra.mxu0 %v3861
        %3939 = vmatprep.subr.bf16.mxu0 %v3854
        %3940 = vmatpush1.bf16.msra.mxu0 %v3853
        %3941 = vmatprep.subr.bf16.mxu0 %v3846
        %3942 = vmatpush1.bf16.msra.mxu0 %v3845
        %3943 = vmatprep.subr.bf16.mxu0 %v3838
        %3944 = vmatpush1.bf16.msra.mxu0 %v3837
        %3945 = vmatprep.subr.bf16.mxu0 %v3830
        %3946 = vmatpush1.bf16.msra.mxu0 %v3829
        %3947 = vmatprep.subr.bf16.mxu0 0
        %3948 = vmatpush2.bf16.msra.mxu0 0
        %3949 = vmatprep.subr.bf16.mxu0 0
        %3950 = vmatpush2.bf16.msra.mxu0 0
        %3951 = vmatprep.subr.bf16.mxu0 0
        %3952 = vmatpush2.bf16.msra.mxu0 0
        %3953 = vmatprep.subr.bf16.mxu0 0
        %3954 = vmatpush2.bf16.msra.mxu0 0
        %3955 = vmatprep.subr.bf16.mxu0 0
        %3956 = vmatpush2.bf16.msra.mxu0 0
        %3957 = vmatprep.subr.bf16.mxu0 0
        %3958 = vmatpush2.bf16.msra.mxu0 0
        %3959 = vmatprep.subr.bf16.mxu0 0
        %3960 = vmatpush2.bf16.msra.mxu0 0
        %3961 = vmatprep.subr.bf16.mxu0 0
        %3962 = vmatpush2.bf16.msra.mxu0 0
        %3963 = vmatprep.mubr.bf16.mxu0 0
        %3964 = vmatmul.mubr.bf16.gmra.mxu0 %v3926
        %v3965 = vpop.f32.mrf.mxu0
        %v3966 = vadd.f32 %v3639, %v3965
        %v3967 = vpop.f32.mrf.mxu0
        %v3968 = vadd.f32 %v3639, %v3967
        %v3969 = vpop.f32.mrf.mxu0
        %v3970 = vadd.f32 %v3644, %v3969
        %v3971 = vpop.f32.mrf.mxu0
        %v3972 = vadd.f32 %v3644, %v3971
        %3973 = vmatprep.mubr.bf16.mxu0 0
        %3974 = vmatmul.mubr.bf16.gmra.mxu0 %v3929
        %v3975 = vpop.f32.mrf.mxu0
        %v3976 = vadd.f32 %v3649, %v3975
        %v3977 = vpop.f32.mrf.mxu0
        %v3978 = vadd.f32 %v3649, %v3977
        %v3979 = vpop.f32.mrf.mxu0
        %v3980 = vadd.f32 %v3654, %v3979
        %v3981 = vpop.f32.mrf.mxu0
        %v3982 = vadd.f32 %v3654, %v3981
        %3983 = vdwg.mxu0
        %3984 = vmatprep.subr.bf16.mxu0 0
        %3985 = vmatpush1.bf16.msra.mxu0 0
        %3986 = vmatprep.subr.bf16.mxu0 0
        %3987 = vmatpush1.bf16.msra.mxu0 0
        %3988 = vmatprep.subr.bf16.mxu0 %v3872
        %3989 = vmatpush1.bf16.msra.mxu0 %v3871
        %3990 = vmatprep.subr.bf16.mxu0 %v3864
        %3991 = vmatpush1.bf16.msra.mxu0 %v3863
        %3992 = vmatprep.subr.bf16.mxu0 %v3856
        %3993 = vmatpush1.bf16.msra.mxu0 %v3855
        %3994 = vmatprep.subr.bf16.mxu0 %v3848
        %3995 = vmatpush1.bf16.msra.mxu0 %v3847
        %3996 = vmatprep.subr.bf16.mxu0 %v3840
        %3997 = vmatpush1.bf16.msra.mxu0 %v3839
        %3998 = vmatprep.subr.bf16.mxu0 %v3832
        %3999 = vmatpush1.bf16.msra.mxu0 %v3831
        %4000 = vmatprep.subr.bf16.mxu0 0
        %4001 = vmatpush2.bf16.msra.mxu0 0
        %4002 = vmatprep.subr.bf16.mxu0 0
        %4003 = vmatpush2.bf16.msra.mxu0 0
        %4004 = vmatprep.subr.bf16.mxu0 0
        %4005 = vmatpush2.bf16.msra.mxu0 0
        %4006 = vmatprep.subr.bf16.mxu0 0
        %4007 = vmatpush2.bf16.msra.mxu0 0
        %4008 = vmatprep.subr.bf16.mxu0 0
        %4009 = vmatpush2.bf16.msra.mxu0 0
        %4010 = vmatprep.subr.bf16.mxu0 0
        %4011 = vmatpush2.bf16.msra.mxu0 0
        %4012 = vmatprep.subr.bf16.mxu0 0
        %4013 = vmatpush2.bf16.msra.mxu0 0
        %4014 = vmatprep.subr.bf16.mxu0 0
        %4015 = vmatpush2.bf16.msra.mxu0 0
        %4016 = vmatprep.mubr.bf16.mxu0 0
        %4017 = vmatmul.mubr.bf16.gmra.mxu0 %v3926
        %v4018 = vpop.f32.mrf.mxu0
        %v4019 = vadd.f32 %v3639, %v4018
        %v4020 = vpop.f32.mrf.mxu0
        %v4021 = vadd.f32 %v3639, %v4020
        %v4022 = vpop.f32.mrf.mxu0
        %v4023 = vadd.f32 %v3644, %v4022
        %v4024 = vpop.f32.mrf.mxu0
        %v4025 = vadd.f32 %v3644, %v4024
        %4026 = vmatprep.mubr.bf16.mxu0 0
        %4027 = vmatmul.mubr.bf16.gmra.mxu0 %v3929
        %v4028 = vpop.f32.mrf.mxu0
        %v4029 = vadd.f32 %v3649, %v4028
        %v4030 = vpop.f32.mrf.mxu0
        %v4031 = vadd.f32 %v3649, %v4030
        %v4032 = vpop.f32.mrf.mxu0
        %v4033 = vadd.f32 %v3654, %v4032
        %v4034 = vpop.f32.mrf.mxu0
        %v4035 = vadd.f32 %v3654, %v4034
        %4036 = vdwg.mxu0
        %4037 = vmatprep.subr.bf16.mxu0 0
        %4038 = vmatpush1.bf16.msra.mxu0 0
        %4039 = vmatprep.subr.bf16.mxu0 0
        %4040 = vmatpush1.bf16.msra.mxu0 0
        %4041 = vmatprep.subr.bf16.mxu0 %v3874
        %4042 = vmatpush1.bf16.msra.mxu0 %v3873
        %4043 = vmatprep.subr.bf16.mxu0 %v3866
        %4044 = vmatpush1.bf16.msra.mxu0 %v3865
        %4045 = vmatprep.subr.bf16.mxu0 %v3858
        %4046 = vmatpush1.bf16.msra.mxu0 %v3857
        %4047 = vmatprep.subr.bf16.mxu0 %v3850
        %4048 = vmatpush1.bf16.msra.mxu0 %v3849
        %4049 = vmatprep.subr.bf16.mxu0 %v3842
        %4050 = vmatpush1.bf16.msra.mxu0 %v3841
        %4051 = vmatprep.subr.bf16.mxu0 %v3834
        %4052 = vmatpush1.bf16.msra.mxu0 %v3833
        %4053 = vmatprep.subr.bf16.mxu0 0
        %4054 = vmatpush2.bf16.msra.mxu0 0
        %4055 = vmatprep.subr.bf16.mxu0 0
        %4056 = vmatpush2.bf16.msra.mxu0 0
        %4057 = vmatprep.subr.bf16.mxu0 0
        %4058 = vmatpush2.bf16.msra.mxu0 0
        %4059 = vmatprep.subr.bf16.mxu0 0
        %4060 = vmatpush2.bf16.msra.mxu0 0
        %4061 = vmatprep.subr.bf16.mxu0 0
        %4062 = vmatpush2.bf16.msra.mxu0 0
        %4063 = vmatprep.subr.bf16.mxu0 0
        %4064 = vmatpush2.bf16.msra.mxu0 0
        %4065 = vmatprep.subr.bf16.mxu0 0
        %4066 = vmatpush2.bf16.msra.mxu0 0
        %4067 = vmatprep.subr.bf16.mxu0 0
        %4068 = vmatpush2.bf16.msra.mxu0 0
        %4069 = vmatprep.mubr.bf16.mxu0 0
        %4070 = vmatmul.mubr.bf16.gmra.mxu0 %v3926
        %v4071 = vpop.f32.mrf.mxu0
        %v4072 = vadd.f32 %v3639, %v4071
        %v4073 = vpop.f32.mrf.mxu0
        %v4074 = vadd.f32 %v3639, %v4073
        %v4075 = vpop.f32.mrf.mxu0
        %v4076 = vadd.f32 %v3644, %v4075
        %v4077 = vpop.f32.mrf.mxu0
        %v4078 = vadd.f32 %v3644, %v4077
        %4079 = vmatprep.mubr.bf16.mxu0 0
        %4080 = vmatmul.mubr.bf16.gmra.mxu0 %v3929
        %v4081 = vpop.f32.mrf.mxu0
        %v4082 = vadd.f32 %v3649, %v4081
        %v4083 = vpop.f32.mrf.mxu0
        %v4084 = vadd.f32 %v3649, %v4083
        %v4085 = vpop.f32.mrf.mxu0
        %v4086 = vadd.f32 %v3654, %v4085
        %v4087 = vpop.f32.mrf.mxu0
        %v4088 = vadd.f32 %v3654, %v4087
        %4089 = vdwg.mxu0
        %4090 = vmatprep.subr.bf16.mxu0 0
        %4091 = vmatpush1.bf16.msra.mxu0 0
        %4092 = vmatprep.subr.bf16.mxu0 0
        %4093 = vmatpush1.bf16.msra.mxu0 0
        %4094 = vmatprep.subr.bf16.mxu0 %v3876
        %4095 = vmatpush1.bf16.msra.mxu0 %v3875
        %4096 = vmatprep.subr.bf16.mxu0 %v3868
        %4097 = vmatpush1.bf16.msra.mxu0 %v3867
        %4098 = vmatprep.subr.bf16.mxu0 %v3860
        %4099 = vmatpush1.bf16.msra.mxu0 %v3859
        %4100 = vmatprep.subr.bf16.mxu0 %v3852
        %4101 = vmatpush1.bf16.msra.mxu0 %v3851
        %4102 = vmatprep.subr.bf16.mxu0 %v3844
        %4103 = vmatpush1.bf16.msra.mxu0 %v3843
        %4104 = vmatprep.subr.bf16.mxu0 %v3836
        %4105 = vmatpush1.bf16.msra.mxu0 %v3835
        %4106 = vmatprep.subr.bf16.mxu0 0
        %4107 = vmatpush2.bf16.msra.mxu0 0
        %4108 = vmatprep.subr.bf16.mxu0 0
        %4109 = vmatpush2.bf16.msra.mxu0 0
        %4110 = vmatprep.subr.bf16.mxu0 0
        %4111 = vmatpush2.bf16.msra.mxu0 0
        %4112 = vmatprep.subr.bf16.mxu0 0
        %4113 = vmatpush2.bf16.msra.mxu0 0
        %4114 = vmatprep.subr.bf16.mxu0 0
        %4115 = vmatpush2.bf16.msra.mxu0 0
        %4116 = vmatprep.subr.bf16.mxu0 0
        %4117 = vmatpush2.bf16.msra.mxu0 0
        %4118 = vmatprep.subr.bf16.mxu0 0
        %4119 = vmatpush2.bf16.msra.mxu0 0
        %4120 = vmatprep.subr.bf16.mxu0 0
        %4121 = vmatpush2.bf16.msra.mxu0 0
        %4122 = vmatprep.mubr.bf16.mxu0 0
        %4123 = vmatmul.mubr.bf16.gmra.mxu0 %v3926
        %v4124 = vpop.f32.mrf.mxu0
        %v4125 = vadd.f32 %v3639, %v4124
        %v4126 = vpop.f32.mrf.mxu0
        %v4127 = vadd.f32 %v3639, %v4126
        %v4128 = vpop.f32.mrf.mxu0
        %v4129 = vadd.f32 %v3644, %v4128
        %v4130 = vpop.f32.mrf.mxu0
        %v4131 = vadd.f32 %v3644, %v4130
        %4132 = vmatprep.mubr.bf16.mxu0 0
        %4133 = vmatmul.mubr.bf16.gmra.mxu0 %v3929
        %v4134 = vpop.f32.mrf.mxu0
        %v4135 = vadd.f32 %v3649, %v4134
        %v4136 = vpop.f32.mrf.mxu0
        %v4137 = vadd.f32 %v3649, %v4136
        %v4138 = vpop.f32.mrf.mxu0
        %v4139 = vadd.f32 %v3654, %v4138
        %v4140 = vpop.f32.mrf.mxu0
        %v4141 = vadd.f32 %v3654, %v4140
        %4142 = vdwg.mxu0
        %v4143 = vmax.f32 %v3966, 0.0
        %v4144 = vmax.f32 %v3968, 0.0
        %v4145 = vmax.f32 %v4019, 0.0
        %v4146 = vmax.f32 %v4021, 0.0
        %v4147 = vmax.f32 %v4072, 0.0
        %v4148 = vmax.f32 %v4074, 0.0
        %v4149 = vmax.f32 %v4125, 0.0
        %v4150 = vmax.f32 %v4127, 0.0
        %v4151 = vmax.f32 %v3970, 0.0
        %v4152 = vmax.f32 %v3972, 0.0
        %v4153 = vmax.f32 %v4023, 0.0
        %v4154 = vmax.f32 %v4025, 0.0
        %v4155 = vmax.f32 %v4076, 0.0
        %v4156 = vmax.f32 %v4078, 0.0
        %v4157 = vmax.f32 %v4129, 0.0
        %v4158 = vmax.f32 %v4131, 0.0
        %v4159 = vmax.f32 %v3976, 0.0
        %v4160 = vmax.f32 %v3978, 0.0
        %v4161 = vmax.f32 %v4029, 0.0
        %v4162 = vmax.f32 %v4031, 0.0
        %v4163 = vmax.f32 %v4082, 0.0
        %v4164 = vmax.f32 %v4084, 0.0
        %v4165 = vmax.f32 %v4135, 0.0
        %v4166 = vmax.f32 %v4137, 0.0
        %v4167 = vmax.f32 %v3980, 0.0
        %v4168 = vmax.f32 %v3982, 0.0
        %v4169 = vmax.f32 %v4033, 0.0
        %v4170 = vmax.f32 %v4035, 0.0
        %v4171 = vmax.f32 %v4086, 0.0
        %v4172 = vmax.f32 %v4088, 0.0
        %v4173 = vmax.f32 %v4139, 0.0
        %v4174 = vmax.f32 %v4141, 0.0
        %4175 = vst [vmem:[#allocation2 + $0x8] sm:$0xff] %v4143
        %4176 = vst [vmem:[#allocation2 + $0x10] sm:$0xff] %v4144
        %4177 = vst [vmem:[#allocation2 + $0x18] sm:$0xff] %v4145
        %4178 = vst [vmem:[#allocation2 + $0x20] sm:$0xff] %v4146
        %4179 = vst [vmem:[#allocation2 + $0x28] sm:$0xff] %v4147
        %4180 = vst [vmem:[#allocation2 + $0x30] sm:$0xff] %v4148
        %4181 = vst [vmem:[#allocation2 + $0x38] sm:$0xff] %v4149
        %4182 = vst [vmem:[#allocation2 + $0x40] sm:$0xff] %v4150
        %4183 = vst [vmem:[#allocation2 + $0x58] sm:$0xff] %v4151
        %4184 = vst [vmem:[#allocation2 + $0x60] sm:$0xff] %v4152
        %4185 = vst [vmem:[#allocation2 + $0x68] sm:$0xff] %v4153
        %4186 = vst [vmem:[#allocation2 + $0x70] sm:$0xff] %v4154
        %4187 = vst [vmem:[#allocation2 + $0x78] sm:$0xff] %v4155
        %4188 = vst [vmem:[#allocation2 + $0x80] sm:$0xff] %v4156
        %4189 = vst [vmem:[#allocation2 + $0x88] sm:$0xff] %v4157
        %4190 = vst [vmem:[#allocation2 + $0x90] sm:$0xff] %v4158
        %4191 = vst [vmem:[#allocation2 + $0xa8] sm:$0xff] %v4159
        %4192 = vst [vmem:[#allocation2 + $0xb0] sm:$0xff] %v4160
        %4193 = vst [vmem:[#allocation2 + $0xb8] sm:$0xff] %v4161
        %4194 = vst [vmem:[#allocation2 + $0xc0] sm:$0xff] %v4162
        %4195 = vst [vmem:[#allocation2 + $0xc8] sm:$0xff] %v4163
        %4196 = vst [vmem:[#allocation2 + $0xd0] sm:$0xff] %v4164
        %4197 = vst [vmem:[#allocation2 + $0xd8] sm:$0xff] %v4165
        %4198 = vst [vmem:[#allocation2 + $0xe0] sm:$0xff] %v4166
        %4199 = vst [vmem:[#allocation2 + $0xf8] sm:$0xff] %v4167
        %4200 = vst [vmem:[#allocation2 + $0x100] sm:$0xff] %v4168
        %4201 = vst [vmem:[#allocation2 + $0x108] sm:$0xff] %v4169
        %4202 = vst [vmem:[#allocation2 + $0x110] sm:$0xff] %v4170
        %4203 = vst [vmem:[#allocation2 + $0x118] sm:$0xff] %v4171
        %4204 = vst [vmem:[#allocation2 + $0x120] sm:$0xff] %v4172
        %4205 = vst [vmem:[#allocation2 + $0x128] sm:$0xff] %v4173
        %4206 = vst [vmem:[#allocation2 + $0x130] sm:$0xff] %v4174
        %v4207 = vld [vmem:[#allocation2] sm:$0xff]
        %v4208 = vld [vmem:[#allocation2 + $0x8] sm:$0xff]
        %v4209 = vld [vmem:[#allocation2 + $0x10] sm:$0xff]
        %v4210 = vld [vmem:[#allocation2 + $0x18] sm:$0xff]
        %v4211 = vld [vmem:[#allocation2 + $0x20] sm:$0xff]
        %v4212 = vld [vmem:[#allocation2 + $0x28] sm:$0xff]
        %v4213 = vld [vmem:[#allocation2 + $0x30] sm:$0xff]
        %v4214 = vld [vmem:[#allocation2 + $0x38] sm:$0xff]
        %v4215 = vld [vmem:[#allocation2 + $0x40] sm:$0xff]
        %v4216 = vld [vmem:[#allocation2 + $0x50] sm:$0xff]
        %v4217 = vld [vmem:[#allocation2 + $0x58] sm:$0xff]
        %v4218 = vld [vmem:[#allocation2 + $0x60] sm:$0xff]
        %v4219 = vld [vmem:[#allocation2 + $0x68] sm:$0xff]
        %v4220 = vld [vmem:[#allocation2 + $0x70] sm:$0xff]
        %v4221 = vld [vmem:[#allocation2 + $0x78] sm:$0xff]
        %v4222 = vld [vmem:[#allocation2 + $0x80] sm:$0xff]
        %v4223 = vld [vmem:[#allocation2 + $0x88] sm:$0xff]
        %v4224 = vld [vmem:[#allocation2 + $0x90] sm:$0xff]
        %v4225 = vld [vmem:[#allocation2 + $0xa0] sm:$0xff]
        %v4226 = vld [vmem:[#allocation2 + $0xa8] sm:$0xff]
        %v4227 = vld [vmem:[#allocation2 + $0xb0] sm:$0xff]
        %v4228 = vld [vmem:[#allocation2 + $0xb8] sm:$0xff]
        %v4229 = vld [vmem:[#allocation2 + $0xc0] sm:$0xff]
        %v4230 = vld [vmem:[#allocation2 + $0xc8] sm:$0xff]
        %v4231 = vld [vmem:[#allocation2 + $0xd0] sm:$0xff]
        %v4232 = vld [vmem:[#allocation2 + $0xd8] sm:$0xff]
        %v4233 = vld [vmem:[#allocation2 + $0xe0] sm:$0xff]
        %v4234 = vld [vmem:[#allocation2 + $0xf0] sm:$0xff]
        %v4235 = vld [vmem:[#allocation2 + $0xf8] sm:$0xff]
        %v4236 = vld [vmem:[#allocation2 + $0x100] sm:$0xff]
        %v4237 = vld [vmem:[#allocation2 + $0x108] sm:$0xff]
        %v4238 = vld [vmem:[#allocation2 + $0x110] sm:$0xff]
        %v4239 = vld [vmem:[#allocation2 + $0x118] sm:$0xff]
        %v4240 = vld [vmem:[#allocation2 + $0x120] sm:$0xff]
        %v4241 = vld [vmem:[#allocation2 + $0x128] sm:$0xff]
        %v4242 = vld [vmem:[#allocation2 + $0x130] sm:$0xff]
        %v4243 = vld [vmem:[#allocation2 + $0x8] sm:$0xff]
        %v4244 = vld [vmem:[#allocation2 + $0x10] sm:$0xff]
        %v4245 = vld [vmem:[#allocation2 + $0x18] sm:$0xff]
        %v4246 = vld [vmem:[#allocation2 + $0x20] sm:$0xff]
        %v4247 = vld [vmem:[#allocation2 + $0x28] sm:$0xff]
        %v4248 = vld [vmem:[#allocation2 + $0x30] sm:$0xff]
        %v4249 = vld [vmem:[#allocation2 + $0x38] sm:$0xff]
        %v4250 = vld [vmem:[#allocation2 + $0x40] sm:$0xff]
        %v4251 = vld [vmem:[#allocation2 + $0x48] sm:$0xff]
        %v4252 = vld [vmem:[#allocation2 + $0x58] sm:$0xff]
        %v4253 = vld [vmem:[#allocation2 + $0x60] sm:$0xff]
        %v4254 = vld [vmem:[#allocation2 + $0x68] sm:$0xff]
        %v4255 = vld [vmem:[#allocation2 + $0x70] sm:$0xff]
        %v4256 = vld [vmem:[#allocation2 + $0x78] sm:$0xff]
        %v4257 = vld [vmem:[#allocation2 + $0x80] sm:$0xff]
        %v4258 = vld [vmem:[#allocation2 + $0x88] sm:$0xff]
        %v4259 = vld [vmem:[#allocation2 + $0x90] sm:$0xff]
        %v4260 = vld [vmem:[#allocation2 + $0x98] sm:$0xff]
        %v4261 = vld [vmem:[#allocation2 + $0xa8] sm:$0xff]
        %v4262 = vld [vmem:[#allocation2 + $0xb0] sm:$0xff]
        %v4263 = vld [vmem:[#allocation2 + $0xb8] sm:$0xff]
        %v4264 = vld [vmem:[#allocation2 + $0xc0] sm:$0xff]
        %v4265 = vld [vmem:[#allocation2 + $0xc8] sm:$0xff]
        %v4266 = vld [vmem:[#allocation2 + $0xd0] sm:$0xff]
        %v4267 = vld [vmem:[#allocation2 + $0xd8] sm:$0xff]
        %v4268 = vld [vmem:[#allocation2 + $0xe0] sm:$0xff]
        %v4269 = vld [vmem:[#allocation2 + $0xe8] sm:$0xff]
        %v4270 = vld [vmem:[#allocation2 + $0xf8] sm:$0xff]
        %v4271 = vld [vmem:[#allocation2 + $0x100] sm:$0xff]
        %v4272 = vld [vmem:[#allocation2 + $0x108] sm:$0xff]
        %v4273 = vld [vmem:[#allocation2 + $0x110] sm:$0xff]
        %v4274 = vld [vmem:[#allocation2 + $0x118] sm:$0xff]
        %v4275 = vld [vmem:[#allocation2 + $0x120] sm:$0xff]
        %v4276 = vld [vmem:[#allocation2 + $0x128] sm:$0xff]
        %v4277 = vld [vmem:[#allocation2 + $0x130] sm:$0xff]
        %v4278 = vld [vmem:[#allocation2 + $0x138] sm:$0xff]
        %4311 = vrot.lane.b32.xlu0 %v4208, 96
        %v4312 = vpop.permute.xlu0 %4311
        %4313 = vrot.lane.b32.xlu0 %v4209, 96
        %v4314 = vpop.permute.xlu0 %4313
        %4315 = vrot.lane.b32.xlu0 %v4210, 96
        %v4316 = vpop.permute.xlu0 %4315
        %4317 = vrot.lane.b32.xlu0 %v4211, 96
        %v4318 = vpop.permute.xlu0 %4317
        %4319 = vrot.lane.b32.xlu0 %v4212, 96
        %v4320 = vpop.permute.xlu0 %4319
        %4321 = vrot.lane.b32.xlu0 %v4213, 96
        %v4322 = vpop.permute.xlu0 %4321
        %4323 = vrot.lane.b32.xlu0 %v4214, 96
        %v4324 = vpop.permute.xlu0 %4323
        %4325 = vrot.lane.b32.xlu0 %v4215, 96
        %v4326 = vpop.permute.xlu0 %4325
        %4327 = vrot.lane.b32.xlu0 %v4217, 96
        %v4328 = vpop.permute.xlu0 %4327
        %4329 = vrot.lane.b32.xlu0 %v4218, 96
        %v4330 = vpop.permute.xlu0 %4329
        %4331 = vrot.lane.b32.xlu0 %v4219, 96
        %v4332 = vpop.permute.xlu0 %4331
        %4333 = vrot.lane.b32.xlu0 %v4220, 96
        %v4334 = vpop.permute.xlu0 %4333
        %4335 = vrot.lane.b32.xlu0 %v4221, 96
        %v4336 = vpop.permute.xlu0 %4335
        %4337 = vrot.lane.b32.xlu0 %v4222, 96
        %v4338 = vpop.permute.xlu0 %4337
        %4339 = vrot.lane.b32.xlu0 %v4223, 96
        %v4340 = vpop.permute.xlu0 %4339
        %4341 = vrot.lane.b32.xlu0 %v4224, 96
        %v4342 = vpop.permute.xlu0 %4341
        %4343 = vrot.lane.b32.xlu0 %v4226, 96
        %v4344 = vpop.permute.xlu0 %4343
        %4345 = vrot.lane.b32.xlu0 %v4227, 96
        %v4346 = vpop.permute.xlu0 %4345
        %4347 = vrot.lane.b32.xlu0 %v4228, 96
        %v4348 = vpop.permute.xlu0 %4347
        %4349 = vrot.lane.b32.xlu0 %v4229, 96
        %v4350 = vpop.permute.xlu0 %4349
        %4351 = vrot.lane.b32.xlu0 %v4230, 96
        %v4352 = vpop.permute.xlu0 %4351
        %4353 = vrot.lane.b32.xlu0 %v4231, 96
        %v4354 = vpop.permute.xlu0 %4353
        %4355 = vrot.lane.b32.xlu0 %v4232, 96
        %v4356 = vpop.permute.xlu0 %4355
        %4357 = vrot.lane.b32.xlu0 %v4233, 96
        %v4358 = vpop.permute.xlu0 %4357
        %4359 = vrot.lane.b32.xlu0 %v4235, 96
        %v4360 = vpop.permute.xlu0 %4359
        %4361 = vrot.lane.b32.xlu0 %v4236, 96
        %v4362 = vpop.permute.xlu0 %4361
        %4363 = vrot.lane.b32.xlu0 %v4237, 96
        %v4364 = vpop.permute.xlu0 %4363
        %4365 = vrot.lane.b32.xlu0 %v4238, 96
        %v4366 = vpop.permute.xlu0 %4365
        %4367 = vrot.lane.b32.xlu0 %v4239, 96
        %v4368 = vpop.permute.xlu0 %4367
        %4369 = vrot.lane.b32.xlu0 %v4240, 96
        %v4370 = vpop.permute.xlu0 %4369
        %4371 = vrot.lane.b32.xlu0 %v4241, 96
        %v4372 = vpop.permute.xlu0 %4371
        %4373 = vrot.lane.b32.xlu0 %v4242, 96
        %v4374 = vpop.permute.xlu0 %4373
        %v4375 = vsel %vm3505, %v4312, %v4314
        %v4376 = vsel %vm3505, %v4314, %v4316
        %v4377 = vsel %vm3505, %v4316, %v4318
        %v4378 = vsel %vm3505, %v4318, %v4320
        %v4379 = vsel %vm3505, %v4320, %v4322
        %v4380 = vsel %vm3505, %v4322, %v4324
        %v4381 = vsel %vm3505, %v4324, %v4326
        %v4382 = vsel %vm3505, %v4328, %v4330
        %v4383 = vsel %vm3505, %v4330, %v4332
        %v4384 = vsel %vm3505, %v4332, %v4334
        %v4385 = vsel %vm3505, %v4334, %v4336
        %v4386 = vsel %vm3505, %v4336, %v4338
        %v4387 = vsel %vm3505, %v4338, %v4340
        %v4388 = vsel %vm3505, %v4340, %v4342
        %v4389 = vsel %vm3505, %v4344, %v4346
        %v4390 = vsel %vm3505, %v4346, %v4348
        %v4391 = vsel %vm3505, %v4348, %v4350
        %v4392 = vsel %vm3505, %v4350, %v4352
        %v4393 = vsel %vm3505, %v4352, %v4354
        %v4394 = vsel %vm3505, %v4354, %v4356
        %v4395 = vsel %vm3505, %v4356, %v4358
        %v4396 = vsel %vm3505, %v4360, %v4362
        %v4397 = vsel %vm3505, %v4362, %v4364
        %v4398 = vsel %vm3505, %v4364, %v4366
        %v4399 = vsel %vm3505, %v4366, %v4368
        %v4400 = vsel %vm3505, %v4368, %v4370
        %v4401 = vsel %vm3505, %v4370, %v4372
        %v4402 = vsel %vm3505, %v4372, %v4374
        %4475 = vrot.lane.b32.xlu0 %v4243, 64
        %v4476 = vpop.permute.xlu0 %4475
        %4477 = vrot.lane.b32.xlu0 %v4244, 64
        %v4478 = vpop.permute.xlu0 %4477
        %4479 = vrot.lane.b32.xlu0 %v4245, 64
        %v4480 = vpop.permute.xlu0 %4479
        %4481 = vrot.lane.b32.xlu0 %v4246, 64
        %v4482 = vpop.permute.xlu0 %4481
        %4483 = vrot.lane.b32.xlu0 %v4247, 64
        %v4484 = vpop.permute.xlu0 %4483
        %4485 = vrot.lane.b32.xlu0 %v4248, 64
        %v4486 = vpop.permute.xlu0 %4485
        %4487 = vrot.lane.b32.xlu0 %v4249, 64
        %v4488 = vpop.permute.xlu0 %4487
        %4489 = vrot.lane.b32.xlu0 %v4250, 64
        %v4490 = vpop.permute.xlu0 %4489
        %4491 = vrot.lane.b32.xlu0 %v4251, 64
        %v4492 = vpop.permute.xlu0 %4491
        %4493 = vrot.lane.b32.xlu0 %v4252, 64
        %v4494 = vpop.permute.xlu0 %4493
        %4495 = vrot.lane.b32.xlu0 %v4253, 64
        %v4496 = vpop.permute.xlu0 %4495
        %4497 = vrot.lane.b32.xlu0 %v4254, 64
        %v4498 = vpop.permute.xlu0 %4497
        %4499 = vrot.lane.b32.xlu0 %v4255, 64
        %v4500 = vpop.permute.xlu0 %4499
        %4501 = vrot.lane.b32.xlu0 %v4256, 64
        %v4502 = vpop.permute.xlu0 %4501
        %4503 = vrot.lane.b32.xlu0 %v4257, 64
        %v4504 = vpop.permute.xlu0 %4503
        %4505 = vrot.lane.b32.xlu0 %v4258, 64
        %v4506 = vpop.permute.xlu0 %4505
        %4507 = vrot.lane.b32.xlu0 %v4259, 64
        %v4508 = vpop.permute.xlu0 %4507
        %4509 = vrot.lane.b32.xlu0 %v4260, 64
        %v4510 = vpop.permute.xlu0 %4509
        %4511 = vrot.lane.b32.xlu0 %v4261, 64
        %v4512 = vpop.permute.xlu0 %4511
        %4513 = vrot.lane.b32.xlu0 %v4262, 64
        %v4514 = vpop.permute.xlu0 %4513
        %4515 = vrot.lane.b32.xlu0 %v4263, 64
        %v4516 = vpop.permute.xlu0 %4515
        %4517 = vrot.lane.b32.xlu0 %v4264, 64
        %v4518 = vpop.permute.xlu0 %4517
        %4519 = vrot.lane.b32.xlu0 %v4265, 64
        %v4520 = vpop.permute.xlu0 %4519
        %4521 = vrot.lane.b32.xlu0 %v4266, 64
        %v4522 = vpop.permute.xlu0 %4521
        %4523 = vrot.lane.b32.xlu0 %v4267, 64
        %v4524 = vpop.permute.xlu0 %4523
        %4525 = vrot.lane.b32.xlu0 %v4268, 64
        %v4526 = vpop.permute.xlu0 %4525
        %4527 = vrot.lane.b32.xlu0 %v4269, 64
        %v4528 = vpop.permute.xlu0 %4527
        %4529 = vrot.lane.b32.xlu0 %v4270, 64
        %v4530 = vpop.permute.xlu0 %4529
        %4531 = vrot.lane.b32.xlu0 %v4271, 64
        %v4532 = vpop.permute.xlu0 %4531
        %4533 = vrot.lane.b32.xlu0 %v4272, 64
        %v4534 = vpop.permute.xlu0 %4533
        %4535 = vrot.lane.b32.xlu0 %v4273, 64
        %v4536 = vpop.permute.xlu0 %4535
        %4537 = vrot.lane.b32.xlu0 %v4274, 64
        %v4538 = vpop.permute.xlu0 %4537
        %4539 = vrot.lane.b32.xlu0 %v4275, 64
        %v4540 = vpop.permute.xlu0 %4539
        %4541 = vrot.lane.b32.xlu0 %v4276, 64
        %v4542 = vpop.permute.xlu0 %4541
        %4543 = vrot.lane.b32.xlu0 %v4277, 64
        %v4544 = vpop.permute.xlu0 %4543
        %4545 = vrot.lane.b32.xlu0 %v4278, 64
        %v4546 = vpop.permute.xlu0 %4545
        %vm4547 = vcmask 523264
        %v4548 = vsel %vm4547, %v4476, %v4478
        %v4549 = vsel %vm4547, %v4478, %v4480
        %v4550 = vsel %vm4547, %v4480, %v4482
        %v4551 = vsel %vm4547, %v4482, %v4484
        %v4552 = vsel %vm4547, %v4484, %v4486
        %v4553 = vsel %vm4547, %v4486, %v4488
        %v4554 = vsel %vm4547, %v4488, %v4490
        %v4555 = vsel %vm4547, %v4490, %v4492
        %v4556 = vsel %vm4547, %v4494, %v4496
        %v4557 = vsel %vm4547, %v4496, %v4498
        %v4558 = vsel %vm4547, %v4498, %v4500
        %v4559 = vsel %vm4547, %v4500, %v4502
        %v4560 = vsel %vm4547, %v4502, %v4504
        %v4561 = vsel %vm4547, %v4504, %v4506
        %v4562 = vsel %vm4547, %v4506, %v4508
        %v4563 = vsel %vm4547, %v4508, %v4510
        %v4564 = vsel %vm4547, %v4512, %v4514
        %v4565 = vsel %vm4547, %v4514, %v4516
        %v4566 = vsel %vm4547, %v4516, %v4518
        %v4567 = vsel %vm4547, %v4518, %v4520
        %v4568 = vsel %vm4547, %v4520, %v4522
        %v4569 = vsel %vm4547, %v4522, %v4524
        %v4570 = vsel %vm4547, %v4524, %v4526
        %v4571 = vsel %vm4547, %v4526, %v4528
        %v4572 = vsel %vm4547, %v4530, %v4532
        %v4573 = vsel %vm4547, %v4532, %v4534
        %v4574 = vsel %vm4547, %v4534, %v4536
        %v4575 = vsel %vm4547, %v4536, %v4538
        %v4576 = vsel %vm4547, %v4538, %v4540
        %v4577 = vsel %vm4547, %v4540, %v4542
        %v4578 = vsel %vm4547, %v4542, %v4544
        %v4579 = vsel %vm4547, %v4544, %v4546
        %v4616 = vpack.c.bf16 %v4216, %v4207
        %v4617 = vpack.c.bf16 %v4217, %v4208
        %v4618 = vpack.c.bf16 %v4218, %v4209
        %v4619 = vpack.c.bf16 %v4219, %v4210
        %v4620 = vpack.c.bf16 %v4220, %v4211
        %v4621 = vpack.c.bf16 %v4221, %v4212
        %v4622 = vpack.c.bf16 %v4222, %v4213
        %v4623 = vpack.c.bf16 %v4223, %v4214
        %v4624 = vpack.c.bf16 %v4224, %v4215
        %v4625 = vpack.c.bf16 %v4234, %v4225
        %v4626 = vpack.c.bf16 %v4235, %v4226
        %v4627 = vpack.c.bf16 %v4236, %v4227
        %v4628 = vpack.c.bf16 %v4237, %v4228
        %v4629 = vpack.c.bf16 %v4238, %v4229
        %v4630 = vpack.c.bf16 %v4239, %v4230
        %v4631 = vpack.c.bf16 %v4240, %v4231
        %v4632 = vpack.c.bf16 %v4241, %v4232
        %v4633 = vpack.c.bf16 %v4242, %v4233
        %v4634 = vpack.c.bf16 %v4328, %v4312
        %v4635 = vpack.c.bf16 %v4382, %v4375
        %v4636 = vpack.c.bf16 %v4383, %v4376
        %v4637 = vpack.c.bf16 %v4384, %v4377
        %v4638 = vpack.c.bf16 %v4385, %v4378
        %v4639 = vpack.c.bf16 %v4386, %v4379
        %v4640 = vpack.c.bf16 %v4387, %v4380
        %v4641 = vpack.c.bf16 %v4388, %v4381
        %v4642 = vpack.c.bf16 %v4342, %v4326
        %v4643 = vpack.c.bf16 %v4360, %v4344
        %v4644 = vpack.c.bf16 %v4396, %v4389
        %v4645 = vpack.c.bf16 %v4397, %v4390
        %v4646 = vpack.c.bf16 %v4398, %v4391
        %v4647 = vpack.c.bf16 %v4399, %v4392
        %v4648 = vpack.c.bf16 %v4400, %v4393
        %v4649 = vpack.c.bf16 %v4401, %v4394
        %v4650 = vpack.c.bf16 %v4402, %v4395
        %v4651 = vpack.c.bf16 %v4374, %v4358
        %v4652 = vpack.c.bf16 %v4494, %v4476
        %v4653 = vpack.c.bf16 %v4556, %v4548
        %v4654 = vpack.c.bf16 %v4557, %v4549
        %v4655 = vpack.c.bf16 %v4558, %v4550
        %v4656 = vpack.c.bf16 %v4559, %v4551
        %v4657 = vpack.c.bf16 %v4560, %v4552
        %v4658 = vpack.c.bf16 %v4561, %v4553
        %v4659 = vpack.c.bf16 %v4562, %v4554
        %v4660 = vpack.c.bf16 %v4563, %v4555
        %v4661 = vpack.c.bf16 %v4530, %v4512
        %v4662 = vpack.c.bf16 %v4572, %v4564
        %v4663 = vpack.c.bf16 %v4573, %v4565
        %v4664 = vpack.c.bf16 %v4574, %v4566
        %v4665 = vpack.c.bf16 %v4575, %v4567
        %v4666 = vpack.c.bf16 %v4576, %v4568
        %v4667 = vpack.c.bf16 %v4577, %v4569
        %v4668 = vpack.c.bf16 %v4578, %v4570
        %v4669 = vpack.c.bf16 %v4579, %v4571
        %v4670 = vld [vmem:[#allocation17] sm:$0xf]
        %v4671 = vld [vmem:[#allocation17 + $0x4] sm:$0xf]
        %v4672 = vld [vmem:[#allocation17 + $0x8] sm:$0xf]
        %v4673 = vld [vmem:[#allocation17 + $0xc] sm:$0xf]
        %v4674 = vld [vmem:[#allocation19] sm:$0xff]
        %v4675 = vld [vmem:[#allocation19 + $0x8] sm:$0xff]
        %v4676 = vld [vmem:[#allocation19 + $0x10] sm:$0xff]
        %v4677 = vld [vmem:[#allocation19 + $0x18] sm:$0xff]
        %4679 = vset.pattern.permute.xlu0 0
        %4680 = vperm.xlu0 %4679, %v4674
        %v4681 = vpop.permute.xlu0 %4680
        %4684 = vset.pattern.permute.xlu0 0
        %4685 = vperm.xlu0 %4684, %v4675
        %v4686 = vpop.permute.xlu0 %4685
        %4689 = vset.pattern.permute.xlu0 0
        %4690 = vperm.xlu0 %4689, %v4676
        %v4691 = vpop.permute.xlu0 %4690
        %4694 = vset.pattern.permute.xlu0 0
        %4695 = vperm.xlu0 %4694, %v4677
        %v4696 = vpop.permute.xlu0 %4695
        %v4702 = vunpack.c.l.b16 %v4670
        %v4703 = vunpack.c.l.b16 %v4671
        %v4704 = vunpack.c.l.b16 %v4672
        %v4705 = vunpack.c.l.b16 %v4673
        %v4706 = vpack.c.b16 %v4703, %v4702
        %v4707 = vpack.c.b16 %v4705, %v4704
        %4762 = vrot.lane.b32.xlu0 %v4616, 32
        %v4763 = vpop.permute.xlu0 %4762
        %4764 = vrot.lane.b32.xlu0 %v4617, 32
        %v4765 = vpop.permute.xlu0 %4764
        %4766 = vrot.lane.b32.xlu0 %v4618, 32
        %v4767 = vpop.permute.xlu0 %4766
        %4768 = vrot.lane.b32.xlu0 %v4619, 32
        %v4769 = vpop.permute.xlu0 %4768
        %4770 = vrot.lane.b32.xlu0 %v4620, 32
        %v4771 = vpop.permute.xlu0 %4770
        %4772 = vrot.lane.b32.xlu0 %v4621, 32
        %v4773 = vpop.permute.xlu0 %4772
        %4774 = vrot.lane.b32.xlu0 %v4622, 32
        %v4775 = vpop.permute.xlu0 %4774
        %4776 = vrot.lane.b32.xlu0 %v4623, 32
        %v4777 = vpop.permute.xlu0 %4776
        %4778 = vrot.lane.b32.xlu0 %v4624, 32
        %v4779 = vpop.permute.xlu0 %4778
        %4780 = vrot.lane.b32.xlu0 %v4625, 32
        %v4781 = vpop.permute.xlu0 %4780
        %4782 = vrot.lane.b32.xlu0 %v4626, 32
        %v4783 = vpop.permute.xlu0 %4782
        %4784 = vrot.lane.b32.xlu0 %v4627, 32
        %v4785 = vpop.permute.xlu0 %4784
        %4786 = vrot.lane.b32.xlu0 %v4628, 32
        %v4787 = vpop.permute.xlu0 %4786
        %4788 = vrot.lane.b32.xlu0 %v4629, 32
        %v4789 = vpop.permute.xlu0 %4788
        %4790 = vrot.lane.b32.xlu0 %v4630, 32
        %v4791 = vpop.permute.xlu0 %4790
        %4792 = vrot.lane.b32.xlu0 %v4631, 32
        %v4793 = vpop.permute.xlu0 %4792
        %4794 = vrot.lane.b32.xlu0 %v4632, 32
        %v4795 = vpop.permute.xlu0 %4794
        %4796 = vrot.lane.b32.xlu0 %v4633, 32
        %v4797 = vpop.permute.xlu0 %4796
        %4798 = vrot.lane.b32.xlu0 %v4634, 32
        %v4799 = vpop.permute.xlu0 %4798
        %4800 = vrot.lane.b32.xlu0 %v4635, 32
        %v4801 = vpop.permute.xlu0 %4800
        %4802 = vrot.lane.b32.xlu0 %v4636, 32
        %v4803 = vpop.permute.xlu0 %4802
        %4804 = vrot.lane.b32.xlu0 %v4637, 32
        %v4805 = vpop.permute.xlu0 %4804
        %4806 = vrot.lane.b32.xlu0 %v4638, 32
        %v4807 = vpop.permute.xlu0 %4806
        %4808 = vrot.lane.b32.xlu0 %v4639, 32
        %v4809 = vpop.permute.xlu0 %4808
        %4810 = vrot.lane.b32.xlu0 %v4640, 32
        %v4811 = vpop.permute.xlu0 %4810
        %4812 = vrot.lane.b32.xlu0 %v4641, 32
        %v4813 = vpop.permute.xlu0 %4812
        %4814 = vrot.lane.b32.xlu0 %v4642, 32
        %v4815 = vpop.permute.xlu0 %4814
        %4816 = vrot.lane.b32.xlu0 %v4643, 32
        %v4817 = vpop.permute.xlu0 %4816
        %4818 = vrot.lane.b32.xlu0 %v4644, 32
        %v4819 = vpop.permute.xlu0 %4818
        %4820 = vrot.lane.b32.xlu0 %v4645, 32
        %v4821 = vpop.permute.xlu0 %4820
        %4822 = vrot.lane.b32.xlu0 %v4646, 32
        %v4823 = vpop.permute.xlu0 %4822
        %4824 = vrot.lane.b32.xlu0 %v4647, 32
        %v4825 = vpop.permute.xlu0 %4824
        %4826 = vrot.lane.b32.xlu0 %v4648, 32
        %v4827 = vpop.permute.xlu0 %4826
        %4828 = vrot.lane.b32.xlu0 %v4649, 32
        %v4829 = vpop.permute.xlu0 %4828
        %4830 = vrot.lane.b32.xlu0 %v4650, 32
        %v4831 = vpop.permute.xlu0 %4830
        %4832 = vrot.lane.b32.xlu0 %v4651, 32
        %v4833 = vpop.permute.xlu0 %4832
        %4834 = vrot.lane.b32.xlu0 %v4652, 32
        %v4835 = vpop.permute.xlu0 %4834
        %4836 = vrot.lane.b32.xlu0 %v4653, 32
        %v4837 = vpop.permute.xlu0 %4836
        %4838 = vrot.lane.b32.xlu0 %v4654, 32
        %v4839 = vpop.permute.xlu0 %4838
        %4840 = vrot.lane.b32.xlu0 %v4655, 32
        %v4841 = vpop.permute.xlu0 %4840
        %4842 = vrot.lane.b32.xlu0 %v4656, 32
        %v4843 = vpop.permute.xlu0 %4842
        %4844 = vrot.lane.b32.xlu0 %v4657, 32
        %v4845 = vpop.permute.xlu0 %4844
        %4846 = vrot.lane.b32.xlu0 %v4658, 32
        %v4847 = vpop.permute.xlu0 %4846
        %4848 = vrot.lane.b32.xlu0 %v4659, 32
        %v4849 = vpop.permute.xlu0 %4848
        %4850 = vrot.lane.b32.xlu0 %v4660, 32
        %v4851 = vpop.permute.xlu0 %4850
        %4852 = vrot.lane.b32.xlu0 %v4661, 32
        %v4853 = vpop.permute.xlu0 %4852
        %4854 = vrot.lane.b32.xlu0 %v4662, 32
        %v4855 = vpop.permute.xlu0 %4854
        %4856 = vrot.lane.b32.xlu0 %v4663, 32
        %v4857 = vpop.permute.xlu0 %4856
        %4858 = vrot.lane.b32.xlu0 %v4664, 32
        %v4859 = vpop.permute.xlu0 %4858
        %4860 = vrot.lane.b32.xlu0 %v4665, 32
        %v4861 = vpop.permute.xlu0 %4860
        %4862 = vrot.lane.b32.xlu0 %v4666, 32
        %v4863 = vpop.permute.xlu0 %4862
        %4864 = vrot.lane.b32.xlu0 %v4667, 32
        %v4865 = vpop.permute.xlu0 %4864
        %4866 = vrot.lane.b32.xlu0 %v4668, 32
        %v4867 = vpop.permute.xlu0 %4866
        %4868 = vrot.lane.b32.xlu0 %v4669, 32
        %v4869 = vpop.permute.xlu0 %4868
        %vm4870 = vcmask 261120
        %v4871 = vsel %vm4870, %v4763, %v4765
        %v4872 = vsel %vm4870, %v4765, %v4767
        %v4873 = vsel %vm4870, %v4767, %v4769
        %v4874 = vsel %vm4870, %v4769, %v4771
        %v4875 = vsel %vm4870, %v4771, %v4773
        %v4876 = vsel %vm4870, %v4773, %v4775
        %v4877 = vsel %vm4870, %v4775, %v4777
        %v4878 = vsel %vm4870, %v4777, %v4779
        %v4879 = vsel %vm4870, %v4781, %v4783
        %v4880 = vsel %vm4870, %v4783, %v4785
        %v4881 = vsel %vm4870, %v4785, %v4787
        %v4882 = vsel %vm4870, %v4787, %v4789
        %v4883 = vsel %vm4870, %v4789, %v4791
        %v4884 = vsel %vm4870, %v4791, %v4793
        %v4885 = vsel %vm4870, %v4793, %v4795
        %v4886 = vsel %vm4870, %v4795, %v4797
        %v4887 = vsel %vm4870, %v4799, %v4801
        %v4888 = vsel %vm4870, %v4801, %v4803
        %v4889 = vsel %vm4870, %v4803, %v4805
        %v4890 = vsel %vm4870, %v4805, %v4807
        %v4891 = vsel %vm4870, %v4807, %v4809
        %v4892 = vsel %vm4870, %v4809, %v4811
        %v4893 = vsel %vm4870, %v4811, %v4813
        %v4894 = vsel %vm4870, %v4813, %v4815
        %v4895 = vsel %vm4870, %v4817, %v4819
        %v4896 = vsel %vm4870, %v4819, %v4821
        %v4897 = vsel %vm4870, %v4821, %v4823
        %v4898 = vsel %vm4870, %v4823, %v4825
        %v4899 = vsel %vm4870, %v4825, %v4827
        %v4900 = vsel %vm4870, %v4827, %v4829
        %v4901 = vsel %vm4870, %v4829, %v4831
        %v4902 = vsel %vm4870, %v4831, %v4833
        %v4903 = vsel %vm4870, %v4835, %v4837
        %v4904 = vsel %vm4870, %v4837, %v4839
        %v4905 = vsel %vm4870, %v4839, %v4841
        %v4906 = vsel %vm4870, %v4841, %v4843
        %v4907 = vsel %vm4870, %v4843, %v4845
        %v4908 = vsel %vm4870, %v4845, %v4847
        %v4909 = vsel %vm4870, %v4847, %v4849
        %v4910 = vsel %vm4870, %v4849, %v4851
        %v4911 = vsel %vm4870, %v4853, %v4855
        %v4912 = vsel %vm4870, %v4855, %v4857
        %v4913 = vsel %vm4870, %v4857, %v4859
        %v4914 = vsel %vm4870, %v4859, %v4861
        %v4915 = vsel %vm4870, %v4861, %v4863
        %v4916 = vsel %vm4870, %v4863, %v4865
        %v4917 = vsel %vm4870, %v4865, %v4867
        %v4918 = vsel %vm4870, %v4867, %v4869
        %v4968 = vsel %vm3505, %v4706, 0
        %v4971 = vsel %vm3505, %v4707, 0
        %4973 = vmatprep.subr.bf16.mxu0 0
        %4974 = vmatpush1.bf16.msra.mxu0 0
        %4975 = vmatprep.subr.bf16.mxu0 0
        %4976 = vmatpush1.bf16.msra.mxu0 0
        %4977 = vmatprep.subr.bf16.mxu0 %v4912
        %4978 = vmatpush1.bf16.msra.mxu0 %v4911
        %4979 = vmatprep.subr.bf16.mxu0 %v4904
        %4980 = vmatpush1.bf16.msra.mxu0 %v4903
        %4981 = vmatprep.subr.bf16.mxu0 %v4896
        %4982 = vmatpush1.bf16.msra.mxu0 %v4895
        %4983 = vmatprep.subr.bf16.mxu0 %v4888
        %4984 = vmatpush1.bf16.msra.mxu0 %v4887
        %4985 = vmatprep.subr.bf16.mxu0 %v4880
        %4986 = vmatpush1.bf16.msra.mxu0 %v4879
        %4987 = vmatprep.subr.bf16.mxu0 %v4872
        %4988 = vmatpush1.bf16.msra.mxu0 %v4871
        %4989 = vmatprep.subr.bf16.mxu0 0
        %4990 = vmatpush2.bf16.msra.mxu0 0
        %4991 = vmatprep.subr.bf16.mxu0 0
        %4992 = vmatpush2.bf16.msra.mxu0 0
        %4993 = vmatprep.subr.bf16.mxu0 0
        %4994 = vmatpush2.bf16.msra.mxu0 0
        %4995 = vmatprep.subr.bf16.mxu0 0
        %4996 = vmatpush2.bf16.msra.mxu0 0
        %4997 = vmatprep.subr.bf16.mxu0 0
        %4998 = vmatpush2.bf16.msra.mxu0 0
        %4999 = vmatprep.subr.bf16.mxu0 0
        %5000 = vmatpush2.bf16.msra.mxu0 0
        %5001 = vmatprep.subr.bf16.mxu0 0
        %5002 = vmatpush2.bf16.msra.mxu0 0
        %5003 = vmatprep.subr.bf16.mxu0 0
        %5004 = vmatpush2.bf16.msra.mxu0 0
        %5005 = vmatprep.mubr.bf16.mxu0 0
        %5006 = vmatmul.mubr.bf16.gmra.mxu0 %v4968
        %v5007 = vpop.f32.mrf.mxu0
        %v5008 = vadd.f32 %v4681, %v5007
        %v5009 = vpop.f32.mrf.mxu0
        %v5010 = vadd.f32 %v4681, %v5009
        %v5011 = vpop.f32.mrf.mxu0
        %v5012 = vadd.f32 %v4686, %v5011
        %v5013 = vpop.f32.mrf.mxu0
        %v5014 = vadd.f32 %v4686, %v5013
        %5015 = vmatprep.mubr.bf16.mxu0 0
        %5016 = vmatmul.mubr.bf16.gmra.mxu0 %v4971
        %v5017 = vpop.f32.mrf.mxu0
        %v5018 = vadd.f32 %v4691, %v5017
        %v5019 = vpop.f32.mrf.mxu0
        %v5020 = vadd.f32 %v4691, %v5019
        %v5021 = vpop.f32.mrf.mxu0
        %v5022 = vadd.f32 %v4696, %v5021
        %v5023 = vpop.f32.mrf.mxu0
        %v5024 = vadd.f32 %v4696, %v5023
        %5025 = vdwg.mxu0
        %5026 = vmatprep.subr.bf16.mxu0 0
        %5027 = vmatpush1.bf16.msra.mxu0 0
        %5028 = vmatprep.subr.bf16.mxu0 0
        %5029 = vmatpush1.bf16.msra.mxu0 0
        %5030 = vmatprep.subr.bf16.mxu0 %v4914
        %5031 = vmatpush1.bf16.msra.mxu0 %v4913
        %5032 = vmatprep.subr.bf16.mxu0 %v4906
        %5033 = vmatpush1.bf16.msra.mxu0 %v4905
        %5034 = vmatprep.subr.bf16.mxu0 %v4898
        %5035 = vmatpush1.bf16.msra.mxu0 %v4897
        %5036 = vmatprep.subr.bf16.mxu0 %v4890
        %5037 = vmatpush1.bf16.msra.mxu0 %v4889
        %5038 = vmatprep.subr.bf16.mxu0 %v4882
        %5039 = vmatpush1.bf16.msra.mxu0 %v4881
        %5040 = vmatprep.subr.bf16.mxu0 %v4874
        %5041 = vmatpush1.bf16.msra.mxu0 %v4873
        %5042 = vmatprep.subr.bf16.mxu0 0
        %5043 = vmatpush2.bf16.msra.mxu0 0
        %5044 = vmatprep.subr.bf16.mxu0 0
        %5045 = vmatpush2.bf16.msra.mxu0 0
        %5046 = vmatprep.subr.bf16.mxu0 0
        %5047 = vmatpush2.bf16.msra.mxu0 0
        %5048 = vmatprep.subr.bf16.mxu0 0
        %5049 = vmatpush2.bf16.msra.mxu0 0
        %5050 = vmatprep.subr.bf16.mxu0 0
        %5051 = vmatpush2.bf16.msra.mxu0 0
        %5052 = vmatprep.subr.bf16.mxu0 0
        %5053 = vmatpush2.bf16.msra.mxu0 0
        %5054 = vmatprep.subr.bf16.mxu0 0
        %5055 = vmatpush2.bf16.msra.mxu0 0
        %5056 = vmatprep.subr.bf16.mxu0 0
        %5057 = vmatpush2.bf16.msra.mxu0 0
        %5058 = vmatprep.mubr.bf16.mxu0 0
        %5059 = vmatmul.mubr.bf16.gmra.mxu0 %v4968
        %v5060 = vpop.f32.mrf.mxu0
        %v5061 = vadd.f32 %v4681, %v5060
        %v5062 = vpop.f32.mrf.mxu0
        %v5063 = vadd.f32 %v4681, %v5062
        %v5064 = vpop.f32.mrf.mxu0
        %v5065 = vadd.f32 %v4686, %v5064
        %v5066 = vpop.f32.mrf.mxu0
        %v5067 = vadd.f32 %v4686, %v5066
        %5068 = vmatprep.mubr.bf16.mxu0 0
        %5069 = vmatmul.mubr.bf16.gmra.mxu0 %v4971
        %v5070 = vpop.f32.mrf.mxu0
        %v5071 = vadd.f32 %v4691, %v5070
        %v5072 = vpop.f32.mrf.mxu0
        %v5073 = vadd.f32 %v4691, %v5072
        %v5074 = vpop.f32.mrf.mxu0
        %v5075 = vadd.f32 %v4696, %v5074
        %v5076 = vpop.f32.mrf.mxu0
        %v5077 = vadd.f32 %v4696, %v5076
        %5078 = vdwg.mxu0
        %5079 = vmatprep.subr.bf16.mxu0 0
        %5080 = vmatpush1.bf16.msra.mxu0 0
        %5081 = vmatprep.subr.bf16.mxu0 0
        %5082 = vmatpush1.bf16.msra.mxu0 0
        %5083 = vmatprep.subr.bf16.mxu0 %v4916
        %5084 = vmatpush1.bf16.msra.mxu0 %v4915
        %5085 = vmatprep.subr.bf16.mxu0 %v4908
        %5086 = vmatpush1.bf16.msra.mxu0 %v4907
        %5087 = vmatprep.subr.bf16.mxu0 %v4900
        %5088 = vmatpush1.bf16.msra.mxu0 %v4899
        %5089 = vmatprep.subr.bf16.mxu0 %v4892
        %5090 = vmatpush1.bf16.msra.mxu0 %v4891
        %5091 = vmatprep.subr.bf16.mxu0 %v4884
        %5092 = vmatpush1.bf16.msra.mxu0 %v4883
        %5093 = vmatprep.subr.bf16.mxu0 %v4876
        %5094 = vmatpush1.bf16.msra.mxu0 %v4875
        %5095 = vmatprep.subr.bf16.mxu0 0
        %5096 = vmatpush2.bf16.msra.mxu0 0
        %5097 = vmatprep.subr.bf16.mxu0 0
        %5098 = vmatpush2.bf16.msra.mxu0 0
        %5099 = vmatprep.subr.bf16.mxu0 0
        %5100 = vmatpush2.bf16.msra.mxu0 0
        %5101 = vmatprep.subr.bf16.mxu0 0
        %5102 = vmatpush2.bf16.msra.mxu0 0
        %5103 = vmatprep.subr.bf16.mxu0 0
        %5104 = vmatpush2.bf16.msra.mxu0 0
        %5105 = vmatprep.subr.bf16.mxu0 0
        %5106 = vmatpush2.bf16.msra.mxu0 0
        %5107 = vmatprep.subr.bf16.mxu0 0
        %5108 = vmatpush2.bf16.msra.mxu0 0
        %5109 = vmatprep.subr.bf16.mxu0 0
        %5110 = vmatpush2.bf16.msra.mxu0 0
        %5111 = vmatprep.mubr.bf16.mxu0 0
        %5112 = vmatmul.mubr.bf16.gmra.mxu0 %v4968
        %v5113 = vpop.f32.mrf.mxu0
        %v5114 = vadd.f32 %v4681, %v5113
        %v5115 = vpop.f32.mrf.mxu0
        %v5116 = vadd.f32 %v4681, %v5115
        %v5117 = vpop.f32.mrf.mxu0
        %v5118 = vadd.f32 %v4686, %v5117
        %v5119 = vpop.f32.mrf.mxu0
        %v5120 = vadd.f32 %v4686, %v5119
        %5121 = vmatprep.mubr.bf16.mxu0 0
        %5122 = vmatmul.mubr.bf16.gmra.mxu0 %v4971
        %v5123 = vpop.f32.mrf.mxu0
        %v5124 = vadd.f32 %v4691, %v5123
        %v5125 = vpop.f32.mrf.mxu0
        %v5126 = vadd.f32 %v4691, %v5125
        %v5127 = vpop.f32.mrf.mxu0
        %v5128 = vadd.f32 %v4696, %v5127
        %v5129 = vpop.f32.mrf.mxu0
        %v5130 = vadd.f32 %v4696, %v5129
        %5131 = vdwg.mxu0
        %5132 = vmatprep.subr.bf16.mxu0 0
        %5133 = vmatpush1.bf16.msra.mxu0 0
        %5134 = vmatprep.subr.bf16.mxu0 0
        %5135 = vmatpush1.bf16.msra.mxu0 0
        %5136 = vmatprep.subr.bf16.mxu0 %v4918
        %5137 = vmatpush1.bf16.msra.mxu0 %v4917
        %5138 = vmatprep.subr.bf16.mxu0 %v4910
        %5139 = vmatpush1.bf16.msra.mxu0 %v4909
        %5140 = vmatprep.subr.bf16.mxu0 %v4902
        %5141 = vmatpush1.bf16.msra.mxu0 %v4901
        %5142 = vmatprep.subr.bf16.mxu0 %v4894
        %5143 = vmatpush1.bf16.msra.mxu0 %v4893
        %5144 = vmatprep.subr.bf16.mxu0 %v4886
        %5145 = vmatpush1.bf16.msra.mxu0 %v4885
        %5146 = vmatprep.subr.bf16.mxu0 %v4878
        %5147 = vmatpush1.bf16.msra.mxu0 %v4877
        %5148 = vmatprep.subr.bf16.mxu0 0
        %5149 = vmatpush2.bf16.msra.mxu0 0
        %5150 = vmatprep.subr.bf16.mxu0 0
        %5151 = vmatpush2.bf16.msra.mxu0 0
        %5152 = vmatprep.subr.bf16.mxu0 0
        %5153 = vmatpush2.bf16.msra.mxu0 0
        %5154 = vmatprep.subr.bf16.mxu0 0
        %5155 = vmatpush2.bf16.msra.mxu0 0
        %5156 = vmatprep.subr.bf16.mxu0 0
        %5157 = vmatpush2.bf16.msra.mxu0 0
        %5158 = vmatprep.subr.bf16.mxu0 0
        %5159 = vmatpush2.bf16.msra.mxu0 0
        %5160 = vmatprep.subr.bf16.mxu0 0
        %5161 = vmatpush2.bf16.msra.mxu0 0
        %5162 = vmatprep.subr.bf16.mxu0 0
        %5163 = vmatpush2.bf16.msra.mxu0 0
        %5164 = vmatprep.mubr.bf16.mxu0 0
        %5165 = vmatmul.mubr.bf16.gmra.mxu0 %v4968
        %v5166 = vpop.f32.mrf.mxu0
        %v5167 = vadd.f32 %v4681, %v5166
        %v5168 = vpop.f32.mrf.mxu0
        %v5169 = vadd.f32 %v4681, %v5168
        %v5170 = vpop.f32.mrf.mxu0
        %v5171 = vadd.f32 %v4686, %v5170
        %v5172 = vpop.f32.mrf.mxu0
        %v5173 = vadd.f32 %v4686, %v5172
        %5174 = vmatprep.mubr.bf16.mxu0 0
        %5175 = vmatmul.mubr.bf16.gmra.mxu0 %v4971
        %v5176 = vpop.f32.mrf.mxu0
        %v5177 = vadd.f32 %v4691, %v5176
        %v5178 = vpop.f32.mrf.mxu0
        %v5179 = vadd.f32 %v4691, %v5178
        %v5180 = vpop.f32.mrf.mxu0
        %v5181 = vadd.f32 %v4696, %v5180
        %v5182 = vpop.f32.mrf.mxu0
        %v5183 = vadd.f32 %v4696, %v5182
        %5184 = vdwg.mxu0
        %v5185 = vmax.f32 %v5008, 0.0
        %v5186 = vmax.f32 %v5010, 0.0
        %v5187 = vmax.f32 %v5061, 0.0
        %v5188 = vmax.f32 %v5063, 0.0
        %v5189 = vmax.f32 %v5114, 0.0
        %v5190 = vmax.f32 %v5116, 0.0
        %v5191 = vmax.f32 %v5167, 0.0
        %v5192 = vmax.f32 %v5169, 0.0
        %v5193 = vmax.f32 %v5012, 0.0
        %v5194 = vmax.f32 %v5014, 0.0
        %v5195 = vmax.f32 %v5065, 0.0
        %v5196 = vmax.f32 %v5067, 0.0
        %v5197 = vmax.f32 %v5118, 0.0
        %v5198 = vmax.f32 %v5120, 0.0
        %v5199 = vmax.f32 %v5171, 0.0
        %v5200 = vmax.f32 %v5173, 0.0
        %v5201 = vmax.f32 %v5018, 0.0
        %v5202 = vmax.f32 %v5020, 0.0
        %v5203 = vmax.f32 %v5071, 0.0
        %v5204 = vmax.f32 %v5073, 0.0
        %v5205 = vmax.f32 %v5124, 0.0
        %v5206 = vmax.f32 %v5126, 0.0
        %v5207 = vmax.f32 %v5177, 0.0
        %v5208 = vmax.f32 %v5179, 0.0
        %v5209 = vmax.f32 %v5022, 0.0
        %v5210 = vmax.f32 %v5024, 0.0
        %v5211 = vmax.f32 %v5075, 0.0
        %v5212 = vmax.f32 %v5077, 0.0
        %v5213 = vmax.f32 %v5128, 0.0
        %v5214 = vmax.f32 %v5130, 0.0
        %v5215 = vmax.f32 %v5181, 0.0
        %v5216 = vmax.f32 %v5183, 0.0
        %5217 = vst [vmem:[#allocation2 + $0x8] sm:$0xff] %v5185
        %5218 = vst [vmem:[#allocation2 + $0x10] sm:$0xff] %v5186
        %5219 = vst [vmem:[#allocation2 + $0x18] sm:$0xff] %v5187
        %5220 = vst [vmem:[#allocation2 + $0x20] sm:$0xff] %v5188
        %5221 = vst [vmem:[#allocation2 + $0x28] sm:$0xff] %v5189
        %5222 = vst [vmem:[#allocation2 + $0x30] sm:$0xff] %v5190
        %5223 = vst [vmem:[#allocation2 + $0x38] sm:$0xff] %v5191
        %5224 = vst [vmem:[#allocation2 + $0x40] sm:$0xff] %v5192
        %5225 = vst [vmem:[#allocation2 + $0x58] sm:$0xff] %v5193
        %5226 = vst [vmem:[#allocation2 + $0x60] sm:$0xff] %v5194
        %5227 = vst [vmem:[#allocation2 + $0x68] sm:$0xff] %v5195
        %5228 = vst [vmem:[#allocation2 + $0x70] sm:$0xff] %v5196
        %5229 = vst [vmem:[#allocation2 + $0x78] sm:$0xff] %v5197
        %5230 = vst [vmem:[#allocation2 + $0x80] sm:$0xff] %v5198
        %5231 = vst [vmem:[#allocation2 + $0x88] sm:$0xff] %v5199
        %5232 = vst [vmem:[#allocation2 + $0x90] sm:$0xff] %v5200
        %5233 = vst [vmem:[#allocation2 + $0xa8] sm:$0xff] %v5201
        %5234 = vst [vmem:[#allocation2 + $0xb0] sm:$0xff] %v5202
        %5235 = vst [vmem:[#allocation2 + $0xb8] sm:$0xff] %v5203
        %5236 = vst [vmem:[#allocation2 + $0xc0] sm:$0xff] %v5204
        %5237 = vst [vmem:[#allocation2 + $0xc8] sm:$0xff] %v5205
        %5238 = vst [vmem:[#allocation2 + $0xd0] sm:$0xff] %v5206
        %5239 = vst [vmem:[#allocation2 + $0xd8] sm:$0xff] %v5207
        %5240 = vst [vmem:[#allocation2 + $0xe0] sm:$0xff] %v5208
        %5241 = vst [vmem:[#allocation2 + $0xf8] sm:$0xff] %v5209
        %5242 = vst [vmem:[#allocation2 + $0x100] sm:$0xff] %v5210
        %5243 = vst [vmem:[#allocation2 + $0x108] sm:$0xff] %v5211
        %5244 = vst [vmem:[#allocation2 + $0x110] sm:$0xff] %v5212
        %5245 = vst [vmem:[#allocation2 + $0x118] sm:$0xff] %v5213
        %5246 = vst [vmem:[#allocation2 + $0x120] sm:$0xff] %v5214
        %5247 = vst [vmem:[#allocation2 + $0x128] sm:$0xff] %v5215
        %5248 = vst [vmem:[#allocation2 + $0x130] sm:$0xff] %v5216
        %v5249 = vld [vmem:[#allocation2] sm:$0xff]
        %v5250 = vld [vmem:[#allocation2 + $0x8] sm:$0xff]
        %v5251 = vld [vmem:[#allocation2 + $0x10] sm:$0xff]
        %v5252 = vld [vmem:[#allocation2 + $0x18] sm:$0xff]
        %v5253 = vld [vmem:[#allocation2 + $0x20] sm:$0xff]
        %v5254 = vld [vmem:[#allocation2 + $0x28] sm:$0xff]
        %v5255 = vld [vmem:[#allocation2 + $0x30] sm:$0xff]
        %v5256 = vld [vmem:[#allocation2 + $0x38] sm:$0xff]
        %v5257 = vld [vmem:[#allocation2 + $0x40] sm:$0xff]
        %v5258 = vld [vmem:[#allocation2 + $0x50] sm:$0xff]
        %v5259 = vld [vmem:[#allocation2 + $0x58] sm:$0xff]
        %v5260 = vld [vmem:[#allocation2 + $0x60] sm:$0xff]
        %v5261 = vld [vmem:[#allocation2 + $0x68] sm:$0xff]
        %v5262 = vld [vmem:[#allocation2 + $0x70] sm:$0xff]
        %v5263 = vld [vmem:[#allocation2 + $0x78] sm:$0xff]
        %v5264 = vld [vmem:[#allocation2 + $0x80] sm:$0xff]
        %v5265 = vld [vmem:[#allocation2 + $0x88] sm:$0xff]
        %v5266 = vld [vmem:[#allocation2 + $0x90] sm:$0xff]
        %v5267 = vld [vmem:[#allocation2 + $0xa0] sm:$0xff]
        %v5268 = vld [vmem:[#allocation2 + $0xa8] sm:$0xff]
        %v5269 = vld [vmem:[#allocation2 + $0xb0] sm:$0xff]
        %v5270 = vld [vmem:[#allocation2 + $0xb8] sm:$0xff]
        %v5271 = vld [vmem:[#allocation2 + $0xc0] sm:$0xff]
        %v5272 = vld [vmem:[#allocation2 + $0xc8] sm:$0xff]
        %v5273 = vld [vmem:[#allocation2 + $0xd0] sm:$0xff]
        %v5274 = vld [vmem:[#allocation2 + $0xd8] sm:$0xff]
        %v5275 = vld [vmem:[#allocation2 + $0xe0] sm:$0xff]
        %v5276 = vld [vmem:[#allocation2 + $0xf0] sm:$0xff]
        %v5277 = vld [vmem:[#allocation2 + $0xf8] sm:$0xff]
        %v5278 = vld [vmem:[#allocation2 + $0x100] sm:$0xff]
        %v5279 = vld [vmem:[#allocation2 + $0x108] sm:$0xff]
        %v5280 = vld [vmem:[#allocation2 + $0x110] sm:$0xff]
        %v5281 = vld [vmem:[#allocation2 + $0x118] sm:$0xff]
        %v5282 = vld [vmem:[#allocation2 + $0x120] sm:$0xff]
        %v5283 = vld [vmem:[#allocation2 + $0x128] sm:$0xff]
        %v5284 = vld [vmem:[#allocation2 + $0x130] sm:$0xff]
        %v5285 = vld [vmem:[#allocation2 + $0x8] sm:$0xff]
        %v5286 = vld [vmem:[#allocation2 + $0x10] sm:$0xff]
        %v5287 = vld [vmem:[#allocation2 + $0x18] sm:$0xff]
        %v5288 = vld [vmem:[#allocation2 + $0x20] sm:$0xff]
        %v5289 = vld [vmem:[#allocation2 + $0x28] sm:$0xff]
        %v5290 = vld [vmem:[#allocation2 + $0x30] sm:$0xff]
        %v5291 = vld [vmem:[#allocation2 + $0x38] sm:$0xff]
        %v5292 = vld [vmem:[#allocation2 + $0x40] sm:$0xff]
        %v5293 = vld [vmem:[#allocation2 + $0x48] sm:$0xff]
        %v5294 = vld [vmem:[#allocation2 + $0x58] sm:$0xff]
        %v5295 = vld [vmem:[#allocation2 + $0x60] sm:$0xff]
        %v5296 = vld [vmem:[#allocation2 + $0x68] sm:$0xff]
        %v5297 = vld [vmem:[#allocation2 + $0x70] sm:$0xff]
        %v5298 = vld [vmem:[#allocation2 + $0x78] sm:$0xff]
        %v5299 = vld [vmem:[#allocation2 + $0x80] sm:$0xff]
        %v5300 = vld [vmem:[#allocation2 + $0x88] sm:$0xff]
        %v5301 = vld [vmem:[#allocation2 + $0x90] sm:$0xff]
        %v5302 = vld [vmem:[#allocation2 + $0x98] sm:$0xff]
        %v5303 = vld [vmem:[#allocation2 + $0xa8] sm:$0xff]
        %v5304 = vld [vmem:[#allocation2 + $0xb0] sm:$0xff]
        %v5305 = vld [vmem:[#allocation2 + $0xb8] sm:$0xff]
        %v5306 = vld [vmem:[#allocation2 + $0xc0] sm:$0xff]
        %v5307 = vld [vmem:[#allocation2 + $0xc8] sm:$0xff]
        %v5308 = vld [vmem:[#allocation2 + $0xd0] sm:$0xff]
        %v5309 = vld [vmem:[#allocation2 + $0xd8] sm:$0xff]
        %v5310 = vld [vmem:[#allocation2 + $0xe0] sm:$0xff]
        %v5311 = vld [vmem:[#allocation2 + $0xe8] sm:$0xff]
        %v5312 = vld [vmem:[#allocation2 + $0xf8] sm:$0xff]
        %v5313 = vld [vmem:[#allocation2 + $0x100] sm:$0xff]
        %v5314 = vld [vmem:[#allocation2 + $0x108] sm:$0xff]
        %v5315 = vld [vmem:[#allocation2 + $0x110] sm:$0xff]
        %v5316 = vld [vmem:[#allocation2 + $0x118] sm:$0xff]
        %v5317 = vld [vmem:[#allocation2 + $0x120] sm:$0xff]
        %v5318 = vld [vmem:[#allocation2 + $0x128] sm:$0xff]
        %v5319 = vld [vmem:[#allocation2 + $0x130] sm:$0xff]
        %v5320 = vld [vmem:[#allocation2 + $0x138] sm:$0xff]
        %5353 = vrot.lane.b32.xlu0 %v5250, 64
        %v5354 = vpop.permute.xlu0 %5353
        %5355 = vrot.lane.b32.xlu0 %v5251, 64
        %v5356 = vpop.permute.xlu0 %5355
        %5357 = vrot.lane.b32.xlu0 %v5252, 64
        %v5358 = vpop.permute.xlu0 %5357
        %5359 = vrot.lane.b32.xlu0 %v5253, 64
        %v5360 = vpop.permute.xlu0 %5359
        %5361 = vrot.lane.b32.xlu0 %v5254, 64
        %v5362 = vpop.permute.xlu0 %5361
        %5363 = vrot.lane.b32.xlu0 %v5255, 64
        %v5364 = vpop.permute.xlu0 %5363
        %5365 = vrot.lane.b32.xlu0 %v5256, 64
        %v5366 = vpop.permute.xlu0 %5365
        %5367 = vrot.lane.b32.xlu0 %v5257, 64
        %v5368 = vpop.permute.xlu0 %5367
        %5369 = vrot.lane.b32.xlu0 %v5259, 64
        %v5370 = vpop.permute.xlu0 %5369
        %5371 = vrot.lane.b32.xlu0 %v5260, 64
        %v5372 = vpop.permute.xlu0 %5371
        %5373 = vrot.lane.b32.xlu0 %v5261, 64
        %v5374 = vpop.permute.xlu0 %5373
        %5375 = vrot.lane.b32.xlu0 %v5262, 64
        %v5376 = vpop.permute.xlu0 %5375
        %5377 = vrot.lane.b32.xlu0 %v5263, 64
        %v5378 = vpop.permute.xlu0 %5377
        %5379 = vrot.lane.b32.xlu0 %v5264, 64
        %v5380 = vpop.permute.xlu0 %5379
        %5381 = vrot.lane.b32.xlu0 %v5265, 64
        %v5382 = vpop.permute.xlu0 %5381
        %5383 = vrot.lane.b32.xlu0 %v5266, 64
        %v5384 = vpop.permute.xlu0 %5383
        %5385 = vrot.lane.b32.xlu0 %v5268, 64
        %v5386 = vpop.permute.xlu0 %5385
        %5387 = vrot.lane.b32.xlu0 %v5269, 64
        %v5388 = vpop.permute.xlu0 %5387
        %5389 = vrot.lane.b32.xlu0 %v5270, 64
        %v5390 = vpop.permute.xlu0 %5389
        %5391 = vrot.lane.b32.xlu0 %v5271, 64
        %v5392 = vpop.permute.xlu0 %5391
        %5393 = vrot.lane.b32.xlu0 %v5272, 64
        %v5394 = vpop.permute.xlu0 %5393
        %5395 = vrot.lane.b32.xlu0 %v5273, 64
        %v5396 = vpop.permute.xlu0 %5395
        %5397 = vrot.lane.b32.xlu0 %v5274, 64
        %v5398 = vpop.permute.xlu0 %5397
        %5399 = vrot.lane.b32.xlu0 %v5275, 64
        %v5400 = vpop.permute.xlu0 %5399
        %5401 = vrot.lane.b32.xlu0 %v5277, 64
        %v5402 = vpop.permute.xlu0 %5401
        %5403 = vrot.lane.b32.xlu0 %v5278, 64
        %v5404 = vpop.permute.xlu0 %5403
        %5405 = vrot.lane.b32.xlu0 %v5279, 64
        %v5406 = vpop.permute.xlu0 %5405
        %5407 = vrot.lane.b32.xlu0 %v5280, 64
        %v5408 = vpop.permute.xlu0 %5407
        %5409 = vrot.lane.b32.xlu0 %v5281, 64
        %v5410 = vpop.permute.xlu0 %5409
        %5411 = vrot.lane.b32.xlu0 %v5282, 64
        %v5412 = vpop.permute.xlu0 %5411
        %5413 = vrot.lane.b32.xlu0 %v5283, 64
        %v5414 = vpop.permute.xlu0 %5413
        %5415 = vrot.lane.b32.xlu0 %v5284, 64
        %v5416 = vpop.permute.xlu0 %5415
        %v5417 = vsel %vm4547, %v5354, %v5356
        %v5418 = vsel %vm4547, %v5356, %v5358
        %v5419 = vsel %vm4547, %v5358, %v5360
        %v5420 = vsel %vm4547, %v5360, %v5362
        %v5421 = vsel %vm4547, %v5362, %v5364
        %v5422 = vsel %vm4547, %v5364, %v5366
        %v5423 = vsel %vm4547, %v5366, %v5368
        %v5424 = vsel %vm4547, %v5370, %v5372
        %v5425 = vsel %vm4547, %v5372, %v5374
        %v5426 = vsel %vm4547, %v5374, %v5376
        %v5427 = vsel %vm4547, %v5376, %v5378
        %v5428 = vsel %vm4547, %v5378, %v5380
        %v5429 = vsel %vm4547, %v5380, %v5382
        %v5430 = vsel %vm4547, %v5382, %v5384
        %v5431 = vsel %vm4547, %v5386, %v5388
        %v5432 = vsel %vm4547, %v5388, %v5390
        %v5433 = vsel %vm4547, %v5390, %v5392
        %v5434 = vsel %vm4547, %v5392, %v5394
        %v5435 = vsel %vm4547, %v5394, %v5396
        %v5436 = vsel %vm4547, %v5396, %v5398
        %v5437 = vsel %vm4547, %v5398, %v5400
        %v5438 = vsel %vm4547, %v5402, %v5404
        %v5439 = vsel %vm4547, %v5404, %v5406
        %v5440 = vsel %vm4547, %v5406, %v5408
        %v5441 = vsel %vm4547, %v5408, %v5410
        %v5442 = vsel %vm4547, %v5410, %v5412
        %v5443 = vsel %vm4547, %v5412, %v5414
        %v5444 = vsel %vm4547, %v5414, %v5416
        %v5481 = vpack.c.bf16 %v5258, %v5249
        %v5482 = vpack.c.bf16 %v5259, %v5250
        %v5483 = vpack.c.bf16 %v5260, %v5251
        %v5484 = vpack.c.bf16 %v5261, %v5252
        %v5485 = vpack.c.bf16 %v5262, %v5253
        %v5486 = vpack.c.bf16 %v5263, %v5254
        %v5487 = vpack.c.bf16 %v5264, %v5255
        %v5488 = vpack.c.bf16 %v5265, %v5256
        %v5489 = vpack.c.bf16 %v5266, %v5257
        %v5490 = vpack.c.bf16 %v5276, %v5267
        %v5491 = vpack.c.bf16 %v5277, %v5268
        %v5492 = vpack.c.bf16 %v5278, %v5269
        %v5493 = vpack.c.bf16 %v5279, %v5270
        %v5494 = vpack.c.bf16 %v5280, %v5271
        %v5495 = vpack.c.bf16 %v5281, %v5272
        %v5496 = vpack.c.bf16 %v5282, %v5273
        %v5497 = vpack.c.bf16 %v5283, %v5274
        %v5498 = vpack.c.bf16 %v5284, %v5275
        %v5499 = vpack.c.bf16 %v5370, %v5354
        %v5500 = vpack.c.bf16 %v5424, %v5417
        %v5501 = vpack.c.bf16 %v5425, %v5418
        %v5502 = vpack.c.bf16 %v5426, %v5419
        %v5503 = vpack.c.bf16 %v5427, %v5420
        %v5504 = vpack.c.bf16 %v5428, %v5421
        %v5505 = vpack.c.bf16 %v5429, %v5422
        %v5506 = vpack.c.bf16 %v5430, %v5423
        %v5507 = vpack.c.bf16 %v5384, %v5368
        %v5508 = vpack.c.bf16 %v5402, %v5386
        %v5509 = vpack.c.bf16 %v5438, %v5431
        %v5510 = vpack.c.bf16 %v5439, %v5432
        %v5511 = vpack.c.bf16 %v5440, %v5433
        %v5512 = vpack.c.bf16 %v5441, %v5434
        %v5513 = vpack.c.bf16 %v5442, %v5435
        %v5514 = vpack.c.bf16 %v5443, %v5436
        %v5515 = vpack.c.bf16 %v5444, %v5437
        %v5516 = vpack.c.bf16 %v5416, %v5400
        %v5517 = vpack.c.bf16 %v5294, %v5285
        %v5518 = vpack.c.bf16 %v5295, %v5286
        %v5519 = vpack.c.bf16 %v5296, %v5287
        %v5520 = vpack.c.bf16 %v5297, %v5288
        %v5521 = vpack.c.bf16 %v5298, %v5289
        %v5522 = vpack.c.bf16 %v5299, %v5290
        %v5523 = vpack.c.bf16 %v5300, %v5291
        %v5524 = vpack.c.bf16 %v5301, %v5292
        %v5525 = vpack.c.bf16 %v5302, %v5293
        %v5526 = vpack.c.bf16 %v5312, %v5303
        %v5527 = vpack.c.bf16 %v5313, %v5304
        %v5528 = vpack.c.bf16 %v5314, %v5305
        %v5529 = vpack.c.bf16 %v5315, %v5306
        %v5530 = vpack.c.bf16 %v5316, %v5307
        %v5531 = vpack.c.bf16 %v5317, %v5308
        %v5532 = vpack.c.bf16 %v5318, %v5309
        %v5533 = vpack.c.bf16 %v5319, %v5310
        %v5534 = vpack.c.bf16 %v5320, %v5311
        %v5535 = vld [vmem:[#allocation20] sm:$0xf]
        %v5536 = vld [vmem:[#allocation20 + $0x4] sm:$0xf]
        %v5537 = vld [vmem:[%s12] sm:$0xff]
        %v5538 = vld [vmem:[%s12 + $0x8] sm:$0xff]
        %5540 = vset.pattern.permute.xlu0 0
        %5541 = vperm.xlu0 %5540, %v5537
        %v5542 = vpop.permute.xlu0 %5541
        %5545 = vset.pattern.permute.xlu0 0
        %5546 = vperm.xlu0 %5545, %v5538
        %v5547 = vpop.permute.xlu0 %5546
        %v5551 = vunpack.c.l.b16 %v5535
        %v5552 = vunpack.c.l.b16 %v5536
        %v5553 = vpack.c.b16 %v5552, %v5551
        %5608 = vrot.lane.b32.xlu0 %v5481, 64
        %v5609 = vpop.permute.xlu0 %5608
        %5610 = vrot.lane.b32.xlu0 %v5482, 64
        %v5611 = vpop.permute.xlu0 %5610
        %5612 = vrot.lane.b32.xlu0 %v5483, 64
        %v5613 = vpop.permute.xlu0 %5612
        %5614 = vrot.lane.b32.xlu0 %v5484, 64
        %v5615 = vpop.permute.xlu0 %5614
        %5616 = vrot.lane.b32.xlu0 %v5485, 64
        %v5617 = vpop.permute.xlu0 %5616
        %5618 = vrot.lane.b32.xlu0 %v5486, 64
        %v5619 = vpop.permute.xlu0 %5618
        %5620 = vrot.lane.b32.xlu0 %v5487, 64
        %v5621 = vpop.permute.xlu0 %5620
        %5622 = vrot.lane.b32.xlu0 %v5488, 64
        %v5623 = vpop.permute.xlu0 %5622
        %5624 = vrot.lane.b32.xlu0 %v5489, 64
        %v5625 = vpop.permute.xlu0 %5624
        %5626 = vrot.lane.b32.xlu0 %v5490, 64
        %v5627 = vpop.permute.xlu0 %5626
        %5628 = vrot.lane.b32.xlu0 %v5491, 64
        %v5629 = vpop.permute.xlu0 %5628
        %5630 = vrot.lane.b32.xlu0 %v5492, 64
        %v5631 = vpop.permute.xlu0 %5630
        %5632 = vrot.lane.b32.xlu0 %v5493, 64
        %v5633 = vpop.permute.xlu0 %5632
        %5634 = vrot.lane.b32.xlu0 %v5494, 64
        %v5635 = vpop.permute.xlu0 %5634
        %5636 = vrot.lane.b32.xlu0 %v5495, 64
        %v5637 = vpop.permute.xlu0 %5636
        %5638 = vrot.lane.b32.xlu0 %v5496, 64
        %v5639 = vpop.permute.xlu0 %5638
        %5640 = vrot.lane.b32.xlu0 %v5497, 64
        %v5641 = vpop.permute.xlu0 %5640
        %5642 = vrot.lane.b32.xlu0 %v5498, 64
        %v5643 = vpop.permute.xlu0 %5642
        %5644 = vrot.lane.b32.xlu0 %v5499, 64
        %v5645 = vpop.permute.xlu0 %5644
        %5646 = vrot.lane.b32.xlu0 %v5500, 64
        %v5647 = vpop.permute.xlu0 %5646
        %5648 = vrot.lane.b32.xlu0 %v5501, 64
        %v5649 = vpop.permute.xlu0 %5648
        %5650 = vrot.lane.b32.xlu0 %v5502, 64
        %v5651 = vpop.permute.xlu0 %5650
        %5652 = vrot.lane.b32.xlu0 %v5503, 64
        %v5653 = vpop.permute.xlu0 %5652
        %5654 = vrot.lane.b32.xlu0 %v5504, 64
        %v5655 = vpop.permute.xlu0 %5654
        %5656 = vrot.lane.b32.xlu0 %v5505, 64
        %v5657 = vpop.permute.xlu0 %5656
        %5658 = vrot.lane.b32.xlu0 %v5506, 64
        %v5659 = vpop.permute.xlu0 %5658
        %5660 = vrot.lane.b32.xlu0 %v5507, 64
        %v5661 = vpop.permute.xlu0 %5660
        %5662 = vrot.lane.b32.xlu0 %v5508, 64
        %v5663 = vpop.permute.xlu0 %5662
        %5664 = vrot.lane.b32.xlu0 %v5509, 64
        %v5665 = vpop.permute.xlu0 %5664
        %5666 = vrot.lane.b32.xlu0 %v5510, 64
        %v5667 = vpop.permute.xlu0 %5666
        %5668 = vrot.lane.b32.xlu0 %v5511, 64
        %v5669 = vpop.permute.xlu0 %5668
        %5670 = vrot.lane.b32.xlu0 %v5512, 64
        %v5671 = vpop.permute.xlu0 %5670
        %5672 = vrot.lane.b32.xlu0 %v5513, 64
        %v5673 = vpop.permute.xlu0 %5672
        %5674 = vrot.lane.b32.xlu0 %v5514, 64
        %v5675 = vpop.permute.xlu0 %5674
        %5676 = vrot.lane.b32.xlu0 %v5515, 64
        %v5677 = vpop.permute.xlu0 %5676
        %5678 = vrot.lane.b32.xlu0 %v5516, 64
        %v5679 = vpop.permute.xlu0 %5678
        %5680 = vrot.lane.b32.xlu0 %v5517, 64
        %v5681 = vpop.permute.xlu0 %5680
        %5682 = vrot.lane.b32.xlu0 %v5518, 64
        %v5683 = vpop.permute.xlu0 %5682
        %5684 = vrot.lane.b32.xlu0 %v5519, 64
        %v5685 = vpop.permute.xlu0 %5684
        %5686 = vrot.lane.b32.xlu0 %v5520, 64
        %v5687 = vpop.permute.xlu0 %5686
        %5688 = vrot.lane.b32.xlu0 %v5521, 64
        %v5689 = vpop.permute.xlu0 %5688
        %5690 = vrot.lane.b32.xlu0 %v5522, 64
        %v5691 = vpop.permute.xlu0 %5690
        %5692 = vrot.lane.b32.xlu0 %v5523, 64
        %v5693 = vpop.permute.xlu0 %5692
        %5694 = vrot.lane.b32.xlu0 %v5524, 64
        %v5695 = vpop.permute.xlu0 %5694
        %5696 = vrot.lane.b32.xlu0 %v5525, 64
        %v5697 = vpop.permute.xlu0 %5696
        %5698 = vrot.lane.b32.xlu0 %v5526, 64
        %v5699 = vpop.permute.xlu0 %5698
        %5700 = vrot.lane.b32.xlu0 %v5527, 64
        %v5701 = vpop.permute.xlu0 %5700
        %5702 = vrot.lane.b32.xlu0 %v5528, 64
        %v5703 = vpop.permute.xlu0 %5702
        %5704 = vrot.lane.b32.xlu0 %v5529, 64
        %v5705 = vpop.permute.xlu0 %5704
        %5706 = vrot.lane.b32.xlu0 %v5530, 64
        %v5707 = vpop.permute.xlu0 %5706
        %5708 = vrot.lane.b32.xlu0 %v5531, 64
        %v5709 = vpop.permute.xlu0 %5708
        %5710 = vrot.lane.b32.xlu0 %v5532, 64
        %v5711 = vpop.permute.xlu0 %5710
        %5712 = vrot.lane.b32.xlu0 %v5533, 64
        %v5713 = vpop.permute.xlu0 %5712
        %5714 = vrot.lane.b32.xlu0 %v5534, 64
        %v5715 = vpop.permute.xlu0 %5714
        %vm5716 = vcmask 523264
        %v5717 = vsel %vm5716, %v5609, %v5611
        %v5718 = vsel %vm5716, %v5611, %v5613
        %v5719 = vsel %vm5716, %v5613, %v5615
        %v5720 = vsel %vm5716, %v5615, %v5617
        %v5721 = vsel %vm5716, %v5617, %v5619
        %v5722 = vsel %vm5716, %v5619, %v5621
        %v5723 = vsel %vm5716, %v5621, %v5623
        %v5724 = vsel %vm5716, %v5623, %v5625
        %v5725 = vsel %vm5716, %v5627, %v5629
        %v5726 = vsel %vm5716, %v5629, %v5631
        %v5727 = vsel %vm5716, %v5631, %v5633
        %v5728 = vsel %vm5716, %v5633, %v5635
        %v5729 = vsel %vm5716, %v5635, %v5637
        %v5730 = vsel %vm5716, %v5637, %v5639
        %v5731 = vsel %vm5716, %v5639, %v5641
        %v5732 = vsel %vm5716, %v5641, %v5643
        %v5733 = vsel %vm5716, %v5645, %v5647
        %v5734 = vsel %vm5716, %v5647, %v5649
        %v5735 = vsel %vm5716, %v5649, %v5651
        %v5736 = vsel %vm5716, %v5651, %v5653
        %v5737 = vsel %vm5716, %v5653, %v5655
        %v5738 = vsel %vm5716, %v5655, %v5657
        %v5739 = vsel %vm5716, %v5657, %v5659
        %v5740 = vsel %vm5716, %v5659, %v5661
        %v5741 = vsel %vm5716, %v5663, %v5665
        %v5742 = vsel %vm5716, %v5665, %v5667
        %v5743 = vsel %vm5716, %v5667, %v5669
        %v5744 = vsel %vm5716, %v5669, %v5671
        %v5745 = vsel %vm5716, %v5671, %v5673
        %v5746 = vsel %vm5716, %v5673, %v5675
        %v5747 = vsel %vm5716, %v5675, %v5677
        %v5748 = vsel %vm5716, %v5677, %v5679
        %v5749 = vsel %vm5716, %v5681, %v5683
        %v5750 = vsel %vm5716, %v5683, %v5685
        %v5751 = vsel %vm5716, %v5685, %v5687
        %v5752 = vsel %vm5716, %v5687, %v5689
        %v5753 = vsel %vm5716, %v5689, %v5691
        %v5754 = vsel %vm5716, %v5691, %v5693
        %v5755 = vsel %vm5716, %v5693, %v5695
        %v5756 = vsel %vm5716, %v5695, %v5697
        %v5757 = vsel %vm5716, %v5699, %v5701
        %v5758 = vsel %vm5716, %v5701, %v5703
        %v5759 = vsel %vm5716, %v5703, %v5705
        %v5760 = vsel %vm5716, %v5705, %v5707
        %v5761 = vsel %vm5716, %v5707, %v5709
        %v5762 = vsel %vm5716, %v5709, %v5711
        %v5763 = vsel %vm5716, %v5711, %v5713
        %v5764 = vsel %vm5716, %v5713, %v5715
        %v5814 = vsel %vm3505, %v5553, 0
        %5816 = vmatprep.subr.bf16.mxu0 0
        %5817 = vmatpush1.bf16.msra.mxu0 0
        %5818 = vmatprep.subr.bf16.mxu0 0
        %5819 = vmatpush1.bf16.msra.mxu0 0
        %5820 = vmatprep.subr.bf16.mxu0 %v5758
        %5821 = vmatpush1.bf16.msra.mxu0 %v5757
        %5822 = vmatprep.subr.bf16.mxu0 %v5750
        %5823 = vmatpush1.bf16.msra.mxu0 %v5749
        %5824 = vmatprep.subr.bf16.mxu0 %v5742
        %5825 = vmatpush1.bf16.msra.mxu0 %v5741
        %5826 = vmatprep.subr.bf16.mxu0 %v5734
        %5827 = vmatpush1.bf16.msra.mxu0 %v5733
        %5828 = vmatprep.subr.bf16.mxu0 %v5726
        %5829 = vmatpush1.bf16.msra.mxu0 %v5725
        %5830 = vmatprep.subr.bf16.mxu0 %v5718
        %5831 = vmatpush1.bf16.msra.mxu0 %v5717
        %5832 = vmatprep.subr.bf16.mxu0 0
        %5833 = vmatpush2.bf16.msra.mxu0 0
        %5834 = vmatprep.subr.bf16.mxu0 0
        %5835 = vmatpush2.bf16.msra.mxu0 0
        %5836 = vmatprep.subr.bf16.mxu0 0
        %5837 = vmatpush2.bf16.msra.mxu0 0
        %5838 = vmatprep.subr.bf16.mxu0 0
        %5839 = vmatpush2.bf16.msra.mxu0 0
        %5840 = vmatprep.subr.bf16.mxu0 0
        %5841 = vmatpush2.bf16.msra.mxu0 0
        %5842 = vmatprep.subr.bf16.mxu0 0
        %5843 = vmatpush2.bf16.msra.mxu0 0
        %5844 = vmatprep.subr.bf16.mxu0 0
        %5845 = vmatpush2.bf16.msra.mxu0 0
        %5846 = vmatprep.subr.bf16.mxu0 0
        %5847 = vmatpush2.bf16.msra.mxu0 0
        %5848 = vmatprep.mubr.bf16.mxu0 0
        %5849 = vmatmul.mubr.bf16.gmra.mxu0 %v5814
        %v5850 = vpop.f32.mrf.mxu0
        %v5851 = vadd.f32 %v5542, %v5850
        %v5852 = vpop.f32.mrf.mxu0
        %v5853 = vadd.f32 %v5542, %v5852
        %v5854 = vpop.f32.mrf.mxu0
        %v5855 = vadd.f32 %v5547, %v5854
        %v5856 = vpop.f32.mrf.mxu0
        %v5857 = vadd.f32 %v5547, %v5856
        %5858 = vdwg.mxu0
        %5859 = vmatprep.subr.bf16.mxu0 0
        %5860 = vmatpush1.bf16.msra.mxu0 0
        %5861 = vmatprep.subr.bf16.mxu0 0
        %5862 = vmatpush1.bf16.msra.mxu0 0
        %5863 = vmatprep.subr.bf16.mxu0 %v5760
        %5864 = vmatpush1.bf16.msra.mxu0 %v5759
        %5865 = vmatprep.subr.bf16.mxu0 %v5752
        %5866 = vmatpush1.bf16.msra.mxu0 %v5751
        %5867 = vmatprep.subr.bf16.mxu0 %v5744
        %5868 = vmatpush1.bf16.msra.mxu0 %v5743
        %5869 = vmatprep.subr.bf16.mxu0 %v5736
        %5870 = vmatpush1.bf16.msra.mxu0 %v5735
        %5871 = vmatprep.subr.bf16.mxu0 %v5728
        %5872 = vmatpush1.bf16.msra.mxu0 %v5727
        %5873 = vmatprep.subr.bf16.mxu0 %v5720
        %5874 = vmatpush1.bf16.msra.mxu0 %v5719
        %5875 = vmatprep.subr.bf16.mxu0 0
        %5876 = vmatpush2.bf16.msra.mxu0 0
        %5877 = vmatprep.subr.bf16.mxu0 0
        %5878 = vmatpush2.bf16.msra.mxu0 0
        %5879 = vmatprep.subr.bf16.mxu0 0
        %5880 = vmatpush2.bf16.msra.mxu0 0
        %5881 = vmatprep.subr.bf16.mxu0 0
        %5882 = vmatpush2.bf16.msra.mxu0 0
        %5883 = vmatprep.subr.bf16.mxu0 0
        %5884 = vmatpush2.bf16.msra.mxu0 0
        %5885 = vmatprep.subr.bf16.mxu0 0
        %5886 = vmatpush2.bf16.msra.mxu0 0
        %5887 = vmatprep.subr.bf16.mxu0 0
        %5888 = vmatpush2.bf16.msra.mxu0 0
        %5889 = vmatprep.subr.bf16.mxu0 0
        %5890 = vmatpush2.bf16.msra.mxu0 0
        %5891 = vmatprep.mubr.bf16.mxu0 0
        %5892 = vmatmul.mubr.bf16.gmra.mxu0 %v5814
        %v5893 = vpop.f32.mrf.mxu0
        %v5894 = vadd.f32 %v5542, %v5893
        %v5895 = vpop.f32.mrf.mxu0
        %v5896 = vadd.f32 %v5542, %v5895
        %v5897 = vpop.f32.mrf.mxu0
        %v5898 = vadd.f32 %v5547, %v5897
        %v5899 = vpop.f32.mrf.mxu0
        %v5900 = vadd.f32 %v5547, %v5899
        %5901 = vdwg.mxu0
        %5902 = vmatprep.subr.bf16.mxu0 0
        %5903 = vmatpush1.bf16.msra.mxu0 0
        %5904 = vmatprep.subr.bf16.mxu0 0
        %5905 = vmatpush1.bf16.msra.mxu0 0
        %5906 = vmatprep.subr.bf16.mxu0 %v5762
        %5907 = vmatpush1.bf16.msra.mxu0 %v5761
        %5908 = vmatprep.subr.bf16.mxu0 %v5754
        %5909 = vmatpush1.bf16.msra.mxu0 %v5753
        %5910 = vmatprep.subr.bf16.mxu0 %v5746
        %5911 = vmatpush1.bf16.msra.mxu0 %v5745
        %5912 = vmatprep.subr.bf16.mxu0 %v5738
        %5913 = vmatpush1.bf16.msra.mxu0 %v5737
        %5914 = vmatprep.subr.bf16.mxu0 %v5730
        %5915 = vmatpush1.bf16.msra.mxu0 %v5729
        %5916 = vmatprep.subr.bf16.mxu0 %v5722
        %5917 = vmatpush1.bf16.msra.mxu0 %v5721
        %5918 = vmatprep.subr.bf16.mxu0 0
        %5919 = vmatpush2.bf16.msra.mxu0 0
        %5920 = vmatprep.subr.bf16.mxu0 0
        %5921 = vmatpush2.bf16.msra.mxu0 0
        %5922 = vmatprep.subr.bf16.mxu0 0
        %5923 = vmatpush2.bf16.msra.mxu0 0
        %5924 = vmatprep.subr.bf16.mxu0 0
        %5925 = vmatpush2.bf16.msra.mxu0 0
        %5926 = vmatprep.subr.bf16.mxu0 0
        %5927 = vmatpush2.bf16.msra.mxu0 0
        %5928 = vmatprep.subr.bf16.mxu0 0
        %5929 = vmatpush2.bf16.msra.mxu0 0
        %5930 = vmatprep.subr.bf16.mxu0 0
        %5931 = vmatpush2.bf16.msra.mxu0 0
        %5932 = vmatprep.subr.bf16.mxu0 0
        %5933 = vmatpush2.bf16.msra.mxu0 0
        %5934 = vmatprep.mubr.bf16.mxu0 0
        %5935 = vmatmul.mubr.bf16.gmra.mxu0 %v5814
        %v5936 = vpop.f32.mrf.mxu0
        %v5937 = vadd.f32 %v5542, %v5936
        %v5938 = vpop.f32.mrf.mxu0
        %v5939 = vadd.f32 %v5542, %v5938
        %v5940 = vpop.f32.mrf.mxu0
        %v5941 = vadd.f32 %v5547, %v5940
        %v5942 = vpop.f32.mrf.mxu0
        %v5943 = vadd.f32 %v5547, %v5942
        %5944 = vdwg.mxu0
        %5945 = vmatprep.subr.bf16.mxu0 0
        %5946 = vmatpush1.bf16.msra.mxu0 0
        %5947 = vmatprep.subr.bf16.mxu0 0
        %5948 = vmatpush1.bf16.msra.mxu0 0
        %5949 = vmatprep.subr.bf16.mxu0 %v5764
        %5950 = vmatpush1.bf16.msra.mxu0 %v5763
        %5951 = vmatprep.subr.bf16.mxu0 %v5756
        %5952 = vmatpush1.bf16.msra.mxu0 %v5755
        %5953 = vmatprep.subr.bf16.mxu0 %v5748
        %5954 = vmatpush1.bf16.msra.mxu0 %v5747
        %5955 = vmatprep.subr.bf16.mxu0 %v5740
        %5956 = vmatpush1.bf16.msra.mxu0 %v5739
        %5957 = vmatprep.subr.bf16.mxu0 %v5732
        %5958 = vmatpush1.bf16.msra.mxu0 %v5731
        %5959 = vmatprep.subr.bf16.mxu0 %v5724
        %5960 = vmatpush1.bf16.msra.mxu0 %v5723
        %5961 = vmatprep.subr.bf16.mxu0 0
        %5962 = vmatpush2.bf16.msra.mxu0 0
        %5963 = vmatprep.subr.bf16.mxu0 0
        %5964 = vmatpush2.bf16.msra.mxu0 0
        %5965 = vmatprep.subr.bf16.mxu0 0
        %5966 = vmatpush2.bf16.msra.mxu0 0
        %5967 = vmatprep.subr.bf16.mxu0 0
        %5968 = vmatpush2.bf16.msra.mxu0 0
        %5969 = vmatprep.subr.bf16.mxu0 0
        %5970 = vmatpush2.bf16.msra.mxu0 0
        %5971 = vmatprep.subr.bf16.mxu0 0
        %5972 = vmatpush2.bf16.msra.mxu0 0
        %5973 = vmatprep.subr.bf16.mxu0 0
        %5974 = vmatpush2.bf16.msra.mxu0 0
        %5975 = vmatprep.subr.bf16.mxu0 0
        %5976 = vmatpush2.bf16.msra.mxu0 0
        %5977 = vmatprep.mubr.bf16.mxu0 0
        %5978 = vmatmul.mubr.bf16.gmra.mxu0 %v5814
        %v5979 = vpop.f32.mrf.mxu0
        %v5980 = vadd.f32 %v5542, %v5979
        %v5981 = vpop.f32.mrf.mxu0
        %v5982 = vadd.f32 %v5542, %v5981
        %v5983 = vpop.f32.mrf.mxu0
        %v5984 = vadd.f32 %v5547, %v5983
        %v5985 = vpop.f32.mrf.mxu0
        %v5986 = vadd.f32 %v5547, %v5985
        %5987 = vdwg.mxu0
        %5988 = vrot.lane.b32.xlu0 %v5851, 64
        %v5989 = vpop.permute.xlu0 %5988
        %5990 = vrot.lane.b32.xlu0 %v5855, 64
        %v5991 = vpop.permute.xlu0 %5990
        %5992 = vrot.lane.b32.xlu0 %v5853, 64
        %v5993 = vpop.permute.xlu0 %5992
        %5994 = vrot.lane.b32.xlu0 %v5857, 64
        %v5995 = vpop.permute.xlu0 %5994
        %5996 = vrot.lane.b32.xlu0 %v5894, 64
        %v5997 = vpop.permute.xlu0 %5996
        %5998 = vrot.lane.b32.xlu0 %v5898, 64
        %v5999 = vpop.permute.xlu0 %5998
        %6000 = vrot.lane.b32.xlu0 %v5896, 64
        %v6001 = vpop.permute.xlu0 %6000
        %6002 = vrot.lane.b32.xlu0 %v5900, 64
        %v6003 = vpop.permute.xlu0 %6002
        %6004 = vrot.lane.b32.xlu0 %v5937, 64
        %v6005 = vpop.permute.xlu0 %6004
        %6006 = vrot.lane.b32.xlu0 %v5941, 64
        %v6007 = vpop.permute.xlu0 %6006
        %6008 = vrot.lane.b32.xlu0 %v5939, 64
        %v6009 = vpop.permute.xlu0 %6008
        %6010 = vrot.lane.b32.xlu0 %v5943, 64
        %v6011 = vpop.permute.xlu0 %6010
        %6012 = vrot.lane.b32.xlu0 %v5980, 64
        %v6013 = vpop.permute.xlu0 %6012
        %6014 = vrot.lane.b32.xlu0 %v5984, 64
        %v6015 = vpop.permute.xlu0 %6014
        %6016 = vrot.lane.b32.xlu0 %v5982, 64
        %v6017 = vpop.permute.xlu0 %6016
        %6018 = vrot.lane.b32.xlu0 %v5986, 64
        %v6019 = vpop.permute.xlu0 %6018
        %v6020 = vlaneseq
        %v6021 = vand.u32 %v6020, 127
        %vm6022 = vcmp.lt.s32.totalorder %v6021, 64
        %v6023 = vsel %vm6022, %v6013, %v6017
        %v6024 = vsel %vm6022, %v6015, %v6019
        %v6025 = vsel %vm6022, %v6005, %v6009
        %v6026 = vsel %vm6022, %v6007, %v6011
        %v6027 = vsel %vm6022, %v5997, %v6001
        %v6028 = vsel %vm6022, %v5999, %v6003
        %v6029 = vsel %vm6022, %v5989, %v5993
        %v6030 = vsel %vm6022, %v5991, %v5995
        %v6031 = vmax.f32 %v5851, %v6029
        %v6032 = vmax.f32 %v5894, %v6027
        %v6033 = vmax.f32 %v5937, %v6025
        %v6034 = vmax.f32 %v5980, %v6023
        %v6035 = vmax.f32 %v5855, %v6030
        %v6036 = vmax.f32 %v5898, %v6028
        %v6037 = vmax.f32 %v5941, %v6026
        %v6038 = vmax.f32 %v5984, %v6024
        %v6039 = vmax.f32 %v6031, %v5853
        %v6040 = vmax.f32 %v6032, %v5896
        %v6041 = vmax.f32 %v6033, %v5939
        %v6042 = vmax.f32 %v6034, %v5982
        %v6043 = vmax.f32 %v6035, %v5857
        %v6044 = vmax.f32 %v6036, %v5900
        %v6045 = vmax.f32 %v6037, %v5943
        %v6046 = vmax.f32 %v6038, %v5986
        %v6047 = vsel %vm6022, %v6009, %v6013
        %v6048 = vsel %vm6022, %v6011, %v6015
        %v6049 = vsel %vm6022, %v6001, %v6005
        %v6050 = vsel %vm6022, %v6003, %v6007
        %v6051 = vsel %vm6022, %v5993, %v5997
        %v6052 = vsel %vm6022, %v5995, %v5999
        %v6053 = vsel %vm6022, %v6017, %v5989
        %v6054 = vsel %vm6022, %v6019, %v5991
        %v6055 = vmax.f32 %v6039, %v6051
        %v6056 = vmax.f32 %v6040, %v6049
        %v6057 = vmax.f32 %v6041, %v6047
        %v6058 = vmax.f32 %v6042, %v6053
        %v6059 = vmax.f32 %v6043, %v6052
        %v6060 = vmax.f32 %v6044, %v6050
        %v6061 = vmax.f32 %v6045, %v6048
        %v6062 = vmax.f32 %v6046, %v6054
        %vm6063 = vcmask 7168
        %6064 = vst.msk [vmem:[%s624] sm:$0xff] %vm6063, %v6055
        %6065 = vst.msk [vmem:[%s624 + $0x8] sm:$0xff] %vm6063, %v6059
        %6068 = vrot.lane.b32.xlu0 %v6056, 1
        %v6069 = vpop.permute.xlu0 %6068
        %6070 = vrot.lane.b32.xlu0 %v6060, 1
        %v6071 = vpop.permute.xlu0 %6070
        %vm6074 = vcmask 15368
        %6075 = vst.msk [vmem:[%s624] sm:$0xff] %vm6074, %v6069
        %6076 = vst.msk [vmem:[%s624 + $0x8] sm:$0xff] %vm6074, %v6071
        %6079 = vrot.lane.b32.xlu0 %v6057, 2
        %v6080 = vpop.permute.xlu0 %6079
        %6081 = vrot.lane.b32.xlu0 %v6061, 2
        %v6082 = vpop.permute.xlu0 %6081
        %vm6085 = vcmask 23568
        %6086 = vst.msk [vmem:[%s624] sm:$0xff] %vm6085, %v6080
        %6087 = vst.msk [vmem:[%s624 + $0x8] sm:$0xff] %vm6085, %v6082
        %6090 = vrot.lane.b32.xlu0 %v6058, 3
        %v6091 = vpop.permute.xlu0 %6090
        %6092 = vrot.lane.b32.xlu0 %v6062, 3
        %v6093 = vpop.permute.xlu0 %6092
        %vm6096 = vcmask 31768
        %6097 = vst.msk [vmem:[%s624] sm:$0xff] %vm6096, %v6091
        %6098 = vst.msk [vmem:[%s624 + $0x8] sm:$0xff] %vm6096, %v6093
        %s6099 = scalar_lea.vmem %s530, 8 [#allocation3]
        %v6100 = vld [vmem:[%s6099] sm:$0xff]
        %6101 = vst [vmem:[%s636] ss:$8 sm:$0xf] %v6100
        %6102 = vst [vmem:[%s636] ss:$8 sm:$0xf0] %v6100
        %v6103 = vld [vmem:[#allocation2] ss:$8 sm:$0xf]
        %v6104 = vld [vmem:[#allocation2] ss:$8 sm:$0xf0]
        %v6105 = vor.u32 %v6103, %v6104
        %v6106 = vld [vmem:[%s642] ss:$8 sm:$0x1]
        %v6107 = vld [vmem:[%s636] ss:$8 sm:$0xf]
        %v6108 = vld [vmem:[%s636] ss:$8 sm:$0xf0]
        %v6109 = vor.u32 %v6107, %v6108
        %v6110 = vld [vmem:[%s647] ss:$8 sm:$0x1]
        %v6111 = vld [vmem:[#allocation5] sm:$0xff]
        %v6112 = vld [vmem:[#allocation5 + $0x8] sm:$0xff]
        %6114 = vset.pattern.permute.xlu0 0
        %6115 = vperm.xlu0 %6114, %v6111
        %v6116 = vpop.permute.xlu0 %6115
        %6119 = vset.pattern.permute.xlu0 0
        %6120 = vperm.xlu0 %6119, %v6112
        %v6121 = vpop.permute.xlu0 %6120
        %v6125 = vlaneseq
        %v6126 = vshrl.u32 %v6125, 7
        %v6127 = vsub.s32 0, %v6126
        %v6128 = vrot.slane %v6105, %v6127
        %v6129 = vlaneseq
        %v6130 = vshrl.u32 %v6129, 7
        %v6131 = vsub.s32 1, %v6130
        %v6132 = vrot.slane %v6105, %v6131
        %v6133 = vlaneseq
        %v6134 = vshrl.u32 %v6133, 7
        %v6135 = vsub.s32 2, %v6134
        %v6136 = vrot.slane %v6105, %v6135
        %v6137 = vlaneseq
        %v6138 = vshrl.u32 %v6137, 7
        %v6139 = vsub.s32 3, %v6138
        %v6140 = vrot.slane %v6105, %v6139
        %v6141 = vlaneseq
        %v6142 = vshrl.u32 %v6141, 7
        %v6143 = vsub.s32 4, %v6142
        %v6144 = vrot.slane %v6105, %v6143
        %v6145 = vlaneseq
        %v6146 = vshrl.u32 %v6145, 7
        %v6147 = vsub.s32 5, %v6146
        %v6148 = vrot.slane %v6105, %v6147
        %v6149 = vlaneseq
        %v6150 = vshrl.u32 %v6149, 7
        %v6151 = vsub.s32 6, %v6150
        %v6152 = vrot.slane %v6105, %v6151
        %v6153 = vlaneseq
        %v6154 = vshrl.u32 %v6153, 7
        %v6155 = vsub.s32 7, %v6154
        %v6156 = vrot.slane %v6105, %v6155
        %v6157 = vlaneseq
        %v6158 = vshrl.u32 %v6157, 7
        %v6159 = vsub.s32 0, %v6158
        %v6160 = vrot.slane %v6106, %v6159
        %v6170 = vmul.f32 %v6116, %v6128
        %v6171 = vmul.f32 %v6116, %v6132
        %v6172 = vmul.f32 %v6116, %v6136
        %v6173 = vmul.f32 %v6116, %v6140
        %v6174 = vmul.f32 %v6116, %v6144
        %v6175 = vmul.f32 %v6116, %v6148
        %v6176 = vmul.f32 %v6116, %v6152
        %v6177 = vmul.f32 %v6116, %v6156
        %v6178 = vmul.f32 %v6116, %v6160
        %v6179 = vmul.f32 %v6121, %v6128
        %v6180 = vmul.f32 %v6121, %v6132
        %v6181 = vmul.f32 %v6121, %v6136
        %v6182 = vmul.f32 %v6121, %v6140
        %v6183 = vmul.f32 %v6121, %v6144
        %v6184 = vmul.f32 %v6121, %v6148
        %v6185 = vmul.f32 %v6121, %v6152
        %v6186 = vmul.f32 %v6121, %v6156
        %v6187 = vmul.f32 %v6121, %v6160
        %v6188 = vadd.f32 %v6170, 0.0
        %v6189 = vadd.f32 %v6171, 0.0
        %v6190 = vadd.f32 %v6172, 0.0
        %v6191 = vadd.f32 %v6173, 0.0
        %v6192 = vadd.f32 %v6174, 0.0
        %v6193 = vadd.f32 %v6175, 0.0
        %v6194 = vadd.f32 %v6176, 0.0
        %v6195 = vadd.f32 %v6177, 0.0
        %v6196 = vadd.f32 %v6178, 0.0
        %v6197 = vadd.f32 %v6179, 0.0
        %v6198 = vadd.f32 %v6180, 0.0
        %v6199 = vadd.f32 %v6181, 0.0
        %v6200 = vadd.f32 %v6182, 0.0
        %v6201 = vadd.f32 %v6183, 0.0
        %v6202 = vadd.f32 %v6184, 0.0
        %v6203 = vadd.f32 %v6185, 0.0
        %v6204 = vadd.f32 %v6186, 0.0
        %v6205 = vadd.f32 %v6187, 0.0
        %6206 = vset.pattern.permute.xlu0 1
        %6207 = vperm.xlu0 %6206, %v6111
        %v6208 = vpop.permute.xlu0 %6207
        %6210 = vset.pattern.permute.xlu0 1
        %6211 = vperm.xlu0 %6210, %v6112
        %v6212 = vpop.permute.xlu0 %6211
        %v6214 = vmul.f32 %v6208, %v6128
        %v6215 = vmul.f32 %v6208, %v6132
        %v6216 = vmul.f32 %v6208, %v6136
        %v6217 = vmul.f32 %v6208, %v6140
        %v6218 = vmul.f32 %v6208, %v6144
        %v6219 = vmul.f32 %v6208, %v6148
        %v6220 = vmul.f32 %v6208, %v6152
        %v6221 = vmul.f32 %v6208, %v6156
        %v6222 = vmul.f32 %v6208, %v6160
        %v6223 = vmul.f32 %v6212, %v6128
        %v6224 = vmul.f32 %v6212, %v6132
        %v6225 = vmul.f32 %v6212, %v6136
        %v6226 = vmul.f32 %v6212, %v6140
        %v6227 = vmul.f32 %v6212, %v6144
        %v6228 = vmul.f32 %v6212, %v6148
        %v6229 = vmul.f32 %v6212, %v6152
        %v6230 = vmul.f32 %v6212, %v6156
        %v6231 = vmul.f32 %v6212, %v6160
        %6250 = vrot.lane.b32.xlu0 %v6214, 127
        %v6251 = vpop.permute.xlu0 %6250
        %6252 = vrot.lane.b32.xlu0 %v6215, 127
        %v6253 = vpop.permute.xlu0 %6252
        %6254 = vrot.lane.b32.xlu0 %v6216, 127
        %v6255 = vpop.permute.xlu0 %6254
        %6256 = vrot.lane.b32.xlu0 %v6217, 127
        %v6257 = vpop.permute.xlu0 %6256
        %6258 = vrot.lane.b32.xlu0 %v6218, 127
        %v6259 = vpop.permute.xlu0 %6258
        %6260 = vrot.lane.b32.xlu0 %v6219, 127
        %v6261 = vpop.permute.xlu0 %6260
        %6262 = vrot.lane.b32.xlu0 %v6220, 127
        %v6263 = vpop.permute.xlu0 %6262
        %6264 = vrot.lane.b32.xlu0 %v6221, 127
        %v6265 = vpop.permute.xlu0 %6264
        %6266 = vrot.lane.b32.xlu0 %v6222, 127
        %v6267 = vpop.permute.xlu0 %6266
        %6268 = vrot.lane.b32.xlu0 %v6223, 127
        %v6269 = vpop.permute.xlu0 %6268
        %6270 = vrot.lane.b32.xlu0 %v6224, 127
        %v6271 = vpop.permute.xlu0 %6270
        %6272 = vrot.lane.b32.xlu0 %v6225, 127
        %v6273 = vpop.permute.xlu0 %6272
        %6274 = vrot.lane.b32.xlu0 %v6226, 127
        %v6275 = vpop.permute.xlu0 %6274
        %6276 = vrot.lane.b32.xlu0 %v6227, 127
        %v6277 = vpop.permute.xlu0 %6276
        %6278 = vrot.lane.b32.xlu0 %v6228, 127
        %v6279 = vpop.permute.xlu0 %6278
        %6280 = vrot.lane.b32.xlu0 %v6229, 127
        %v6281 = vpop.permute.xlu0 %6280
        %6282 = vrot.lane.b32.xlu0 %v6230, 127
        %v6283 = vpop.permute.xlu0 %6282
        %6284 = vrot.lane.b32.xlu0 %v6231, 127
        %v6285 = vpop.permute.xlu0 %6284
        %v6286 = vsel %vm824, %v6251, %v6253
        %v6287 = vsel %vm824, %v6253, %v6255
        %v6288 = vsel %vm824, %v6255, %v6257
        %v6289 = vsel %vm824, %v6257, %v6259
        %v6290 = vsel %vm824, %v6259, %v6261
        %v6291 = vsel %vm824, %v6261, %v6263
        %v6292 = vsel %vm824, %v6263, %v6265
        %v6293 = vsel %vm824, %v6265, %v6267
        %v6294 = vsel %vm824, %v6269, %v6271
        %v6295 = vsel %vm824, %v6271, %v6273
        %v6296 = vsel %vm824, %v6273, %v6275
        %v6297 = vsel %vm824, %v6275, %v6277
        %v6298 = vsel %vm824, %v6277, %v6279
        %v6299 = vsel %vm824, %v6279, %v6281
        %v6300 = vsel %vm824, %v6281, %v6283
        %v6301 = vsel %vm824, %v6283, %v6285
        %v6320 = vadd.f32 %v6188, %v6286
        %v6321 = vadd.f32 %v6189, %v6287
        %v6322 = vadd.f32 %v6190, %v6288
        %v6323 = vadd.f32 %v6191, %v6289
        %v6324 = vadd.f32 %v6192, %v6290
        %v6325 = vadd.f32 %v6193, %v6291
        %v6326 = vadd.f32 %v6194, %v6292
        %v6327 = vadd.f32 %v6195, %v6293
        %v6328 = vadd.f32 %v6196, %v6267
        %v6329 = vadd.f32 %v6197, %v6294
        %v6330 = vadd.f32 %v6198, %v6295
        %v6331 = vadd.f32 %v6199, %v6296
        %v6332 = vadd.f32 %v6200, %v6297
        %v6333 = vadd.f32 %v6201, %v6298
        %v6334 = vadd.f32 %v6202, %v6299
        %v6335 = vadd.f32 %v6203, %v6300
        %v6336 = vadd.f32 %v6204, %v6301
        %v6337 = vadd.f32 %v6205, %v6285
        %6338 = vset.pattern.permute.xlu0 2
        %6339 = vperm.xlu0 %6338, %v6111
        %v6340 = vpop.permute.xlu0 %6339
        %6342 = vset.pattern.permute.xlu0 2
        %6343 = vperm.xlu0 %6342, %v6112
        %v6344 = vpop.permute.xlu0 %6343
        %v6347 = vlaneseq
        %v6348 = vshrl.u32 %v6347, 7
        %v6349 = vsub.s32 0, %v6348
        %v6350 = vrot.slane %v6109, %v6349
        %v6351 = vlaneseq
        %v6352 = vshrl.u32 %v6351, 7
        %v6353 = vsub.s32 1, %v6352
        %v6354 = vrot.slane %v6109, %v6353
        %v6355 = vlaneseq
        %v6356 = vshrl.u32 %v6355, 7
        %v6357 = vsub.s32 2, %v6356
        %v6358 = vrot.slane %v6109, %v6357
        %v6359 = vlaneseq
        %v6360 = vshrl.u32 %v6359, 7
        %v6361 = vsub.s32 3, %v6360
        %v6362 = vrot.slane %v6109, %v6361
        %v6363 = vlaneseq
        %v6364 = vshrl.u32 %v6363, 7
        %v6365 = vsub.s32 4, %v6364
        %v6366 = vrot.slane %v6109, %v6365
        %v6367 = vlaneseq
        %v6368 = vshrl.u32 %v6367, 7
        %v6369 = vsub.s32 5, %v6368
        %v6370 = vrot.slane %v6109, %v6369
        %v6371 = vlaneseq
        %v6372 = vshrl.u32 %v6371, 7
        %v6373 = vsub.s32 6, %v6372
        %v6374 = vrot.slane %v6109, %v6373
        %v6375 = vlaneseq
        %v6376 = vshrl.u32 %v6375, 7
        %v6377 = vsub.s32 7, %v6376
        %v6378 = vrot.slane %v6109, %v6377
        %v6387 = vmul.f32 %v6340, %v6350
        %v6388 = vmul.f32 %v6340, %v6354
        %v6389 = vmul.f32 %v6340, %v6358
        %v6390 = vmul.f32 %v6340, %v6362
        %v6391 = vmul.f32 %v6340, %v6366
        %v6392 = vmul.f32 %v6340, %v6370
        %v6393 = vmul.f32 %v6340, %v6374
        %v6394 = vmul.f32 %v6340, %v6378
        %v6395 = vmul.f32 %v6344, %v6350
        %v6396 = vmul.f32 %v6344, %v6354
        %v6397 = vmul.f32 %v6344, %v6358
        %v6398 = vmul.f32 %v6344, %v6362
        %v6399 = vmul.f32 %v6344, %v6366
        %v6400 = vmul.f32 %v6344, %v6370
        %v6401 = vmul.f32 %v6344, %v6374
        %v6402 = vmul.f32 %v6344, %v6378
        %6419 = vrot.lane.b32.xlu0 %v6387, 126
        %v6420 = vpop.permute.xlu0 %6419
        %6421 = vrot.lane.b32.xlu0 %v6388, 126
        %v6422 = vpop.permute.xlu0 %6421
        %6423 = vrot.lane.b32.xlu0 %v6389, 126
        %v6424 = vpop.permute.xlu0 %6423
        %6425 = vrot.lane.b32.xlu0 %v6390, 126
        %v6426 = vpop.permute.xlu0 %6425
        %6427 = vrot.lane.b32.xlu0 %v6391, 126
        %v6428 = vpop.permute.xlu0 %6427
        %6429 = vrot.lane.b32.xlu0 %v6392, 126
        %v6430 = vpop.permute.xlu0 %6429
        %6431 = vrot.lane.b32.xlu0 %v6393, 126
        %v6432 = vpop.permute.xlu0 %6431
        %6433 = vrot.lane.b32.xlu0 %v6394, 126
        %v6434 = vpop.permute.xlu0 %6433
        %6435 = vrot.lane.b32.xlu0 %v6395, 126
        %v6436 = vpop.permute.xlu0 %6435
        %6437 = vrot.lane.b32.xlu0 %v6396, 126
        %v6438 = vpop.permute.xlu0 %6437
        %6439 = vrot.lane.b32.xlu0 %v6397, 126
        %v6440 = vpop.permute.xlu0 %6439
        %6441 = vrot.lane.b32.xlu0 %v6398, 126
        %v6442 = vpop.permute.xlu0 %6441
        %6443 = vrot.lane.b32.xlu0 %v6399, 126
        %v6444 = vpop.permute.xlu0 %6443
        %6445 = vrot.lane.b32.xlu0 %v6400, 126
        %v6446 = vpop.permute.xlu0 %6445
        %6447 = vrot.lane.b32.xlu0 %v6401, 126
        %v6448 = vpop.permute.xlu0 %6447
        %6449 = vrot.lane.b32.xlu0 %v6402, 126
        %v6450 = vpop.permute.xlu0 %6449
        %v6451 = vsel %vm990, %v6420, %v6422
        %v6452 = vsel %vm990, %v6422, %v6424
        %v6453 = vsel %vm990, %v6424, %v6426
        %v6454 = vsel %vm990, %v6426, %v6428
        %v6455 = vsel %vm990, %v6428, %v6430
        %v6456 = vsel %vm990, %v6430, %v6432
        %v6457 = vsel %vm990, %v6432, %v6434
        %v6458 = vsel %vm990, %v6436, %v6438
        %v6459 = vsel %vm990, %v6438, %v6440
        %v6460 = vsel %vm990, %v6440, %v6442
        %v6461 = vsel %vm990, %v6442, %v6444
        %v6462 = vsel %vm990, %v6444, %v6446
        %v6463 = vsel %vm990, %v6446, %v6448
        %v6464 = vsel %vm990, %v6448, %v6450
        %v6483 = vadd.f32 %v6320, %v6420
        %v6484 = vadd.f32 %v6321, %v6451
        %v6485 = vadd.f32 %v6322, %v6452
        %v6486 = vadd.f32 %v6323, %v6453
        %v6487 = vadd.f32 %v6324, %v6454
        %v6488 = vadd.f32 %v6325, %v6455
        %v6489 = vadd.f32 %v6326, %v6456
        %v6490 = vadd.f32 %v6327, %v6457
        %v6491 = vadd.f32 %v6328, %v6434
        %v6492 = vadd.f32 %v6329, %v6436
        %v6493 = vadd.f32 %v6330, %v6458
        %v6494 = vadd.f32 %v6331, %v6459
        %v6495 = vadd.f32 %v6332, %v6460
        %v6496 = vadd.f32 %v6333, %v6461
        %v6497 = vadd.f32 %v6334, %v6462
        %v6498 = vadd.f32 %v6335, %v6463
        %v6499 = vadd.f32 %v6336, %v6464
        %v6500 = vadd.f32 %v6337, %v6450
        %6501 = vset.pattern.permute.xlu0 3
        %6502 = vperm.xlu0 %6501, %v6111
        %v6503 = vpop.permute.xlu0 %6502
        %6505 = vset.pattern.permute.xlu0 3
        %6506 = vperm.xlu0 %6505, %v6112
        %v6507 = vpop.permute.xlu0 %6506
        %v6510 = vlaneseq
        %v6511 = vshrl.u32 %v6510, 7
        %v6512 = vsub.s32 0, %v6511
        %v6513 = vrot.slane %v6110, %v6512
        %v6515 = vmul.f32 %v6503, %v6350
        %v6516 = vmul.f32 %v6503, %v6354
        %v6517 = vmul.f32 %v6503, %v6358
        %v6518 = vmul.f32 %v6503, %v6362
        %v6519 = vmul.f32 %v6503, %v6366
        %v6520 = vmul.f32 %v6503, %v6370
        %v6521 = vmul.f32 %v6503, %v6374
        %v6522 = vmul.f32 %v6503, %v6378
        %v6523 = vmul.f32 %v6503, %v6513
        %v6524 = vmul.f32 %v6507, %v6350
        %v6525 = vmul.f32 %v6507, %v6354
        %v6526 = vmul.f32 %v6507, %v6358
        %v6527 = vmul.f32 %v6507, %v6362
        %v6528 = vmul.f32 %v6507, %v6366
        %v6529 = vmul.f32 %v6507, %v6370
        %v6530 = vmul.f32 %v6507, %v6374
        %v6531 = vmul.f32 %v6507, %v6378
        %v6532 = vmul.f32 %v6507, %v6513
        %6551 = vrot.lane.b32.xlu0 %v6515, 125
        %v6552 = vpop.permute.xlu0 %6551
        %6553 = vrot.lane.b32.xlu0 %v6516, 125
        %v6554 = vpop.permute.xlu0 %6553
        %6555 = vrot.lane.b32.xlu0 %v6517, 125
        %v6556 = vpop.permute.xlu0 %6555
        %6557 = vrot.lane.b32.xlu0 %v6518, 125
        %v6558 = vpop.permute.xlu0 %6557
        %6559 = vrot.lane.b32.xlu0 %v6519, 125
        %v6560 = vpop.permute.xlu0 %6559
        %6561 = vrot.lane.b32.xlu0 %v6520, 125
        %v6562 = vpop.permute.xlu0 %6561
        %6563 = vrot.lane.b32.xlu0 %v6521, 125
        %v6564 = vpop.permute.xlu0 %6563
        %6565 = vrot.lane.b32.xlu0 %v6522, 125
        %v6566 = vpop.permute.xlu0 %6565
        %6567 = vrot.lane.b32.xlu0 %v6523, 125
        %v6568 = vpop.permute.xlu0 %6567
        %6569 = vrot.lane.b32.xlu0 %v6524, 125
        %v6570 = vpop.permute.xlu0 %6569
        %6571 = vrot.lane.b32.xlu0 %v6525, 125
        %v6572 = vpop.permute.xlu0 %6571
        %6573 = vrot.lane.b32.xlu0 %v6526, 125
        %v6574 = vpop.permute.xlu0 %6573
        %6575 = vrot.lane.b32.xlu0 %v6527, 125
        %v6576 = vpop.permute.xlu0 %6575
        %6577 = vrot.lane.b32.xlu0 %v6528, 125
        %v6578 = vpop.permute.xlu0 %6577
        %6579 = vrot.lane.b32.xlu0 %v6529, 125
        %v6580 = vpop.permute.xlu0 %6579
        %6581 = vrot.lane.b32.xlu0 %v6530, 125
        %v6582 = vpop.permute.xlu0 %6581
        %6583 = vrot.lane.b32.xlu0 %v6531, 125
        %v6584 = vpop.permute.xlu0 %6583
        %6585 = vrot.lane.b32.xlu0 %v6532, 125
        %v6586 = vpop.permute.xlu0 %6585
        %v6587 = vsel %vm1127, %v6552, %v6554
        %v6588 = vsel %vm1127, %v6554, %v6556
        %v6589 = vsel %vm1127, %v6556, %v6558
        %v6590 = vsel %vm1127, %v6558, %v6560
        %v6591 = vsel %vm1127, %v6560, %v6562
        %v6592 = vsel %vm1127, %v6562, %v6564
        %v6593 = vsel %vm1127, %v6564, %v6566
        %v6594 = vsel %vm1127, %v6566, %v6568
        %v6595 = vsel %vm1127, %v6570, %v6572
        %v6596 = vsel %vm1127, %v6572, %v6574
        %v6597 = vsel %vm1127, %v6574, %v6576
        %v6598 = vsel %vm1127, %v6576, %v6578
        %v6599 = vsel %vm1127, %v6578, %v6580
        %v6600 = vsel %vm1127, %v6580, %v6582
        %v6601 = vsel %vm1127, %v6582, %v6584
        %v6602 = vsel %vm1127, %v6584, %v6586
        %v6621 = vadd.f32 %v6483, %v6552
        %v6622 = vadd.f32 %v6484, %v6587
        %v6623 = vadd.f32 %v6485, %v6588
        %v6624 = vadd.f32 %v6486, %v6589
        %v6625 = vadd.f32 %v6487, %v6590
        %v6626 = vadd.f32 %v6488, %v6591
        %v6627 = vadd.f32 %v6489, %v6592
        %v6628 = vadd.f32 %v6490, %v6593
        %v6629 = vadd.f32 %v6491, %v6594
        %v6630 = vadd.f32 %v6492, %v6570
        %v6631 = vadd.f32 %v6493, %v6595
        %v6632 = vadd.f32 %v6494, %v6596
        %v6633 = vadd.f32 %v6495, %v6597
        %v6634 = vadd.f32 %v6496, %v6598
        %v6635 = vadd.f32 %v6497, %v6599
        %v6636 = vadd.f32 %v6498, %v6600
        %v6637 = vadd.f32 %v6499, %v6601
        %v6638 = vadd.f32 %v6500, %v6602
        %6639 = vset.pattern.permute.xlu0 4
        %6640 = vperm.xlu0 %6639, %v6111
        %v6641 = vpop.permute.xlu0 %6640
        %6643 = vset.pattern.permute.xlu0 4
        %6644 = vperm.xlu0 %6643, %v6112
        %v6645 = vpop.permute.xlu0 %6644
        %v6647 = vmul.f32 %v6641, %v6350
        %v6648 = vmul.f32 %v6641, %v6354
        %v6649 = vmul.f32 %v6641, %v6358
        %v6650 = vmul.f32 %v6641, %v6362
        %v6651 = vmul.f32 %v6641, %v6366
        %v6652 = vmul.f32 %v6641, %v6370
        %v6653 = vmul.f32 %v6641, %v6374
        %v6654 = vmul.f32 %v6641, %v6378
        %v6655 = vmul.f32 %v6641, %v6513
        %v6656 = vmul.f32 %v6645, %v6350
        %v6657 = vmul.f32 %v6645, %v6354
        %v6658 = vmul.f32 %v6645, %v6358
        %v6659 = vmul.f32 %v6645, %v6362
        %v6660 = vmul.f32 %v6645, %v6366
        %v6661 = vmul.f32 %v6645, %v6370
        %v6662 = vmul.f32 %v6645, %v6374
        %v6663 = vmul.f32 %v6645, %v6378
        %v6664 = vmul.f32 %v6645, %v6513
        %6683 = vrot.lane.b32.xlu0 %v6647, 124
        %v6684 = vpop.permute.xlu0 %6683
        %6685 = vrot.lane.b32.xlu0 %v6648, 124
        %v6686 = vpop.permute.xlu0 %6685
        %6687 = vrot.lane.b32.xlu0 %v6649, 124
        %v6688 = vpop.permute.xlu0 %6687
        %6689 = vrot.lane.b32.xlu0 %v6650, 124
        %v6690 = vpop.permute.xlu0 %6689
        %6691 = vrot.lane.b32.xlu0 %v6651, 124
        %v6692 = vpop.permute.xlu0 %6691
        %6693 = vrot.lane.b32.xlu0 %v6652, 124
        %v6694 = vpop.permute.xlu0 %6693
        %6695 = vrot.lane.b32.xlu0 %v6653, 124
        %v6696 = vpop.permute.xlu0 %6695
        %6697 = vrot.lane.b32.xlu0 %v6654, 124
        %v6698 = vpop.permute.xlu0 %6697
        %6699 = vrot.lane.b32.xlu0 %v6655, 124
        %v6700 = vpop.permute.xlu0 %6699
        %6701 = vrot.lane.b32.xlu0 %v6656, 124
        %v6702 = vpop.permute.xlu0 %6701
        %6703 = vrot.lane.b32.xlu0 %v6657, 124
        %v6704 = vpop.permute.xlu0 %6703
        %6705 = vrot.lane.b32.xlu0 %v6658, 124
        %v6706 = vpop.permute.xlu0 %6705
        %6707 = vrot.lane.b32.xlu0 %v6659, 124
        %v6708 = vpop.permute.xlu0 %6707
        %6709 = vrot.lane.b32.xlu0 %v6660, 124
        %v6710 = vpop.permute.xlu0 %6709
        %6711 = vrot.lane.b32.xlu0 %v6661, 124
        %v6712 = vpop.permute.xlu0 %6711
        %6713 = vrot.lane.b32.xlu0 %v6662, 124
        %v6714 = vpop.permute.xlu0 %6713
        %6715 = vrot.lane.b32.xlu0 %v6663, 124
        %v6716 = vpop.permute.xlu0 %6715
        %6717 = vrot.lane.b32.xlu0 %v6664, 124
        %v6718 = vpop.permute.xlu0 %6717
        %v6719 = vsel %vm1260, %v6684, %v6686
        %v6720 = vsel %vm1260, %v6686, %v6688
        %v6721 = vsel %vm1260, %v6688, %v6690
        %v6722 = vsel %vm1260, %v6690, %v6692
        %v6723 = vsel %vm1260, %v6692, %v6694
        %v6724 = vsel %vm1260, %v6694, %v6696
        %v6725 = vsel %vm1260, %v6696, %v6698
        %v6726 = vsel %vm1260, %v6698, %v6700
        %v6727 = vsel %vm1260, %v6702, %v6704
        %v6728 = vsel %vm1260, %v6704, %v6706
        %v6729 = vsel %vm1260, %v6706, %v6708
        %v6730 = vsel %vm1260, %v6708, %v6710
        %v6731 = vsel %vm1260, %v6710, %v6712
        %v6732 = vsel %vm1260, %v6712, %v6714
        %v6733 = vsel %vm1260, %v6714, %v6716
        %v6734 = vsel %vm1260, %v6716, %v6718
        %v6753 = vadd.f32 %v6621, %v6684
        %v6754 = vadd.f32 %v6622, %v6719
        %v6755 = vadd.f32 %v6623, %v6720
        %v6756 = vadd.f32 %v6624, %v6721
        %v6757 = vadd.f32 %v6625, %v6722
        %v6758 = vadd.f32 %v6626, %v6723
        %v6759 = vadd.f32 %v6627, %v6724
        %v6760 = vadd.f32 %v6628, %v6725
        %v6761 = vadd.f32 %v6629, %v6726
        %v6762 = vadd.f32 %v6630, %v6702
        %v6763 = vadd.f32 %v6631, %v6727
        %v6764 = vadd.f32 %v6632, %v6728
        %v6765 = vadd.f32 %v6633, %v6729
        %v6766 = vadd.f32 %v6634, %v6730
        %v6767 = vadd.f32 %v6635, %v6731
        %v6768 = vadd.f32 %v6636, %v6732
        %v6769 = vadd.f32 %v6637, %v6733
        %v6770 = vadd.f32 %v6638, %v6734
        %v6771 = vld [vmem:[#allocation7] sm:$0xff]
        %v6772 = vld [vmem:[#allocation7 + $0x8] sm:$0xff]
        %6774 = vset.pattern.permute.xlu0 0
        %6775 = vperm.xlu0 %6774, %v6771
        %v6776 = vpop.permute.xlu0 %6775
        %6779 = vset.pattern.permute.xlu0 0
        %6780 = vperm.xlu0 %6779, %v6772
        %v6781 = vpop.permute.xlu0 %6780
        %v6783 = vadd.f32 %v6753, %v6776
        %v6784 = vadd.f32 %v6754, %v6776
        %v6785 = vadd.f32 %v6755, %v6776
        %v6786 = vadd.f32 %v6756, %v6776
        %v6787 = vadd.f32 %v6757, %v6776
        %v6788 = vadd.f32 %v6758, %v6776
        %v6789 = vadd.f32 %v6759, %v6776
        %v6790 = vadd.f32 %v6760, %v6776
        %v6791 = vadd.f32 %v6761, %v6776
        %v6792 = vadd.f32 %v6762, %v6781
        %v6793 = vadd.f32 %v6763, %v6781
        %v6794 = vadd.f32 %v6764, %v6781
        %v6795 = vadd.f32 %v6765, %v6781
        %v6796 = vadd.f32 %v6766, %v6781
        %v6797 = vadd.f32 %v6767, %v6781
        %v6798 = vadd.f32 %v6768, %v6781
        %v6799 = vadd.f32 %v6769, %v6781
        %v6800 = vadd.f32 %v6770, %v6781
        %v6801 = vmax.f32 %v6783, 0.0
        %v6802 = vmax.f32 %v6784, 0.0
        %v6803 = vmax.f32 %v6785, 0.0
        %v6804 = vmax.f32 %v6786, 0.0
        %v6805 = vmax.f32 %v6787, 0.0
        %v6806 = vmax.f32 %v6788, 0.0
        %v6807 = vmax.f32 %v6789, 0.0
        %v6808 = vmax.f32 %v6790, 0.0
        %v6809 = vmax.f32 %v6791, 0.0
        %v6810 = vmax.f32 %v6792, 0.0
        %v6811 = vmax.f32 %v6793, 0.0
        %v6812 = vmax.f32 %v6794, 0.0
        %v6813 = vmax.f32 %v6795, 0.0
        %v6814 = vmax.f32 %v6796, 0.0
        %v6815 = vmax.f32 %v6797, 0.0
        %v6816 = vmax.f32 %v6798, 0.0
        %v6817 = vmax.f32 %v6799, 0.0
        %v6818 = vmax.f32 %v6800, 0.0
        %6837 = vrot.lane.b32.xlu0 %v6801, 2
        %v6838 = vpop.permute.xlu0 %6837
        %6839 = vrot.lane.b32.xlu0 %v6802, 2
        %v6840 = vpop.permute.xlu0 %6839
        %6841 = vrot.lane.b32.xlu0 %v6803, 2
        %v6842 = vpop.permute.xlu0 %6841
        %6843 = vrot.lane.b32.xlu0 %v6804, 2
        %v6844 = vpop.permute.xlu0 %6843
        %6845 = vrot.lane.b32.xlu0 %v6805, 2
        %v6846 = vpop.permute.xlu0 %6845
        %6847 = vrot.lane.b32.xlu0 %v6806, 2
        %v6848 = vpop.permute.xlu0 %6847
        %6849 = vrot.lane.b32.xlu0 %v6807, 2
        %v6850 = vpop.permute.xlu0 %6849
        %6851 = vrot.lane.b32.xlu0 %v6808, 2
        %v6852 = vpop.permute.xlu0 %6851
        %6853 = vrot.lane.b32.xlu0 %v6809, 2
        %v6854 = vpop.permute.xlu0 %6853
        %6855 = vrot.lane.b32.xlu0 %v6810, 2
        %v6856 = vpop.permute.xlu0 %6855
        %6857 = vrot.lane.b32.xlu0 %v6811, 2
        %v6858 = vpop.permute.xlu0 %6857
        %6859 = vrot.lane.b32.xlu0 %v6812, 2
        %v6860 = vpop.permute.xlu0 %6859
        %6861 = vrot.lane.b32.xlu0 %v6813, 2
        %v6862 = vpop.permute.xlu0 %6861
        %6863 = vrot.lane.b32.xlu0 %v6814, 2
        %v6864 = vpop.permute.xlu0 %6863
        %6865 = vrot.lane.b32.xlu0 %v6815, 2
        %v6866 = vpop.permute.xlu0 %6865
        %6867 = vrot.lane.b32.xlu0 %v6816, 2
        %v6868 = vpop.permute.xlu0 %6867
        %6869 = vrot.lane.b32.xlu0 %v6817, 2
        %v6870 = vpop.permute.xlu0 %6869
        %6871 = vrot.lane.b32.xlu0 %v6818, 2
        %v6872 = vpop.permute.xlu0 %6871
        %v6873 = vsel %vm1415, %v6838, %v6840
        %v6874 = vsel %vm1415, %v6840, %v6842
        %v6875 = vsel %vm1415, %v6842, %v6844
        %v6876 = vsel %vm1415, %v6844, %v6846
        %v6877 = vsel %vm1415, %v6846, %v6848
        %v6878 = vsel %vm1415, %v6848, %v6850
        %v6879 = vsel %vm1415, %v6850, %v6852
        %v6880 = vsel %vm1415, %v6852, %v6854
        %v6881 = vsel %vm1415, %v6856, %v6858
        %v6882 = vsel %vm1415, %v6858, %v6860
        %v6883 = vsel %vm1415, %v6860, %v6862
        %v6884 = vsel %vm1415, %v6862, %v6864
        %v6885 = vsel %vm1415, %v6864, %v6866
        %v6886 = vsel %vm1415, %v6866, %v6868
        %v6887 = vsel %vm1415, %v6868, %v6870
        %v6888 = vsel %vm1415, %v6870, %v6872
        %6905 = vst [vmem:[#allocation2 + $0x8] sm:$0xff] %v6873
        %6906 = vst [vmem:[#allocation2 + $0x10] sm:$0xff] %v6874
        %6907 = vst [vmem:[#allocation2 + $0x18] sm:$0xff] %v6875
        %6908 = vst [vmem:[#allocation2 + $0x20] sm:$0xff] %v6876
        %6909 = vst [vmem:[#allocation2 + $0x28] sm:$0xff] %v6877
        %6910 = vst [vmem:[#allocation2 + $0x30] sm:$0xff] %v6878
        %6911 = vst [vmem:[#allocation2 + $0x38] sm:$0xff] %v6879
        %6912 = vst [vmem:[#allocation2 + $0x40] sm:$0xff] %v6880
        %6913 = vst [vmem:[#allocation2 + $0x58] sm:$0xff] %v6881
        %6914 = vst [vmem:[#allocation2 + $0x60] sm:$0xff] %v6882
        %6915 = vst [vmem:[#allocation2 + $0x68] sm:$0xff] %v6883
        %6916 = vst [vmem:[#allocation2 + $0x70] sm:$0xff] %v6884
        %6917 = vst [vmem:[#allocation2 + $0x78] sm:$0xff] %v6885
        %6918 = vst [vmem:[#allocation2 + $0x80] sm:$0xff] %v6886
        %6919 = vst [vmem:[#allocation2 + $0x88] sm:$0xff] %v6887
        %6920 = vst [vmem:[#allocation2 + $0x90] sm:$0xff] %v6888
        %v6921 = vld [vmem:[#allocation2] sm:$0xff]
        %v6922 = vld [vmem:[#allocation2 + $0x8] sm:$0xff]
        %v6923 = vld [vmem:[#allocation2 + $0x10] sm:$0xff]
        %v6924 = vld [vmem:[#allocation2 + $0x18] sm:$0xff]
        %v6925 = vld [vmem:[#allocation2 + $0x20] sm:$0xff]
        %v6926 = vld [vmem:[#allocation2 + $0x28] sm:$0xff]
        %v6927 = vld [vmem:[#allocation2 + $0x30] sm:$0xff]
        %v6928 = vld [vmem:[#allocation2 + $0x38] sm:$0xff]
        %v6929 = vld [vmem:[#allocation2 + $0x40] sm:$0xff]
        %v6930 = vld [vmem:[#allocation2 + $0x50] sm:$0xff]
        %v6931 = vld [vmem:[#allocation2 + $0x58] sm:$0xff]
        %v6932 = vld [vmem:[#allocation2 + $0x60] sm:$0xff]
        %v6933 = vld [vmem:[#allocation2 + $0x68] sm:$0xff]
        %v6934 = vld [vmem:[#allocation2 + $0x70] sm:$0xff]
        %v6935 = vld [vmem:[#allocation2 + $0x78] sm:$0xff]
        %v6936 = vld [vmem:[#allocation2 + $0x80] sm:$0xff]
        %v6937 = vld [vmem:[#allocation2 + $0x88] sm:$0xff]
        %v6938 = vld [vmem:[#allocation2 + $0x90] sm:$0xff]
        %v6939 = vld [vmem:[#allocation2 + $0x48] sm:$0xff]
        %v6940 = vld [vmem:[#allocation2 + $0x98] sm:$0xff]
        %6959 = vrot.lane.b32.xlu0 %v6921, 126
        %v6960 = vpop.permute.xlu0 %6959
        %6961 = vrot.lane.b32.xlu0 %v6922, 126
        %v6962 = vpop.permute.xlu0 %6961
        %6963 = vrot.lane.b32.xlu0 %v6923, 126
        %v6964 = vpop.permute.xlu0 %6963
        %6965 = vrot.lane.b32.xlu0 %v6924, 126
        %v6966 = vpop.permute.xlu0 %6965
        %6967 = vrot.lane.b32.xlu0 %v6925, 126
        %v6968 = vpop.permute.xlu0 %6967
        %6969 = vrot.lane.b32.xlu0 %v6926, 126
        %v6970 = vpop.permute.xlu0 %6969
        %6971 = vrot.lane.b32.xlu0 %v6927, 126
        %v6972 = vpop.permute.xlu0 %6971
        %6973 = vrot.lane.b32.xlu0 %v6928, 126
        %v6974 = vpop.permute.xlu0 %6973
        %6975 = vrot.lane.b32.xlu0 %v6929, 126
        %v6976 = vpop.permute.xlu0 %6975
        %6977 = vrot.lane.b32.xlu0 %v6930, 126
        %v6978 = vpop.permute.xlu0 %6977
        %6979 = vrot.lane.b32.xlu0 %v6931, 126
        %v6980 = vpop.permute.xlu0 %6979
        %6981 = vrot.lane.b32.xlu0 %v6932, 126
        %v6982 = vpop.permute.xlu0 %6981
        %6983 = vrot.lane.b32.xlu0 %v6933, 126
        %v6984 = vpop.permute.xlu0 %6983
        %6985 = vrot.lane.b32.xlu0 %v6934, 126
        %v6986 = vpop.permute.xlu0 %6985
        %6987 = vrot.lane.b32.xlu0 %v6935, 126
        %v6988 = vpop.permute.xlu0 %6987
        %6989 = vrot.lane.b32.xlu0 %v6936, 126
        %v6990 = vpop.permute.xlu0 %6989
        %6991 = vrot.lane.b32.xlu0 %v6937, 126
        %v6992 = vpop.permute.xlu0 %6991
        %6993 = vrot.lane.b32.xlu0 %v6938, 126
        %v6994 = vpop.permute.xlu0 %6993
        %v6995 = vsel %vm990, %v6960, %v6962
        %v6996 = vsel %vm990, %v6962, %v6964
        %v6997 = vsel %vm990, %v6964, %v6966
        %v6998 = vsel %vm990, %v6966, %v6968
        %v6999 = vsel %vm990, %v6968, %v6970
        %v7000 = vsel %vm990, %v6970, %v6972
        %v7001 = vsel %vm990, %v6972, %v6974
        %v7002 = vsel %vm990, %v6974, %v6976
        %v7003 = vsel %vm990, %v6978, %v6980
        %v7004 = vsel %vm990, %v6980, %v6982
        %v7005 = vsel %vm990, %v6982, %v6984
        %v7006 = vsel %vm990, %v6984, %v6986
        %v7007 = vsel %vm990, %v6986, %v6988
        %v7008 = vsel %vm990, %v6988, %v6990
        %v7009 = vsel %vm990, %v6990, %v6992
        %v7010 = vsel %vm990, %v6992, %v6994
        %7029 = vrot.lane.b32.xlu0 %v6922, 124
        %v7030 = vpop.permute.xlu0 %7029
        %7031 = vrot.lane.b32.xlu0 %v6923, 124
        %v7032 = vpop.permute.xlu0 %7031
        %7033 = vrot.lane.b32.xlu0 %v6924, 124
        %v7034 = vpop.permute.xlu0 %7033
        %7035 = vrot.lane.b32.xlu0 %v6925, 124
        %v7036 = vpop.permute.xlu0 %7035
        %7037 = vrot.lane.b32.xlu0 %v6926, 124
        %v7038 = vpop.permute.xlu0 %7037
        %7039 = vrot.lane.b32.xlu0 %v6927, 124
        %v7040 = vpop.permute.xlu0 %7039
        %7041 = vrot.lane.b32.xlu0 %v6928, 124
        %v7042 = vpop.permute.xlu0 %7041
        %7043 = vrot.lane.b32.xlu0 %v6929, 124
        %v7044 = vpop.permute.xlu0 %7043
        %7045 = vrot.lane.b32.xlu0 %v6931, 124
        %v7046 = vpop.permute.xlu0 %7045
        %7047 = vrot.lane.b32.xlu0 %v6932, 124
        %v7048 = vpop.permute.xlu0 %7047
        %7049 = vrot.lane.b32.xlu0 %v6933, 124
        %v7050 = vpop.permute.xlu0 %7049
        %7051 = vrot.lane.b32.xlu0 %v6934, 124
        %v7052 = vpop.permute.xlu0 %7051
        %7053 = vrot.lane.b32.xlu0 %v6935, 124
        %v7054 = vpop.permute.xlu0 %7053
        %7055 = vrot.lane.b32.xlu0 %v6936, 124
        %v7056 = vpop.permute.xlu0 %7055
        %7057 = vrot.lane.b32.xlu0 %v6937, 124
        %v7058 = vpop.permute.xlu0 %7057
        %7059 = vrot.lane.b32.xlu0 %v6938, 124
        %v7060 = vpop.permute.xlu0 %7059
        %v7061 = vsel %vm1260, %v7030, %v7032
        %v7062 = vsel %vm1260, %v7032, %v7034
        %v7063 = vsel %vm1260, %v7034, %v7036
        %v7064 = vsel %vm1260, %v7036, %v7038
        %v7065 = vsel %vm1260, %v7038, %v7040
        %v7066 = vsel %vm1260, %v7040, %v7042
        %v7067 = vsel %vm1260, %v7042, %v7044
        %v7068 = vsel %vm1260, %v7046, %v7048
        %v7069 = vsel %vm1260, %v7048, %v7050
        %v7070 = vsel %vm1260, %v7050, %v7052
        %v7071 = vsel %vm1260, %v7052, %v7054
        %v7072 = vsel %vm1260, %v7054, %v7056
        %v7073 = vsel %vm1260, %v7056, %v7058
        %v7074 = vsel %vm1260, %v7058, %v7060
        %7095 = vrot.lane.b32.xlu0 %v6922, 122
        %v7096 = vpop.permute.xlu0 %7095
        %7097 = vrot.lane.b32.xlu0 %v6923, 122
        %v7098 = vpop.permute.xlu0 %7097
        %7099 = vrot.lane.b32.xlu0 %v6924, 122
        %v7100 = vpop.permute.xlu0 %7099
        %7101 = vrot.lane.b32.xlu0 %v6925, 122
        %v7102 = vpop.permute.xlu0 %7101
        %7103 = vrot.lane.b32.xlu0 %v6926, 122
        %v7104 = vpop.permute.xlu0 %7103
        %7105 = vrot.lane.b32.xlu0 %v6927, 122
        %v7106 = vpop.permute.xlu0 %7105
        %7107 = vrot.lane.b32.xlu0 %v6928, 122
        %v7108 = vpop.permute.xlu0 %7107
        %7109 = vrot.lane.b32.xlu0 %v6929, 122
        %v7110 = vpop.permute.xlu0 %7109
        %7111 = vrot.lane.b32.xlu0 %v6939, 122
        %v7112 = vpop.permute.xlu0 %7111
        %7113 = vrot.lane.b32.xlu0 %v6931, 122
        %v7114 = vpop.permute.xlu0 %7113
        %7115 = vrot.lane.b32.xlu0 %v6932, 122
        %v7116 = vpop.permute.xlu0 %7115
        %7117 = vrot.lane.b32.xlu0 %v6933, 122
        %v7118 = vpop.permute.xlu0 %7117
        %7119 = vrot.lane.b32.xlu0 %v6934, 122
        %v7120 = vpop.permute.xlu0 %7119
        %7121 = vrot.lane.b32.xlu0 %v6935, 122
        %v7122 = vpop.permute.xlu0 %7121
        %7123 = vrot.lane.b32.xlu0 %v6936, 122
        %v7124 = vpop.permute.xlu0 %7123
        %7125 = vrot.lane.b32.xlu0 %v6937, 122
        %v7126 = vpop.permute.xlu0 %7125
        %7127 = vrot.lane.b32.xlu0 %v6938, 122
        %v7128 = vpop.permute.xlu0 %7127
        %7129 = vrot.lane.b32.xlu0 %v6940, 122
        %v7130 = vpop.permute.xlu0 %7129
        %v7131 = vsel %vm1674, %v7096, %v7098
        %v7132 = vsel %vm1674, %v7098, %v7100
        %v7133 = vsel %vm1674, %v7100, %v7102
        %v7134 = vsel %vm1674, %v7102, %v7104
        %v7135 = vsel %vm1674, %v7104, %v7106
        %v7136 = vsel %vm1674, %v7106, %v7108
        %v7137 = vsel %vm1674, %v7108, %v7110
        %v7138 = vsel %vm1674, %v7110, %v7112
        %v7139 = vsel %vm1674, %v7114, %v7116
        %v7140 = vsel %vm1674, %v7116, %v7118
        %v7141 = vsel %vm1674, %v7118, %v7120
        %v7142 = vsel %vm1674, %v7120, %v7122
        %v7143 = vsel %vm1674, %v7122, %v7124
        %v7144 = vsel %vm1674, %v7124, %v7126
        %v7145 = vsel %vm1674, %v7126, %v7128
        %v7146 = vsel %vm1674, %v7128, %v7130
        %7165 = vrot.lane.b32.xlu0 %v6922, 120
        %v7166 = vpop.permute.xlu0 %7165
        %7167 = vrot.lane.b32.xlu0 %v6923, 120
        %v7168 = vpop.permute.xlu0 %7167
        %7169 = vrot.lane.b32.xlu0 %v6924, 120
        %v7170 = vpop.permute.xlu0 %7169
        %7171 = vrot.lane.b32.xlu0 %v6925, 120
        %v7172 = vpop.permute.xlu0 %7171
        %7173 = vrot.lane.b32.xlu0 %v6926, 120
        %v7174 = vpop.permute.xlu0 %7173
        %7175 = vrot.lane.b32.xlu0 %v6927, 120
        %v7176 = vpop.permute.xlu0 %7175
        %7177 = vrot.lane.b32.xlu0 %v6928, 120
        %v7178 = vpop.permute.xlu0 %7177
        %7179 = vrot.lane.b32.xlu0 %v6929, 120
        %v7180 = vpop.permute.xlu0 %7179
        %7181 = vrot.lane.b32.xlu0 %v6939, 120
        %v7182 = vpop.permute.xlu0 %7181
        %7183 = vrot.lane.b32.xlu0 %v6931, 120
        %v7184 = vpop.permute.xlu0 %7183
        %7185 = vrot.lane.b32.xlu0 %v6932, 120
        %v7186 = vpop.permute.xlu0 %7185
        %7187 = vrot.lane.b32.xlu0 %v6933, 120
        %v7188 = vpop.permute.xlu0 %7187
        %7189 = vrot.lane.b32.xlu0 %v6934, 120
        %v7190 = vpop.permute.xlu0 %7189
        %7191 = vrot.lane.b32.xlu0 %v6935, 120
        %v7192 = vpop.permute.xlu0 %7191
        %7193 = vrot.lane.b32.xlu0 %v6936, 120
        %v7194 = vpop.permute.xlu0 %7193
        %7195 = vrot.lane.b32.xlu0 %v6937, 120
        %v7196 = vpop.permute.xlu0 %7195
        %7197 = vrot.lane.b32.xlu0 %v6938, 120
        %v7198 = vpop.permute.xlu0 %7197
        %7199 = vrot.lane.b32.xlu0 %v6940, 120
        %v7200 = vpop.permute.xlu0 %7199
        %v7201 = vsel %vm1745, %v7166, %v7168
        %v7202 = vsel %vm1745, %v7168, %v7170
        %v7203 = vsel %vm1745, %v7170, %v7172
        %v7204 = vsel %vm1745, %v7172, %v7174
        %v7205 = vsel %vm1745, %v7174, %v7176
        %v7206 = vsel %vm1745, %v7176, %v7178
        %v7207 = vsel %vm1745, %v7178, %v7180
        %v7208 = vsel %vm1745, %v7180, %v7182
        %v7209 = vsel %vm1745, %v7184, %v7186
        %v7210 = vsel %vm1745, %v7186, %v7188
        %v7211 = vsel %vm1745, %v7188, %v7190
        %v7212 = vsel %vm1745, %v7190, %v7192
        %v7213 = vsel %vm1745, %v7192, %v7194
        %v7214 = vsel %vm1745, %v7194, %v7196
        %v7215 = vsel %vm1745, %v7196, %v7198
        %v7216 = vsel %vm1745, %v7198, %v7200
        %v7235 = vpack.c.bf16 %v6930, %v6921
        %v7236 = vpack.c.bf16 %v6931, %v6922
        %v7237 = vpack.c.bf16 %v6932, %v6923
        %v7238 = vpack.c.bf16 %v6933, %v6924
        %v7239 = vpack.c.bf16 %v6934, %v6925
        %v7240 = vpack.c.bf16 %v6935, %v6926
        %v7241 = vpack.c.bf16 %v6936, %v6927
        %v7242 = vpack.c.bf16 %v6937, %v6928
        %v7243 = vpack.c.bf16 %v6938, %v6929
        %v7244 = vpack.c.bf16 %v7003, %v6995
        %v7245 = vpack.c.bf16 %v7004, %v6996
        %v7246 = vpack.c.bf16 %v7005, %v6997
        %v7247 = vpack.c.bf16 %v7006, %v6998
        %v7248 = vpack.c.bf16 %v7007, %v6999
        %v7249 = vpack.c.bf16 %v7008, %v7000
        %v7250 = vpack.c.bf16 %v7009, %v7001
        %v7251 = vpack.c.bf16 %v7010, %v7002
        %v7252 = vpack.c.bf16 %v6994, %v6976
        %v7253 = vpack.c.bf16 %v7046, %v7030
        %v7254 = vpack.c.bf16 %v7068, %v7061
        %v7255 = vpack.c.bf16 %v7069, %v7062
        %v7256 = vpack.c.bf16 %v7070, %v7063
        %v7257 = vpack.c.bf16 %v7071, %v7064
        %v7258 = vpack.c.bf16 %v7072, %v7065
        %v7259 = vpack.c.bf16 %v7073, %v7066
        %v7260 = vpack.c.bf16 %v7074, %v7067
        %v7261 = vpack.c.bf16 %v7060, %v7044
        %v7262 = vpack.c.bf16 %v7114, %v7096
        %v7263 = vpack.c.bf16 %v7139, %v7131
        %v7264 = vpack.c.bf16 %v7140, %v7132
        %v7265 = vpack.c.bf16 %v7141, %v7133
        %v7266 = vpack.c.bf16 %v7142, %v7134
        %v7267 = vpack.c.bf16 %v7143, %v7135
        %v7268 = vpack.c.bf16 %v7144, %v7136
        %v7269 = vpack.c.bf16 %v7145, %v7137
        %v7270 = vpack.c.bf16 %v7146, %v7138
        %v7271 = vpack.c.bf16 %v7184, %v7166
        %v7272 = vpack.c.bf16 %v7209, %v7201
        %v7273 = vpack.c.bf16 %v7210, %v7202
        %v7274 = vpack.c.bf16 %v7211, %v7203
        %v7275 = vpack.c.bf16 %v7212, %v7204
        %v7276 = vpack.c.bf16 %v7213, %v7205
        %v7277 = vpack.c.bf16 %v7214, %v7206
        %v7278 = vpack.c.bf16 %v7215, %v7207
        %v7279 = vpack.c.bf16 %v7216, %v7208
        %v7280 = vld [vmem:[#allocation8] sm:$0xf]
        %v7281 = vld [vmem:[#allocation8 + $0x4] sm:$0xf]
        %v7282 = vld [vmem:[#allocation10] sm:$0xff]
        %v7283 = vld [vmem:[#allocation10 + $0x8] sm:$0xff]
        %7285 = vset.pattern.permute.xlu0 0
        %7286 = vperm.xlu0 %7285, %v7282
        %v7287 = vpop.permute.xlu0 %7286
        %7290 = vset.pattern.permute.xlu0 0
        %7291 = vperm.xlu0 %7290, %v7283
        %v7292 = vpop.permute.xlu0 %7291
        %v7296 = vunpack.c.l.b16 %v7280
        %v7297 = vunpack.c.l.b16 %v7281
        %v7298 = vpack.c.b16 %v7297, %v7296
        %7344 = vrot.lane.b32.xlu0 %v7235, 4
        %v7345 = vpop.permute.xlu0 %7344
        %7346 = vrot.lane.b32.xlu0 %v7236, 4
        %v7347 = vpop.permute.xlu0 %7346
        %7348 = vrot.lane.b32.xlu0 %v7237, 4
        %v7349 = vpop.permute.xlu0 %7348
        %7350 = vrot.lane.b32.xlu0 %v7238, 4
        %v7351 = vpop.permute.xlu0 %7350
        %7352 = vrot.lane.b32.xlu0 %v7239, 4
        %v7353 = vpop.permute.xlu0 %7352
        %7354 = vrot.lane.b32.xlu0 %v7240, 4
        %v7355 = vpop.permute.xlu0 %7354
        %7356 = vrot.lane.b32.xlu0 %v7241, 4
        %v7357 = vpop.permute.xlu0 %7356
        %7358 = vrot.lane.b32.xlu0 %v7242, 4
        %v7359 = vpop.permute.xlu0 %7358
        %7360 = vrot.lane.b32.xlu0 %v7243, 4
        %v7361 = vpop.permute.xlu0 %7360
        %7362 = vrot.lane.b32.xlu0 %v7244, 4
        %v7363 = vpop.permute.xlu0 %7362
        %7364 = vrot.lane.b32.xlu0 %v7245, 4
        %v7365 = vpop.permute.xlu0 %7364
        %7366 = vrot.lane.b32.xlu0 %v7246, 4
        %v7367 = vpop.permute.xlu0 %7366
        %7368 = vrot.lane.b32.xlu0 %v7247, 4
        %v7369 = vpop.permute.xlu0 %7368
        %7370 = vrot.lane.b32.xlu0 %v7248, 4
        %v7371 = vpop.permute.xlu0 %7370
        %7372 = vrot.lane.b32.xlu0 %v7249, 4
        %v7373 = vpop.permute.xlu0 %7372
        %7374 = vrot.lane.b32.xlu0 %v7250, 4
        %v7375 = vpop.permute.xlu0 %7374
        %7376 = vrot.lane.b32.xlu0 %v7251, 4
        %v7377 = vpop.permute.xlu0 %7376
        %7378 = vrot.lane.b32.xlu0 %v7252, 4
        %v7379 = vpop.permute.xlu0 %7378
        %7380 = vrot.lane.b32.xlu0 %v7253, 4
        %v7381 = vpop.permute.xlu0 %7380
        %7382 = vrot.lane.b32.xlu0 %v7254, 4
        %v7383 = vpop.permute.xlu0 %7382
        %7384 = vrot.lane.b32.xlu0 %v7255, 4
        %v7385 = vpop.permute.xlu0 %7384
        %7386 = vrot.lane.b32.xlu0 %v7256, 4
        %v7387 = vpop.permute.xlu0 %7386
        %7388 = vrot.lane.b32.xlu0 %v7257, 4
        %v7389 = vpop.permute.xlu0 %7388
        %7390 = vrot.lane.b32.xlu0 %v7258, 4
        %v7391 = vpop.permute.xlu0 %7390
        %7392 = vrot.lane.b32.xlu0 %v7259, 4
        %v7393 = vpop.permute.xlu0 %7392
        %7394 = vrot.lane.b32.xlu0 %v7260, 4
        %v7395 = vpop.permute.xlu0 %7394
        %7396 = vrot.lane.b32.xlu0 %v7261, 4
        %v7397 = vpop.permute.xlu0 %7396
        %7398 = vrot.lane.b32.xlu0 %v7262, 4
        %v7399 = vpop.permute.xlu0 %7398
        %7400 = vrot.lane.b32.xlu0 %v7263, 4
        %v7401 = vpop.permute.xlu0 %7400
        %7402 = vrot.lane.b32.xlu0 %v7264, 4
        %v7403 = vpop.permute.xlu0 %7402
        %7404 = vrot.lane.b32.xlu0 %v7265, 4
        %v7405 = vpop.permute.xlu0 %7404
        %7406 = vrot.lane.b32.xlu0 %v7266, 4
        %v7407 = vpop.permute.xlu0 %7406
        %7408 = vrot.lane.b32.xlu0 %v7267, 4
        %v7409 = vpop.permute.xlu0 %7408
        %7410 = vrot.lane.b32.xlu0 %v7268, 4
        %v7411 = vpop.permute.xlu0 %7410
        %7412 = vrot.lane.b32.xlu0 %v7269, 4
        %v7413 = vpop.permute.xlu0 %7412
        %7414 = vrot.lane.b32.xlu0 %v7270, 4
        %v7415 = vpop.permute.xlu0 %7414
        %7416 = vrot.lane.b32.xlu0 %v7271, 4
        %v7417 = vpop.permute.xlu0 %7416
        %7418 = vrot.lane.b32.xlu0 %v7272, 4
        %v7419 = vpop.permute.xlu0 %7418
        %7420 = vrot.lane.b32.xlu0 %v7273, 4
        %v7421 = vpop.permute.xlu0 %7420
        %7422 = vrot.lane.b32.xlu0 %v7274, 4
        %v7423 = vpop.permute.xlu0 %7422
        %7424 = vrot.lane.b32.xlu0 %v7275, 4
        %v7425 = vpop.permute.xlu0 %7424
        %7426 = vrot.lane.b32.xlu0 %v7276, 4
        %v7427 = vpop.permute.xlu0 %7426
        %7428 = vrot.lane.b32.xlu0 %v7277, 4
        %v7429 = vpop.permute.xlu0 %7428
        %7430 = vrot.lane.b32.xlu0 %v7278, 4
        %v7431 = vpop.permute.xlu0 %7430
        %7432 = vrot.lane.b32.xlu0 %v7279, 4
        %v7433 = vpop.permute.xlu0 %7432
        %v7434 = vsel %vm1979, %v7345, %v7347
        %v7435 = vsel %vm1979, %v7347, %v7349
        %v7436 = vsel %vm1979, %v7349, %v7351
        %v7437 = vsel %vm1979, %v7351, %v7353
        %v7438 = vsel %vm1979, %v7353, %v7355
        %v7439 = vsel %vm1979, %v7355, %v7357
        %v7440 = vsel %vm1979, %v7357, %v7359
        %v7441 = vsel %vm1979, %v7359, %v7361
        %v7442 = vsel %vm1979, %v7363, %v7365
        %v7443 = vsel %vm1979, %v7365, %v7367
        %v7444 = vsel %vm1979, %v7367, %v7369
        %v7445 = vsel %vm1979, %v7369, %v7371
        %v7446 = vsel %vm1979, %v7371, %v7373
        %v7447 = vsel %vm1979, %v7373, %v7375
        %v7448 = vsel %vm1979, %v7375, %v7377
        %v7449 = vsel %vm1979, %v7377, %v7379
        %v7450 = vsel %vm1979, %v7381, %v7383
        %v7451 = vsel %vm1979, %v7383, %v7385
        %v7452 = vsel %vm1979, %v7385, %v7387
        %v7453 = vsel %vm1979, %v7387, %v7389
        %v7454 = vsel %vm1979, %v7389, %v7391
        %v7455 = vsel %vm1979, %v7391, %v7393
        %v7456 = vsel %vm1979, %v7393, %v7395
        %v7457 = vsel %vm1979, %v7395, %v7397
        %v7458 = vsel %vm1979, %v7399, %v7401
        %v7459 = vsel %vm1979, %v7401, %v7403
        %v7460 = vsel %vm1979, %v7403, %v7405
        %v7461 = vsel %vm1979, %v7405, %v7407
        %v7462 = vsel %vm1979, %v7407, %v7409
        %v7463 = vsel %vm1979, %v7409, %v7411
        %v7464 = vsel %vm1979, %v7411, %v7413
        %v7465 = vsel %vm1979, %v7413, %v7415
        %v7466 = vsel %vm1979, %v7417, %v7419
        %v7467 = vsel %vm1979, %v7419, %v7421
        %v7468 = vsel %vm1979, %v7421, %v7423
        %v7469 = vsel %vm1979, %v7423, %v7425
        %v7470 = vsel %vm1979, %v7425, %v7427
        %v7471 = vsel %vm1979, %v7427, %v7429
        %v7472 = vsel %vm1979, %v7429, %v7431
        %v7473 = vsel %vm1979, %v7431, %v7433
        %v7515 = vsel %vm2060, %v7298, 0
        %7517 = vmatprep.subr.bf16.mxu0 0
        %7518 = vmatpush1.bf16.msra.mxu0 0
        %7519 = vmatprep.subr.bf16.mxu0 0
        %7520 = vmatpush1.bf16.msra.mxu0 0
        %7521 = vmatprep.subr.bf16.mxu0 0
        %7522 = vmatpush1.bf16.msra.mxu0 0
        %7523 = vmatprep.subr.bf16.mxu0 %v7467
        %7524 = vmatpush1.bf16.msra.mxu0 %v7466
        %7525 = vmatprep.subr.bf16.mxu0 %v7459
        %7526 = vmatpush1.bf16.msra.mxu0 %v7458
        %7527 = vmatprep.subr.bf16.mxu0 %v7451
        %7528 = vmatpush1.bf16.msra.mxu0 %v7450
        %7529 = vmatprep.subr.bf16.mxu0 %v7443
        %7530 = vmatpush1.bf16.msra.mxu0 %v7442
        %7531 = vmatprep.subr.bf16.mxu0 %v7435
        %7532 = vmatpush1.bf16.msra.mxu0 %v7434
        %7533 = vmatprep.subr.bf16.mxu0 0
        %7534 = vmatpush2.bf16.msra.mxu0 0
        %7535 = vmatprep.subr.bf16.mxu0 0
        %7536 = vmatpush2.bf16.msra.mxu0 0
        %7537 = vmatprep.subr.bf16.mxu0 0
        %7538 = vmatpush2.bf16.msra.mxu0 0
        %7539 = vmatprep.subr.bf16.mxu0 0
        %7540 = vmatpush2.bf16.msra.mxu0 0
        %7541 = vmatprep.subr.bf16.mxu0 0
        %7542 = vmatpush2.bf16.msra.mxu0 0
        %7543 = vmatprep.subr.bf16.mxu0 0
        %7544 = vmatpush2.bf16.msra.mxu0 0
        %7545 = vmatprep.subr.bf16.mxu0 0
        %7546 = vmatpush2.bf16.msra.mxu0 0
        %7547 = vmatprep.subr.bf16.mxu0 0
        %7548 = vmatpush2.bf16.msra.mxu0 0
        %7549 = vmatprep.mubr.bf16.mxu0 0
        %7550 = vmatmul.mubr.bf16.gmra.mxu0 %v7515
        %v7551 = vpop.f32.mrf.mxu0
        %v7552 = vadd.f32 %v7287, %v7551
        %v7553 = vpop.f32.mrf.mxu0
        %v7554 = vadd.f32 %v7287, %v7553
        %v7555 = vpop.f32.mrf.mxu0
        %v7556 = vadd.f32 %v7292, %v7555
        %v7557 = vpop.f32.mrf.mxu0
        %v7558 = vadd.f32 %v7292, %v7557
        %7559 = vdwg.mxu0
        %7560 = vmatprep.subr.bf16.mxu0 0
        %7561 = vmatpush1.bf16.msra.mxu0 0
        %7562 = vmatprep.subr.bf16.mxu0 0
        %7563 = vmatpush1.bf16.msra.mxu0 0
        %7564 = vmatprep.subr.bf16.mxu0 0
        %7565 = vmatpush1.bf16.msra.mxu0 0
        %7566 = vmatprep.subr.bf16.mxu0 %v7469
        %7567 = vmatpush1.bf16.msra.mxu0 %v7468
        %7568 = vmatprep.subr.bf16.mxu0 %v7461
        %7569 = vmatpush1.bf16.msra.mxu0 %v7460
        %7570 = vmatprep.subr.bf16.mxu0 %v7453
        %7571 = vmatpush1.bf16.msra.mxu0 %v7452
        %7572 = vmatprep.subr.bf16.mxu0 %v7445
        %7573 = vmatpush1.bf16.msra.mxu0 %v7444
        %7574 = vmatprep.subr.bf16.mxu0 %v7437
        %7575 = vmatpush1.bf16.msra.mxu0 %v7436
        %7576 = vmatprep.subr.bf16.mxu0 0
        %7577 = vmatpush2.bf16.msra.mxu0 0
        %7578 = vmatprep.subr.bf16.mxu0 0
        %7579 = vmatpush2.bf16.msra.mxu0 0
        %7580 = vmatprep.subr.bf16.mxu0 0
        %7581 = vmatpush2.bf16.msra.mxu0 0
        %7582 = vmatprep.subr.bf16.mxu0 0
        %7583 = vmatpush2.bf16.msra.mxu0 0
        %7584 = vmatprep.subr.bf16.mxu0 0
        %7585 = vmatpush2.bf16.msra.mxu0 0
        %7586 = vmatprep.subr.bf16.mxu0 0
        %7587 = vmatpush2.bf16.msra.mxu0 0
        %7588 = vmatprep.subr.bf16.mxu0 0
        %7589 = vmatpush2.bf16.msra.mxu0 0
        %7590 = vmatprep.subr.bf16.mxu0 0
        %7591 = vmatpush2.bf16.msra.mxu0 0
        %7592 = vmatprep.mubr.bf16.mxu0 0
        %7593 = vmatmul.mubr.bf16.gmra.mxu0 %v7515
        %v7594 = vpop.f32.mrf.mxu0
        %v7595 = vadd.f32 %v7287, %v7594
        %v7596 = vpop.f32.mrf.mxu0
        %v7597 = vadd.f32 %v7287, %v7596
        %v7598 = vpop.f32.mrf.mxu0
        %v7599 = vadd.f32 %v7292, %v7598
        %v7600 = vpop.f32.mrf.mxu0
        %v7601 = vadd.f32 %v7292, %v7600
        %7602 = vdwg.mxu0
        %7603 = vmatprep.subr.bf16.mxu0 0
        %7604 = vmatpush1.bf16.msra.mxu0 0
        %7605 = vmatprep.subr.bf16.mxu0 0
        %7606 = vmatpush1.bf16.msra.mxu0 0
        %7607 = vmatprep.subr.bf16.mxu0 0
        %7608 = vmatpush1.bf16.msra.mxu0 0
        %7609 = vmatprep.subr.bf16.mxu0 %v7471
        %7610 = vmatpush1.bf16.msra.mxu0 %v7470
        %7611 = vmatprep.subr.bf16.mxu0 %v7463
        %7612 = vmatpush1.bf16.msra.mxu0 %v7462
        %7613 = vmatprep.subr.bf16.mxu0 %v7455
        %7614 = vmatpush1.bf16.msra.mxu0 %v7454
        %7615 = vmatprep.subr.bf16.mxu0 %v7447
        %7616 = vmatpush1.bf16.msra.mxu0 %v7446
        %7617 = vmatprep.subr.bf16.mxu0 %v7439
        %7618 = vmatpush1.bf16.msra.mxu0 %v7438
        %7619 = vmatprep.subr.bf16.mxu0 0
        %7620 = vmatpush2.bf16.msra.mxu0 0
        %7621 = vmatprep.subr.bf16.mxu0 0
        %7622 = vmatpush2.bf16.msra.mxu0 0
        %7623 = vmatprep.subr.bf16.mxu0 0
        %7624 = vmatpush2.bf16.msra.mxu0 0
        %7625 = vmatprep.subr.bf16.mxu0 0
        %7626 = vmatpush2.bf16.msra.mxu0 0
        %7627 = vmatprep.subr.bf16.mxu0 0
        %7628 = vmatpush2.bf16.msra.mxu0 0
        %7629 = vmatprep.subr.bf16.mxu0 0
        %7630 = vmatpush2.bf16.msra.mxu0 0
        %7631 = vmatprep.subr.bf16.mxu0 0
        %7632 = vmatpush2.bf16.msra.mxu0 0
        %7633 = vmatprep.subr.bf16.mxu0 0
        %7634 = vmatpush2.bf16.msra.mxu0 0
        %7635 = vmatprep.mubr.bf16.mxu0 0
        %7636 = vmatmul.mubr.bf16.gmra.mxu0 %v7515
        %v7637 = vpop.f32.mrf.mxu0
        %v7638 = vadd.f32 %v7287, %v7637
        %v7639 = vpop.f32.mrf.mxu0
        %v7640 = vadd.f32 %v7287, %v7639
        %v7641 = vpop.f32.mrf.mxu0
        %v7642 = vadd.f32 %v7292, %v7641
        %v7643 = vpop.f32.mrf.mxu0
        %v7644 = vadd.f32 %v7292, %v7643
        %7645 = vdwg.mxu0
        %7646 = vmatprep.subr.bf16.mxu0 0
        %7647 = vmatpush1.bf16.msra.mxu0 0
        %7648 = vmatprep.subr.bf16.mxu0 0
        %7649 = vmatpush1.bf16.msra.mxu0 0
        %7650 = vmatprep.subr.bf16.mxu0 0
        %7651 = vmatpush1.bf16.msra.mxu0 0
        %7652 = vmatprep.subr.bf16.mxu0 %v7473
        %7653 = vmatpush1.bf16.msra.mxu0 %v7472
        %7654 = vmatprep.subr.bf16.mxu0 %v7465
        %7655 = vmatpush1.bf16.msra.mxu0 %v7464
        %7656 = vmatprep.subr.bf16.mxu0 %v7457
        %7657 = vmatpush1.bf16.msra.mxu0 %v7456
        %7658 = vmatprep.subr.bf16.mxu0 %v7449
        %7659 = vmatpush1.bf16.msra.mxu0 %v7448
        %7660 = vmatprep.subr.bf16.mxu0 %v7441
        %7661 = vmatpush1.bf16.msra.mxu0 %v7440
        %7662 = vmatprep.subr.bf16.mxu0 0
        %7663 = vmatpush2.bf16.msra.mxu0 0
        %7664 = vmatprep.subr.bf16.mxu0 0
        %7665 = vmatpush2.bf16.msra.mxu0 0
        %7666 = vmatprep.subr.bf16.mxu0 0
        %7667 = vmatpush2.bf16.msra.mxu0 0
        %7668 = vmatprep.subr.bf16.mxu0 0
        %7669 = vmatpush2.bf16.msra.mxu0 0
        %7670 = vmatprep.subr.bf16.mxu0 0
        %7671 = vmatpush2.bf16.msra.mxu0 0
        %7672 = vmatprep.subr.bf16.mxu0 0
        %7673 = vmatpush2.bf16.msra.mxu0 0
        %7674 = vmatprep.subr.bf16.mxu0 0
        %7675 = vmatpush2.bf16.msra.mxu0 0
        %7676 = vmatprep.subr.bf16.mxu0 0
        %7677 = vmatpush2.bf16.msra.mxu0 0
        %7678 = vmatprep.mubr.bf16.mxu0 0
        %7679 = vmatmul.mubr.bf16.gmra.mxu0 %v7515
        %v7680 = vpop.f32.mrf.mxu0
        %v7681 = vadd.f32 %v7287, %v7680
        %v7682 = vpop.f32.mrf.mxu0
        %v7683 = vadd.f32 %v7287, %v7682
        %v7684 = vpop.f32.mrf.mxu0
        %v7685 = vadd.f32 %v7292, %v7684
        %v7686 = vpop.f32.mrf.mxu0
        %v7687 = vadd.f32 %v7292, %v7686
        %7688 = vdwg.mxu0
        %v7689 = vmax.f32 %v7552, 0.0
        %v7690 = vmax.f32 %v7554, 0.0
        %v7691 = vmax.f32 %v7595, 0.0
        %v7692 = vmax.f32 %v7597, 0.0
        %v7693 = vmax.f32 %v7638, 0.0
        %v7694 = vmax.f32 %v7640, 0.0
        %v7695 = vmax.f32 %v7681, 0.0
        %v7696 = vmax.f32 %v7683, 0.0
        %v7697 = vmax.f32 %v7556, 0.0
        %v7698 = vmax.f32 %v7558, 0.0
        %v7699 = vmax.f32 %v7599, 0.0
        %v7700 = vmax.f32 %v7601, 0.0
        %v7701 = vmax.f32 %v7642, 0.0
        %v7702 = vmax.f32 %v7644, 0.0
        %v7703 = vmax.f32 %v7685, 0.0
        %v7704 = vmax.f32 %v7687, 0.0
        %7705 = vst [vmem:[#allocation2 + $0x8] sm:$0xff] %v7689
        %7706 = vst [vmem:[#allocation2 + $0x10] sm:$0xff] %v7690
        %7707 = vst [vmem:[#allocation2 + $0x18] sm:$0xff] %v7691
        %7708 = vst [vmem:[#allocation2 + $0x20] sm:$0xff] %v7692
        %7709 = vst [vmem:[#allocation2 + $0x28] sm:$0xff] %v7693
        %7710 = vst [vmem:[#allocation2 + $0x30] sm:$0xff] %v7694
        %7711 = vst [vmem:[#allocation2 + $0x38] sm:$0xff] %v7695
        %7712 = vst [vmem:[#allocation2 + $0x40] sm:$0xff] %v7696
        %7713 = vst [vmem:[#allocation2 + $0x58] sm:$0xff] %v7697
        %7714 = vst [vmem:[#allocation2 + $0x60] sm:$0xff] %v7698
        %7715 = vst [vmem:[#allocation2 + $0x68] sm:$0xff] %v7699
        %7716 = vst [vmem:[#allocation2 + $0x70] sm:$0xff] %v7700
        %7717 = vst [vmem:[#allocation2 + $0x78] sm:$0xff] %v7701
        %7718 = vst [vmem:[#allocation2 + $0x80] sm:$0xff] %v7702
        %7719 = vst [vmem:[#allocation2 + $0x88] sm:$0xff] %v7703
        %7720 = vst [vmem:[#allocation2 + $0x90] sm:$0xff] %v7704
        %v7721 = vld [vmem:[#allocation2] sm:$0xff]
        %v7722 = vld [vmem:[#allocation2 + $0x8] sm:$0xff]
        %v7723 = vld [vmem:[#allocation2 + $0x10] sm:$0xff]
        %v7724 = vld [vmem:[#allocation2 + $0x18] sm:$0xff]
        %v7725 = vld [vmem:[#allocation2 + $0x20] sm:$0xff]
        %v7726 = vld [vmem:[#allocation2 + $0x28] sm:$0xff]
        %v7727 = vld [vmem:[#allocation2 + $0x30] sm:$0xff]
        %v7728 = vld [vmem:[#allocation2 + $0x38] sm:$0xff]
        %v7729 = vld [vmem:[#allocation2 + $0x40] sm:$0xff]
        %v7730 = vld [vmem:[#allocation2 + $0x50] sm:$0xff]
        %v7731 = vld [vmem:[#allocation2 + $0x58] sm:$0xff]
        %v7732 = vld [vmem:[#allocation2 + $0x60] sm:$0xff]
        %v7733 = vld [vmem:[#allocation2 + $0x68] sm:$0xff]
        %v7734 = vld [vmem:[#allocation2 + $0x70] sm:$0xff]
        %v7735 = vld [vmem:[#allocation2 + $0x78] sm:$0xff]
        %v7736 = vld [vmem:[#allocation2 + $0x80] sm:$0xff]
        %v7737 = vld [vmem:[#allocation2 + $0x88] sm:$0xff]
        %v7738 = vld [vmem:[#allocation2 + $0x90] sm:$0xff]
        %v7739 = vld [vmem:[#allocation2 + $0x48] sm:$0xff]
        %v7740 = vld [vmem:[#allocation2 + $0x98] sm:$0xff]
        %7759 = vrot.lane.b32.xlu0 %v7721, 124
        %v7760 = vpop.permute.xlu0 %7759
        %7761 = vrot.lane.b32.xlu0 %v7722, 124
        %v7762 = vpop.permute.xlu0 %7761
        %7763 = vrot.lane.b32.xlu0 %v7723, 124
        %v7764 = vpop.permute.xlu0 %7763
        %7765 = vrot.lane.b32.xlu0 %v7724, 124
        %v7766 = vpop.permute.xlu0 %7765
        %7767 = vrot.lane.b32.xlu0 %v7725, 124
        %v7768 = vpop.permute.xlu0 %7767
        %7769 = vrot.lane.b32.xlu0 %v7726, 124
        %v7770 = vpop.permute.xlu0 %7769
        %7771 = vrot.lane.b32.xlu0 %v7727, 124
        %v7772 = vpop.permute.xlu0 %7771
        %7773 = vrot.lane.b32.xlu0 %v7728, 124
        %v7774 = vpop.permute.xlu0 %7773
        %7775 = vrot.lane.b32.xlu0 %v7729, 124
        %v7776 = vpop.permute.xlu0 %7775
        %7777 = vrot.lane.b32.xlu0 %v7730, 124
        %v7778 = vpop.permute.xlu0 %7777
        %7779 = vrot.lane.b32.xlu0 %v7731, 124
        %v7780 = vpop.permute.xlu0 %7779
        %7781 = vrot.lane.b32.xlu0 %v7732, 124
        %v7782 = vpop.permute.xlu0 %7781
        %7783 = vrot.lane.b32.xlu0 %v7733, 124
        %v7784 = vpop.permute.xlu0 %7783
        %7785 = vrot.lane.b32.xlu0 %v7734, 124
        %v7786 = vpop.permute.xlu0 %7785
        %7787 = vrot.lane.b32.xlu0 %v7735, 124
        %v7788 = vpop.permute.xlu0 %7787
        %7789 = vrot.lane.b32.xlu0 %v7736, 124
        %v7790 = vpop.permute.xlu0 %7789
        %7791 = vrot.lane.b32.xlu0 %v7737, 124
        %v7792 = vpop.permute.xlu0 %7791
        %7793 = vrot.lane.b32.xlu0 %v7738, 124
        %v7794 = vpop.permute.xlu0 %7793
        %v7795 = vsel %vm1260, %v7760, %v7762
        %v7796 = vsel %vm1260, %v7762, %v7764
        %v7797 = vsel %vm1260, %v7764, %v7766
        %v7798 = vsel %vm1260, %v7766, %v7768
        %v7799 = vsel %vm1260, %v7768, %v7770
        %v7800 = vsel %vm1260, %v7770, %v7772
        %v7801 = vsel %vm1260, %v7772, %v7774
        %v7802 = vsel %vm1260, %v7774, %v7776
        %v7803 = vsel %vm1260, %v7778, %v7780
        %v7804 = vsel %vm1260, %v7780, %v7782
        %v7805 = vsel %vm1260, %v7782, %v7784
        %v7806 = vsel %vm1260, %v7784, %v7786
        %v7807 = vsel %vm1260, %v7786, %v7788
        %v7808 = vsel %vm1260, %v7788, %v7790
        %v7809 = vsel %vm1260, %v7790, %v7792
        %v7810 = vsel %vm1260, %v7792, %v7794
        %7829 = vrot.lane.b32.xlu0 %v7722, 120
        %v7830 = vpop.permute.xlu0 %7829
        %7831 = vrot.lane.b32.xlu0 %v7723, 120
        %v7832 = vpop.permute.xlu0 %7831
        %7833 = vrot.lane.b32.xlu0 %v7724, 120
        %v7834 = vpop.permute.xlu0 %7833
        %7835 = vrot.lane.b32.xlu0 %v7725, 120
        %v7836 = vpop.permute.xlu0 %7835
        %7837 = vrot.lane.b32.xlu0 %v7726, 120
        %v7838 = vpop.permute.xlu0 %7837
        %7839 = vrot.lane.b32.xlu0 %v7727, 120
        %v7840 = vpop.permute.xlu0 %7839
        %7841 = vrot.lane.b32.xlu0 %v7728, 120
        %v7842 = vpop.permute.xlu0 %7841
        %7843 = vrot.lane.b32.xlu0 %v7729, 120
        %v7844 = vpop.permute.xlu0 %7843
        %7845 = vrot.lane.b32.xlu0 %v7731, 120
        %v7846 = vpop.permute.xlu0 %7845
        %7847 = vrot.lane.b32.xlu0 %v7732, 120
        %v7848 = vpop.permute.xlu0 %7847
        %7849 = vrot.lane.b32.xlu0 %v7733, 120
        %v7850 = vpop.permute.xlu0 %7849
        %7851 = vrot.lane.b32.xlu0 %v7734, 120
        %v7852 = vpop.permute.xlu0 %7851
        %7853 = vrot.lane.b32.xlu0 %v7735, 120
        %v7854 = vpop.permute.xlu0 %7853
        %7855 = vrot.lane.b32.xlu0 %v7736, 120
        %v7856 = vpop.permute.xlu0 %7855
        %7857 = vrot.lane.b32.xlu0 %v7737, 120
        %v7858 = vpop.permute.xlu0 %7857
        %7859 = vrot.lane.b32.xlu0 %v7738, 120
        %v7860 = vpop.permute.xlu0 %7859
        %v7861 = vsel %vm1745, %v7830, %v7832
        %v7862 = vsel %vm1745, %v7832, %v7834
        %v7863 = vsel %vm1745, %v7834, %v7836
        %v7864 = vsel %vm1745, %v7836, %v7838
        %v7865 = vsel %vm1745, %v7838, %v7840
        %v7866 = vsel %vm1745, %v7840, %v7842
        %v7867 = vsel %vm1745, %v7842, %v7844
        %v7868 = vsel %vm1745, %v7846, %v7848
        %v7869 = vsel %vm1745, %v7848, %v7850
        %v7870 = vsel %vm1745, %v7850, %v7852
        %v7871 = vsel %vm1745, %v7852, %v7854
        %v7872 = vsel %vm1745, %v7854, %v7856
        %v7873 = vsel %vm1745, %v7856, %v7858
        %v7874 = vsel %vm1745, %v7858, %v7860
        %7895 = vrot.lane.b32.xlu0 %v7722, 116
        %v7896 = vpop.permute.xlu0 %7895
        %7897 = vrot.lane.b32.xlu0 %v7723, 116
        %v7898 = vpop.permute.xlu0 %7897
        %7899 = vrot.lane.b32.xlu0 %v7724, 116
        %v7900 = vpop.permute.xlu0 %7899
        %7901 = vrot.lane.b32.xlu0 %v7725, 116
        %v7902 = vpop.permute.xlu0 %7901
        %7903 = vrot.lane.b32.xlu0 %v7726, 116
        %v7904 = vpop.permute.xlu0 %7903
        %7905 = vrot.lane.b32.xlu0 %v7727, 116
        %v7906 = vpop.permute.xlu0 %7905
        %7907 = vrot.lane.b32.xlu0 %v7728, 116
        %v7908 = vpop.permute.xlu0 %7907
        %7909 = vrot.lane.b32.xlu0 %v7729, 116
        %v7910 = vpop.permute.xlu0 %7909
        %7911 = vrot.lane.b32.xlu0 %v7739, 116
        %v7912 = vpop.permute.xlu0 %7911
        %7913 = vrot.lane.b32.xlu0 %v7731, 116
        %v7914 = vpop.permute.xlu0 %7913
        %7915 = vrot.lane.b32.xlu0 %v7732, 116
        %v7916 = vpop.permute.xlu0 %7915
        %7917 = vrot.lane.b32.xlu0 %v7733, 116
        %v7918 = vpop.permute.xlu0 %7917
        %7919 = vrot.lane.b32.xlu0 %v7734, 116
        %v7920 = vpop.permute.xlu0 %7919
        %7921 = vrot.lane.b32.xlu0 %v7735, 116
        %v7922 = vpop.permute.xlu0 %7921
        %7923 = vrot.lane.b32.xlu0 %v7736, 116
        %v7924 = vpop.permute.xlu0 %7923
        %7925 = vrot.lane.b32.xlu0 %v7737, 116
        %v7926 = vpop.permute.xlu0 %7925
        %7927 = vrot.lane.b32.xlu0 %v7738, 116
        %v7928 = vpop.permute.xlu0 %7927
        %7929 = vrot.lane.b32.xlu0 %v7740, 116
        %v7930 = vpop.permute.xlu0 %7929
        %v7931 = vsel %vm2478, %v7896, %v7898
        %v7932 = vsel %vm2478, %v7898, %v7900
        %v7933 = vsel %vm2478, %v7900, %v7902
        %v7934 = vsel %vm2478, %v7902, %v7904
        %v7935 = vsel %vm2478, %v7904, %v7906
        %v7936 = vsel %vm2478, %v7906, %v7908
        %v7937 = vsel %vm2478, %v7908, %v7910
        %v7938 = vsel %vm2478, %v7910, %v7912
        %v7939 = vsel %vm2478, %v7914, %v7916
        %v7940 = vsel %vm2478, %v7916, %v7918
        %v7941 = vsel %vm2478, %v7918, %v7920
        %v7942 = vsel %vm2478, %v7920, %v7922
        %v7943 = vsel %vm2478, %v7922, %v7924
        %v7944 = vsel %vm2478, %v7924, %v7926
        %v7945 = vsel %vm2478, %v7926, %v7928
        %v7946 = vsel %vm2478, %v7928, %v7930
        %7965 = vrot.lane.b32.xlu0 %v7722, 112
        %v7966 = vpop.permute.xlu0 %7965
        %7967 = vrot.lane.b32.xlu0 %v7723, 112
        %v7968 = vpop.permute.xlu0 %7967
        %7969 = vrot.lane.b32.xlu0 %v7724, 112
        %v7970 = vpop.permute.xlu0 %7969
        %7971 = vrot.lane.b32.xlu0 %v7725, 112
        %v7972 = vpop.permute.xlu0 %7971
        %7973 = vrot.lane.b32.xlu0 %v7726, 112
        %v7974 = vpop.permute.xlu0 %7973
        %7975 = vrot.lane.b32.xlu0 %v7727, 112
        %v7976 = vpop.permute.xlu0 %7975
        %7977 = vrot.lane.b32.xlu0 %v7728, 112
        %v7978 = vpop.permute.xlu0 %7977
        %7979 = vrot.lane.b32.xlu0 %v7729, 112
        %v7980 = vpop.permute.xlu0 %7979
        %7981 = vrot.lane.b32.xlu0 %v7739, 112
        %v7982 = vpop.permute.xlu0 %7981
        %7983 = vrot.lane.b32.xlu0 %v7731, 112
        %v7984 = vpop.permute.xlu0 %7983
        %7985 = vrot.lane.b32.xlu0 %v7732, 112
        %v7986 = vpop.permute.xlu0 %7985
        %7987 = vrot.lane.b32.xlu0 %v7733, 112
        %v7988 = vpop.permute.xlu0 %7987
        %7989 = vrot.lane.b32.xlu0 %v7734, 112
        %v7990 = vpop.permute.xlu0 %7989
        %7991 = vrot.lane.b32.xlu0 %v7735, 112
        %v7992 = vpop.permute.xlu0 %7991
        %7993 = vrot.lane.b32.xlu0 %v7736, 112
        %v7994 = vpop.permute.xlu0 %7993
        %7995 = vrot.lane.b32.xlu0 %v7737, 112
        %v7996 = vpop.permute.xlu0 %7995
        %7997 = vrot.lane.b32.xlu0 %v7738, 112
        %v7998 = vpop.permute.xlu0 %7997
        %7999 = vrot.lane.b32.xlu0 %v7740, 112
        %v8000 = vpop.permute.xlu0 %7999
        %v8001 = vsel %vm2549, %v7966, %v7968
        %v8002 = vsel %vm2549, %v7968, %v7970
        %v8003 = vsel %vm2549, %v7970, %v7972
        %v8004 = vsel %vm2549, %v7972, %v7974
        %v8005 = vsel %vm2549, %v7974, %v7976
        %v8006 = vsel %vm2549, %v7976, %v7978
        %v8007 = vsel %vm2549, %v7978, %v7980
        %v8008 = vsel %vm2549, %v7980, %v7982
        %v8009 = vsel %vm2549, %v7984, %v7986
        %v8010 = vsel %vm2549, %v7986, %v7988
        %v8011 = vsel %vm2549, %v7988, %v7990
        %v8012 = vsel %vm2549, %v7990, %v7992
        %v8013 = vsel %vm2549, %v7992, %v7994
        %v8014 = vsel %vm2549, %v7994, %v7996
        %v8015 = vsel %vm2549, %v7996, %v7998
        %v8016 = vsel %vm2549, %v7998, %v8000
        %v8035 = vpack.c.bf16 %v7730, %v7721
        %v8036 = vpack.c.bf16 %v7731, %v7722
        %v8037 = vpack.c.bf16 %v7732, %v7723
        %v8038 = vpack.c.bf16 %v7733, %v7724
        %v8039 = vpack.c.bf16 %v7734, %v7725
        %v8040 = vpack.c.bf16 %v7735, %v7726
        %v8041 = vpack.c.bf16 %v7736, %v7727
        %v8042 = vpack.c.bf16 %v7737, %v7728
        %v8043 = vpack.c.bf16 %v7738, %v7729
        %v8044 = vpack.c.bf16 %v7803, %v7795
        %v8045 = vpack.c.bf16 %v7804, %v7796
        %v8046 = vpack.c.bf16 %v7805, %v7797
        %v8047 = vpack.c.bf16 %v7806, %v7798
        %v8048 = vpack.c.bf16 %v7807, %v7799
        %v8049 = vpack.c.bf16 %v7808, %v7800
        %v8050 = vpack.c.bf16 %v7809, %v7801
        %v8051 = vpack.c.bf16 %v7810, %v7802
        %v8052 = vpack.c.bf16 %v7794, %v7776
        %v8053 = vpack.c.bf16 %v7846, %v7830
        %v8054 = vpack.c.bf16 %v7868, %v7861
        %v8055 = vpack.c.bf16 %v7869, %v7862
        %v8056 = vpack.c.bf16 %v7870, %v7863
        %v8057 = vpack.c.bf16 %v7871, %v7864
        %v8058 = vpack.c.bf16 %v7872, %v7865
        %v8059 = vpack.c.bf16 %v7873, %v7866
        %v8060 = vpack.c.bf16 %v7874, %v7867
        %v8061 = vpack.c.bf16 %v7860, %v7844
        %v8062 = vpack.c.bf16 %v7914, %v7896
        %v8063 = vpack.c.bf16 %v7939, %v7931
        %v8064 = vpack.c.bf16 %v7940, %v7932
        %v8065 = vpack.c.bf16 %v7941, %v7933
        %v8066 = vpack.c.bf16 %v7942, %v7934
        %v8067 = vpack.c.bf16 %v7943, %v7935
        %v8068 = vpack.c.bf16 %v7944, %v7936
        %v8069 = vpack.c.bf16 %v7945, %v7937
        %v8070 = vpack.c.bf16 %v7946, %v7938
        %v8071 = vpack.c.bf16 %v7984, %v7966
        %v8072 = vpack.c.bf16 %v8009, %v8001
        %v8073 = vpack.c.bf16 %v8010, %v8002
        %v8074 = vpack.c.bf16 %v8011, %v8003
        %v8075 = vpack.c.bf16 %v8012, %v8004
        %v8076 = vpack.c.bf16 %v8013, %v8005
        %v8077 = vpack.c.bf16 %v8014, %v8006
        %v8078 = vpack.c.bf16 %v8015, %v8007
        %v8079 = vpack.c.bf16 %v8016, %v8008
        %v8080 = vld [vmem:[#allocation11] sm:$0xf]
        %v8081 = vld [vmem:[#allocation11 + $0x4] sm:$0xf]
        %v8082 = vld [vmem:[#allocation11 + $0x8] sm:$0xf]
        %v8083 = vld [vmem:[#allocation11 + $0xc] sm:$0xf]
        %v8084 = vld [vmem:[#allocation13] sm:$0xff]
        %v8085 = vld [vmem:[#allocation13 + $0x8] sm:$0xff]
        %v8086 = vld [vmem:[#allocation13 + $0x10] sm:$0xff]
        %v8087 = vld [vmem:[#allocation13 + $0x18] sm:$0xff]
        %8089 = vset.pattern.permute.xlu0 0
        %8090 = vperm.xlu0 %8089, %v8084
        %v8091 = vpop.permute.xlu0 %8090
        %8094 = vset.pattern.permute.xlu0 0
        %8095 = vperm.xlu0 %8094, %v8085
        %v8096 = vpop.permute.xlu0 %8095
        %8099 = vset.pattern.permute.xlu0 0
        %8100 = vperm.xlu0 %8099, %v8086
        %v8101 = vpop.permute.xlu0 %8100
        %8104 = vset.pattern.permute.xlu0 0
        %8105 = vperm.xlu0 %8104, %v8087
        %v8106 = vpop.permute.xlu0 %8105
        %v8112 = vunpack.c.l.b16 %v8080
        %v8113 = vunpack.c.l.b16 %v8081
        %v8114 = vunpack.c.l.b16 %v8082
        %v8115 = vunpack.c.l.b16 %v8083
        %v8116 = vpack.c.b16 %v8113, %v8112
        %v8117 = vpack.c.b16 %v8115, %v8114
        %8163 = vrot.lane.b32.xlu0 %v8035, 8
        %v8164 = vpop.permute.xlu0 %8163
        %8165 = vrot.lane.b32.xlu0 %v8036, 8
        %v8166 = vpop.permute.xlu0 %8165
        %8167 = vrot.lane.b32.xlu0 %v8037, 8
        %v8168 = vpop.permute.xlu0 %8167
        %8169 = vrot.lane.b32.xlu0 %v8038, 8
        %v8170 = vpop.permute.xlu0 %8169
        %8171 = vrot.lane.b32.xlu0 %v8039, 8
        %v8172 = vpop.permute.xlu0 %8171
        %8173 = vrot.lane.b32.xlu0 %v8040, 8
        %v8174 = vpop.permute.xlu0 %8173
        %8175 = vrot.lane.b32.xlu0 %v8041, 8
        %v8176 = vpop.permute.xlu0 %8175
        %8177 = vrot.lane.b32.xlu0 %v8042, 8
        %v8178 = vpop.permute.xlu0 %8177
        %8179 = vrot.lane.b32.xlu0 %v8043, 8
        %v8180 = vpop.permute.xlu0 %8179
        %8181 = vrot.lane.b32.xlu0 %v8044, 8
        %v8182 = vpop.permute.xlu0 %8181
        %8183 = vrot.lane.b32.xlu0 %v8045, 8
        %v8184 = vpop.permute.xlu0 %8183
        %8185 = vrot.lane.b32.xlu0 %v8046, 8
        %v8186 = vpop.permute.xlu0 %8185
        %8187 = vrot.lane.b32.xlu0 %v8047, 8
        %v8188 = vpop.permute.xlu0 %8187
        %8189 = vrot.lane.b32.xlu0 %v8048, 8
        %v8190 = vpop.permute.xlu0 %8189
        %8191 = vrot.lane.b32.xlu0 %v8049, 8
        %v8192 = vpop.permute.xlu0 %8191
        %8193 = vrot.lane.b32.xlu0 %v8050, 8
        %v8194 = vpop.permute.xlu0 %8193
        %8195 = vrot.lane.b32.xlu0 %v8051, 8
        %v8196 = vpop.permute.xlu0 %8195
        %8197 = vrot.lane.b32.xlu0 %v8052, 8
        %v8198 = vpop.permute.xlu0 %8197
        %8199 = vrot.lane.b32.xlu0 %v8053, 8
        %v8200 = vpop.permute.xlu0 %8199
        %8201 = vrot.lane.b32.xlu0 %v8054, 8
        %v8202 = vpop.permute.xlu0 %8201
        %8203 = vrot.lane.b32.xlu0 %v8055, 8
        %v8204 = vpop.permute.xlu0 %8203
        %8205 = vrot.lane.b32.xlu0 %v8056, 8
        %v8206 = vpop.permute.xlu0 %8205
        %8207 = vrot.lane.b32.xlu0 %v8057, 8
        %v8208 = vpop.permute.xlu0 %8207
        %8209 = vrot.lane.b32.xlu0 %v8058, 8
        %v8210 = vpop.permute.xlu0 %8209
        %8211 = vrot.lane.b32.xlu0 %v8059, 8
        %v8212 = vpop.permute.xlu0 %8211
        %8213 = vrot.lane.b32.xlu0 %v8060, 8
        %v8214 = vpop.permute.xlu0 %8213
        %8215 = vrot.lane.b32.xlu0 %v8061, 8
        %v8216 = vpop.permute.xlu0 %8215
        %8217 = vrot.lane.b32.xlu0 %v8062, 8
        %v8218 = vpop.permute.xlu0 %8217
        %8219 = vrot.lane.b32.xlu0 %v8063, 8
        %v8220 = vpop.permute.xlu0 %8219
        %8221 = vrot.lane.b32.xlu0 %v8064, 8
        %v8222 = vpop.permute.xlu0 %8221
        %8223 = vrot.lane.b32.xlu0 %v8065, 8
        %v8224 = vpop.permute.xlu0 %8223
        %8225 = vrot.lane.b32.xlu0 %v8066, 8
        %v8226 = vpop.permute.xlu0 %8225
        %8227 = vrot.lane.b32.xlu0 %v8067, 8
        %v8228 = vpop.permute.xlu0 %8227
        %8229 = vrot.lane.b32.xlu0 %v8068, 8
        %v8230 = vpop.permute.xlu0 %8229
        %8231 = vrot.lane.b32.xlu0 %v8069, 8
        %v8232 = vpop.permute.xlu0 %8231
        %8233 = vrot.lane.b32.xlu0 %v8070, 8
        %v8234 = vpop.permute.xlu0 %8233
        %8235 = vrot.lane.b32.xlu0 %v8071, 8
        %v8236 = vpop.permute.xlu0 %8235
        %8237 = vrot.lane.b32.xlu0 %v8072, 8
        %v8238 = vpop.permute.xlu0 %8237
        %8239 = vrot.lane.b32.xlu0 %v8073, 8
        %v8240 = vpop.permute.xlu0 %8239
        %8241 = vrot.lane.b32.xlu0 %v8074, 8
        %v8242 = vpop.permute.xlu0 %8241
        %8243 = vrot.lane.b32.xlu0 %v8075, 8
        %v8244 = vpop.permute.xlu0 %8243
        %8245 = vrot.lane.b32.xlu0 %v8076, 8
        %v8246 = vpop.permute.xlu0 %8245
        %8247 = vrot.lane.b32.xlu0 %v8077, 8
        %v8248 = vpop.permute.xlu0 %8247
        %8249 = vrot.lane.b32.xlu0 %v8078, 8
        %v8250 = vpop.permute.xlu0 %8249
        %8251 = vrot.lane.b32.xlu0 %v8079, 8
        %v8252 = vpop.permute.xlu0 %8251
        %v8253 = vsel %vm2802, %v8164, %v8166
        %v8254 = vsel %vm2802, %v8166, %v8168
        %v8255 = vsel %vm2802, %v8168, %v8170
        %v8256 = vsel %vm2802, %v8170, %v8172
        %v8257 = vsel %vm2802, %v8172, %v8174
        %v8258 = vsel %vm2802, %v8174, %v8176
        %v8259 = vsel %vm2802, %v8176, %v8178
        %v8260 = vsel %vm2802, %v8178, %v8180
        %v8261 = vsel %vm2802, %v8182, %v8184
        %v8262 = vsel %vm2802, %v8184, %v8186
        %v8263 = vsel %vm2802, %v8186, %v8188
        %v8264 = vsel %vm2802, %v8188, %v8190
        %v8265 = vsel %vm2802, %v8190, %v8192
        %v8266 = vsel %vm2802, %v8192, %v8194
        %v8267 = vsel %vm2802, %v8194, %v8196
        %v8268 = vsel %vm2802, %v8196, %v8198
        %v8269 = vsel %vm2802, %v8200, %v8202
        %v8270 = vsel %vm2802, %v8202, %v8204
        %v8271 = vsel %vm2802, %v8204, %v8206
        %v8272 = vsel %vm2802, %v8206, %v8208
        %v8273 = vsel %vm2802, %v8208, %v8210
        %v8274 = vsel %vm2802, %v8210, %v8212
        %v8275 = vsel %vm2802, %v8212, %v8214
        %v8276 = vsel %vm2802, %v8214, %v8216
        %v8277 = vsel %vm2802, %v8218, %v8220
        %v8278 = vsel %vm2802, %v8220, %v8222
        %v8279 = vsel %vm2802, %v8222, %v8224
        %v8280 = vsel %vm2802, %v8224, %v8226
        %v8281 = vsel %vm2802, %v8226, %v8228
        %v8282 = vsel %vm2802, %v8228, %v8230
        %v8283 = vsel %vm2802, %v8230, %v8232
        %v8284 = vsel %vm2802, %v8232, %v8234
        %v8285 = vsel %vm2802, %v8236, %v8238
        %v8286 = vsel %vm2802, %v8238, %v8240
        %v8287 = vsel %vm2802, %v8240, %v8242
        %v8288 = vsel %vm2802, %v8242, %v8244
        %v8289 = vsel %vm2802, %v8244, %v8246
        %v8290 = vsel %vm2802, %v8246, %v8248
        %v8291 = vsel %vm2802, %v8248, %v8250
        %v8292 = vsel %vm2802, %v8250, %v8252
        %v8334 = vsel %vm2060, %v8116, 0
        %v8337 = vsel %vm2060, %v8117, 0
        %8339 = vmatprep.subr.bf16.mxu0 0
        %8340 = vmatpush1.bf16.msra.mxu0 0
        %8341 = vmatprep.subr.bf16.mxu0 0
        %8342 = vmatpush1.bf16.msra.mxu0 0
        %8343 = vmatprep.subr.bf16.mxu0 0
        %8344 = vmatpush1.bf16.msra.mxu0 0
        %8345 = vmatprep.subr.bf16.mxu0 %v8286
        %8346 = vmatpush1.bf16.msra.mxu0 %v8285
        %8347 = vmatprep.subr.bf16.mxu0 %v8278
        %8348 = vmatpush1.bf16.msra.mxu0 %v8277
        %8349 = vmatprep.subr.bf16.mxu0 %v8270
        %8350 = vmatpush1.bf16.msra.mxu0 %v8269
        %8351 = vmatprep.subr.bf16.mxu0 %v8262
        %8352 = vmatpush1.bf16.msra.mxu0 %v8261
        %8353 = vmatprep.subr.bf16.mxu0 %v8254
        %8354 = vmatpush1.bf16.msra.mxu0 %v8253
        %8355 = vmatprep.subr.bf16.mxu0 0
        %8356 = vmatpush2.bf16.msra.mxu0 0
        %8357 = vmatprep.subr.bf16.mxu0 0
        %8358 = vmatpush2.bf16.msra.mxu0 0
        %8359 = vmatprep.subr.bf16.mxu0 0
        %8360 = vmatpush2.bf16.msra.mxu0 0
        %8361 = vmatprep.subr.bf16.mxu0 0
        %8362 = vmatpush2.bf16.msra.mxu0 0
        %8363 = vmatprep.subr.bf16.mxu0 0
        %8364 = vmatpush2.bf16.msra.mxu0 0
        %8365 = vmatprep.subr.bf16.mxu0 0
        %8366 = vmatpush2.bf16.msra.mxu0 0
        %8367 = vmatprep.subr.bf16.mxu0 0
        %8368 = vmatpush2.bf16.msra.mxu0 0
        %8369 = vmatprep.subr.bf16.mxu0 0
        %8370 = vmatpush2.bf16.msra.mxu0 0
        %8371 = vmatprep.mubr.bf16.mxu0 0
        %8372 = vmatmul.mubr.bf16.gmra.mxu0 %v8334
        %v8373 = vpop.f32.mrf.mxu0
        %v8374 = vadd.f32 %v8091, %v8373
        %v8375 = vpop.f32.mrf.mxu0
        %v8376 = vadd.f32 %v8091, %v8375
        %v8377 = vpop.f32.mrf.mxu0
        %v8378 = vadd.f32 %v8096, %v8377
        %v8379 = vpop.f32.mrf.mxu0
        %v8380 = vadd.f32 %v8096, %v8379
        %8381 = vmatprep.mubr.bf16.mxu0 0
        %8382 = vmatmul.mubr.bf16.gmra.mxu0 %v8337
        %v8383 = vpop.f32.mrf.mxu0
        %v8384 = vadd.f32 %v8101, %v8383
        %v8385 = vpop.f32.mrf.mxu0
        %v8386 = vadd.f32 %v8101, %v8385
        %v8387 = vpop.f32.mrf.mxu0
        %v8388 = vadd.f32 %v8106, %v8387
        %v8389 = vpop.f32.mrf.mxu0
        %v8390 = vadd.f32 %v8106, %v8389
        %8391 = vdwg.mxu0
        %8392 = vmatprep.subr.bf16.mxu0 0
        %8393 = vmatpush1.bf16.msra.mxu0 0
        %8394 = vmatprep.subr.bf16.mxu0 0
        %8395 = vmatpush1.bf16.msra.mxu0 0
        %8396 = vmatprep.subr.bf16.mxu0 0
        %8397 = vmatpush1.bf16.msra.mxu0 0
        %8398 = vmatprep.subr.bf16.mxu0 %v8288
        %8399 = vmatpush1.bf16.msra.mxu0 %v8287
        %8400 = vmatprep.subr.bf16.mxu0 %v8280
        %8401 = vmatpush1.bf16.msra.mxu0 %v8279
        %8402 = vmatprep.subr.bf16.mxu0 %v8272
        %8403 = vmatpush1.bf16.msra.mxu0 %v8271
        %8404 = vmatprep.subr.bf16.mxu0 %v8264
        %8405 = vmatpush1.bf16.msra.mxu0 %v8263
        %8406 = vmatprep.subr.bf16.mxu0 %v8256
        %8407 = vmatpush1.bf16.msra.mxu0 %v8255
        %8408 = vmatprep.subr.bf16.mxu0 0
        %8409 = vmatpush2.bf16.msra.mxu0 0
        %8410 = vmatprep.subr.bf16.mxu0 0
        %8411 = vmatpush2.bf16.msra.mxu0 0
        %8412 = vmatprep.subr.bf16.mxu0 0
        %8413 = vmatpush2.bf16.msra.mxu0 0
        %8414 = vmatprep.subr.bf16.mxu0 0
        %8415 = vmatpush2.bf16.msra.mxu0 0
        %8416 = vmatprep.subr.bf16.mxu0 0
        %8417 = vmatpush2.bf16.msra.mxu0 0
        %8418 = vmatprep.subr.bf16.mxu0 0
        %8419 = vmatpush2.bf16.msra.mxu0 0
        %8420 = vmatprep.subr.bf16.mxu0 0
        %8421 = vmatpush2.bf16.msra.mxu0 0
        %8422 = vmatprep.subr.bf16.mxu0 0
        %8423 = vmatpush2.bf16.msra.mxu0 0
        %8424 = vmatprep.mubr.bf16.mxu0 0
        %8425 = vmatmul.mubr.bf16.gmra.mxu0 %v8334
        %v8426 = vpop.f32.mrf.mxu0
        %v8427 = vadd.f32 %v8091, %v8426
        %v8428 = vpop.f32.mrf.mxu0
        %v8429 = vadd.f32 %v8091, %v8428
        %v8430 = vpop.f32.mrf.mxu0
        %v8431 = vadd.f32 %v8096, %v8430
        %v8432 = vpop.f32.mrf.mxu0
        %v8433 = vadd.f32 %v8096, %v8432
        %8434 = vmatprep.mubr.bf16.mxu0 0
        %8435 = vmatmul.mubr.bf16.gmra.mxu0 %v8337
        %v8436 = vpop.f32.mrf.mxu0
        %v8437 = vadd.f32 %v8101, %v8436
        %v8438 = vpop.f32.mrf.mxu0
        %v8439 = vadd.f32 %v8101, %v8438
        %v8440 = vpop.f32.mrf.mxu0
        %v8441 = vadd.f32 %v8106, %v8440
        %v8442 = vpop.f32.mrf.mxu0
        %v8443 = vadd.f32 %v8106, %v8442
        %8444 = vdwg.mxu0
        %8445 = vmatprep.subr.bf16.mxu0 0
        %8446 = vmatpush1.bf16.msra.mxu0 0
        %8447 = vmatprep.subr.bf16.mxu0 0
        %8448 = vmatpush1.bf16.msra.mxu0 0
        %8449 = vmatprep.subr.bf16.mxu0 0
        %8450 = vmatpush1.bf16.msra.mxu0 0
        %8451 = vmatprep.subr.bf16.mxu0 %v8290
        %8452 = vmatpush1.bf16.msra.mxu0 %v8289
        %8453 = vmatprep.subr.bf16.mxu0 %v8282
        %8454 = vmatpush1.bf16.msra.mxu0 %v8281
        %8455 = vmatprep.subr.bf16.mxu0 %v8274
        %8456 = vmatpush1.bf16.msra.mxu0 %v8273
        %8457 = vmatprep.subr.bf16.mxu0 %v8266
        %8458 = vmatpush1.bf16.msra.mxu0 %v8265
        %8459 = vmatprep.subr.bf16.mxu0 %v8258
        %8460 = vmatpush1.bf16.msra.mxu0 %v8257
        %8461 = vmatprep.subr.bf16.mxu0 0
        %8462 = vmatpush2.bf16.msra.mxu0 0
        %8463 = vmatprep.subr.bf16.mxu0 0
        %8464 = vmatpush2.bf16.msra.mxu0 0
        %8465 = vmatprep.subr.bf16.mxu0 0
        %8466 = vmatpush2.bf16.msra.mxu0 0
        %8467 = vmatprep.subr.bf16.mxu0 0
        %8468 = vmatpush2.bf16.msra.mxu0 0
        %8469 = vmatprep.subr.bf16.mxu0 0
        %8470 = vmatpush2.bf16.msra.mxu0 0
        %8471 = vmatprep.subr.bf16.mxu0 0
        %8472 = vmatpush2.bf16.msra.mxu0 0
        %8473 = vmatprep.subr.bf16.mxu0 0
        %8474 = vmatpush2.bf16.msra.mxu0 0
        %8475 = vmatprep.subr.bf16.mxu0 0
        %8476 = vmatpush2.bf16.msra.mxu0 0
        %8477 = vmatprep.mubr.bf16.mxu0 0
        %8478 = vmatmul.mubr.bf16.gmra.mxu0 %v8334
        %v8479 = vpop.f32.mrf.mxu0
        %v8480 = vadd.f32 %v8091, %v8479
        %v8481 = vpop.f32.mrf.mxu0
        %v8482 = vadd.f32 %v8091, %v8481
        %v8483 = vpop.f32.mrf.mxu0
        %v8484 = vadd.f32 %v8096, %v8483
        %v8485 = vpop.f32.mrf.mxu0
        %v8486 = vadd.f32 %v8096, %v8485
        %8487 = vmatprep.mubr.bf16.mxu0 0
        %8488 = vmatmul.mubr.bf16.gmra.mxu0 %v8337
        %v8489 = vpop.f32.mrf.mxu0
        %v8490 = vadd.f32 %v8101, %v8489
        %v8491 = vpop.f32.mrf.mxu0
        %v8492 = vadd.f32 %v8101, %v8491
        %v8493 = vpop.f32.mrf.mxu0
        %v8494 = vadd.f32 %v8106, %v8493
        %v8495 = vpop.f32.mrf.mxu0
        %v8496 = vadd.f32 %v8106, %v8495
        %8497 = vdwg.mxu0
        %8498 = vmatprep.subr.bf16.mxu0 0
        %8499 = vmatpush1.bf16.msra.mxu0 0
        %8500 = vmatprep.subr.bf16.mxu0 0
        %8501 = vmatpush1.bf16.msra.mxu0 0
        %8502 = vmatprep.subr.bf16.mxu0 0
        %8503 = vmatpush1.bf16.msra.mxu0 0
        %8504 = vmatprep.subr.bf16.mxu0 %v8292
        %8505 = vmatpush1.bf16.msra.mxu0 %v8291
        %8506 = vmatprep.subr.bf16.mxu0 %v8284
        %8507 = vmatpush1.bf16.msra.mxu0 %v8283
        %8508 = vmatprep.subr.bf16.mxu0 %v8276
        %8509 = vmatpush1.bf16.msra.mxu0 %v8275
        %8510 = vmatprep.subr.bf16.mxu0 %v8268
        %8511 = vmatpush1.bf16.msra.mxu0 %v8267
        %8512 = vmatprep.subr.bf16.mxu0 %v8260
        %8513 = vmatpush1.bf16.msra.mxu0 %v8259
        %8514 = vmatprep.subr.bf16.mxu0 0
        %8515 = vmatpush2.bf16.msra.mxu0 0
        %8516 = vmatprep.subr.bf16.mxu0 0
        %8517 = vmatpush2.bf16.msra.mxu0 0
        %8518 = vmatprep.subr.bf16.mxu0 0
        %8519 = vmatpush2.bf16.msra.mxu0 0
        %8520 = vmatprep.subr.bf16.mxu0 0
        %8521 = vmatpush2.bf16.msra.mxu0 0
        %8522 = vmatprep.subr.bf16.mxu0 0
        %8523 = vmatpush2.bf16.msra.mxu0 0
        %8524 = vmatprep.subr.bf16.mxu0 0
        %8525 = vmatpush2.bf16.msra.mxu0 0
        %8526 = vmatprep.subr.bf16.mxu0 0
        %8527 = vmatpush2.bf16.msra.mxu0 0
        %8528 = vmatprep.subr.bf16.mxu0 0
        %8529 = vmatpush2.bf16.msra.mxu0 0
        %8530 = vmatprep.mubr.bf16.mxu0 0
        %8531 = vmatmul.mubr.bf16.gmra.mxu0 %v8334
        %v8532 = vpop.f32.mrf.mxu0
        %v8533 = vadd.f32 %v8091, %v8532
        %v8534 = vpop.f32.mrf.mxu0
        %v8535 = vadd.f32 %v8091, %v8534
        %v8536 = vpop.f32.mrf.mxu0
        %v8537 = vadd.f32 %v8096, %v8536
        %v8538 = vpop.f32.mrf.mxu0
        %v8539 = vadd.f32 %v8096, %v8538
        %8540 = vmatprep.mubr.bf16.mxu0 0
        %8541 = vmatmul.mubr.bf16.gmra.mxu0 %v8337
        %v8542 = vpop.f32.mrf.mxu0
        %v8543 = vadd.f32 %v8101, %v8542
        %v8544 = vpop.f32.mrf.mxu0
        %v8545 = vadd.f32 %v8101, %v8544
        %v8546 = vpop.f32.mrf.mxu0
        %v8547 = vadd.f32 %v8106, %v8546
        %v8548 = vpop.f32.mrf.mxu0
        %v8549 = vadd.f32 %v8106, %v8548
        %8550 = vdwg.mxu0
        %v8551 = vmax.f32 %v8374, 0.0
        %v8552 = vmax.f32 %v8376, 0.0
        %v8553 = vmax.f32 %v8427, 0.0
        %v8554 = vmax.f32 %v8429, 0.0
        %v8555 = vmax.f32 %v8480, 0.0
        %v8556 = vmax.f32 %v8482, 0.0
        %v8557 = vmax.f32 %v8533, 0.0
        %v8558 = vmax.f32 %v8535, 0.0
        %v8559 = vmax.f32 %v8378, 0.0
        %v8560 = vmax.f32 %v8380, 0.0
        %v8561 = vmax.f32 %v8431, 0.0
        %v8562 = vmax.f32 %v8433, 0.0
        %v8563 = vmax.f32 %v8484, 0.0
        %v8564 = vmax.f32 %v8486, 0.0
        %v8565 = vmax.f32 %v8537, 0.0
        %v8566 = vmax.f32 %v8539, 0.0
        %v8567 = vmax.f32 %v8384, 0.0
        %v8568 = vmax.f32 %v8386, 0.0
        %v8569 = vmax.f32 %v8437, 0.0
        %v8570 = vmax.f32 %v8439, 0.0
        %v8571 = vmax.f32 %v8490, 0.0
        %v8572 = vmax.f32 %v8492, 0.0
        %v8573 = vmax.f32 %v8543, 0.0
        %v8574 = vmax.f32 %v8545, 0.0
        %v8575 = vmax.f32 %v8388, 0.0
        %v8576 = vmax.f32 %v8390, 0.0
        %v8577 = vmax.f32 %v8441, 0.0
        %v8578 = vmax.f32 %v8443, 0.0
        %v8579 = vmax.f32 %v8494, 0.0
        %v8580 = vmax.f32 %v8496, 0.0
        %v8581 = vmax.f32 %v8547, 0.0
        %v8582 = vmax.f32 %v8549, 0.0
        %8583 = vst [vmem:[#allocation2 + $0x8] sm:$0xff] %v8551
        %8584 = vst [vmem:[#allocation2 + $0x10] sm:$0xff] %v8552
        %8585 = vst [vmem:[#allocation2 + $0x18] sm:$0xff] %v8553
        %8586 = vst [vmem:[#allocation2 + $0x20] sm:$0xff] %v8554
        %8587 = vst [vmem:[#allocation2 + $0x28] sm:$0xff] %v8555
        %8588 = vst [vmem:[#allocation2 + $0x30] sm:$0xff] %v8556
        %8589 = vst [vmem:[#allocation2 + $0x38] sm:$0xff] %v8557
        %8590 = vst [vmem:[#allocation2 + $0x40] sm:$0xff] %v8558
        %8591 = vst [vmem:[#allocation2 + $0x58] sm:$0xff] %v8559
        %8592 = vst [vmem:[#allocation2 + $0x60] sm:$0xff] %v8560
        %8593 = vst [vmem:[#allocation2 + $0x68] sm:$0xff] %v8561
        %8594 = vst [vmem:[#allocation2 + $0x70] sm:$0xff] %v8562
        %8595 = vst [vmem:[#allocation2 + $0x78] sm:$0xff] %v8563
        %8596 = vst [vmem:[#allocation2 + $0x80] sm:$0xff] %v8564
        %8597 = vst [vmem:[#allocation2 + $0x88] sm:$0xff] %v8565
        %8598 = vst [vmem:[#allocation2 + $0x90] sm:$0xff] %v8566
        %8599 = vst [vmem:[#allocation2 + $0xa8] sm:$0xff] %v8567
        %8600 = vst [vmem:[#allocation2 + $0xb0] sm:$0xff] %v8568
        %8601 = vst [vmem:[#allocation2 + $0xb8] sm:$0xff] %v8569
        %8602 = vst [vmem:[#allocation2 + $0xc0] sm:$0xff] %v8570
        %8603 = vst [vmem:[#allocation2 + $0xc8] sm:$0xff] %v8571
        %8604 = vst [vmem:[#allocation2 + $0xd0] sm:$0xff] %v8572
        %8605 = vst [vmem:[#allocation2 + $0xd8] sm:$0xff] %v8573
        %8606 = vst [vmem:[#allocation2 + $0xe0] sm:$0xff] %v8574
        %8607 = vst [vmem:[#allocation2 + $0xf8] sm:$0xff] %v8575
        %8608 = vst [vmem:[#allocation2 + $0x100] sm:$0xff] %v8576
        %8609 = vst [vmem:[#allocation2 + $0x108] sm:$0xff] %v8577
        %8610 = vst [vmem:[#allocation2 + $0x110] sm:$0xff] %v8578
        %8611 = vst [vmem:[#allocation2 + $0x118] sm:$0xff] %v8579
        %8612 = vst [vmem:[#allocation2 + $0x120] sm:$0xff] %v8580
        %8613 = vst [vmem:[#allocation2 + $0x128] sm:$0xff] %v8581
        %8614 = vst [vmem:[#allocation2 + $0x130] sm:$0xff] %v8582
        %v8615 = vld [vmem:[#allocation2] sm:$0xff]
        %v8616 = vld [vmem:[#allocation2 + $0x8] sm:$0xff]
        %v8617 = vld [vmem:[#allocation2 + $0x10] sm:$0xff]
        %v8618 = vld [vmem:[#allocation2 + $0x18] sm:$0xff]
        %v8619 = vld [vmem:[#allocation2 + $0x20] sm:$0xff]
        %v8620 = vld [vmem:[#allocation2 + $0x28] sm:$0xff]
        %v8621 = vld [vmem:[#allocation2 + $0x30] sm:$0xff]
        %v8622 = vld [vmem:[#allocation2 + $0x38] sm:$0xff]
        %v8623 = vld [vmem:[#allocation2 + $0x40] sm:$0xff]
        %v8624 = vld [vmem:[#allocation2 + $0x50] sm:$0xff]
        %v8625 = vld [vmem:[#allocation2 + $0x58] sm:$0xff]
        %v8626 = vld [vmem:[#allocation2 + $0x60] sm:$0xff]
        %v8627 = vld [vmem:[#allocation2 + $0x68] sm:$0xff]
        %v8628 = vld [vmem:[#allocation2 + $0x70] sm:$0xff]
        %v8629 = vld [vmem:[#allocation2 + $0x78] sm:$0xff]
        %v8630 = vld [vmem:[#allocation2 + $0x80] sm:$0xff]
        %v8631 = vld [vmem:[#allocation2 + $0x88] sm:$0xff]
        %v8632 = vld [vmem:[#allocation2 + $0x90] sm:$0xff]
        %v8633 = vld [vmem:[#allocation2 + $0xa0] sm:$0xff]
        %v8634 = vld [vmem:[#allocation2 + $0xa8] sm:$0xff]
        %v8635 = vld [vmem:[#allocation2 + $0xb0] sm:$0xff]
        %v8636 = vld [vmem:[#allocation2 + $0xb8] sm:$0xff]
        %v8637 = vld [vmem:[#allocation2 + $0xc0] sm:$0xff]
        %v8638 = vld [vmem:[#allocation2 + $0xc8] sm:$0xff]
        %v8639 = vld [vmem:[#allocation2 + $0xd0] sm:$0xff]
        %v8640 = vld [vmem:[#allocation2 + $0xd8] sm:$0xff]
        %v8641 = vld [vmem:[#allocation2 + $0xe0] sm:$0xff]
        %v8642 = vld [vmem:[#allocation2 + $0xf0] sm:$0xff]
        %v8643 = vld [vmem:[#allocation2 + $0xf8] sm:$0xff]
        %v8644 = vld [vmem:[#allocation2 + $0x100] sm:$0xff]
        %v8645 = vld [vmem:[#allocation2 + $0x108] sm:$0xff]
        %v8646 = vld [vmem:[#allocation2 + $0x110] sm:$0xff]
        %v8647 = vld [vmem:[#allocation2 + $0x118] sm:$0xff]
        %v8648 = vld [vmem:[#allocation2 + $0x120] sm:$0xff]
        %v8649 = vld [vmem:[#allocation2 + $0x128] sm:$0xff]
        %v8650 = vld [vmem:[#allocation2 + $0x130] sm:$0xff]
        %v8651 = vld [vmem:[#allocation2 + $0x8] sm:$0xff]
        %v8652 = vld [vmem:[#allocation2 + $0x10] sm:$0xff]
        %v8653 = vld [vmem:[#allocation2 + $0x18] sm:$0xff]
        %v8654 = vld [vmem:[#allocation2 + $0x20] sm:$0xff]
        %v8655 = vld [vmem:[#allocation2 + $0x28] sm:$0xff]
        %v8656 = vld [vmem:[#allocation2 + $0x30] sm:$0xff]
        %v8657 = vld [vmem:[#allocation2 + $0x38] sm:$0xff]
        %v8658 = vld [vmem:[#allocation2 + $0x40] sm:$0xff]
        %v8659 = vld [vmem:[#allocation2 + $0x48] sm:$0xff]
        %v8660 = vld [vmem:[#allocation2 + $0x58] sm:$0xff]
        %v8661 = vld [vmem:[#allocation2 + $0x60] sm:$0xff]
        %v8662 = vld [vmem:[#allocation2 + $0x68] sm:$0xff]
        %v8663 = vld [vmem:[#allocation2 + $0x70] sm:$0xff]
        %v8664 = vld [vmem:[#allocation2 + $0x78] sm:$0xff]
        %v8665 = vld [vmem:[#allocation2 + $0x80] sm:$0xff]
        %v8666 = vld [vmem:[#allocation2 + $0x88] sm:$0xff]
        %v8667 = vld [vmem:[#allocation2 + $0x90] sm:$0xff]
        %v8668 = vld [vmem:[#allocation2 + $0x98] sm:$0xff]
        %v8669 = vld [vmem:[#allocation2 + $0xa8] sm:$0xff]
        %v8670 = vld [vmem:[#allocation2 + $0xb0] sm:$0xff]
        %v8671 = vld [vmem:[#allocation2 + $0xb8] sm:$0xff]
        %v8672 = vld [vmem:[#allocation2 + $0xc0] sm:$0xff]
        %v8673 = vld [vmem:[#allocation2 + $0xc8] sm:$0xff]
        %v8674 = vld [vmem:[#allocation2 + $0xd0] sm:$0xff]
        %v8675 = vld [vmem:[#allocation2 + $0xd8] sm:$0xff]
        %v8676 = vld [vmem:[#allocation2 + $0xe0] sm:$0xff]
        %v8677 = vld [vmem:[#allocation2 + $0xe8] sm:$0xff]
        %v8678 = vld [vmem:[#allocation2 + $0xf8] sm:$0xff]
        %v8679 = vld [vmem:[#allocation2 + $0x100] sm:$0xff]
        %v8680 = vld [vmem:[#allocation2 + $0x108] sm:$0xff]
        %v8681 = vld [vmem:[#allocation2 + $0x110] sm:$0xff]
        %v8682 = vld [vmem:[#allocation2 + $0x118] sm:$0xff]
        %v8683 = vld [vmem:[#allocation2 + $0x120] sm:$0xff]
        %v8684 = vld [vmem:[#allocation2 + $0x128] sm:$0xff]
        %v8685 = vld [vmem:[#allocation2 + $0x130] sm:$0xff]
        %v8686 = vld [vmem:[#allocation2 + $0x138] sm:$0xff]
        %8719 = vrot.lane.b32.xlu0 %v8616, 112
        %v8720 = vpop.permute.xlu0 %8719
        %8721 = vrot.lane.b32.xlu0 %v8617, 112
        %v8722 = vpop.permute.xlu0 %8721
        %8723 = vrot.lane.b32.xlu0 %v8618, 112
        %v8724 = vpop.permute.xlu0 %8723
        %8725 = vrot.lane.b32.xlu0 %v8619, 112
        %v8726 = vpop.permute.xlu0 %8725
        %8727 = vrot.lane.b32.xlu0 %v8620, 112
        %v8728 = vpop.permute.xlu0 %8727
        %8729 = vrot.lane.b32.xlu0 %v8621, 112
        %v8730 = vpop.permute.xlu0 %8729
        %8731 = vrot.lane.b32.xlu0 %v8622, 112
        %v8732 = vpop.permute.xlu0 %8731
        %8733 = vrot.lane.b32.xlu0 %v8623, 112
        %v8734 = vpop.permute.xlu0 %8733
        %8735 = vrot.lane.b32.xlu0 %v8625, 112
        %v8736 = vpop.permute.xlu0 %8735
        %8737 = vrot.lane.b32.xlu0 %v8626, 112
        %v8738 = vpop.permute.xlu0 %8737
        %8739 = vrot.lane.b32.xlu0 %v8627, 112
        %v8740 = vpop.permute.xlu0 %8739
        %8741 = vrot.lane.b32.xlu0 %v8628, 112
        %v8742 = vpop.permute.xlu0 %8741
        %8743 = vrot.lane.b32.xlu0 %v8629, 112
        %v8744 = vpop.permute.xlu0 %8743
        %8745 = vrot.lane.b32.xlu0 %v8630, 112
        %v8746 = vpop.permute.xlu0 %8745
        %8747 = vrot.lane.b32.xlu0 %v8631, 112
        %v8748 = vpop.permute.xlu0 %8747
        %8749 = vrot.lane.b32.xlu0 %v8632, 112
        %v8750 = vpop.permute.xlu0 %8749
        %8751 = vrot.lane.b32.xlu0 %v8634, 112
        %v8752 = vpop.permute.xlu0 %8751
        %8753 = vrot.lane.b32.xlu0 %v8635, 112
        %v8754 = vpop.permute.xlu0 %8753
        %8755 = vrot.lane.b32.xlu0 %v8636, 112
        %v8756 = vpop.permute.xlu0 %8755
        %8757 = vrot.lane.b32.xlu0 %v8637, 112
        %v8758 = vpop.permute.xlu0 %8757
        %8759 = vrot.lane.b32.xlu0 %v8638, 112
        %v8760 = vpop.permute.xlu0 %8759
        %8761 = vrot.lane.b32.xlu0 %v8639, 112
        %v8762 = vpop.permute.xlu0 %8761
        %8763 = vrot.lane.b32.xlu0 %v8640, 112
        %v8764 = vpop.permute.xlu0 %8763
        %8765 = vrot.lane.b32.xlu0 %v8641, 112
        %v8766 = vpop.permute.xlu0 %8765
        %8767 = vrot.lane.b32.xlu0 %v8643, 112
        %v8768 = vpop.permute.xlu0 %8767
        %8769 = vrot.lane.b32.xlu0 %v8644, 112
        %v8770 = vpop.permute.xlu0 %8769
        %8771 = vrot.lane.b32.xlu0 %v8645, 112
        %v8772 = vpop.permute.xlu0 %8771
        %8773 = vrot.lane.b32.xlu0 %v8646, 112
        %v8774 = vpop.permute.xlu0 %8773
        %8775 = vrot.lane.b32.xlu0 %v8647, 112
        %v8776 = vpop.permute.xlu0 %8775
        %8777 = vrot.lane.b32.xlu0 %v8648, 112
        %v8778 = vpop.permute.xlu0 %8777
        %8779 = vrot.lane.b32.xlu0 %v8649, 112
        %v8780 = vpop.permute.xlu0 %8779
        %8781 = vrot.lane.b32.xlu0 %v8650, 112
        %v8782 = vpop.permute.xlu0 %8781
        %v8783 = vsel %vm2549, %v8720, %v8722
        %v8784 = vsel %vm2549, %v8722, %v8724
        %v8785 = vsel %vm2549, %v8724, %v8726
        %v8786 = vsel %vm2549, %v8726, %v8728
        %v8787 = vsel %vm2549, %v8728, %v8730
        %v8788 = vsel %vm2549, %v8730, %v8732
        %v8789 = vsel %vm2549, %v8732, %v8734
        %v8790 = vsel %vm2549, %v8736, %v8738
        %v8791 = vsel %vm2549, %v8738, %v8740
        %v8792 = vsel %vm2549, %v8740, %v8742
        %v8793 = vsel %vm2549, %v8742, %v8744
        %v8794 = vsel %vm2549, %v8744, %v8746
        %v8795 = vsel %vm2549, %v8746, %v8748
        %v8796 = vsel %vm2549, %v8748, %v8750
        %v8797 = vsel %vm2549, %v8752, %v8754
        %v8798 = vsel %vm2549, %v8754, %v8756
        %v8799 = vsel %vm2549, %v8756, %v8758
        %v8800 = vsel %vm2549, %v8758, %v8760
        %v8801 = vsel %vm2549, %v8760, %v8762
        %v8802 = vsel %vm2549, %v8762, %v8764
        %v8803 = vsel %vm2549, %v8764, %v8766
        %v8804 = vsel %vm2549, %v8768, %v8770
        %v8805 = vsel %vm2549, %v8770, %v8772
        %v8806 = vsel %vm2549, %v8772, %v8774
        %v8807 = vsel %vm2549, %v8774, %v8776
        %v8808 = vsel %vm2549, %v8776, %v8778
        %v8809 = vsel %vm2549, %v8778, %v8780
        %v8810 = vsel %vm2549, %v8780, %v8782
        %8883 = vrot.lane.b32.xlu0 %v8651, 96
        %v8884 = vpop.permute.xlu0 %8883
        %8885 = vrot.lane.b32.xlu0 %v8652, 96
        %v8886 = vpop.permute.xlu0 %8885
        %8887 = vrot.lane.b32.xlu0 %v8653, 96
        %v8888 = vpop.permute.xlu0 %8887
        %8889 = vrot.lane.b32.xlu0 %v8654, 96
        %v8890 = vpop.permute.xlu0 %8889
        %8891 = vrot.lane.b32.xlu0 %v8655, 96
        %v8892 = vpop.permute.xlu0 %8891
        %8893 = vrot.lane.b32.xlu0 %v8656, 96
        %v8894 = vpop.permute.xlu0 %8893
        %8895 = vrot.lane.b32.xlu0 %v8657, 96
        %v8896 = vpop.permute.xlu0 %8895
        %8897 = vrot.lane.b32.xlu0 %v8658, 96
        %v8898 = vpop.permute.xlu0 %8897
        %8899 = vrot.lane.b32.xlu0 %v8659, 96
        %v8900 = vpop.permute.xlu0 %8899
        %8901 = vrot.lane.b32.xlu0 %v8660, 96
        %v8902 = vpop.permute.xlu0 %8901
        %8903 = vrot.lane.b32.xlu0 %v8661, 96
        %v8904 = vpop.permute.xlu0 %8903
        %8905 = vrot.lane.b32.xlu0 %v8662, 96
        %v8906 = vpop.permute.xlu0 %8905
        %8907 = vrot.lane.b32.xlu0 %v8663, 96
        %v8908 = vpop.permute.xlu0 %8907
        %8909 = vrot.lane.b32.xlu0 %v8664, 96
        %v8910 = vpop.permute.xlu0 %8909
        %8911 = vrot.lane.b32.xlu0 %v8665, 96
        %v8912 = vpop.permute.xlu0 %8911
        %8913 = vrot.lane.b32.xlu0 %v8666, 96
        %v8914 = vpop.permute.xlu0 %8913
        %8915 = vrot.lane.b32.xlu0 %v8667, 96
        %v8916 = vpop.permute.xlu0 %8915
        %8917 = vrot.lane.b32.xlu0 %v8668, 96
        %v8918 = vpop.permute.xlu0 %8917
        %8919 = vrot.lane.b32.xlu0 %v8669, 96
        %v8920 = vpop.permute.xlu0 %8919
        %8921 = vrot.lane.b32.xlu0 %v8670, 96
        %v8922 = vpop.permute.xlu0 %8921
        %8923 = vrot.lane.b32.xlu0 %v8671, 96
        %v8924 = vpop.permute.xlu0 %8923
        %8925 = vrot.lane.b32.xlu0 %v8672, 96
        %v8926 = vpop.permute.xlu0 %8925
        %8927 = vrot.lane.b32.xlu0 %v8673, 96
        %v8928 = vpop.permute.xlu0 %8927
        %8929 = vrot.lane.b32.xlu0 %v8674, 96
        %v8930 = vpop.permute.xlu0 %8929
        %8931 = vrot.lane.b32.xlu0 %v8675, 96
        %v8932 = vpop.permute.xlu0 %8931
        %8933 = vrot.lane.b32.xlu0 %v8676, 96
        %v8934 = vpop.permute.xlu0 %8933
        %8935 = vrot.lane.b32.xlu0 %v8677, 96
        %v8936 = vpop.permute.xlu0 %8935
        %8937 = vrot.lane.b32.xlu0 %v8678, 96
        %v8938 = vpop.permute.xlu0 %8937
        %8939 = vrot.lane.b32.xlu0 %v8679, 96
        %v8940 = vpop.permute.xlu0 %8939
        %8941 = vrot.lane.b32.xlu0 %v8680, 96
        %v8942 = vpop.permute.xlu0 %8941
        %8943 = vrot.lane.b32.xlu0 %v8681, 96
        %v8944 = vpop.permute.xlu0 %8943
        %8945 = vrot.lane.b32.xlu0 %v8682, 96
        %v8946 = vpop.permute.xlu0 %8945
        %8947 = vrot.lane.b32.xlu0 %v8683, 96
        %v8948 = vpop.permute.xlu0 %8947
        %8949 = vrot.lane.b32.xlu0 %v8684, 96
        %v8950 = vpop.permute.xlu0 %8949
        %8951 = vrot.lane.b32.xlu0 %v8685, 96
        %v8952 = vpop.permute.xlu0 %8951
        %8953 = vrot.lane.b32.xlu0 %v8686, 96
        %v8954 = vpop.permute.xlu0 %8953
        %v8955 = vsel %vm3505, %v8884, %v8886
        %v8956 = vsel %vm3505, %v8886, %v8888
        %v8957 = vsel %vm3505, %v8888, %v8890
        %v8958 = vsel %vm3505, %v8890, %v8892
        %v8959 = vsel %vm3505, %v8892, %v8894
        %v8960 = vsel %vm3505, %v8894, %v8896
        %v8961 = vsel %vm3505, %v8896, %v8898
        %v8962 = vsel %vm3505, %v8898, %v8900
        %v8963 = vsel %vm3505, %v8902, %v8904
        %v8964 = vsel %vm3505, %v8904, %v8906
        %v8965 = vsel %vm3505, %v8906, %v8908
        %v8966 = vsel %vm3505, %v8908, %v8910
        %v8967 = vsel %vm3505, %v8910, %v8912
        %v8968 = vsel %vm3505, %v8912, %v8914
        %v8969 = vsel %vm3505, %v8914, %v8916
        %v8970 = vsel %vm3505, %v8916, %v8918
        %v8971 = vsel %vm3505, %v8920, %v8922
        %v8972 = vsel %vm3505, %v8922, %v8924
        %v8973 = vsel %vm3505, %v8924, %v8926
        %v8974 = vsel %vm3505, %v8926, %v8928
        %v8975 = vsel %vm3505, %v8928, %v8930
        %v8976 = vsel %vm3505, %v8930, %v8932
        %v8977 = vsel %vm3505, %v8932, %v8934
        %v8978 = vsel %vm3505, %v8934, %v8936
        %v8979 = vsel %vm3505, %v8938, %v8940
        %v8980 = vsel %vm3505, %v8940, %v8942
        %v8981 = vsel %vm3505, %v8942, %v8944
        %v8982 = vsel %vm3505, %v8944, %v8946
        %v8983 = vsel %vm3505, %v8946, %v8948
        %v8984 = vsel %vm3505, %v8948, %v8950
        %v8985 = vsel %vm3505, %v8950, %v8952
        %v8986 = vsel %vm3505, %v8952, %v8954
        %v9023 = vpack.c.bf16 %v8624, %v8615
        %v9024 = vpack.c.bf16 %v8625, %v8616
        %v9025 = vpack.c.bf16 %v8626, %v8617
        %v9026 = vpack.c.bf16 %v8627, %v8618
        %v9027 = vpack.c.bf16 %v8628, %v8619
        %v9028 = vpack.c.bf16 %v8629, %v8620
        %v9029 = vpack.c.bf16 %v8630, %v8621
        %v9030 = vpack.c.bf16 %v8631, %v8622
        %v9031 = vpack.c.bf16 %v8632, %v8623
        %v9032 = vpack.c.bf16 %v8642, %v8633
        %v9033 = vpack.c.bf16 %v8643, %v8634
        %v9034 = vpack.c.bf16 %v8644, %v8635
        %v9035 = vpack.c.bf16 %v8645, %v8636
        %v9036 = vpack.c.bf16 %v8646, %v8637
        %v9037 = vpack.c.bf16 %v8647, %v8638
        %v9038 = vpack.c.bf16 %v8648, %v8639
        %v9039 = vpack.c.bf16 %v8649, %v8640
        %v9040 = vpack.c.bf16 %v8650, %v8641
        %v9041 = vpack.c.bf16 %v8736, %v8720
        %v9042 = vpack.c.bf16 %v8790, %v8783
        %v9043 = vpack.c.bf16 %v8791, %v8784
        %v9044 = vpack.c.bf16 %v8792, %v8785
        %v9045 = vpack.c.bf16 %v8793, %v8786
        %v9046 = vpack.c.bf16 %v8794, %v8787
        %v9047 = vpack.c.bf16 %v8795, %v8788
        %v9048 = vpack.c.bf16 %v8796, %v8789
        %v9049 = vpack.c.bf16 %v8750, %v8734
        %v9050 = vpack.c.bf16 %v8768, %v8752
        %v9051 = vpack.c.bf16 %v8804, %v8797
        %v9052 = vpack.c.bf16 %v8805, %v8798
        %v9053 = vpack.c.bf16 %v8806, %v8799
        %v9054 = vpack.c.bf16 %v8807, %v8800
        %v9055 = vpack.c.bf16 %v8808, %v8801
        %v9056 = vpack.c.bf16 %v8809, %v8802
        %v9057 = vpack.c.bf16 %v8810, %v8803
        %v9058 = vpack.c.bf16 %v8782, %v8766
        %v9059 = vpack.c.bf16 %v8902, %v8884
        %v9060 = vpack.c.bf16 %v8963, %v8955
        %v9061 = vpack.c.bf16 %v8964, %v8956
        %v9062 = vpack.c.bf16 %v8965, %v8957
        %v9063 = vpack.c.bf16 %v8966, %v8958
        %v9064 = vpack.c.bf16 %v8967, %v8959
        %v9065 = vpack.c.bf16 %v8968, %v8960
        %v9066 = vpack.c.bf16 %v8969, %v8961
        %v9067 = vpack.c.bf16 %v8970, %v8962
        %v9068 = vpack.c.bf16 %v8938, %v8920
        %v9069 = vpack.c.bf16 %v8979, %v8971
        %v9070 = vpack.c.bf16 %v8980, %v8972
        %v9071 = vpack.c.bf16 %v8981, %v8973
        %v9072 = vpack.c.bf16 %v8982, %v8974
        %v9073 = vpack.c.bf16 %v8983, %v8975
        %v9074 = vpack.c.bf16 %v8984, %v8976
        %v9075 = vpack.c.bf16 %v8985, %v8977
        %v9076 = vpack.c.bf16 %v8986, %v8978
        %v9077 = vld [vmem:[#allocation14] sm:$0xf]
        %v9078 = vld [vmem:[#allocation14 + $0x4] sm:$0xf]
        %v9079 = vld [vmem:[#allocation14 + $0x8] sm:$0xf]
        %v9080 = vld [vmem:[#allocation14 + $0xc] sm:$0xf]
        %v9081 = vld [vmem:[#allocation16] sm:$0xff]
        %v9082 = vld [vmem:[#allocation16 + $0x8] sm:$0xff]
        %v9083 = vld [vmem:[#allocation16 + $0x10] sm:$0xff]
        %v9084 = vld [vmem:[#allocation16 + $0x18] sm:$0xff]
        %9086 = vset.pattern.permute.xlu0 0
        %9087 = vperm.xlu0 %9086, %v9081
        %v9088 = vpop.permute.xlu0 %9087
        %9091 = vset.pattern.permute.xlu0 0
        %9092 = vperm.xlu0 %9091, %v9082
        %v9093 = vpop.permute.xlu0 %9092
        %9096 = vset.pattern.permute.xlu0 0
        %9097 = vperm.xlu0 %9096, %v9083
        %v9098 = vpop.permute.xlu0 %9097
        %9101 = vset.pattern.permute.xlu0 0
        %9102 = vperm.xlu0 %9101, %v9084
        %v9103 = vpop.permute.xlu0 %9102
        %v9109 = vunpack.c.l.b16 %v9077
        %v9110 = vunpack.c.l.b16 %v9078
        %v9111 = vunpack.c.l.b16 %v9079
        %v9112 = vunpack.c.l.b16 %v9080
        %v9113 = vpack.c.b16 %v9110, %v9109
        %v9114 = vpack.c.b16 %v9112, %v9111
        %9169 = vrot.lane.b32.xlu0 %v9023, 16
        %v9170 = vpop.permute.xlu0 %9169
        %9171 = vrot.lane.b32.xlu0 %v9024, 16
        %v9172 = vpop.permute.xlu0 %9171
        %9173 = vrot.lane.b32.xlu0 %v9025, 16
        %v9174 = vpop.permute.xlu0 %9173
        %9175 = vrot.lane.b32.xlu0 %v9026, 16
        %v9176 = vpop.permute.xlu0 %9175
        %9177 = vrot.lane.b32.xlu0 %v9027, 16
        %v9178 = vpop.permute.xlu0 %9177
        %9179 = vrot.lane.b32.xlu0 %v9028, 16
        %v9180 = vpop.permute.xlu0 %9179
        %9181 = vrot.lane.b32.xlu0 %v9029, 16
        %v9182 = vpop.permute.xlu0 %9181
        %9183 = vrot.lane.b32.xlu0 %v9030, 16
        %v9184 = vpop.permute.xlu0 %9183
        %9185 = vrot.lane.b32.xlu0 %v9031, 16
        %v9186 = vpop.permute.xlu0 %9185
        %9187 = vrot.lane.b32.xlu0 %v9032, 16
        %v9188 = vpop.permute.xlu0 %9187
        %9189 = vrot.lane.b32.xlu0 %v9033, 16
        %v9190 = vpop.permute.xlu0 %9189
        %9191 = vrot.lane.b32.xlu0 %v9034, 16
        %v9192 = vpop.permute.xlu0 %9191
        %9193 = vrot.lane.b32.xlu0 %v9035, 16
        %v9194 = vpop.permute.xlu0 %9193
        %9195 = vrot.lane.b32.xlu0 %v9036, 16
        %v9196 = vpop.permute.xlu0 %9195
        %9197 = vrot.lane.b32.xlu0 %v9037, 16
        %v9198 = vpop.permute.xlu0 %9197
        %9199 = vrot.lane.b32.xlu0 %v9038, 16
        %v9200 = vpop.permute.xlu0 %9199
        %9201 = vrot.lane.b32.xlu0 %v9039, 16
        %v9202 = vpop.permute.xlu0 %9201
        %9203 = vrot.lane.b32.xlu0 %v9040, 16
        %v9204 = vpop.permute.xlu0 %9203
        %9205 = vrot.lane.b32.xlu0 %v9041, 16
        %v9206 = vpop.permute.xlu0 %9205
        %9207 = vrot.lane.b32.xlu0 %v9042, 16
        %v9208 = vpop.permute.xlu0 %9207
        %9209 = vrot.lane.b32.xlu0 %v9043, 16
        %v9210 = vpop.permute.xlu0 %9209
        %9211 = vrot.lane.b32.xlu0 %v9044, 16
        %v9212 = vpop.permute.xlu0 %9211
        %9213 = vrot.lane.b32.xlu0 %v9045, 16
        %v9214 = vpop.permute.xlu0 %9213
        %9215 = vrot.lane.b32.xlu0 %v9046, 16
        %v9216 = vpop.permute.xlu0 %9215
        %9217 = vrot.lane.b32.xlu0 %v9047, 16
        %v9218 = vpop.permute.xlu0 %9217
        %9219 = vrot.lane.b32.xlu0 %v9048, 16
        %v9220 = vpop.permute.xlu0 %9219
        %9221 = vrot.lane.b32.xlu0 %v9049, 16
        %v9222 = vpop.permute.xlu0 %9221
        %9223 = vrot.lane.b32.xlu0 %v9050, 16
        %v9224 = vpop.permute.xlu0 %9223
        %9225 = vrot.lane.b32.xlu0 %v9051, 16
        %v9226 = vpop.permute.xlu0 %9225
        %9227 = vrot.lane.b32.xlu0 %v9052, 16
        %v9228 = vpop.permute.xlu0 %9227
        %9229 = vrot.lane.b32.xlu0 %v9053, 16
        %v9230 = vpop.permute.xlu0 %9229
        %9231 = vrot.lane.b32.xlu0 %v9054, 16
        %v9232 = vpop.permute.xlu0 %9231
        %9233 = vrot.lane.b32.xlu0 %v9055, 16
        %v9234 = vpop.permute.xlu0 %9233
        %9235 = vrot.lane.b32.xlu0 %v9056, 16
        %v9236 = vpop.permute.xlu0 %9235
        %9237 = vrot.lane.b32.xlu0 %v9057, 16
        %v9238 = vpop.permute.xlu0 %9237
        %9239 = vrot.lane.b32.xlu0 %v9058, 16
        %v9240 = vpop.permute.xlu0 %9239
        %9241 = vrot.lane.b32.xlu0 %v9059, 16
        %v9242 = vpop.permute.xlu0 %9241
        %9243 = vrot.lane.b32.xlu0 %v9060, 16
        %v9244 = vpop.permute.xlu0 %9243
        %9245 = vrot.lane.b32.xlu0 %v9061, 16
        %v9246 = vpop.permute.xlu0 %9245
        %9247 = vrot.lane.b32.xlu0 %v9062, 16
        %v9248 = vpop.permute.xlu0 %9247
        %9249 = vrot.lane.b32.xlu0 %v9063, 16
        %v9250 = vpop.permute.xlu0 %9249
        %9251 = vrot.lane.b32.xlu0 %v9064, 16
        %v9252 = vpop.permute.xlu0 %9251
        %9253 = vrot.lane.b32.xlu0 %v9065, 16
        %v9254 = vpop.permute.xlu0 %9253
        %9255 = vrot.lane.b32.xlu0 %v9066, 16
        %v9256 = vpop.permute.xlu0 %9255
        %9257 = vrot.lane.b32.xlu0 %v9067, 16
        %v9258 = vpop.permute.xlu0 %9257
        %9259 = vrot.lane.b32.xlu0 %v9068, 16
        %v9260 = vpop.permute.xlu0 %9259
        %9261 = vrot.lane.b32.xlu0 %v9069, 16
        %v9262 = vpop.permute.xlu0 %9261
        %9263 = vrot.lane.b32.xlu0 %v9070, 16
        %v9264 = vpop.permute.xlu0 %9263
        %9265 = vrot.lane.b32.xlu0 %v9071, 16
        %v9266 = vpop.permute.xlu0 %9265
        %9267 = vrot.lane.b32.xlu0 %v9072, 16
        %v9268 = vpop.permute.xlu0 %9267
        %9269 = vrot.lane.b32.xlu0 %v9073, 16
        %v9270 = vpop.permute.xlu0 %9269
        %9271 = vrot.lane.b32.xlu0 %v9074, 16
        %v9272 = vpop.permute.xlu0 %9271
        %9273 = vrot.lane.b32.xlu0 %v9075, 16
        %v9274 = vpop.permute.xlu0 %9273
        %9275 = vrot.lane.b32.xlu0 %v9076, 16
        %v9276 = vpop.permute.xlu0 %9275
        %v9277 = vsel %vm3828, %v9170, %v9172
        %v9278 = vsel %vm3828, %v9172, %v9174
        %v9279 = vsel %vm3828, %v9174, %v9176
        %v9280 = vsel %vm3828, %v9176, %v9178
        %v9281 = vsel %vm3828, %v9178, %v9180
        %v9282 = vsel %vm3828, %v9180, %v9182
        %v9283 = vsel %vm3828, %v9182, %v9184
        %v9284 = vsel %vm3828, %v9184, %v9186
        %v9285 = vsel %vm3828, %v9188, %v9190
        %v9286 = vsel %vm3828, %v9190, %v9192
        %v9287 = vsel %vm3828, %v9192, %v9194
        %v9288 = vsel %vm3828, %v9194, %v9196
        %v9289 = vsel %vm3828, %v9196, %v9198
        %v9290 = vsel %vm3828, %v9198, %v9200
        %v9291 = vsel %vm3828, %v9200, %v9202
        %v9292 = vsel %vm3828, %v9202, %v9204
        %v9293 = vsel %vm3828, %v9206, %v9208
        %v9294 = vsel %vm3828, %v9208, %v9210
        %v9295 = vsel %vm3828, %v9210, %v9212
        %v9296 = vsel %vm3828, %v9212, %v9214
        %v9297 = vsel %vm3828, %v9214, %v9216
        %v9298 = vsel %vm3828, %v9216, %v9218
        %v9299 = vsel %vm3828, %v9218, %v9220
        %v9300 = vsel %vm3828, %v9220, %v9222
        %v9301 = vsel %vm3828, %v9224, %v9226
        %v9302 = vsel %vm3828, %v9226, %v9228
        %v9303 = vsel %vm3828, %v9228, %v9230
        %v9304 = vsel %vm3828, %v9230, %v9232
        %v9305 = vsel %vm3828, %v9232, %v9234
        %v9306 = vsel %vm3828, %v9234, %v9236
        %v9307 = vsel %vm3828, %v9236, %v9238
        %v9308 = vsel %vm3828, %v9238, %v9240
        %v9309 = vsel %vm3828, %v9242, %v9244
        %v9310 = vsel %vm3828, %v9244, %v9246
        %v9311 = vsel %vm3828, %v9246, %v9248
        %v9312 = vsel %vm3828, %v9248, %v9250
        %v9313 = vsel %vm3828, %v9250, %v9252
        %v9314 = vsel %vm3828, %v9252, %v9254
        %v9315 = vsel %vm3828, %v9254, %v9256
        %v9316 = vsel %vm3828, %v9256, %v9258
        %v9317 = vsel %vm3828, %v9260, %v9262
        %v9318 = vsel %vm3828, %v9262, %v9264
        %v9319 = vsel %vm3828, %v9264, %v9266
        %v9320 = vsel %vm3828, %v9266, %v9268
        %v9321 = vsel %vm3828, %v9268, %v9270
        %v9322 = vsel %vm3828, %v9270, %v9272
        %v9323 = vsel %vm3828, %v9272, %v9274
        %v9324 = vsel %vm3828, %v9274, %v9276
        %v9374 = vsel %vm3505, %v9113, 0
        %v9377 = vsel %vm3505, %v9114, 0
        %9379 = vmatprep.subr.bf16.mxu0 0
        %9380 = vmatpush1.bf16.msra.mxu0 0
        %9381 = vmatprep.subr.bf16.mxu0 0
        %9382 = vmatpush1.bf16.msra.mxu0 0
        %9383 = vmatprep.subr.bf16.mxu0 %v9318
        %9384 = vmatpush1.bf16.msra.mxu0 %v9317
        %9385 = vmatprep.subr.bf16.mxu0 %v9310
        %9386 = vmatpush1.bf16.msra.mxu0 %v9309
        %9387 = vmatprep.subr.bf16.mxu0 %v9302
        %9388 = vmatpush1.bf16.msra.mxu0 %v9301
        %9389 = vmatprep.subr.bf16.mxu0 %v9294
        %9390 = vmatpush1.bf16.msra.mxu0 %v9293
        %9391 = vmatprep.subr.bf16.mxu0 %v9286
        %9392 = vmatpush1.bf16.msra.mxu0 %v9285
        %9393 = vmatprep.subr.bf16.mxu0 %v9278
        %9394 = vmatpush1.bf16.msra.mxu0 %v9277
        %9395 = vmatprep.subr.bf16.mxu0 0
        %9396 = vmatpush2.bf16.msra.mxu0 0
        %9397 = vmatprep.subr.bf16.mxu0 0
        %9398 = vmatpush2.bf16.msra.mxu0 0
        %9399 = vmatprep.subr.bf16.mxu0 0
        %9400 = vmatpush2.bf16.msra.mxu0 0
        %9401 = vmatprep.subr.bf16.mxu0 0
        %9402 = vmatpush2.bf16.msra.mxu0 0
        %9403 = vmatprep.subr.bf16.mxu0 0
        %9404 = vmatpush2.bf16.msra.mxu0 0
        %9405 = vmatprep.subr.bf16.mxu0 0
        %9406 = vmatpush2.bf16.msra.mxu0 0
        %9407 = vmatprep.subr.bf16.mxu0 0
        %9408 = vmatpush2.bf16.msra.mxu0 0
        %9409 = vmatprep.subr.bf16.mxu0 0
        %9410 = vmatpush2.bf16.msra.mxu0 0
        %9411 = vmatprep.mubr.bf16.mxu0 0
        %9412 = vmatmul.mubr.bf16.gmra.mxu0 %v9374
        %v9413 = vpop.f32.mrf.mxu0
        %v9414 = vadd.f32 %v9088, %v9413
        %v9415 = vpop.f32.mrf.mxu0
        %v9416 = vadd.f32 %v9088, %v9415
        %v9417 = vpop.f32.mrf.mxu0
        %v9418 = vadd.f32 %v9093, %v9417
        %v9419 = vpop.f32.mrf.mxu0
        %v9420 = vadd.f32 %v9093, %v9419
        %9421 = vmatprep.mubr.bf16.mxu0 0
        %9422 = vmatmul.mubr.bf16.gmra.mxu0 %v9377
        %v9423 = vpop.f32.mrf.mxu0
        %v9424 = vadd.f32 %v9098, %v9423
        %v9425 = vpop.f32.mrf.mxu0
        %v9426 = vadd.f32 %v9098, %v9425
        %v9427 = vpop.f32.mrf.mxu0
        %v9428 = vadd.f32 %v9103, %v9427
        %v9429 = vpop.f32.mrf.mxu0
        %v9430 = vadd.f32 %v9103, %v9429
        %9431 = vdwg.mxu0
        %9432 = vmatprep.subr.bf16.mxu0 0
        %9433 = vmatpush1.bf16.msra.mxu0 0
        %9434 = vmatprep.subr.bf16.mxu0 0
        %9435 = vmatpush1.bf16.msra.mxu0 0
        %9436 = vmatprep.subr.bf16.mxu0 %v9320
        %9437 = vmatpush1.bf16.msra.mxu0 %v9319
        %9438 = vmatprep.subr.bf16.mxu0 %v9312
        %9439 = vmatpush1.bf16.msra.mxu0 %v9311
        %9440 = vmatprep.subr.bf16.mxu0 %v9304
        %9441 = vmatpush1.bf16.msra.mxu0 %v9303
        %9442 = vmatprep.subr.bf16.mxu0 %v9296
        %9443 = vmatpush1.bf16.msra.mxu0 %v9295
        %9444 = vmatprep.subr.bf16.mxu0 %v9288
        %9445 = vmatpush1.bf16.msra.mxu0 %v9287
        %9446 = vmatprep.subr.bf16.mxu0 %v9280
        %9447 = vmatpush1.bf16.msra.mxu0 %v9279
        %9448 = vmatprep.subr.bf16.mxu0 0
        %9449 = vmatpush2.bf16.msra.mxu0 0
        %9450 = vmatprep.subr.bf16.mxu0 0
        %9451 = vmatpush2.bf16.msra.mxu0 0
        %9452 = vmatprep.subr.bf16.mxu0 0
        %9453 = vmatpush2.bf16.msra.mxu0 0
        %9454 = vmatprep.subr.bf16.mxu0 0
        %9455 = vmatpush2.bf16.msra.mxu0 0
        %9456 = vmatprep.subr.bf16.mxu0 0
        %9457 = vmatpush2.bf16.msra.mxu0 0
        %9458 = vmatprep.subr.bf16.mxu0 0
        %9459 = vmatpush2.bf16.msra.mxu0 0
        %9460 = vmatprep.subr.bf16.mxu0 0
        %9461 = vmatpush2.bf16.msra.mxu0 0
        %9462 = vmatprep.subr.bf16.mxu0 0
        %9463 = vmatpush2.bf16.msra.mxu0 0
        %9464 = vmatprep.mubr.bf16.mxu0 0
        %9465 = vmatmul.mubr.bf16.gmra.mxu0 %v9374
        %v9466 = vpop.f32.mrf.mxu0
        %v9467 = vadd.f32 %v9088, %v9466
        %v9468 = vpop.f32.mrf.mxu0
        %v9469 = vadd.f32 %v9088, %v9468
        %v9470 = vpop.f32.mrf.mxu0
        %v9471 = vadd.f32 %v9093, %v9470
        %v9472 = vpop.f32.mrf.mxu0
        %v9473 = vadd.f32 %v9093, %v9472
        %9474 = vmatprep.mubr.bf16.mxu0 0
        %9475 = vmatmul.mubr.bf16.gmra.mxu0 %v9377
        %v9476 = vpop.f32.mrf.mxu0
        %v9477 = vadd.f32 %v9098, %v9476
        %v9478 = vpop.f32.mrf.mxu0
        %v9479 = vadd.f32 %v9098, %v9478
        %v9480 = vpop.f32.mrf.mxu0
        %v9481 = vadd.f32 %v9103, %v9480
        %v9482 = vpop.f32.mrf.mxu0
        %v9483 = vadd.f32 %v9103, %v9482
        %9484 = vdwg.mxu0
        %9485 = vmatprep.subr.bf16.mxu0 0
        %9486 = vmatpush1.bf16.msra.mxu0 0
        %9487 = vmatprep.subr.bf16.mxu0 0
        %9488 = vmatpush1.bf16.msra.mxu0 0
        %9489 = vmatprep.subr.bf16.mxu0 %v9322
        %9490 = vmatpush1.bf16.msra.mxu0 %v9321
        %9491 = vmatprep.subr.bf16.mxu0 %v9314
        %9492 = vmatpush1.bf16.msra.mxu0 %v9313
        %9493 = vmatprep.subr.bf16.mxu0 %v9306
        %9494 = vmatpush1.bf16.msra.mxu0 %v9305
        %9495 = vmatprep.subr.bf16.mxu0 %v9298
        %9496 = vmatpush1.bf16.msra.mxu0 %v9297
        %9497 = vmatprep.subr.bf16.mxu0 %v9290
        %9498 = vmatpush1.bf16.msra.mxu0 %v9289
        %9499 = vmatprep.subr.bf16.mxu0 %v9282
        %9500 = vmatpush1.bf16.msra.mxu0 %v9281
        %9501 = vmatprep.subr.bf16.mxu0 0
        %9502 = vmatpush2.bf16.msra.mxu0 0
        %9503 = vmatprep.subr.bf16.mxu0 0
        %9504 = vmatpush2.bf16.msra.mxu0 0
        %9505 = vmatprep.subr.bf16.mxu0 0
        %9506 = vmatpush2.bf16.msra.mxu0 0
        %9507 = vmatprep.subr.bf16.mxu0 0
        %9508 = vmatpush2.bf16.msra.mxu0 0
        %9509 = vmatprep.subr.bf16.mxu0 0
        %9510 = vmatpush2.bf16.msra.mxu0 0
        %9511 = vmatprep.subr.bf16.mxu0 0
        %9512 = vmatpush2.bf16.msra.mxu0 0
        %9513 = vmatprep.subr.bf16.mxu0 0
        %9514 = vmatpush2.bf16.msra.mxu0 0
        %9515 = vmatprep.subr.bf16.mxu0 0
        %9516 = vmatpush2.bf16.msra.mxu0 0
        %9517 = vmatprep.mubr.bf16.mxu0 0
        %9518 = vmatmul.mubr.bf16.gmra.mxu0 %v9374
        %v9519 = vpop.f32.mrf.mxu0
        %v9520 = vadd.f32 %v9088, %v9519
        %v9521 = vpop.f32.mrf.mxu0
        %v9522 = vadd.f32 %v9088, %v9521
        %v9523 = vpop.f32.mrf.mxu0
        %v9524 = vadd.f32 %v9093, %v9523
        %v9525 = vpop.f32.mrf.mxu0
        %v9526 = vadd.f32 %v9093, %v9525
        %9527 = vmatprep.mubr.bf16.mxu0 0
        %9528 = vmatmul.mubr.bf16.gmra.mxu0 %v9377
        %v9529 = vpop.f32.mrf.mxu0
        %v9530 = vadd.f32 %v9098, %v9529
        %v9531 = vpop.f32.mrf.mxu0
        %v9532 = vadd.f32 %v9098, %v9531
        %v9533 = vpop.f32.mrf.mxu0
        %v9534 = vadd.f32 %v9103, %v9533
        %v9535 = vpop.f32.mrf.mxu0
        %v9536 = vadd.f32 %v9103, %v9535
        %9537 = vdwg.mxu0
        %9538 = vmatprep.subr.bf16.mxu0 0
        %9539 = vmatpush1.bf16.msra.mxu0 0
        %9540 = vmatprep.subr.bf16.mxu0 0
        %9541 = vmatpush1.bf16.msra.mxu0 0
        %9542 = vmatprep.subr.bf16.mxu0 %v9324
        %9543 = vmatpush1.bf16.msra.mxu0 %v9323
        %9544 = vmatprep.subr.bf16.mxu0 %v9316
        %9545 = vmatpush1.bf16.msra.mxu0 %v9315
        %9546 = vmatprep.subr.bf16.mxu0 %v9308
        %9547 = vmatpush1.bf16.msra.mxu0 %v9307
        %9548 = vmatprep.subr.bf16.mxu0 %v9300
        %9549 = vmatpush1.bf16.msra.mxu0 %v9299
        %9550 = vmatprep.subr.bf16.mxu0 %v9292
        %9551 = vmatpush1.bf16.msra.mxu0 %v9291
        %9552 = vmatprep.subr.bf16.mxu0 %v9284
        %9553 = vmatpush1.bf16.msra.mxu0 %v9283
        %9554 = vmatprep.subr.bf16.mxu0 0
        %9555 = vmatpush2.bf16.msra.mxu0 0
        %9556 = vmatprep.subr.bf16.mxu0 0
        %9557 = vmatpush2.bf16.msra.mxu0 0
        %9558 = vmatprep.subr.bf16.mxu0 0
        %9559 = vmatpush2.bf16.msra.mxu0 0
        %9560 = vmatprep.subr.bf16.mxu0 0
        %9561 = vmatpush2.bf16.msra.mxu0 0
        %9562 = vmatprep.subr.bf16.mxu0 0
        %9563 = vmatpush2.bf16.msra.mxu0 0
        %9564 = vmatprep.subr.bf16.mxu0 0
        %9565 = vmatpush2.bf16.msra.mxu0 0
        %9566 = vmatprep.subr.bf16.mxu0 0
        %9567 = vmatpush2.bf16.msra.mxu0 0
        %9568 = vmatprep.subr.bf16.mxu0 0
        %9569 = vmatpush2.bf16.msra.mxu0 0
        %9570 = vmatprep.mubr.bf16.mxu0 0
        %9571 = vmatmul.mubr.bf16.gmra.mxu0 %v9374
        %v9572 = vpop.f32.mrf.mxu0
        %v9573 = vadd.f32 %v9088, %v9572
        %v9574 = vpop.f32.mrf.mxu0
        %v9575 = vadd.f32 %v9088, %v9574
        %v9576 = vpop.f32.mrf.mxu0
        %v9577 = vadd.f32 %v9093, %v9576
        %v9578 = vpop.f32.mrf.mxu0
        %v9579 = vadd.f32 %v9093, %v9578
        %9580 = vmatprep.mubr.bf16.mxu0 0
        %9581 = vmatmul.mubr.bf16.gmra.mxu0 %v9377
        %v9582 = vpop.f32.mrf.mxu0
        %v9583 = vadd.f32 %v9098, %v9582
        %v9584 = vpop.f32.mrf.mxu0
        %v9585 = vadd.f32 %v9098, %v9584
        %v9586 = vpop.f32.mrf.mxu0
        %v9587 = vadd.f32 %v9103, %v9586
        %v9588 = vpop.f32.mrf.mxu0
        %v9589 = vadd.f32 %v9103, %v9588
        %9590 = vdwg.mxu0
        %v9591 = vmax.f32 %v9414, 0.0
        %v9592 = vmax.f32 %v9416, 0.0
        %v9593 = vmax.f32 %v9467, 0.0
        %v9594 = vmax.f32 %v9469, 0.0
        %v9595 = vmax.f32 %v9520, 0.0
        %v9596 = vmax.f32 %v9522, 0.0
        %v9597 = vmax.f32 %v9573, 0.0
        %v9598 = vmax.f32 %v9575, 0.0
        %v9599 = vmax.f32 %v9418, 0.0
        %v9600 = vmax.f32 %v9420, 0.0
        %v9601 = vmax.f32 %v9471, 0.0
        %v9602 = vmax.f32 %v9473, 0.0
        %v9603 = vmax.f32 %v9524, 0.0
        %v9604 = vmax.f32 %v9526, 0.0
        %v9605 = vmax.f32 %v9577, 0.0
        %v9606 = vmax.f32 %v9579, 0.0
        %v9607 = vmax.f32 %v9424, 0.0
        %v9608 = vmax.f32 %v9426, 0.0
        %v9609 = vmax.f32 %v9477, 0.0
        %v9610 = vmax.f32 %v9479, 0.0
        %v9611 = vmax.f32 %v9530, 0.0
        %v9612 = vmax.f32 %v9532, 0.0
        %v9613 = vmax.f32 %v9583, 0.0
        %v9614 = vmax.f32 %v9585, 0.0
        %v9615 = vmax.f32 %v9428, 0.0
        %v9616 = vmax.f32 %v9430, 0.0
        %v9617 = vmax.f32 %v9481, 0.0
        %v9618 = vmax.f32 %v9483, 0.0
        %v9619 = vmax.f32 %v9534, 0.0
        %v9620 = vmax.f32 %v9536, 0.0
        %v9621 = vmax.f32 %v9587, 0.0
        %v9622 = vmax.f32 %v9589, 0.0
        %9623 = vst [vmem:[#allocation2 + $0x8] sm:$0xff] %v9591
        %9624 = vst [vmem:[#allocation2 + $0x10] sm:$0xff] %v9592
        %9625 = vst [vmem:[#allocation2 + $0x18] sm:$0xff] %v9593
        %9626 = vst [vmem:[#allocation2 + $0x20] sm:$0xff] %v9594
        %9627 = vst [vmem:[#allocation2 + $0x28] sm:$0xff] %v9595
        %9628 = vst [vmem:[#allocation2 + $0x30] sm:$0xff] %v9596
        %9629 = vst [vmem:[#allocation2 + $0x38] sm:$0xff] %v9597
        %9630 = vst [vmem:[#allocation2 + $0x40] sm:$0xff] %v9598
        %9631 = vst [vmem:[#allocation2 + $0x58] sm:$0xff] %v9599
        %9632 = vst [vmem:[#allocation2 + $0x60] sm:$0xff] %v9600
        %9633 = vst [vmem:[#allocation2 + $0x68] sm:$0xff] %v9601
        %9634 = vst [vmem:[#allocation2 + $0x70] sm:$0xff] %v9602
        %9635 = vst [vmem:[#allocation2 + $0x78] sm:$0xff] %v9603
        %9636 = vst [vmem:[#allocation2 + $0x80] sm:$0xff] %v9604
        %9637 = vst [vmem:[#allocation2 + $0x88] sm:$0xff] %v9605
        %9638 = vst [vmem:[#allocation2 + $0x90] sm:$0xff] %v9606
        %9639 = vst [vmem:[#allocation2 + $0xa8] sm:$0xff] %v9607
        %9640 = vst [vmem:[#allocation2 + $0xb0] sm:$0xff] %v9608
        %9641 = vst [vmem:[#allocation2 + $0xb8] sm:$0xff] %v9609
        %9642 = vst [vmem:[#allocation2 + $0xc0] sm:$0xff] %v9610
        %9643 = vst [vmem:[#allocation2 + $0xc8] sm:$0xff] %v9611
        %9644 = vst [vmem:[#allocation2 + $0xd0] sm:$0xff] %v9612
        %9645 = vst [vmem:[#allocation2 + $0xd8] sm:$0xff] %v9613
        %9646 = vst [vmem:[#allocation2 + $0xe0] sm:$0xff] %v9614
        %9647 = vst [vmem:[#allocation2 + $0xf8] sm:$0xff] %v9615
        %9648 = vst [vmem:[#allocation2 + $0x100] sm:$0xff] %v9616
        %9649 = vst [vmem:[#allocation2 + $0x108] sm:$0xff] %v9617
        %9650 = vst [vmem:[#allocation2 + $0x110] sm:$0xff] %v9618
        %9651 = vst [vmem:[#allocation2 + $0x118] sm:$0xff] %v9619
        %9652 = vst [vmem:[#allocation2 + $0x120] sm:$0xff] %v9620
        %9653 = vst [vmem:[#allocation2 + $0x128] sm:$0xff] %v9621
        %9654 = vst [vmem:[#allocation2 + $0x130] sm:$0xff] %v9622
        %v9655 = vld [vmem:[#allocation2] sm:$0xff]
        %v9656 = vld [vmem:[#allocation2 + $0x8] sm:$0xff]
        %v9657 = vld [vmem:[#allocation2 + $0x10] sm:$0xff]
        %v9658 = vld [vmem:[#allocation2 + $0x18] sm:$0xff]
        %v9659 = vld [vmem:[#allocation2 + $0x20] sm:$0xff]
        %v9660 = vld [vmem:[#allocation2 + $0x28] sm:$0xff]
        %v9661 = vld [vmem:[#allocation2 + $0x30] sm:$0xff]
        %v9662 = vld [vmem:[#allocation2 + $0x38] sm:$0xff]
        %v9663 = vld [vmem:[#allocation2 + $0x40] sm:$0xff]
        %v9664 = vld [vmem:[#allocation2 + $0x50] sm:$0xff]
        %v9665 = vld [vmem:[#allocation2 + $0x58] sm:$0xff]
        %v9666 = vld [vmem:[#allocation2 + $0x60] sm:$0xff]
        %v9667 = vld [vmem:[#allocation2 + $0x68] sm:$0xff]
        %v9668 = vld [vmem:[#allocation2 + $0x70] sm:$0xff]
        %v9669 = vld [vmem:[#allocation2 + $0x78] sm:$0xff]
        %v9670 = vld [vmem:[#allocation2 + $0x80] sm:$0xff]
        %v9671 = vld [vmem:[#allocation2 + $0x88] sm:$0xff]
        %v9672 = vld [vmem:[#allocation2 + $0x90] sm:$0xff]
        %v9673 = vld [vmem:[#allocation2 + $0xa0] sm:$0xff]
        %v9674 = vld [vmem:[#allocation2 + $0xa8] sm:$0xff]
        %v9675 = vld [vmem:[#allocation2 + $0xb0] sm:$0xff]
        %v9676 = vld [vmem:[#allocation2 + $0xb8] sm:$0xff]
        %v9677 = vld [vmem:[#allocation2 + $0xc0] sm:$0xff]
        %v9678 = vld [vmem:[#allocation2 + $0xc8] sm:$0xff]
        %v9679 = vld [vmem:[#allocation2 + $0xd0] sm:$0xff]
        %v9680 = vld [vmem:[#allocation2 + $0xd8] sm:$0xff]
        %v9681 = vld [vmem:[#allocation2 + $0xe0] sm:$0xff]
        %v9682 = vld [vmem:[#allocation2 + $0xf0] sm:$0xff]
        %v9683 = vld [vmem:[#allocation2 + $0xf8] sm:$0xff]
        %v9684 = vld [vmem:[#allocation2 + $0x100] sm:$0xff]
        %v9685 = vld [vmem:[#allocation2 + $0x108] sm:$0xff]
        %v9686 = vld [vmem:[#allocation2 + $0x110] sm:$0xff]
        %v9687 = vld [vmem:[#allocation2 + $0x118] sm:$0xff]
        %v9688 = vld [vmem:[#allocation2 + $0x120] sm:$0xff]
        %v9689 = vld [vmem:[#allocation2 + $0x128] sm:$0xff]
        %v9690 = vld [vmem:[#allocation2 + $0x130] sm:$0xff]
        %v9691 = vld [vmem:[#allocation2 + $0x8] sm:$0xff]
        %v9692 = vld [vmem:[#allocation2 + $0x10] sm:$0xff]
        %v9693 = vld [vmem:[#allocation2 + $0x18] sm:$0xff]
        %v9694 = vld [vmem:[#allocation2 + $0x20] sm:$0xff]
        %v9695 = vld [vmem:[#allocation2 + $0x28] sm:$0xff]
        %v9696 = vld [vmem:[#allocation2 + $0x30] sm:$0xff]
        %v9697 = vld [vmem:[#allocation2 + $0x38] sm:$0xff]
        %v9698 = vld [vmem:[#allocation2 + $0x40] sm:$0xff]
        %v9699 = vld [vmem:[#allocation2 + $0x48] sm:$0xff]
        %v9700 = vld [vmem:[#allocation2 + $0x58] sm:$0xff]
        %v9701 = vld [vmem:[#allocation2 + $0x60] sm:$0xff]
        %v9702 = vld [vmem:[#allocation2 + $0x68] sm:$0xff]
        %v9703 = vld [vmem:[#allocation2 + $0x70] sm:$0xff]
        %v9704 = vld [vmem:[#allocation2 + $0x78] sm:$0xff]
        %v9705 = vld [vmem:[#allocation2 + $0x80] sm:$0xff]
        %v9706 = vld [vmem:[#allocation2 + $0x88] sm:$0xff]
        %v9707 = vld [vmem:[#allocation2 + $0x90] sm:$0xff]
        %v9708 = vld [vmem:[#allocation2 + $0x98] sm:$0xff]
        %v9709 = vld [vmem:[#allocation2 + $0xa8] sm:$0xff]
        %v9710 = vld [vmem:[#allocation2 + $0xb0] sm:$0xff]
        %v9711 = vld [vmem:[#allocation2 + $0xb8] sm:$0xff]
        %v9712 = vld [vmem:[#allocation2 + $0xc0] sm:$0xff]
        %v9713 = vld [vmem:[#allocation2 + $0xc8] sm:$0xff]
        %v9714 = vld [vmem:[#allocation2 + $0xd0] sm:$0xff]
        %v9715 = vld [vmem:[#allocation2 + $0xd8] sm:$0xff]
        %v9716 = vld [vmem:[#allocation2 + $0xe0] sm:$0xff]
        %v9717 = vld [vmem:[#allocation2 + $0xe8] sm:$0xff]
        %v9718 = vld [vmem:[#allocation2 + $0xf8] sm:$0xff]
        %v9719 = vld [vmem:[#allocation2 + $0x100] sm:$0xff]
        %v9720 = vld [vmem:[#allocation2 + $0x108] sm:$0xff]
        %v9721 = vld [vmem:[#allocation2 + $0x110] sm:$0xff]
        %v9722 = vld [vmem:[#allocation2 + $0x118] sm:$0xff]
        %v9723 = vld [vmem:[#allocation2 + $0x120] sm:$0xff]
        %v9724 = vld [vmem:[#allocation2 + $0x128] sm:$0xff]
        %v9725 = vld [vmem:[#allocation2 + $0x130] sm:$0xff]
        %v9726 = vld [vmem:[#allocation2 + $0x138] sm:$0xff]
        %9759 = vrot.lane.b32.xlu0 %v9656, 96
        %v9760 = vpop.permute.xlu0 %9759
        %9761 = vrot.lane.b32.xlu0 %v9657, 96
        %v9762 = vpop.permute.xlu0 %9761
        %9763 = vrot.lane.b32.xlu0 %v9658, 96
        %v9764 = vpop.permute.xlu0 %9763
        %9765 = vrot.lane.b32.xlu0 %v9659, 96
        %v9766 = vpop.permute.xlu0 %9765
        %9767 = vrot.lane.b32.xlu0 %v9660, 96
        %v9768 = vpop.permute.xlu0 %9767
        %9769 = vrot.lane.b32.xlu0 %v9661, 96
        %v9770 = vpop.permute.xlu0 %9769
        %9771 = vrot.lane.b32.xlu0 %v9662, 96
        %v9772 = vpop.permute.xlu0 %9771
        %9773 = vrot.lane.b32.xlu0 %v9663, 96
        %v9774 = vpop.permute.xlu0 %9773
        %9775 = vrot.lane.b32.xlu0 %v9665, 96
        %v9776 = vpop.permute.xlu0 %9775
        %9777 = vrot.lane.b32.xlu0 %v9666, 96
        %v9778 = vpop.permute.xlu0 %9777
        %9779 = vrot.lane.b32.xlu0 %v9667, 96
        %v9780 = vpop.permute.xlu0 %9779
        %9781 = vrot.lane.b32.xlu0 %v9668, 96
        %v9782 = vpop.permute.xlu0 %9781
        %9783 = vrot.lane.b32.xlu0 %v9669, 96
        %v9784 = vpop.permute.xlu0 %9783
        %9785 = vrot.lane.b32.xlu0 %v9670, 96
        %v9786 = vpop.permute.xlu0 %9785
        %9787 = vrot.lane.b32.xlu0 %v9671, 96
        %v9788 = vpop.permute.xlu0 %9787
        %9789 = vrot.lane.b32.xlu0 %v9672, 96
        %v9790 = vpop.permute.xlu0 %9789
        %9791 = vrot.lane.b32.xlu0 %v9674, 96
        %v9792 = vpop.permute.xlu0 %9791
        %9793 = vrot.lane.b32.xlu0 %v9675, 96
        %v9794 = vpop.permute.xlu0 %9793
        %9795 = vrot.lane.b32.xlu0 %v9676, 96
        %v9796 = vpop.permute.xlu0 %9795
        %9797 = vrot.lane.b32.xlu0 %v9677, 96
        %v9798 = vpop.permute.xlu0 %9797
        %9799 = vrot.lane.b32.xlu0 %v9678, 96
        %v9800 = vpop.permute.xlu0 %9799
        %9801 = vrot.lane.b32.xlu0 %v9679, 96
        %v9802 = vpop.permute.xlu0 %9801
        %9803 = vrot.lane.b32.xlu0 %v9680, 96
        %v9804 = vpop.permute.xlu0 %9803
        %9805 = vrot.lane.b32.xlu0 %v9681, 96
        %v9806 = vpop.permute.xlu0 %9805
        %9807 = vrot.lane.b32.xlu0 %v9683, 96
        %v9808 = vpop.permute.xlu0 %9807
        %9809 = vrot.lane.b32.xlu0 %v9684, 96
        %v9810 = vpop.permute.xlu0 %9809
        %9811 = vrot.lane.b32.xlu0 %v9685, 96
        %v9812 = vpop.permute.xlu0 %9811
        %9813 = vrot.lane.b32.xlu0 %v9686, 96
        %v9814 = vpop.permute.xlu0 %9813
        %9815 = vrot.lane.b32.xlu0 %v9687, 96
        %v9816 = vpop.permute.xlu0 %9815
        %9817 = vrot.lane.b32.xlu0 %v9688, 96
        %v9818 = vpop.permute.xlu0 %9817
        %9819 = vrot.lane.b32.xlu0 %v9689, 96
        %v9820 = vpop.permute.xlu0 %9819
        %9821 = vrot.lane.b32.xlu0 %v9690, 96
        %v9822 = vpop.permute.xlu0 %9821
        %v9823 = vsel %vm3505, %v9760, %v9762
        %v9824 = vsel %vm3505, %v9762, %v9764
        %v9825 = vsel %vm3505, %v9764, %v9766
        %v9826 = vsel %vm3505, %v9766, %v9768
        %v9827 = vsel %vm3505, %v9768, %v9770
        %v9828 = vsel %vm3505, %v9770, %v9772
        %v9829 = vsel %vm3505, %v9772, %v9774
        %v9830 = vsel %vm3505, %v9776, %v9778
        %v9831 = vsel %vm3505, %v9778, %v9780
        %v9832 = vsel %vm3505, %v9780, %v9782
        %v9833 = vsel %vm3505, %v9782, %v9784
        %v9834 = vsel %vm3505, %v9784, %v9786
        %v9835 = vsel %vm3505, %v9786, %v9788
        %v9836 = vsel %vm3505, %v9788, %v9790
        %v9837 = vsel %vm3505, %v9792, %v9794
        %v9838 = vsel %vm3505, %v9794, %v9796
        %v9839 = vsel %vm3505, %v9796, %v9798
        %v9840 = vsel %vm3505, %v9798, %v9800
        %v9841 = vsel %vm3505, %v9800, %v9802
        %v9842 = vsel %vm3505, %v9802, %v9804
        %v9843 = vsel %vm3505, %v9804, %v9806
        %v9844 = vsel %vm3505, %v9808, %v9810
        %v9845 = vsel %vm3505, %v9810, %v9812
        %v9846 = vsel %vm3505, %v9812, %v9814
        %v9847 = vsel %vm3505, %v9814, %v9816
        %v9848 = vsel %vm3505, %v9816, %v9818
        %v9849 = vsel %vm3505, %v9818, %v9820
        %v9850 = vsel %vm3505, %v9820, %v9822
        %9923 = vrot.lane.b32.xlu0 %v9691, 64
        %v9924 = vpop.permute.xlu0 %9923
        %9925 = vrot.lane.b32.xlu0 %v9692, 64
        %v9926 = vpop.permute.xlu0 %9925
        %9927 = vrot.lane.b32.xlu0 %v9693, 64
        %v9928 = vpop.permute.xlu0 %9927
        %9929 = vrot.lane.b32.xlu0 %v9694, 64
        %v9930 = vpop.permute.xlu0 %9929
        %9931 = vrot.lane.b32.xlu0 %v9695, 64
        %v9932 = vpop.permute.xlu0 %9931
        %9933 = vrot.lane.b32.xlu0 %v9696, 64
        %v9934 = vpop.permute.xlu0 %9933
        %9935 = vrot.lane.b32.xlu0 %v9697, 64
        %v9936 = vpop.permute.xlu0 %9935
        %9937 = vrot.lane.b32.xlu0 %v9698, 64
        %v9938 = vpop.permute.xlu0 %9937
        %9939 = vrot.lane.b32.xlu0 %v9699, 64
        %v9940 = vpop.permute.xlu0 %9939
        %9941 = vrot.lane.b32.xlu0 %v9700, 64
        %v9942 = vpop.permute.xlu0 %9941
        %9943 = vrot.lane.b32.xlu0 %v9701, 64
        %v9944 = vpop.permute.xlu0 %9943
        %9945 = vrot.lane.b32.xlu0 %v9702, 64
        %v9946 = vpop.permute.xlu0 %9945
        %9947 = vrot.lane.b32.xlu0 %v9703, 64
        %v9948 = vpop.permute.xlu0 %9947
        %9949 = vrot.lane.b32.xlu0 %v9704, 64
        %v9950 = vpop.permute.xlu0 %9949
        %9951 = vrot.lane.b32.xlu0 %v9705, 64
        %v9952 = vpop.permute.xlu0 %9951
        %9953 = vrot.lane.b32.xlu0 %v9706, 64
        %v9954 = vpop.permute.xlu0 %9953
        %9955 = vrot.lane.b32.xlu0 %v9707, 64
        %v9956 = vpop.permute.xlu0 %9955
        %9957 = vrot.lane.b32.xlu0 %v9708, 64
        %v9958 = vpop.permute.xlu0 %9957
        %9959 = vrot.lane.b32.xlu0 %v9709, 64
        %v9960 = vpop.permute.xlu0 %9959
        %9961 = vrot.lane.b32.xlu0 %v9710, 64
        %v9962 = vpop.permute.xlu0 %9961
        %9963 = vrot.lane.b32.xlu0 %v9711, 64
        %v9964 = vpop.permute.xlu0 %9963
        %9965 = vrot.lane.b32.xlu0 %v9712, 64
        %v9966 = vpop.permute.xlu0 %9965
        %9967 = vrot.lane.b32.xlu0 %v9713, 64
        %v9968 = vpop.permute.xlu0 %9967
        %9969 = vrot.lane.b32.xlu0 %v9714, 64
        %v9970 = vpop.permute.xlu0 %9969
        %9971 = vrot.lane.b32.xlu0 %v9715, 64
        %v9972 = vpop.permute.xlu0 %9971
        %9973 = vrot.lane.b32.xlu0 %v9716, 64
        %v9974 = vpop.permute.xlu0 %9973
        %9975 = vrot.lane.b32.xlu0 %v9717, 64
        %v9976 = vpop.permute.xlu0 %9975
        %9977 = vrot.lane.b32.xlu0 %v9718, 64
        %v9978 = vpop.permute.xlu0 %9977
        %9979 = vrot.lane.b32.xlu0 %v9719, 64
        %v9980 = vpop.permute.xlu0 %9979
        %9981 = vrot.lane.b32.xlu0 %v9720, 64
        %v9982 = vpop.permute.xlu0 %9981
        %9983 = vrot.lane.b32.xlu0 %v9721, 64
        %v9984 = vpop.permute.xlu0 %9983
        %9985 = vrot.lane.b32.xlu0 %v9722, 64
        %v9986 = vpop.permute.xlu0 %9985
        %9987 = vrot.lane.b32.xlu0 %v9723, 64
        %v9988 = vpop.permute.xlu0 %9987
        %9989 = vrot.lane.b32.xlu0 %v9724, 64
        %v9990 = vpop.permute.xlu0 %9989
        %9991 = vrot.lane.b32.xlu0 %v9725, 64
        %v9992 = vpop.permute.xlu0 %9991
        %9993 = vrot.lane.b32.xlu0 %v9726, 64
        %v9994 = vpop.permute.xlu0 %9993
        %v9995 = vsel %vm4547, %v9924, %v9926
        %v9996 = vsel %vm4547, %v9926, %v9928
        %v9997 = vsel %vm4547, %v9928, %v9930
        %v9998 = vsel %vm4547, %v9930, %v9932
        %v9999 = vsel %vm4547, %v9932, %v9934
        %v10000 = vsel %vm4547, %v9934, %v9936
        %v10001 = vsel %vm4547, %v9936, %v9938
        %v10002 = vsel %vm4547, %v9938, %v9940
        %v10003 = vsel %vm4547, %v9942, %v9944
        %v10004 = vsel %vm4547, %v9944, %v9946
        %v10005 = vsel %vm4547, %v9946, %v9948
        %v10006 = vsel %vm4547, %v9948, %v9950
        %v10007 = vsel %vm4547, %v9950, %v9952
        %v10008 = vsel %vm4547, %v9952, %v9954
        %v10009 = vsel %vm4547, %v9954, %v9956
        %v10010 = vsel %vm4547, %v9956, %v9958
        %v10011 = vsel %vm4547, %v9960, %v9962
        %v10012 = vsel %vm4547, %v9962, %v9964
        %v10013 = vsel %vm4547, %v9964, %v9966
        %v10014 = vsel %vm4547, %v9966, %v9968
        %v10015 = vsel %vm4547, %v9968, %v9970
        %v10016 = vsel %vm4547, %v9970, %v9972
        %v10017 = vsel %vm4547, %v9972, %v9974
        %v10018 = vsel %vm4547, %v9974, %v9976
        %v10019 = vsel %vm4547, %v9978, %v9980
        %v10020 = vsel %vm4547, %v9980, %v9982
        %v10021 = vsel %vm4547, %v9982, %v9984
        %v10022 = vsel %vm4547, %v9984, %v9986
        %v10023 = vsel %vm4547, %v9986, %v9988
        %v10024 = vsel %vm4547, %v9988, %v9990
        %v10025 = vsel %vm4547, %v9990, %v9992
        %v10026 = vsel %vm4547, %v9992, %v9994
        %v10063 = vpack.c.bf16 %v9664, %v9655
        %v10064 = vpack.c.bf16 %v9665, %v9656
        %v10065 = vpack.c.bf16 %v9666, %v9657
        %v10066 = vpack.c.bf16 %v9667, %v9658
        %v10067 = vpack.c.bf16 %v9668, %v9659
        %v10068 = vpack.c.bf16 %v9669, %v9660
        %v10069 = vpack.c.bf16 %v9670, %v9661
        %v10070 = vpack.c.bf16 %v9671, %v9662
        %v10071 = vpack.c.bf16 %v9672, %v9663
        %v10072 = vpack.c.bf16 %v9682, %v9673
        %v10073 = vpack.c.bf16 %v9683, %v9674
        %v10074 = vpack.c.bf16 %v9684, %v9675
        %v10075 = vpack.c.bf16 %v9685, %v9676
        %v10076 = vpack.c.bf16 %v9686, %v9677
        %v10077 = vpack.c.bf16 %v9687, %v9678
        %v10078 = vpack.c.bf16 %v9688, %v9679
        %v10079 = vpack.c.bf16 %v9689, %v9680
        %v10080 = vpack.c.bf16 %v9690, %v9681
        %v10081 = vpack.c.bf16 %v9776, %v9760
        %v10082 = vpack.c.bf16 %v9830, %v9823
        %v10083 = vpack.c.bf16 %v9831, %v9824
        %v10084 = vpack.c.bf16 %v9832, %v9825
        %v10085 = vpack.c.bf16 %v9833, %v9826
        %v10086 = vpack.c.bf16 %v9834, %v9827
        %v10087 = vpack.c.bf16 %v9835, %v9828
        %v10088 = vpack.c.bf16 %v9836, %v9829
        %v10089 = vpack.c.bf16 %v9790, %v9774
        %v10090 = vpack.c.bf16 %v9808, %v9792
        %v10091 = vpack.c.bf16 %v9844, %v9837
        %v10092 = vpack.c.bf16 %v9845, %v9838
        %v10093 = vpack.c.bf16 %v9846, %v9839
        %v10094 = vpack.c.bf16 %v9847, %v9840
        %v10095 = vpack.c.bf16 %v9848, %v9841
        %v10096 = vpack.c.bf16 %v9849, %v9842
        %v10097 = vpack.c.bf16 %v9850, %v9843
        %v10098 = vpack.c.bf16 %v9822, %v9806
        %v10099 = vpack.c.bf16 %v9942, %v9924
        %v10100 = vpack.c.bf16 %v10003, %v9995
        %v10101 = vpack.c.bf16 %v10004, %v9996
        %v10102 = vpack.c.bf16 %v10005, %v9997
        %v10103 = vpack.c.bf16 %v10006, %v9998
        %v10104 = vpack.c.bf16 %v10007, %v9999
        %v10105 = vpack.c.bf16 %v10008, %v10000
        %v10106 = vpack.c.bf16 %v10009, %v10001
        %v10107 = vpack.c.bf16 %v10010, %v10002
        %v10108 = vpack.c.bf16 %v9978, %v9960
        %v10109 = vpack.c.bf16 %v10019, %v10011
        %v10110 = vpack.c.bf16 %v10020, %v10012
        %v10111 = vpack.c.bf16 %v10021, %v10013
        %v10112 = vpack.c.bf16 %v10022, %v10014
        %v10113 = vpack.c.bf16 %v10023, %v10015
        %v10114 = vpack.c.bf16 %v10024, %v10016
        %v10115 = vpack.c.bf16 %v10025, %v10017
        %v10116 = vpack.c.bf16 %v10026, %v10018
        %v10117 = vld [vmem:[#allocation17] sm:$0xf]
        %v10118 = vld [vmem:[#allocation17 + $0x4] sm:$0xf]
        %v10119 = vld [vmem:[#allocation17 + $0x8] sm:$0xf]
        %v10120 = vld [vmem:[#allocation17 + $0xc] sm:$0xf]
        %v10121 = vld [vmem:[#allocation19] sm:$0xff]
        %v10122 = vld [vmem:[#allocation19 + $0x8] sm:$0xff]
        %v10123 = vld [vmem:[#allocation19 + $0x10] sm:$0xff]
        %v10124 = vld [vmem:[#allocation19 + $0x18] sm:$0xff]
        %10126 = vset.pattern.permute.xlu0 0
        %10127 = vperm.xlu0 %10126, %v10121
        %v10128 = vpop.permute.xlu0 %10127
        %10131 = vset.pattern.permute.xlu0 0
        %10132 = vperm.xlu0 %10131, %v10122
        %v10133 = vpop.permute.xlu0 %10132
        %10136 = vset.pattern.permute.xlu0 0
        %10137 = vperm.xlu0 %10136, %v10123
        %v10138 = vpop.permute.xlu0 %10137
        %10141 = vset.pattern.permute.xlu0 0
        %10142 = vperm.xlu0 %10141, %v10124
        %v10143 = vpop.permute.xlu0 %10142
        %v10149 = vunpack.c.l.b16 %v10117
        %v10150 = vunpack.c.l.b16 %v10118
        %v10151 = vunpack.c.l.b16 %v10119
        %v10152 = vunpack.c.l.b16 %v10120
        %v10153 = vpack.c.b16 %v10150, %v10149
        %v10154 = vpack.c.b16 %v10152, %v10151
        %10209 = vrot.lane.b32.xlu0 %v10063, 32
        %v10210 = vpop.permute.xlu0 %10209
        %10211 = vrot.lane.b32.xlu0 %v10064, 32
        %v10212 = vpop.permute.xlu0 %10211
        %10213 = vrot.lane.b32.xlu0 %v10065, 32
        %v10214 = vpop.permute.xlu0 %10213
        %10215 = vrot.lane.b32.xlu0 %v10066, 32
        %v10216 = vpop.permute.xlu0 %10215
        %10217 = vrot.lane.b32.xlu0 %v10067, 32
        %v10218 = vpop.permute.xlu0 %10217
        %10219 = vrot.lane.b32.xlu0 %v10068, 32
        %v10220 = vpop.permute.xlu0 %10219
        %10221 = vrot.lane.b32.xlu0 %v10069, 32
        %v10222 = vpop.permute.xlu0 %10221
        %10223 = vrot.lane.b32.xlu0 %v10070, 32
        %v10224 = vpop.permute.xlu0 %10223
        %10225 = vrot.lane.b32.xlu0 %v10071, 32
        %v10226 = vpop.permute.xlu0 %10225
        %10227 = vrot.lane.b32.xlu0 %v10072, 32
        %v10228 = vpop.permute.xlu0 %10227
        %10229 = vrot.lane.b32.xlu0 %v10073, 32
        %v10230 = vpop.permute.xlu0 %10229
        %10231 = vrot.lane.b32.xlu0 %v10074, 32
        %v10232 = vpop.permute.xlu0 %10231
        %10233 = vrot.lane.b32.xlu0 %v10075, 32
        %v10234 = vpop.permute.xlu0 %10233
        %10235 = vrot.lane.b32.xlu0 %v10076, 32
        %v10236 = vpop.permute.xlu0 %10235
        %10237 = vrot.lane.b32.xlu0 %v10077, 32
        %v10238 = vpop.permute.xlu0 %10237
        %10239 = vrot.lane.b32.xlu0 %v10078, 32
        %v10240 = vpop.permute.xlu0 %10239
        %10241 = vrot.lane.b32.xlu0 %v10079, 32
        %v10242 = vpop.permute.xlu0 %10241
        %10243 = vrot.lane.b32.xlu0 %v10080, 32
        %v10244 = vpop.permute.xlu0 %10243
        %10245 = vrot.lane.b32.xlu0 %v10081, 32
        %v10246 = vpop.permute.xlu0 %10245
        %10247 = vrot.lane.b32.xlu0 %v10082, 32
        %v10248 = vpop.permute.xlu0 %10247
        %10249 = vrot.lane.b32.xlu0 %v10083, 32
        %v10250 = vpop.permute.xlu0 %10249
        %10251 = vrot.lane.b32.xlu0 %v10084, 32
        %v10252 = vpop.permute.xlu0 %10251
        %10253 = vrot.lane.b32.xlu0 %v10085, 32
        %v10254 = vpop.permute.xlu0 %10253
        %10255 = vrot.lane.b32.xlu0 %v10086, 32
        %v10256 = vpop.permute.xlu0 %10255
        %10257 = vrot.lane.b32.xlu0 %v10087, 32
        %v10258 = vpop.permute.xlu0 %10257
        %10259 = vrot.lane.b32.xlu0 %v10088, 32
        %v10260 = vpop.permute.xlu0 %10259
        %10261 = vrot.lane.b32.xlu0 %v10089, 32
        %v10262 = vpop.permute.xlu0 %10261
        %10263 = vrot.lane.b32.xlu0 %v10090, 32
        %v10264 = vpop.permute.xlu0 %10263
        %10265 = vrot.lane.b32.xlu0 %v10091, 32
        %v10266 = vpop.permute.xlu0 %10265
        %10267 = vrot.lane.b32.xlu0 %v10092, 32
        %v10268 = vpop.permute.xlu0 %10267
        %10269 = vrot.lane.b32.xlu0 %v10093, 32
        %v10270 = vpop.permute.xlu0 %10269
        %10271 = vrot.lane.b32.xlu0 %v10094, 32
        %v10272 = vpop.permute.xlu0 %10271
        %10273 = vrot.lane.b32.xlu0 %v10095, 32
        %v10274 = vpop.permute.xlu0 %10273
        %10275 = vrot.lane.b32.xlu0 %v10096, 32
        %v10276 = vpop.permute.xlu0 %10275
        %10277 = vrot.lane.b32.xlu0 %v10097, 32
        %v10278 = vpop.permute.xlu0 %10277
        %10279 = vrot.lane.b32.xlu0 %v10098, 32
        %v10280 = vpop.permute.xlu0 %10279
        %10281 = vrot.lane.b32.xlu0 %v10099, 32
        %v10282 = vpop.permute.xlu0 %10281
        %10283 = vrot.lane.b32.xlu0 %v10100, 32
        %v10284 = vpop.permute.xlu0 %10283
        %10285 = vrot.lane.b32.xlu0 %v10101, 32
        %v10286 = vpop.permute.xlu0 %10285
        %10287 = vrot.lane.b32.xlu0 %v10102, 32
        %v10288 = vpop.permute.xlu0 %10287
        %10289 = vrot.lane.b32.xlu0 %v10103, 32
        %v10290 = vpop.permute.xlu0 %10289
        %10291 = vrot.lane.b32.xlu0 %v10104, 32
        %v10292 = vpop.permute.xlu0 %10291
        %10293 = vrot.lane.b32.xlu0 %v10105, 32
        %v10294 = vpop.permute.xlu0 %10293
        %10295 = vrot.lane.b32.xlu0 %v10106, 32
        %v10296 = vpop.permute.xlu0 %10295
        %10297 = vrot.lane.b32.xlu0 %v10107, 32
        %v10298 = vpop.permute.xlu0 %10297
        %10299 = vrot.lane.b32.xlu0 %v10108, 32
        %v10300 = vpop.permute.xlu0 %10299
        %10301 = vrot.lane.b32.xlu0 %v10109, 32
        %v10302 = vpop.permute.xlu0 %10301
        %10303 = vrot.lane.b32.xlu0 %v10110, 32
        %v10304 = vpop.permute.xlu0 %10303
        %10305 = vrot.lane.b32.xlu0 %v10111, 32
        %v10306 = vpop.permute.xlu0 %10305
        %10307 = vrot.lane.b32.xlu0 %v10112, 32
        %v10308 = vpop.permute.xlu0 %10307
        %10309 = vrot.lane.b32.xlu0 %v10113, 32
        %v10310 = vpop.permute.xlu0 %10309
        %10311 = vrot.lane.b32.xlu0 %v10114, 32
        %v10312 = vpop.permute.xlu0 %10311
        %10313 = vrot.lane.b32.xlu0 %v10115, 32
        %v10314 = vpop.permute.xlu0 %10313
        %10315 = vrot.lane.b32.xlu0 %v10116, 32
        %v10316 = vpop.permute.xlu0 %10315
        %v10317 = vsel %vm4870, %v10210, %v10212
        %v10318 = vsel %vm4870, %v10212, %v10214
        %v10319 = vsel %vm4870, %v10214, %v10216
        %v10320 = vsel %vm4870, %v10216, %v10218
        %v10321 = vsel %vm4870, %v10218, %v10220
        %v10322 = vsel %vm4870, %v10220, %v10222
        %v10323 = vsel %vm4870, %v10222, %v10224
        %v10324 = vsel %vm4870, %v10224, %v10226
        %v10325 = vsel %vm4870, %v10228, %v10230
        %v10326 = vsel %vm4870, %v10230, %v10232
        %v10327 = vsel %vm4870, %v10232, %v10234
        %v10328 = vsel %vm4870, %v10234, %v10236
        %v10329 = vsel %vm4870, %v10236, %v10238
        %v10330 = vsel %vm4870, %v10238, %v10240
        %v10331 = vsel %vm4870, %v10240, %v10242
        %v10332 = vsel %vm4870, %v10242, %v10244
        %v10333 = vsel %vm4870, %v10246, %v10248
        %v10334 = vsel %vm4870, %v10248, %v10250
        %v10335 = vsel %vm4870, %v10250, %v10252
        %v10336 = vsel %vm4870, %v10252, %v10254
        %v10337 = vsel %vm4870, %v10254, %v10256
        %v10338 = vsel %vm4870, %v10256, %v10258
        %v10339 = vsel %vm4870, %v10258, %v10260
        %v10340 = vsel %vm4870, %v10260, %v10262
        %v10341 = vsel %vm4870, %v10264, %v10266
        %v10342 = vsel %vm4870, %v10266, %v10268
        %v10343 = vsel %vm4870, %v10268, %v10270
        %v10344 = vsel %vm4870, %v10270, %v10272
        %v10345 = vsel %vm4870, %v10272, %v10274
        %v10346 = vsel %vm4870, %v10274, %v10276
        %v10347 = vsel %vm4870, %v10276, %v10278
        %v10348 = vsel %vm4870, %v10278, %v10280
        %v10349 = vsel %vm4870, %v10282, %v10284
        %v10350 = vsel %vm4870, %v10284, %v10286
        %v10351 = vsel %vm4870, %v10286, %v10288
        %v10352 = vsel %vm4870, %v10288, %v10290
        %v10353 = vsel %vm4870, %v10290, %v10292
        %v10354 = vsel %vm4870, %v10292, %v10294
        %v10355 = vsel %vm4870, %v10294, %v10296
        %v10356 = vsel %vm4870, %v10296, %v10298
        %v10357 = vsel %vm4870, %v10300, %v10302
        %v10358 = vsel %vm4870, %v10302, %v10304
        %v10359 = vsel %vm4870, %v10304, %v10306
        %v10360 = vsel %vm4870, %v10306, %v10308
        %v10361 = vsel %vm4870, %v10308, %v10310
        %v10362 = vsel %vm4870, %v10310, %v10312
        %v10363 = vsel %vm4870, %v10312, %v10314
        %v10364 = vsel %vm4870, %v10314, %v10316
        %v10414 = vsel %vm3505, %v10153, 0
        %v10417 = vsel %vm3505, %v10154, 0
        %10419 = vmatprep.subr.bf16.mxu0 0
        %10420 = vmatpush1.bf16.msra.mxu0 0
        %10421 = vmatprep.subr.bf16.mxu0 0
        %10422 = vmatpush1.bf16.msra.mxu0 0
        %10423 = vmatprep.subr.bf16.mxu0 %v10358
        %10424 = vmatpush1.bf16.msra.mxu0 %v10357
        %10425 = vmatprep.subr.bf16.mxu0 %v10350
        %10426 = vmatpush1.bf16.msra.mxu0 %v10349
        %10427 = vmatprep.subr.bf16.mxu0 %v10342
        %10428 = vmatpush1.bf16.msra.mxu0 %v10341
        %10429 = vmatprep.subr.bf16.mxu0 %v10334
        %10430 = vmatpush1.bf16.msra.mxu0 %v10333
        %10431 = vmatprep.subr.bf16.mxu0 %v10326
        %10432 = vmatpush1.bf16.msra.mxu0 %v10325
        %10433 = vmatprep.subr.bf16.mxu0 %v10318
        %10434 = vmatpush1.bf16.msra.mxu0 %v10317
        %10435 = vmatprep.subr.bf16.mxu0 0
        %10436 = vmatpush2.bf16.msra.mxu0 0
        %10437 = vmatprep.subr.bf16.mxu0 0
        %10438 = vmatpush2.bf16.msra.mxu0 0
        %10439 = vmatprep.subr.bf16.mxu0 0
        %10440 = vmatpush2.bf16.msra.mxu0 0
        %10441 = vmatprep.subr.bf16.mxu0 0
        %10442 = vmatpush2.bf16.msra.mxu0 0
        %10443 = vmatprep.subr.bf16.mxu0 0
        %10444 = vmatpush2.bf16.msra.mxu0 0
        %10445 = vmatprep.subr.bf16.mxu0 0
        %10446 = vmatpush2.bf16.msra.mxu0 0
        %10447 = vmatprep.subr.bf16.mxu0 0
        %10448 = vmatpush2.bf16.msra.mxu0 0
        %10449 = vmatprep.subr.bf16.mxu0 0
        %10450 = vmatpush2.bf16.msra.mxu0 0
        %10451 = vmatprep.mubr.bf16.mxu0 0
        %10452 = vmatmul.mubr.bf16.gmra.mxu0 %v10414
        %v10453 = vpop.f32.mrf.mxu0
        %v10454 = vadd.f32 %v10128, %v10453
        %v10455 = vpop.f32.mrf.mxu0
        %v10456 = vadd.f32 %v10128, %v10455
        %v10457 = vpop.f32.mrf.mxu0
        %v10458 = vadd.f32 %v10133, %v10457
        %v10459 = vpop.f32.mrf.mxu0
        %v10460 = vadd.f32 %v10133, %v10459
        %10461 = vmatprep.mubr.bf16.mxu0 0
        %10462 = vmatmul.mubr.bf16.gmra.mxu0 %v10417
        %v10463 = vpop.f32.mrf.mxu0
        %v10464 = vadd.f32 %v10138, %v10463
        %v10465 = vpop.f32.mrf.mxu0
        %v10466 = vadd.f32 %v10138, %v10465
        %v10467 = vpop.f32.mrf.mxu0
        %v10468 = vadd.f32 %v10143, %v10467
        %v10469 = vpop.f32.mrf.mxu0
        %v10470 = vadd.f32 %v10143, %v10469
        %10471 = vdwg.mxu0
        %10472 = vmatprep.subr.bf16.mxu0 0
        %10473 = vmatpush1.bf16.msra.mxu0 0
        %10474 = vmatprep.subr.bf16.mxu0 0
        %10475 = vmatpush1.bf16.msra.mxu0 0
        %10476 = vmatprep.subr.bf16.mxu0 %v10360
        %10477 = vmatpush1.bf16.msra.mxu0 %v10359
        %10478 = vmatprep.subr.bf16.mxu0 %v10352
        %10479 = vmatpush1.bf16.msra.mxu0 %v10351
        %10480 = vmatprep.subr.bf16.mxu0 %v10344
        %10481 = vmatpush1.bf16.msra.mxu0 %v10343
        %10482 = vmatprep.subr.bf16.mxu0 %v10336
        %10483 = vmatpush1.bf16.msra.mxu0 %v10335
        %10484 = vmatprep.subr.bf16.mxu0 %v10328
        %10485 = vmatpush1.bf16.msra.mxu0 %v10327
        %10486 = vmatprep.subr.bf16.mxu0 %v10320
        %10487 = vmatpush1.bf16.msra.mxu0 %v10319
        %10488 = vmatprep.subr.bf16.mxu0 0
        %10489 = vmatpush2.bf16.msra.mxu0 0
        %10490 = vmatprep.subr.bf16.mxu0 0
        %10491 = vmatpush2.bf16.msra.mxu0 0
        %10492 = vmatprep.subr.bf16.mxu0 0
        %10493 = vmatpush2.bf16.msra.mxu0 0
        %10494 = vmatprep.subr.bf16.mxu0 0
        %10495 = vmatpush2.bf16.msra.mxu0 0
        %10496 = vmatprep.subr.bf16.mxu0 0
        %10497 = vmatpush2.bf16.msra.mxu0 0
        %10498 = vmatprep.subr.bf16.mxu0 0
        %10499 = vmatpush2.bf16.msra.mxu0 0
        %10500 = vmatprep.subr.bf16.mxu0 0
        %10501 = vmatpush2.bf16.msra.mxu0 0
        %10502 = vmatprep.subr.bf16.mxu0 0
        %10503 = vmatpush2.bf16.msra.mxu0 0
        %10504 = vmatprep.mubr.bf16.mxu0 0
        %10505 = vmatmul.mubr.bf16.gmra.mxu0 %v10414
        %v10506 = vpop.f32.mrf.mxu0
        %v10507 = vadd.f32 %v10128, %v10506
        %v10508 = vpop.f32.mrf.mxu0
        %v10509 = vadd.f32 %v10128, %v10508
        %v10510 = vpop.f32.mrf.mxu0
        %v10511 = vadd.f32 %v10133, %v10510
        %v10512 = vpop.f32.mrf.mxu0
        %v10513 = vadd.f32 %v10133, %v10512
        %10514 = vmatprep.mubr.bf16.mxu0 0
        %10515 = vmatmul.mubr.bf16.gmra.mxu0 %v10417
        %v10516 = vpop.f32.mrf.mxu0
        %v10517 = vadd.f32 %v10138, %v10516
        %v10518 = vpop.f32.mrf.mxu0
        %v10519 = vadd.f32 %v10138, %v10518
        %v10520 = vpop.f32.mrf.mxu0
        %v10521 = vadd.f32 %v10143, %v10520
        %v10522 = vpop.f32.mrf.mxu0
        %v10523 = vadd.f32 %v10143, %v10522
        %10524 = vdwg.mxu0
        %10525 = vmatprep.subr.bf16.mxu0 0
        %10526 = vmatpush1.bf16.msra.mxu0 0
        %10527 = vmatprep.subr.bf16.mxu0 0
        %10528 = vmatpush1.bf16.msra.mxu0 0
        %10529 = vmatprep.subr.bf16.mxu0 %v10362
        %10530 = vmatpush1.bf16.msra.mxu0 %v10361
        %10531 = vmatprep.subr.bf16.mxu0 %v10354
        %10532 = vmatpush1.bf16.msra.mxu0 %v10353
        %10533 = vmatprep.subr.bf16.mxu0 %v10346
        %10534 = vmatpush1.bf16.msra.mxu0 %v10345
        %10535 = vmatprep.subr.bf16.mxu0 %v10338
        %10536 = vmatpush1.bf16.msra.mxu0 %v10337
        %10537 = vmatprep.subr.bf16.mxu0 %v10330
        %10538 = vmatpush1.bf16.msra.mxu0 %v10329
        %10539 = vmatprep.subr.bf16.mxu0 %v10322
        %10540 = vmatpush1.bf16.msra.mxu0 %v10321
        %10541 = vmatprep.subr.bf16.mxu0 0
        %10542 = vmatpush2.bf16.msra.mxu0 0
        %10543 = vmatprep.subr.bf16.mxu0 0
        %10544 = vmatpush2.bf16.msra.mxu0 0
        %10545 = vmatprep.subr.bf16.mxu0 0
        %10546 = vmatpush2.bf16.msra.mxu0 0
        %10547 = vmatprep.subr.bf16.mxu0 0
        %10548 = vmatpush2.bf16.msra.mxu0 0
        %10549 = vmatprep.subr.bf16.mxu0 0
        %10550 = vmatpush2.bf16.msra.mxu0 0
        %10551 = vmatprep.subr.bf16.mxu0 0
        %10552 = vmatpush2.bf16.msra.mxu0 0
        %10553 = vmatprep.subr.bf16.mxu0 0
        %10554 = vmatpush2.bf16.msra.mxu0 0
        %10555 = vmatprep.subr.bf16.mxu0 0
        %10556 = vmatpush2.bf16.msra.mxu0 0
        %10557 = vmatprep.mubr.bf16.mxu0 0
        %10558 = vmatmul.mubr.bf16.gmra.mxu0 %v10414
        %v10559 = vpop.f32.mrf.mxu0
        %v10560 = vadd.f32 %v10128, %v10559
        %v10561 = vpop.f32.mrf.mxu0
        %v10562 = vadd.f32 %v10128, %v10561
        %v10563 = vpop.f32.mrf.mxu0
        %v10564 = vadd.f32 %v10133, %v10563
        %v10565 = vpop.f32.mrf.mxu0
        %v10566 = vadd.f32 %v10133, %v10565
        %10567 = vmatprep.mubr.bf16.mxu0 0
        %10568 = vmatmul.mubr.bf16.gmra.mxu0 %v10417
        %v10569 = vpop.f32.mrf.mxu0
        %v10570 = vadd.f32 %v10138, %v10569
        %v10571 = vpop.f32.mrf.mxu0
        %v10572 = vadd.f32 %v10138, %v10571
        %v10573 = vpop.f32.mrf.mxu0
        %v10574 = vadd.f32 %v10143, %v10573
        %v10575 = vpop.f32.mrf.mxu0
        %v10576 = vadd.f32 %v10143, %v10575
        %10577 = vdwg.mxu0
        %10578 = vmatprep.subr.bf16.mxu0 0
        %10579 = vmatpush1.bf16.msra.mxu0 0
        %10580 = vmatprep.subr.bf16.mxu0 0
        %10581 = vmatpush1.bf16.msra.mxu0 0
        %10582 = vmatprep.subr.bf16.mxu0 %v10364
        %10583 = vmatpush1.bf16.msra.mxu0 %v10363
        %10584 = vmatprep.subr.bf16.mxu0 %v10356
        %10585 = vmatpush1.bf16.msra.mxu0 %v10355
        %10586 = vmatprep.subr.bf16.mxu0 %v10348
        %10587 = vmatpush1.bf16.msra.mxu0 %v10347
        %10588 = vmatprep.subr.bf16.mxu0 %v10340
        %10589 = vmatpush1.bf16.msra.mxu0 %v10339
        %10590 = vmatprep.subr.bf16.mxu0 %v10332
        %10591 = vmatpush1.bf16.msra.mxu0 %v10331
        %10592 = vmatprep.subr.bf16.mxu0 %v10324
        %10593 = vmatpush1.bf16.msra.mxu0 %v10323
        %10594 = vmatprep.subr.bf16.mxu0 0
        %10595 = vmatpush2.bf16.msra.mxu0 0
        %10596 = vmatprep.subr.bf16.mxu0 0
        %10597 = vmatpush2.bf16.msra.mxu0 0
        %10598 = vmatprep.subr.bf16.mxu0 0
        %10599 = vmatpush2.bf16.msra.mxu0 0
        %10600 = vmatprep.subr.bf16.mxu0 0
        %10601 = vmatpush2.bf16.msra.mxu0 0
        %10602 = vmatprep.subr.bf16.mxu0 0
        %10603 = vmatpush2.bf16.msra.mxu0 0
        %10604 = vmatprep.subr.bf16.mxu0 0
        %10605 = vmatpush2.bf16.msra.mxu0 0
        %10606 = vmatprep.subr.bf16.mxu0 0
        %10607 = vmatpush2.bf16.msra.mxu0 0
        %10608 = vmatprep.subr.bf16.mxu0 0
        %10609 = vmatpush2.bf16.msra.mxu0 0
        %10610 = vmatprep.mubr.bf16.mxu0 0
        %10611 = vmatmul.mubr.bf16.gmra.mxu0 %v10414
        %v10612 = vpop.f32.mrf.mxu0
        %v10613 = vadd.f32 %v10128, %v10612
        %v10614 = vpop.f32.mrf.mxu0
        %v10615 = vadd.f32 %v10128, %v10614
        %v10616 = vpop.f32.mrf.mxu0
        %v10617 = vadd.f32 %v10133, %v10616
        %v10618 = vpop.f32.mrf.mxu0
        %v10619 = vadd.f32 %v10133, %v10618
        %10620 = vmatprep.mubr.bf16.mxu0 0
        %10621 = vmatmul.mubr.bf16.gmra.mxu0 %v10417
        %v10622 = vpop.f32.mrf.mxu0
        %v10623 = vadd.f32 %v10138, %v10622
        %v10624 = vpop.f32.mrf.mxu0
        %v10625 = vadd.f32 %v10138, %v10624
        %v10626 = vpop.f32.mrf.mxu0
        %v10627 = vadd.f32 %v10143, %v10626
        %v10628 = vpop.f32.mrf.mxu0
        %v10629 = vadd.f32 %v10143, %v10628
        %10630 = vdwg.mxu0
        %v10631 = vmax.f32 %v10454, 0.0
        %v10632 = vmax.f32 %v10456, 0.0
        %v10633 = vmax.f32 %v10507, 0.0
        %v10634 = vmax.f32 %v10509, 0.0
        %v10635 = vmax.f32 %v10560, 0.0
        %v10636 = vmax.f32 %v10562, 0.0
        %v10637 = vmax.f32 %v10613, 0.0
        %v10638 = vmax.f32 %v10615, 0.0
        %v10639 = vmax.f32 %v10458, 0.0
        %v10640 = vmax.f32 %v10460, 0.0
        %v10641 = vmax.f32 %v10511, 0.0
        %v10642 = vmax.f32 %v10513, 0.0
        %v10643 = vmax.f32 %v10564, 0.0
        %v10644 = vmax.f32 %v10566, 0.0
        %v10645 = vmax.f32 %v10617, 0.0
        %v10646 = vmax.f32 %v10619, 0.0
        %v10647 = vmax.f32 %v10464, 0.0
        %v10648 = vmax.f32 %v10466, 0.0
        %v10649 = vmax.f32 %v10517, 0.0
        %v10650 = vmax.f32 %v10519, 0.0
        %v10651 = vmax.f32 %v10570, 0.0
        %v10652 = vmax.f32 %v10572, 0.0
        %v10653 = vmax.f32 %v10623, 0.0
        %v10654 = vmax.f32 %v10625, 0.0
        %v10655 = vmax.f32 %v10468, 0.0
        %v10656 = vmax.f32 %v10470, 0.0
        %v10657 = vmax.f32 %v10521, 0.0
        %v10658 = vmax.f32 %v10523, 0.0
        %v10659 = vmax.f32 %v10574, 0.0
        %v10660 = vmax.f32 %v10576, 0.0
        %v10661 = vmax.f32 %v10627, 0.0
        %v10662 = vmax.f32 %v10629, 0.0
        %10663 = vst [vmem:[#allocation2 + $0x8] sm:$0xff] %v10631
        %10664 = vst [vmem:[#allocation2 + $0x10] sm:$0xff] %v10632
        %10665 = vst [vmem:[#allocation2 + $0x18] sm:$0xff] %v10633
        %10666 = vst [vmem:[#allocation2 + $0x20] sm:$0xff] %v10634
        %10667 = vst [vmem:[#allocation2 + $0x28] sm:$0xff] %v10635
        %10668 = vst [vmem:[#allocation2 + $0x30] sm:$0xff] %v10636
        %10669 = vst [vmem:[#allocation2 + $0x38] sm:$0xff] %v10637
        %10670 = vst [vmem:[#allocation2 + $0x40] sm:$0xff] %v10638
        %10671 = vst [vmem:[#allocation2 + $0x58] sm:$0xff] %v10639
        %10672 = vst [vmem:[#allocation2 + $0x60] sm:$0xff] %v10640
        %10673 = vst [vmem:[#allocation2 + $0x68] sm:$0xff] %v10641
        %10674 = vst [vmem:[#allocation2 + $0x70] sm:$0xff] %v10642
        %10675 = vst [vmem:[#allocation2 + $0x78] sm:$0xff] %v10643
        %10676 = vst [vmem:[#allocation2 + $0x80] sm:$0xff] %v10644
        %10677 = vst [vmem:[#allocation2 + $0x88] sm:$0xff] %v10645
        %10678 = vst [vmem:[#allocation2 + $0x90] sm:$0xff] %v10646
        %10679 = vst [vmem:[#allocation2 + $0xa8] sm:$0xff] %v10647
        %10680 = vst [vmem:[#allocation2 + $0xb0] sm:$0xff] %v10648
        %10681 = vst [vmem:[#allocation2 + $0xb8] sm:$0xff] %v10649
        %10682 = vst [vmem:[#allocation2 + $0xc0] sm:$0xff] %v10650
        %10683 = vst [vmem:[#allocation2 + $0xc8] sm:$0xff] %v10651
        %10684 = vst [vmem:[#allocation2 + $0xd0] sm:$0xff] %v10652
        %10685 = vst [vmem:[#allocation2 + $0xd8] sm:$0xff] %v10653
        %10686 = vst [vmem:[#allocation2 + $0xe0] sm:$0xff] %v10654
        %10687 = vst [vmem:[#allocation2 + $0xf8] sm:$0xff] %v10655
        %10688 = vst [vmem:[#allocation2 + $0x100] sm:$0xff] %v10656
        %10689 = vst [vmem:[#allocation2 + $0x108] sm:$0xff] %v10657
        %10690 = vst [vmem:[#allocation2 + $0x110] sm:$0xff] %v10658
        %10691 = vst [vmem:[#allocation2 + $0x118] sm:$0xff] %v10659
        %10692 = vst [vmem:[#allocation2 + $0x120] sm:$0xff] %v10660
        %10693 = vst [vmem:[#allocation2 + $0x128] sm:$0xff] %v10661
        %10694 = vst [vmem:[#allocation2 + $0x130] sm:$0xff] %v10662
        %v10695 = vld [vmem:[#allocation2] sm:$0xff]
        %v10696 = vld [vmem:[#allocation2 + $0x8] sm:$0xff]
        %v10697 = vld [vmem:[#allocation2 + $0x10] sm:$0xff]
        %v10698 = vld [vmem:[#allocation2 + $0x18] sm:$0xff]
        %v10699 = vld [vmem:[#allocation2 + $0x20] sm:$0xff]
        %v10700 = vld [vmem:[#allocation2 + $0x28] sm:$0xff]
        %v10701 = vld [vmem:[#allocation2 + $0x30] sm:$0xff]
        %v10702 = vld [vmem:[#allocation2 + $0x38] sm:$0xff]
        %v10703 = vld [vmem:[#allocation2 + $0x40] sm:$0xff]
        %v10704 = vld [vmem:[#allocation2 + $0x50] sm:$0xff]
        %v10705 = vld [vmem:[#allocation2 + $0x58] sm:$0xff]
        %v10706 = vld [vmem:[#allocation2 + $0x60] sm:$0xff]
        %v10707 = vld [vmem:[#allocation2 + $0x68] sm:$0xff]
        %v10708 = vld [vmem:[#allocation2 + $0x70] sm:$0xff]
        %v10709 = vld [vmem:[#allocation2 + $0x78] sm:$0xff]
        %v10710 = vld [vmem:[#allocation2 + $0x80] sm:$0xff]
        %v10711 = vld [vmem:[#allocation2 + $0x88] sm:$0xff]
        %v10712 = vld [vmem:[#allocation2 + $0x90] sm:$0xff]
        %v10713 = vld [vmem:[#allocation2 + $0xa0] sm:$0xff]
        %v10714 = vld [vmem:[#allocation2 + $0xa8] sm:$0xff]
        %v10715 = vld [vmem:[#allocation2 + $0xb0] sm:$0xff]
        %v10716 = vld [vmem:[#allocation2 + $0xb8] sm:$0xff]
        %v10717 = vld [vmem:[#allocation2 + $0xc0] sm:$0xff]
        %v10718 = vld [vmem:[#allocation2 + $0xc8] sm:$0xff]
        %v10719 = vld [vmem:[#allocation2 + $0xd0] sm:$0xff]
        %v10720 = vld [vmem:[#allocation2 + $0xd8] sm:$0xff]
        %v10721 = vld [vmem:[#allocation2 + $0xe0] sm:$0xff]
        %v10722 = vld [vmem:[#allocation2 + $0xf0] sm:$0xff]
        %v10723 = vld [vmem:[#allocation2 + $0xf8] sm:$0xff]
        %v10724 = vld [vmem:[#allocation2 + $0x100] sm:$0xff]
        %v10725 = vld [vmem:[#allocation2 + $0x108] sm:$0xff]
        %v10726 = vld [vmem:[#allocation2 + $0x110] sm:$0xff]
        %v10727 = vld [vmem:[#allocation2 + $0x118] sm:$0xff]
        %v10728 = vld [vmem:[#allocation2 + $0x120] sm:$0xff]
        %v10729 = vld [vmem:[#allocation2 + $0x128] sm:$0xff]
        %v10730 = vld [vmem:[#allocation2 + $0x130] sm:$0xff]
        %v10731 = vld [vmem:[#allocation2 + $0x8] sm:$0xff]
        %v10732 = vld [vmem:[#allocation2 + $0x10] sm:$0xff]
        %v10733 = vld [vmem:[#allocation2 + $0x18] sm:$0xff]
        %v10734 = vld [vmem:[#allocation2 + $0x20] sm:$0xff]
        %v10735 = vld [vmem:[#allocation2 + $0x28] sm:$0xff]
        %v10736 = vld [vmem:[#allocation2 + $0x30] sm:$0xff]
        %v10737 = vld [vmem:[#allocation2 + $0x38] sm:$0xff]
        %v10738 = vld [vmem:[#allocation2 + $0x40] sm:$0xff]
        %v10739 = vld [vmem:[#allocation2 + $0x48] sm:$0xff]
        %v10740 = vld [vmem:[#allocation2 + $0x58] sm:$0xff]
        %v10741 = vld [vmem:[#allocation2 + $0x60] sm:$0xff]
        %v10742 = vld [vmem:[#allocation2 + $0x68] sm:$0xff]
        %v10743 = vld [vmem:[#allocation2 + $0x70] sm:$0xff]
        %v10744 = vld [vmem:[#allocation2 + $0x78] sm:$0xff]
        %v10745 = vld [vmem:[#allocation2 + $0x80] sm:$0xff]
        %v10746 = vld [vmem:[#allocation2 + $0x88] sm:$0xff]
        %v10747 = vld [vmem:[#allocation2 + $0x90] sm:$0xff]
        %v10748 = vld [vmem:[#allocation2 + $0x98] sm:$0xff]
        %v10749 = vld [vmem:[#allocation2 + $0xa8] sm:$0xff]
        %v10750 = vld [vmem:[#allocation2 + $0xb0] sm:$0xff]
        %v10751 = vld [vmem:[#allocation2 + $0xb8] sm:$0xff]
        %v10752 = vld [vmem:[#allocation2 + $0xc0] sm:$0xff]
        %v10753 = vld [vmem:[#allocation2 + $0xc8] sm:$0xff]
        %v10754 = vld [vmem:[#allocation2 + $0xd0] sm:$0xff]
        %v10755 = vld [vmem:[#allocation2 + $0xd8] sm:$0xff]
        %v10756 = vld [vmem:[#allocation2 + $0xe0] sm:$0xff]
        %v10757 = vld [vmem:[#allocation2 + $0xe8] sm:$0xff]
        %v10758 = vld [vmem:[#allocation2 + $0xf8] sm:$0xff]
        %v10759 = vld [vmem:[#allocation2 + $0x100] sm:$0xff]
        %v10760 = vld [vmem:[#allocation2 + $0x108] sm:$0xff]
        %v10761 = vld [vmem:[#allocation2 + $0x110] sm:$0xff]
        %v10762 = vld [vmem:[#allocation2 + $0x118] sm:$0xff]
        %v10763 = vld [vmem:[#allocation2 + $0x120] sm:$0xff]
        %v10764 = vld [vmem:[#allocation2 + $0x128] sm:$0xff]
        %v10765 = vld [vmem:[#allocation2 + $0x130] sm:$0xff]
        %v10766 = vld [vmem:[#allocation2 + $0x138] sm:$0xff]
        %10799 = vrot.lane.b32.xlu0 %v10696, 64
        %v10800 = vpop.permute.xlu0 %10799
        %10801 = vrot.lane.b32.xlu0 %v10697, 64
        %v10802 = vpop.permute.xlu0 %10801
        %10803 = vrot.lane.b32.xlu0 %v10698, 64
        %v10804 = vpop.permute.xlu0 %10803
        %10805 = vrot.lane.b32.xlu0 %v10699, 64
        %v10806 = vpop.permute.xlu0 %10805
        %10807 = vrot.lane.b32.xlu0 %v10700, 64
        %v10808 = vpop.permute.xlu0 %10807
        %10809 = vrot.lane.b32.xlu0 %v10701, 64
        %v10810 = vpop.permute.xlu0 %10809
        %10811 = vrot.lane.b32.xlu0 %v10702, 64
        %v10812 = vpop.permute.xlu0 %10811
        %10813 = vrot.lane.b32.xlu0 %v10703, 64
        %v10814 = vpop.permute.xlu0 %10813
        %10815 = vrot.lane.b32.xlu0 %v10705, 64
        %v10816 = vpop.permute.xlu0 %10815
        %10817 = vrot.lane.b32.xlu0 %v10706, 64
        %v10818 = vpop.permute.xlu0 %10817
        %10819 = vrot.lane.b32.xlu0 %v10707, 64
        %v10820 = vpop.permute.xlu0 %10819
        %10821 = vrot.lane.b32.xlu0 %v10708, 64
        %v10822 = vpop.permute.xlu0 %10821
        %10823 = vrot.lane.b32.xlu0 %v10709, 64
        %v10824 = vpop.permute.xlu0 %10823
        %10825 = vrot.lane.b32.xlu0 %v10710, 64
        %v10826 = vpop.permute.xlu0 %10825
        %10827 = vrot.lane.b32.xlu0 %v10711, 64
        %v10828 = vpop.permute.xlu0 %10827
        %10829 = vrot.lane.b32.xlu0 %v10712, 64
        %v10830 = vpop.permute.xlu0 %10829
        %10831 = vrot.lane.b32.xlu0 %v10714, 64
        %v10832 = vpop.permute.xlu0 %10831
        %10833 = vrot.lane.b32.xlu0 %v10715, 64
        %v10834 = vpop.permute.xlu0 %10833
        %10835 = vrot.lane.b32.xlu0 %v10716, 64
        %v10836 = vpop.permute.xlu0 %10835
        %10837 = vrot.lane.b32.xlu0 %v10717, 64
        %v10838 = vpop.permute.xlu0 %10837
        %10839 = vrot.lane.b32.xlu0 %v10718, 64
        %v10840 = vpop.permute.xlu0 %10839
        %10841 = vrot.lane.b32.xlu0 %v10719, 64
        %v10842 = vpop.permute.xlu0 %10841
        %10843 = vrot.lane.b32.xlu0 %v10720, 64
        %v10844 = vpop.permute.xlu0 %10843
        %10845 = vrot.lane.b32.xlu0 %v10721, 64
        %v10846 = vpop.permute.xlu0 %10845
        %10847 = vrot.lane.b32.xlu0 %v10723, 64
        %v10848 = vpop.permute.xlu0 %10847
        %10849 = vrot.lane.b32.xlu0 %v10724, 64
        %v10850 = vpop.permute.xlu0 %10849
        %10851 = vrot.lane.b32.xlu0 %v10725, 64
        %v10852 = vpop.permute.xlu0 %10851
        %10853 = vrot.lane.b32.xlu0 %v10726, 64
        %v10854 = vpop.permute.xlu0 %10853
        %10855 = vrot.lane.b32.xlu0 %v10727, 64
        %v10856 = vpop.permute.xlu0 %10855
        %10857 = vrot.lane.b32.xlu0 %v10728, 64
        %v10858 = vpop.permute.xlu0 %10857
        %10859 = vrot.lane.b32.xlu0 %v10729, 64
        %v10860 = vpop.permute.xlu0 %10859
        %10861 = vrot.lane.b32.xlu0 %v10730, 64
        %v10862 = vpop.permute.xlu0 %10861
        %v10863 = vsel %vm4547, %v10800, %v10802
        %v10864 = vsel %vm4547, %v10802, %v10804
        %v10865 = vsel %vm4547, %v10804, %v10806
        %v10866 = vsel %vm4547, %v10806, %v10808
        %v10867 = vsel %vm4547, %v10808, %v10810
        %v10868 = vsel %vm4547, %v10810, %v10812
        %v10869 = vsel %vm4547, %v10812, %v10814
        %v10870 = vsel %vm4547, %v10816, %v10818
        %v10871 = vsel %vm4547, %v10818, %v10820
        %v10872 = vsel %vm4547, %v10820, %v10822
        %v10873 = vsel %vm4547, %v10822, %v10824
        %v10874 = vsel %vm4547, %v10824, %v10826
        %v10875 = vsel %vm4547, %v10826, %v10828
        %v10876 = vsel %vm4547, %v10828, %v10830
        %v10877 = vsel %vm4547, %v10832, %v10834
        %v10878 = vsel %vm4547, %v10834, %v10836
        %v10879 = vsel %vm4547, %v10836, %v10838
        %v10880 = vsel %vm4547, %v10838, %v10840
        %v10881 = vsel %vm4547, %v10840, %v10842
        %v10882 = vsel %vm4547, %v10842, %v10844
        %v10883 = vsel %vm4547, %v10844, %v10846
        %v10884 = vsel %vm4547, %v10848, %v10850
        %v10885 = vsel %vm4547, %v10850, %v10852
        %v10886 = vsel %vm4547, %v10852, %v10854
        %v10887 = vsel %vm4547, %v10854, %v10856
        %v10888 = vsel %vm4547, %v10856, %v10858
        %v10889 = vsel %vm4547, %v10858, %v10860
        %v10890 = vsel %vm4547, %v10860, %v10862
        %v10927 = vpack.c.bf16 %v10704, %v10695
        %v10928 = vpack.c.bf16 %v10705, %v10696
        %v10929 = vpack.c.bf16 %v10706, %v10697
        %v10930 = vpack.c.bf16 %v10707, %v10698
        %v10931 = vpack.c.bf16 %v10708, %v10699
        %v10932 = vpack.c.bf16 %v10709, %v10700
        %v10933 = vpack.c.bf16 %v10710, %v10701
        %v10934 = vpack.c.bf16 %v10711, %v10702
        %v10935 = vpack.c.bf16 %v10712, %v10703
        %v10936 = vpack.c.bf16 %v10722, %v10713
        %v10937 = vpack.c.bf16 %v10723, %v10714
        %v10938 = vpack.c.bf16 %v10724, %v10715
        %v10939 = vpack.c.bf16 %v10725, %v10716
        %v10940 = vpack.c.bf16 %v10726, %v10717
        %v10941 = vpack.c.bf16 %v10727, %v10718
        %v10942 = vpack.c.bf16 %v10728, %v10719
        %v10943 = vpack.c.bf16 %v10729, %v10720
        %v10944 = vpack.c.bf16 %v10730, %v10721
        %v10945 = vpack.c.bf16 %v10816, %v10800
        %v10946 = vpack.c.bf16 %v10870, %v10863
        %v10947 = vpack.c.bf16 %v10871, %v10864
        %v10948 = vpack.c.bf16 %v10872, %v10865
        %v10949 = vpack.c.bf16 %v10873, %v10866
        %v10950 = vpack.c.bf16 %v10874, %v10867
        %v10951 = vpack.c.bf16 %v10875, %v10868
        %v10952 = vpack.c.bf16 %v10876, %v10869
        %v10953 = vpack.c.bf16 %v10830, %v10814
        %v10954 = vpack.c.bf16 %v10848, %v10832
        %v10955 = vpack.c.bf16 %v10884, %v10877
        %v10956 = vpack.c.bf16 %v10885, %v10878
        %v10957 = vpack.c.bf16 %v10886, %v10879
        %v10958 = vpack.c.bf16 %v10887, %v10880
        %v10959 = vpack.c.bf16 %v10888, %v10881
        %v10960 = vpack.c.bf16 %v10889, %v10882
        %v10961 = vpack.c.bf16 %v10890, %v10883
        %v10962 = vpack.c.bf16 %v10862, %v10846
        %v10963 = vpack.c.bf16 %v10740, %v10731
        %v10964 = vpack.c.bf16 %v10741, %v10732
        %v10965 = vpack.c.bf16 %v10742, %v10733
        %v10966 = vpack.c.bf16 %v10743, %v10734
        %v10967 = vpack.c.bf16 %v10744, %v10735
        %v10968 = vpack.c.bf16 %v10745, %v10736
        %v10969 = vpack.c.bf16 %v10746, %v10737
        %v10970 = vpack.c.bf16 %v10747, %v10738
        %v10971 = vpack.c.bf16 %v10748, %v10739
        %v10972 = vpack.c.bf16 %v10758, %v10749
        %v10973 = vpack.c.bf16 %v10759, %v10750
        %v10974 = vpack.c.bf16 %v10760, %v10751
        %v10975 = vpack.c.bf16 %v10761, %v10752
        %v10976 = vpack.c.bf16 %v10762, %v10753
        %v10977 = vpack.c.bf16 %v10763, %v10754
        %v10978 = vpack.c.bf16 %v10764, %v10755
        %v10979 = vpack.c.bf16 %v10765, %v10756
        %v10980 = vpack.c.bf16 %v10766, %v10757
        %v10981 = vld [vmem:[#allocation20] sm:$0xf]
        %v10982 = vld [vmem:[#allocation20 + $0x4] sm:$0xf]
        %v10983 = vld [vmem:[%s12] sm:$0xff]
        %v10984 = vld [vmem:[%s12 + $0x8] sm:$0xff]
        %10986 = vset.pattern.permute.xlu0 0
        %10987 = vperm.xlu0 %10986, %v10983
        %v10988 = vpop.permute.xlu0 %10987
        %10991 = vset.pattern.permute.xlu0 0
        %10992 = vperm.xlu0 %10991, %v10984
        %v10993 = vpop.permute.xlu0 %10992
        %v10997 = vunpack.c.l.b16 %v10981
        %v10998 = vunpack.c.l.b16 %v10982
        %v10999 = vpack.c.b16 %v10998, %v10997
        %11054 = vrot.lane.b32.xlu0 %v10927, 64
        %v11055 = vpop.permute.xlu0 %11054
        %11056 = vrot.lane.b32.xlu0 %v10928, 64
        %v11057 = vpop.permute.xlu0 %11056
        %11058 = vrot.lane.b32.xlu0 %v10929, 64
        %v11059 = vpop.permute.xlu0 %11058
        %11060 = vrot.lane.b32.xlu0 %v10930, 64
        %v11061 = vpop.permute.xlu0 %11060
        %11062 = vrot.lane.b32.xlu0 %v10931, 64
        %v11063 = vpop.permute.xlu0 %11062
        %11064 = vrot.lane.b32.xlu0 %v10932, 64
        %v11065 = vpop.permute.xlu0 %11064
        %11066 = vrot.lane.b32.xlu0 %v10933, 64
        %v11067 = vpop.permute.xlu0 %11066
        %11068 = vrot.lane.b32.xlu0 %v10934, 64
        %v11069 = vpop.permute.xlu0 %11068
        %11070 = vrot.lane.b32.xlu0 %v10935, 64
        %v11071 = vpop.permute.xlu0 %11070
        %11072 = vrot.lane.b32.xlu0 %v10936, 64
        %v11073 = vpop.permute.xlu0 %11072
        %11074 = vrot.lane.b32.xlu0 %v10937, 64
        %v11075 = vpop.permute.xlu0 %11074
        %11076 = vrot.lane.b32.xlu0 %v10938, 64
        %v11077 = vpop.permute.xlu0 %11076
        %11078 = vrot.lane.b32.xlu0 %v10939, 64
        %v11079 = vpop.permute.xlu0 %11078
        %11080 = vrot.lane.b32.xlu0 %v10940, 64
        %v11081 = vpop.permute.xlu0 %11080
        %11082 = vrot.lane.b32.xlu0 %v10941, 64
        %v11083 = vpop.permute.xlu0 %11082
        %11084 = vrot.lane.b32.xlu0 %v10942, 64
        %v11085 = vpop.permute.xlu0 %11084
        %11086 = vrot.lane.b32.xlu0 %v10943, 64
        %v11087 = vpop.permute.xlu0 %11086
        %11088 = vrot.lane.b32.xlu0 %v10944, 64
        %v11089 = vpop.permute.xlu0 %11088
        %11090 = vrot.lane.b32.xlu0 %v10945, 64
        %v11091 = vpop.permute.xlu0 %11090
        %11092 = vrot.lane.b32.xlu0 %v10946, 64
        %v11093 = vpop.permute.xlu0 %11092
        %11094 = vrot.lane.b32.xlu0 %v10947, 64
        %v11095 = vpop.permute.xlu0 %11094
        %11096 = vrot.lane.b32.xlu0 %v10948, 64
        %v11097 = vpop.permute.xlu0 %11096
        %11098 = vrot.lane.b32.xlu0 %v10949, 64
        %v11099 = vpop.permute.xlu0 %11098
        %11100 = vrot.lane.b32.xlu0 %v10950, 64
        %v11101 = vpop.permute.xlu0 %11100
        %11102 = vrot.lane.b32.xlu0 %v10951, 64
        %v11103 = vpop.permute.xlu0 %11102
        %11104 = vrot.lane.b32.xlu0 %v10952, 64
        %v11105 = vpop.permute.xlu0 %11104
        %11106 = vrot.lane.b32.xlu0 %v10953, 64
        %v11107 = vpop.permute.xlu0 %11106
        %11108 = vrot.lane.b32.xlu0 %v10954, 64
        %v11109 = vpop.permute.xlu0 %11108
        %11110 = vrot.lane.b32.xlu0 %v10955, 64
        %v11111 = vpop.permute.xlu0 %11110
        %11112 = vrot.lane.b32.xlu0 %v10956, 64
        %v11113 = vpop.permute.xlu0 %11112
        %11114 = vrot.lane.b32.xlu0 %v10957, 64
        %v11115 = vpop.permute.xlu0 %11114
        %11116 = vrot.lane.b32.xlu0 %v10958, 64
        %v11117 = vpop.permute.xlu0 %11116
        %11118 = vrot.lane.b32.xlu0 %v10959, 64
        %v11119 = vpop.permute.xlu0 %11118
        %11120 = vrot.lane.b32.xlu0 %v10960, 64
        %v11121 = vpop.permute.xlu0 %11120
        %11122 = vrot.lane.b32.xlu0 %v10961, 64
        %v11123 = vpop.permute.xlu0 %11122
        %11124 = vrot.lane.b32.xlu0 %v10962, 64
        %v11125 = vpop.permute.xlu0 %11124
        %11126 = vrot.lane.b32.xlu0 %v10963, 64
        %v11127 = vpop.permute.xlu0 %11126
        %11128 = vrot.lane.b32.xlu0 %v10964, 64
        %v11129 = vpop.permute.xlu0 %11128
        %11130 = vrot.lane.b32.xlu0 %v10965, 64
        %v11131 = vpop.permute.xlu0 %11130
        %11132 = vrot.lane.b32.xlu0 %v10966, 64
        %v11133 = vpop.permute.xlu0 %11132
        %11134 = vrot.lane.b32.xlu0 %v10967, 64
        %v11135 = vpop.permute.xlu0 %11134
        %11136 = vrot.lane.b32.xlu0 %v10968, 64
        %v11137 = vpop.permute.xlu0 %11136
        %11138 = vrot.lane.b32.xlu0 %v10969, 64
        %v11139 = vpop.permute.xlu0 %11138
        %11140 = vrot.lane.b32.xlu0 %v10970, 64
        %v11141 = vpop.permute.xlu0 %11140
        %11142 = vrot.lane.b32.xlu0 %v10971, 64
        %v11143 = vpop.permute.xlu0 %11142
        %11144 = vrot.lane.b32.xlu0 %v10972, 64
        %v11145 = vpop.permute.xlu0 %11144
        %11146 = vrot.lane.b32.xlu0 %v10973, 64
        %v11147 = vpop.permute.xlu0 %11146
        %11148 = vrot.lane.b32.xlu0 %v10974, 64
        %v11149 = vpop.permute.xlu0 %11148
        %11150 = vrot.lane.b32.xlu0 %v10975, 64
        %v11151 = vpop.permute.xlu0 %11150
        %11152 = vrot.lane.b32.xlu0 %v10976, 64
        %v11153 = vpop.permute.xlu0 %11152
        %11154 = vrot.lane.b32.xlu0 %v10977, 64
        %v11155 = vpop.permute.xlu0 %11154
        %11156 = vrot.lane.b32.xlu0 %v10978, 64
        %v11157 = vpop.permute.xlu0 %11156
        %11158 = vrot.lane.b32.xlu0 %v10979, 64
        %v11159 = vpop.permute.xlu0 %11158
        %11160 = vrot.lane.b32.xlu0 %v10980, 64
        %v11161 = vpop.permute.xlu0 %11160
        %v11162 = vsel %vm5716, %v11055, %v11057
        %v11163 = vsel %vm5716, %v11057, %v11059
        %v11164 = vsel %vm5716, %v11059, %v11061
        %v11165 = vsel %vm5716, %v11061, %v11063
        %v11166 = vsel %vm5716, %v11063, %v11065
        %v11167 = vsel %vm5716, %v11065, %v11067
        %v11168 = vsel %vm5716, %v11067, %v11069
        %v11169 = vsel %vm5716, %v11069, %v11071
        %v11170 = vsel %vm5716, %v11073, %v11075
        %v11171 = vsel %vm5716, %v11075, %v11077
        %v11172 = vsel %vm5716, %v11077, %v11079
        %v11173 = vsel %vm5716, %v11079, %v11081
        %v11174 = vsel %vm5716, %v11081, %v11083
        %v11175 = vsel %vm5716, %v11083, %v11085
        %v11176 = vsel %vm5716, %v11085, %v11087
        %v11177 = vsel %vm5716, %v11087, %v11089
        %v11178 = vsel %vm5716, %v11091, %v11093
        %v11179 = vsel %vm5716, %v11093, %v11095
        %v11180 = vsel %vm5716, %v11095, %v11097
        %v11181 = vsel %vm5716, %v11097, %v11099
        %v11182 = vsel %vm5716, %v11099, %v11101
        %v11183 = vsel %vm5716, %v11101, %v11103
        %v11184 = vsel %vm5716, %v11103, %v11105
        %v11185 = vsel %vm5716, %v11105, %v11107
        %v11186 = vsel %vm5716, %v11109, %v11111
        %v11187 = vsel %vm5716, %v11111, %v11113
        %v11188 = vsel %vm5716, %v11113, %v11115
        %v11189 = vsel %vm5716, %v11115, %v11117
        %v11190 = vsel %vm5716, %v11117, %v11119
        %v11191 = vsel %vm5716, %v11119, %v11121
        %v11192 = vsel %vm5716, %v11121, %v11123
        %v11193 = vsel %vm5716, %v11123, %v11125
        %v11194 = vsel %vm5716, %v11127, %v11129
        %v11195 = vsel %vm5716, %v11129, %v11131
        %v11196 = vsel %vm5716, %v11131, %v11133
        %v11197 = vsel %vm5716, %v11133, %v11135
        %v11198 = vsel %vm5716, %v11135, %v11137
        %v11199 = vsel %vm5716, %v11137, %v11139
        %v11200 = vsel %vm5716, %v11139, %v11141
        %v11201 = vsel %vm5716, %v11141, %v11143
        %v11202 = vsel %vm5716, %v11145, %v11147
        %v11203 = vsel %vm5716, %v11147, %v11149
        %v11204 = vsel %vm5716, %v11149, %v11151
        %v11205 = vsel %vm5716, %v11151, %v11153
        %v11206 = vsel %vm5716, %v11153, %v11155
        %v11207 = vsel %vm5716, %v11155, %v11157
        %v11208 = vsel %vm5716, %v11157, %v11159
        %v11209 = vsel %vm5716, %v11159, %v11161
        %v11259 = vsel %vm3505, %v10999, 0
        %11261 = vmatprep.subr.bf16.mxu0 0
        %11262 = vmatpush1.bf16.msra.mxu0 0
        %11263 = vmatprep.subr.bf16.mxu0 0
        %11264 = vmatpush1.bf16.msra.mxu0 0
        %11265 = vmatprep.subr.bf16.mxu0 %v11203
        %11266 = vmatpush1.bf16.msra.mxu0 %v11202
        %11267 = vmatprep.subr.bf16.mxu0 %v11195
        %11268 = vmatpush1.bf16.msra.mxu0 %v11194
        %11269 = vmatprep.subr.bf16.mxu0 %v11187
        %11270 = vmatpush1.bf16.msra.mxu0 %v11186
        %11271 = vmatprep.subr.bf16.mxu0 %v11179
        %11272 = vmatpush1.bf16.msra.mxu0 %v11178
        %11273 = vmatprep.subr.bf16.mxu0 %v11171
        %11274 = vmatpush1.bf16.msra.mxu0 %v11170
        %11275 = vmatprep.subr.bf16.mxu0 %v11163
        %11276 = vmatpush1.bf16.msra.mxu0 %v11162
        %11277 = vmatprep.subr.bf16.mxu0 0
        %11278 = vmatpush2.bf16.msra.mxu0 0
        %11279 = vmatprep.subr.bf16.mxu0 0
        %11280 = vmatpush2.bf16.msra.mxu0 0
        %11281 = vmatprep.subr.bf16.mxu0 0
        %11282 = vmatpush2.bf16.msra.mxu0 0
        %11283 = vmatprep.subr.bf16.mxu0 0
        %11284 = vmatpush2.bf16.msra.mxu0 0
        %11285 = vmatprep.subr.bf16.mxu0 0
        %11286 = vmatpush2.bf16.msra.mxu0 0
        %11287 = vmatprep.subr.bf16.mxu0 0
        %11288 = vmatpush2.bf16.msra.mxu0 0
        %11289 = vmatprep.subr.bf16.mxu0 0
        %11290 = vmatpush2.bf16.msra.mxu0 0
        %11291 = vmatprep.subr.bf16.mxu0 0
        %11292 = vmatpush2.bf16.msra.mxu0 0
        %11293 = vmatprep.mubr.bf16.mxu0 0
        %11294 = vmatmul.mubr.bf16.gmra.mxu0 %v11259
        %v11295 = vpop.f32.mrf.mxu0
        %v11296 = vadd.f32 %v10988, %v11295
        %v11297 = vpop.f32.mrf.mxu0
        %v11298 = vadd.f32 %v10988, %v11297
        %v11299 = vpop.f32.mrf.mxu0
        %v11300 = vadd.f32 %v10993, %v11299
        %v11301 = vpop.f32.mrf.mxu0
        %v11302 = vadd.f32 %v10993, %v11301
        %11303 = vdwg.mxu0
        %11304 = vmatprep.subr.bf16.mxu0 0
        %11305 = vmatpush1.bf16.msra.mxu0 0
        %11306 = vmatprep.subr.bf16.mxu0 0
        %11307 = vmatpush1.bf16.msra.mxu0 0
        %11308 = vmatprep.subr.bf16.mxu0 %v11205
        %11309 = vmatpush1.bf16.msra.mxu0 %v11204
        %11310 = vmatprep.subr.bf16.mxu0 %v11197
        %11311 = vmatpush1.bf16.msra.mxu0 %v11196
        %11312 = vmatprep.subr.bf16.mxu0 %v11189
        %11313 = vmatpush1.bf16.msra.mxu0 %v11188
        %11314 = vmatprep.subr.bf16.mxu0 %v11181
        %11315 = vmatpush1.bf16.msra.mxu0 %v11180
        %11316 = vmatprep.subr.bf16.mxu0 %v11173
        %11317 = vmatpush1.bf16.msra.mxu0 %v11172
        %11318 = vmatprep.subr.bf16.mxu0 %v11165
        %11319 = vmatpush1.bf16.msra.mxu0 %v11164
        %11320 = vmatprep.subr.bf16.mxu0 0
        %11321 = vmatpush2.bf16.msra.mxu0 0
        %11322 = vmatprep.subr.bf16.mxu0 0
        %11323 = vmatpush2.bf16.msra.mxu0 0
        %11324 = vmatprep.subr.bf16.mxu0 0
        %11325 = vmatpush2.bf16.msra.mxu0 0
        %11326 = vmatprep.subr.bf16.mxu0 0
        %11327 = vmatpush2.bf16.msra.mxu0 0
        %11328 = vmatprep.subr.bf16.mxu0 0
        %11329 = vmatpush2.bf16.msra.mxu0 0
        %11330 = vmatprep.subr.bf16.mxu0 0
        %11331 = vmatpush2.bf16.msra.mxu0 0
        %11332 = vmatprep.subr.bf16.mxu0 0
        %11333 = vmatpush2.bf16.msra.mxu0 0
        %11334 = vmatprep.subr.bf16.mxu0 0
        %11335 = vmatpush2.bf16.msra.mxu0 0
        %11336 = vmatprep.mubr.bf16.mxu0 0
        %11337 = vmatmul.mubr.bf16.gmra.mxu0 %v11259
        %v11338 = vpop.f32.mrf.mxu0
        %v11339 = vadd.f32 %v10988, %v11338
        %v11340 = vpop.f32.mrf.mxu0
        %v11341 = vadd.f32 %v10988, %v11340
        %v11342 = vpop.f32.mrf.mxu0
        %v11343 = vadd.f32 %v10993, %v11342
        %v11344 = vpop.f32.mrf.mxu0
        %v11345 = vadd.f32 %v10993, %v11344
        %11346 = vdwg.mxu0
        %11347 = vmatprep.subr.bf16.mxu0 0
        %11348 = vmatpush1.bf16.msra.mxu0 0
        %11349 = vmatprep.subr.bf16.mxu0 0
        %11350 = vmatpush1.bf16.msra.mxu0 0
        %11351 = vmatprep.subr.bf16.mxu0 %v11207
        %11352 = vmatpush1.bf16.msra.mxu0 %v11206
        %11353 = vmatprep.subr.bf16.mxu0 %v11199
        %11354 = vmatpush1.bf16.msra.mxu0 %v11198
        %11355 = vmatprep.subr.bf16.mxu0 %v11191
        %11356 = vmatpush1.bf16.msra.mxu0 %v11190
        %11357 = vmatprep.subr.bf16.mxu0 %v11183
        %11358 = vmatpush1.bf16.msra.mxu0 %v11182
        %11359 = vmatprep.subr.bf16.mxu0 %v11175
        %11360 = vmatpush1.bf16.msra.mxu0 %v11174
        %11361 = vmatprep.subr.bf16.mxu0 %v11167
        %11362 = vmatpush1.bf16.msra.mxu0 %v11166
        %11363 = vmatprep.subr.bf16.mxu0 0
        %11364 = vmatpush2.bf16.msra.mxu0 0
        %11365 = vmatprep.subr.bf16.mxu0 0
        %11366 = vmatpush2.bf16.msra.mxu0 0
        %11367 = vmatprep.subr.bf16.mxu0 0
        %11368 = vmatpush2.bf16.msra.mxu0 0
        %11369 = vmatprep.subr.bf16.mxu0 0
        %11370 = vmatpush2.bf16.msra.mxu0 0
        %11371 = vmatprep.subr.bf16.mxu0 0
        %11372 = vmatpush2.bf16.msra.mxu0 0
        %11373 = vmatprep.subr.bf16.mxu0 0
        %11374 = vmatpush2.bf16.msra.mxu0 0
        %11375 = vmatprep.subr.bf16.mxu0 0
        %11376 = vmatpush2.bf16.msra.mxu0 0
        %11377 = vmatprep.subr.bf16.mxu0 0
        %11378 = vmatpush2.bf16.msra.mxu0 0
        %11379 = vmatprep.mubr.bf16.mxu0 0
        %11380 = vmatmul.mubr.bf16.gmra.mxu0 %v11259
        %v11381 = vpop.f32.mrf.mxu0
        %v11382 = vadd.f32 %v10988, %v11381
        %v11383 = vpop.f32.mrf.mxu0
        %v11384 = vadd.f32 %v10988, %v11383
        %v11385 = vpop.f32.mrf.mxu0
        %v11386 = vadd.f32 %v10993, %v11385
        %v11387 = vpop.f32.mrf.mxu0
        %v11388 = vadd.f32 %v10993, %v11387
        %11389 = vdwg.mxu0
        %11390 = vmatprep.subr.bf16.mxu0 0
        %11391 = vmatpush1.bf16.msra.mxu0 0
        %11392 = vmatprep.subr.bf16.mxu0 0
        %11393 = vmatpush1.bf16.msra.mxu0 0
        %11394 = vmatprep.subr.bf16.mxu0 %v11209
        %11395 = vmatpush1.bf16.msra.mxu0 %v11208
        %11396 = vmatprep.subr.bf16.mxu0 %v11201
        %11397 = vmatpush1.bf16.msra.mxu0 %v11200
        %11398 = vmatprep.subr.bf16.mxu0 %v11193
        %11399 = vmatpush1.bf16.msra.mxu0 %v11192
        %11400 = vmatprep.subr.bf16.mxu0 %v11185
        %11401 = vmatpush1.bf16.msra.mxu0 %v11184
        %11402 = vmatprep.subr.bf16.mxu0 %v11177
        %11403 = vmatpush1.bf16.msra.mxu0 %v11176
        %11404 = vmatprep.subr.bf16.mxu0 %v11169
        %11405 = vmatpush1.bf16.msra.mxu0 %v11168
        %11406 = vmatprep.subr.bf16.mxu0 0
        %11407 = vmatpush2.bf16.msra.mxu0 0
        %11408 = vmatprep.subr.bf16.mxu0 0
        %11409 = vmatpush2.bf16.msra.mxu0 0
        %11410 = vmatprep.subr.bf16.mxu0 0
        %11411 = vmatpush2.bf16.msra.mxu0 0
        %11412 = vmatprep.subr.bf16.mxu0 0
        %11413 = vmatpush2.bf16.msra.mxu0 0
        %11414 = vmatprep.subr.bf16.mxu0 0
        %11415 = vmatpush2.bf16.msra.mxu0 0
        %11416 = vmatprep.subr.bf16.mxu0 0
        %11417 = vmatpush2.bf16.msra.mxu0 0
        %11418 = vmatprep.subr.bf16.mxu0 0
        %11419 = vmatpush2.bf16.msra.mxu0 0
        %11420 = vmatprep.subr.bf16.mxu0 0
        %11421 = vmatpush2.bf16.msra.mxu0 0
        %11422 = vmatprep.mubr.bf16.mxu0 0
        %11423 = vmatmul.mubr.bf16.gmra.mxu0 %v11259
        %v11424 = vpop.f32.mrf.mxu0
        %v11425 = vadd.f32 %v10988, %v11424
        %v11426 = vpop.f32.mrf.mxu0
        %v11427 = vadd.f32 %v10988, %v11426
        %v11428 = vpop.f32.mrf.mxu0
        %v11429 = vadd.f32 %v10993, %v11428
        %v11430 = vpop.f32.mrf.mxu0
        %v11431 = vadd.f32 %v10993, %v11430
        %11432 = vdwg.mxu0
        %11433 = vrot.lane.b32.xlu0 %v11296, 64
        %v11434 = vpop.permute.xlu0 %11433
        %11435 = vrot.lane.b32.xlu0 %v11300, 64
        %v11436 = vpop.permute.xlu0 %11435
        %11437 = vrot.lane.b32.xlu0 %v11298, 64
        %v11438 = vpop.permute.xlu0 %11437
        %11439 = vrot.lane.b32.xlu0 %v11302, 64
        %v11440 = vpop.permute.xlu0 %11439
        %11441 = vrot.lane.b32.xlu0 %v11339, 64
        %v11442 = vpop.permute.xlu0 %11441
        %11443 = vrot.lane.b32.xlu0 %v11343, 64
        %v11444 = vpop.permute.xlu0 %11443
        %11445 = vrot.lane.b32.xlu0 %v11341, 64
        %v11446 = vpop.permute.xlu0 %11445
        %11447 = vrot.lane.b32.xlu0 %v11345, 64
        %v11448 = vpop.permute.xlu0 %11447
        %11449 = vrot.lane.b32.xlu0 %v11382, 64
        %v11450 = vpop.permute.xlu0 %11449
        %11451 = vrot.lane.b32.xlu0 %v11386, 64
        %v11452 = vpop.permute.xlu0 %11451
        %11453 = vrot.lane.b32.xlu0 %v11384, 64
        %v11454 = vpop.permute.xlu0 %11453
        %11455 = vrot.lane.b32.xlu0 %v11388, 64
        %v11456 = vpop.permute.xlu0 %11455
        %11457 = vrot.lane.b32.xlu0 %v11425, 64
        %v11458 = vpop.permute.xlu0 %11457
        %11459 = vrot.lane.b32.xlu0 %v11429, 64
        %v11460 = vpop.permute.xlu0 %11459
        %11461 = vrot.lane.b32.xlu0 %v11427, 64
        %v11462 = vpop.permute.xlu0 %11461
        %11463 = vrot.lane.b32.xlu0 %v11431, 64
        %v11464 = vpop.permute.xlu0 %11463
        %v11465 = vsel %vm6022, %v11458, %v11462
        %v11466 = vsel %vm6022, %v11460, %v11464
        %v11467 = vsel %vm6022, %v11450, %v11454
        %v11468 = vsel %vm6022, %v11452, %v11456
        %v11469 = vsel %vm6022, %v11442, %v11446
        %v11470 = vsel %vm6022, %v11444, %v11448
        %v11471 = vsel %vm6022, %v11434, %v11438
        %v11472 = vsel %vm6022, %v11436, %v11440
        %v11473 = vmax.f32 %v11296, %v11471
        %v11474 = vmax.f32 %v11339, %v11469
        %v11475 = vmax.f32 %v11382, %v11467
        %v11476 = vmax.f32 %v11425, %v11465
        %v11477 = vmax.f32 %v11300, %v11472
        %v11478 = vmax.f32 %v11343, %v11470
        %v11479 = vmax.f32 %v11386, %v11468
        %v11480 = vmax.f32 %v11429, %v11466
        %v11481 = vmax.f32 %v11473, %v11298
        %v11482 = vmax.f32 %v11474, %v11341
        %v11483 = vmax.f32 %v11475, %v11384
        %v11484 = vmax.f32 %v11476, %v11427
        %v11485 = vmax.f32 %v11477, %v11302
        %v11486 = vmax.f32 %v11478, %v11345
        %v11487 = vmax.f32 %v11479, %v11388
        %v11488 = vmax.f32 %v11480, %v11431
        %v11489 = vsel %vm6022, %v11454, %v11458
        %v11490 = vsel %vm6022, %v11456, %v11460
        %v11491 = vsel %vm6022, %v11446, %v11450
        %v11492 = vsel %vm6022, %v11448, %v11452
        %v11493 = vsel %vm6022, %v11438, %v11442
        %v11494 = vsel %vm6022, %v11440, %v11444
        %v11495 = vsel %vm6022, %v11462, %v11434
        %v11496 = vsel %vm6022, %v11464, %v11436
        %v11497 = vmax.f32 %v11481, %v11493
        %v11498 = vmax.f32 %v11482, %v11491
        %v11499 = vmax.f32 %v11483, %v11489
        %v11500 = vmax.f32 %v11484, %v11495
        %v11501 = vmax.f32 %v11485, %v11494
        %v11502 = vmax.f32 %v11486, %v11492
        %v11503 = vmax.f32 %v11487, %v11490
        %v11504 = vmax.f32 %v11488, %v11496
        %s11505 = scalar_lea.vmem %s624, 16
        %11506 = vst.msk [vmem:[%s11505] sm:$0xff] %vm6063, %v11497
        %11507 = vst.msk [vmem:[%s11505 + $0x8] sm:$0xff] %vm6063, %v11501
        %11510 = vrot.lane.b32.xlu0 %v11498, 1
        %v11511 = vpop.permute.xlu0 %11510
        %11512 = vrot.lane.b32.xlu0 %v11502, 1
        %v11513 = vpop.permute.xlu0 %11512
        %11516 = vst.msk [vmem:[%s11505] sm:$0xff] %vm6074, %v11511
        %11517 = vst.msk [vmem:[%s11505 + $0x8] sm:$0xff] %vm6074, %v11513
        %11520 = vrot.lane.b32.xlu0 %v11499, 2
        %v11521 = vpop.permute.xlu0 %11520
        %11522 = vrot.lane.b32.xlu0 %v11503, 2
        %v11523 = vpop.permute.xlu0 %11522
        %11526 = vst.msk [vmem:[%s11505] sm:$0xff] %vm6085, %v11521
        %11527 = vst.msk [vmem:[%s11505 + $0x8] sm:$0xff] %vm6085, %v11523
        %11530 = vrot.lane.b32.xlu0 %v11500, 3
        %v11531 = vpop.permute.xlu0 %11530
        %11532 = vrot.lane.b32.xlu0 %v11504, 3
        %v11533 = vpop.permute.xlu0 %11532
        %11536 = vst.msk [vmem:[%s11505] sm:$0xff] %vm6096, %v11531
        %11537 = vst.msk [vmem:[%s11505 + $0x8] sm:$0xff] %vm6096, %v11533
        %s11538 = smul.u32 2, %s33
        %p11539 = scmp.lt.s32.totalorder %s11538, 3
        %s11540 = scalar_select %p11539, %s11538, 3
        %s11541 = smul.addr %s11540, 2
        %s11542 = smul.addr %s11541, 8
        %s11543 = scalar_lea.vmem %s13, %s11542
        // Predicated region
        $region121: #{_lambda_.1} parent=71 // pred_check
          %p11544 = pneg %p329
        $region122: #{_lambda_.1} parent=71 // pred_check_branch
          %11546 = sbr.rel (%p11544) target = $region124
        $region123: #{_lambda_.1} parent=71 // pred_region
          %s11547 = smul.u32 2, %s33
        $region124: #{_lambda_.1} parent=71 // pred_fallthru
          _
      $region72: #{_lambda_.1} parent=5 // pred_fallthru
        _
      %p11548 = scmp.le.s32.totalorder 2, %s28
      // Predicated region
      $region125: #{_lambda_.1} parent=5 // pred_check
        %p11549 = pneg %p11548
      $region126: #{_lambda_.1} parent=5 // pred_check_branch
        %11551 = sbr.rel (%p11549) target = $region128
      $region127: #{_lambda_.1} parent=5 // pred_region
        %s11552 = ssub.s32 %s28, 2
        // Predicated region
        $region129: #{_lambda_.1} parent=127 // pred_check
          %p11553 = pneg %p335
        $region130: #{_lambda_.1} parent=127 // pred_check_branch
          %11555 = sbr.rel (%p11553) target = $region132
        $region131: #{_lambda_.1} parent=127 // pred_region
          %s11556 = smul.u32 2, %s34
          %p11557 = scmp.lt.s32.totalorder %s11556, 3
          %s11558 = scalar_select %p11557, %s11556, 3
          %s11559 = smul.addr %s11558, 2
          %s11560 = smul.addr %s11559, 8
          %s11561 = scalar_lea.vmem %s13, %s11560
        $region132: #{_lambda_.1} parent=127 // pred_fallthru
          _
      $region128: #{_lambda_.1} parent=5 // pred_fallthru
        _
    $region6: #{_lambda_.1} parent=1 // loop_footer
      %s32 = sadd.s32 1, %s28
    $region7: #{_lambda_.1} parent=1 // loop_footer_branch
      %27 = sbr.rel target = $region3
    $region8: #{_lambda_.1} parent=1 // loop_exit
      _
    %11562 = vsyncpa [#allocation4], 1
    %s11563 = scalar_lea.sflag [#allocation4], 1
    %11564 = vsyncpa %s11563, 1
    %11565 = vsyncpa [#allocation6], 1
    %11566 = vsyncpa [#allocation9], 1
    %11567 = vsyncpa [#allocation12], 1
    %11568 = vsyncpa [#allocation15], 1
    %11569 = vsyncpa [#allocation18], 1
    %11570 = vsyncpa [#allocation21], 1

</llo_original>
